<compile_context>
chip_gen: v7x
topology: tpu7x:2x2x1
jax: 0.10.0
libtpu: 0.0.40
codegen_flags: <defaults>
</compile_context>

<pallas_src>
import math

import jax
import jax.numpy as jnp
from jax.experimental import pallas as pl
from jax.experimental.pallas import tpu as pltpu


def _round_up8(v):
    return max(8, ((v + 7) // 8) * 8)


def _conv_block(pad_ref, im_ref, w_ref, gamma_ref, beta_ref, dst_ref, dst_off,
                N, H, W, Cin, Cout):
    """One ConvBlock operating entirely on VMEM-resident data.

    pad_ref:   (N, H+2, W+2, Cin)  zero-padded input activation (border already 0)
    im_ref:    (N*H, Wr, 9*Cin)    im2col scratch, Wr = round_up(W, 8)
    w_ref:     (9*Cin, Cout) bf16  conv weights, rows ordered (kh, kw, cin)
    gamma_ref: (1, Cout)           BN gamma
    beta_ref:  (1, Cout)           BN beta
    dst_ref:   next layer's padded buffer (or the kernel output ref)
    dst_off:   1 when writing into a padded interior, 0 for the output ref
    """
    Ho, Wo = H // 2, W // 2
    NH = N * H
    Wr = im_ref.shape[1]
    K = 9 * Cin

    # Rows [W:Wr) of the im2col matrix are sublane padding; keep them exactly zero
    # so they contribute nothing to the matmul output / BatchNorm sums.
    if Wr > W:
        im_ref[:, W:, :] = jnp.zeros((NH, Wr - W, K), jnp.float32)

    # im2col: 9 shifted tap windows -> lane blocks of the scratch (covers all K lanes).
    for t in range(9):
        kh, kw = t // 3, t % 3
        patch = pad_ref[:, kh:kh + H, kw:kw + W, :].reshape(NH, W, Cin)
        im_ref[:, :W, t * Cin:(t + 1) * Cin] = patch

    # One MXU matmul for the whole layer (bf16 operands, f32 accumulation).
    lhs = im_ref[...].reshape(NH * Wr, K).astype(jnp.bfloat16)    # free reshape (Wr%8==0)
    z = jnp.dot(lhs, w_ref[...], preferred_element_type=jnp.float32)  # (NH*Wr, Cout)

    # BatchNorm2d, training mode (biased batch stats over N,H,W), folded into one
    # per-channel scale/shift.  Padded rows of z are exactly 0, so summing over all
    # rows and dividing by the true count gives exact stats.  The conv bias cancels
    # exactly under train-mode BN ((z+b) - mean(z+b) == z - mean(z)), so it is not
    # applied (it is 0 under maml_init_ anyway).
    cnt = float(N * H * W)
    mean = jnp.sum(z, axis=0, keepdims=True) / cnt                # (1, Cout)
    var = jnp.sum(z * z, axis=0, keepdims=True) / cnt - mean * mean
    scale = gamma_ref[...] * jax.lax.rsqrt(var + 1e-5)
    shift = beta_ref[...] - mean * scale
    y = jnp.maximum(z * scale + shift, 0.0)                       # BN + ReLU, one pass

    # 2x2 / stride-2 max pool.
    y = y.reshape(NH, Wr, Cout)                # leading-dim split (Wr % 8 == 0) -> free
    y = y.reshape(N * Ho, 2, Wr, Cout)         # leading-dims-only split -> free
    yh = jnp.maximum(y[:, 0], y[:, 1])         # pool along H -> (N*Ho, Wr, Cout), VALU
    for wo in range(Wo):                       # pool along W, write into dst (VMEM)
        col = jnp.maximum(yh[:, 2 * wo:2 * wo + 1, :],
                          yh[:, 2 * wo + 1:2 * wo + 2, :])        # (N*Ho, 1, Cout)
        dst_ref[:, dst_off:dst_off + Ho, dst_off + wo:dst_off + wo + 1, :] = (
            col.reshape(N, Ho, 1, Cout))


def _make_fused_kernel(layer_dims):
    """layer_dims: list of (N, H, W, Cin, Cout), one per ConvBlock."""
    n_layers = len(layer_dims)

    def kernel(*refs):
        x_ref = refs[0]
        o_ref = refs[1 + 3 * n_layers]
        scratch = refs[2 + 3 * n_layers:]

        # Zero every padded buffer once up-front: the 1-pixel border stays zero
        # (= conv padding) and each interior is filled by the producing layer.
        for li in range(n_layers):
            pad_ref = scratch[2 * li]
            pad_ref[...] = jnp.zeros(pad_ref.shape, jnp.float32)

        N0, H0, W0, _, _ = layer_dims[0]
        scratch[0][:, 1:1 + H0, 1:1 + W0, :] = x_ref[...]

        for li, (N, H, W, Cin, Cout) in enumerate(layer_dims):
            w_ref, gamma_ref, beta_ref = refs[1 + 3 * li:4 + 3 * li]
            pad_ref, im_ref = scratch[2 * li], scratch[2 * li + 1]
            last = li == n_layers - 1
            dst_ref = o_ref if last else scratch[2 * (li + 1)]
            _conv_block(pad_ref, im_ref, w_ref, gamma_ref, beta_ref,
                        dst_ref, 0 if last else 1, N, H, W, Cin, Cout)

    return kernel


def quicdraw_cnn_forward(x_nchw, params):
    """x_nchw: (N, C, H, W) float32; params: list of (w_hwio, bias, gamma, beta)."""
    n_layers = len(params)
    x = jnp.transpose(x_nchw, (0, 2, 3, 1)).astype(jnp.float32)   # NCHW -> NHWC once
    N, H, W, C0 = x.shape
    assert H % (2 ** n_layers) == 0 and W % (2 ** n_layers) == 0

    layer_dims, scratch = [], []
    h, w, cin = H, W, C0
    for (wgt, _, _, _) in params:
        cout = wgt.shape[-1]
        layer_dims.append((N, h, w, cin, cout))
        scratch.append(pltpu.VMEM((N, h + 2, w + 2, cin), jnp.float32))          # padded input
        scratch.append(pltpu.VMEM((N * h, _round_up8(w), 9 * cin), jnp.float32))  # im2col
        h, w, cin = h // 2, w // 2, cout

    inputs = [x]
    for (wgt, _bias, gamma, beta) in params:
        cin_l, cout_l = wgt.shape[2], wgt.shape[3]
        # conv bias is exactly cancelled by train-mode BatchNorm mean subtraction
        # (and is 0 under maml_init_), so it is not passed into the kernel.
        inputs += [wgt.reshape(9 * cin_l, cout_l).astype(jnp.bfloat16),  # (kh,kw,cin) rows
                   gamma.reshape(1, cout_l).astype(jnp.float32),
                   beta.reshape(1, cout_l).astype(jnp.float32)]

    Hf, Wf, Cf = h, w, cin
    vmem = pl.BlockSpec(memory_space=pltpu.MemorySpace.VMEM)
    out = pl.pallas_call(
        _make_fused_kernel(layer_dims),
        out_shape=jax.ShapeDtypeStruct((N, Hf, Wf, Cf), jnp.float32),
        in_specs=[vmem] * len(inputs),
        out_specs=vmem,
        scratch_shapes=scratch,
    )(*inputs)

    if Hf == 1 and Wf == 1:
        return out.reshape(N, Cf, 1, 1)     # NHWC -> NCHW is a free reshape for 1x1 spatial
    return jnp.transpose(out, (0, 3, 1, 2))


def init_params(key, channels, hidden, layers=4):
    """Deterministic init matching the module's __init__:
       conv: xavier_uniform (gain=1), bias=0 (maml_init_);
       BN:   weight ~ U(0,1), bias = 0."""
    # TODO(synk): BatchNorm running_mean/running_var buffer updates (training-time
    # side effect) are not modeled; they do not affect the forward output in train mode.
    params = []
    cin = channels
    for _ in range(layers):
        key, kw, kg = jax.random.split(key, 3)
        fan_in, fan_out = cin * 9, hidden * 9
        bound = math.sqrt(6.0 / (fan_in + fan_out))
        w = jax.random.uniform(kw, (3, 3, cin, hidden), jnp.float32, -bound, bound)
        b = jnp.zeros((hidden,), jnp.float32)
        gamma = jax.random.uniform(kg, (hidden,), jnp.float32)
        beta = jnp.zeros((hidden,), jnp.float32)
        params.append((w, b, gamma, beta))
        cin = hidden
    return params


if __name__ == "__main__":
    key = jax.random.PRNGKey(0)
    kx, kp = jax.random.split(key)

    N, C, S, HID = 2, 4, 16, 32               # batch=2, channels=4, 16x16, hidden=32
    x = jax.random.normal(kx, (N, C, S, S), jnp.float32)   # NCHW, as in PyTorch
    params = init_params(kp, C, HID, layers=4)

    fwd = jax.jit(quicdraw_cnn_forward)
    out = jax.block_until_ready(fwd(x, params))

    # 16 -> 8 -> 4 -> 2 -> 1 spatial after 4 pooled ConvBlocks
    assert out.shape == (N, HID, 1, 1), out.shape
    assert bool(jnp.all(jnp.isfinite(out)))
    print("KERNEL_OK")
</pallas_src>

<mosaic_0001>
module attributes {stable_mosaic.version = 11 : i64} {
  func.func @kernel(%arg0: memref<2x16x16x4xf32, #tpu.memory_space<vmem>>, %arg1: memref<36x32xbf16, #tpu.memory_space<vmem>>, %arg2: memref<1x32xf32, #tpu.memory_space<vmem>>, %arg3: memref<1x32xf32, #tpu.memory_space<vmem>>, %arg4: memref<288x32xbf16, #tpu.memory_space<vmem>>, %arg5: memref<1x32xf32, #tpu.memory_space<vmem>>, %arg6: memref<1x32xf32, #tpu.memory_space<vmem>>, %arg7: memref<288x32xbf16, #tpu.memory_space<vmem>>, %arg8: memref<1x32xf32, #tpu.memory_space<vmem>>, %arg9: memref<1x32xf32, #tpu.memory_space<vmem>>, %arg10: memref<288x32xbf16, #tpu.memory_space<vmem>>, %arg11: memref<1x32xf32, #tpu.memory_space<vmem>>, %arg12: memref<1x32xf32, #tpu.memory_space<vmem>>, %arg13: memref<2x1x1x32xf32, #tpu.memory_space<vmem>>, %arg14: memref<2x18x18x4xf32, #tpu.memory_space<vmem>>, %arg15: memref<32x16x36xf32, #tpu.memory_space<vmem>>, %arg16: memref<2x10x10x32xf32, #tpu.memory_space<vmem>>, %arg17: memref<16x8x288xf32, #tpu.memory_space<vmem>>, %arg18: memref<2x6x6x32xf32, #tpu.memory_space<vmem>>, %arg19: memref<8x8x288xf32, #tpu.memory_space<vmem>>, %arg20: memref<2x4x4x32xf32, #tpu.memory_space<vmem>>, %arg21: memref<4x8x288xf32, #tpu.memory_space<vmem>>) attributes {dimension_semantics = [], scalar_prefetch = 0 : i64, scratch_operands = 8 : i64, tpu.core_type = #tpu.core_type<tc>} {
    %cst = arith.constant 0.000000e+00 : f32
    %0 = vector.broadcast %cst : f32 to vector<2x18x18x4xf32>
    %c0 = arith.constant 0 : index
    %c0_0 = arith.constant 0 : index
    %c0_1 = arith.constant 0 : index
    %c0_2 = arith.constant 0 : index
    %1 = vector.load %arg14[%c0, %c0_0, %c0_1, %c0_2] : memref<2x18x18x4xf32, #tpu.memory_space<vmem>>, vector<2x18x18x4xf32>
    tpu.vector_store %arg14[%c0, %c0_0, %c0_1, %c0_2], %0 {strides = array<i32>} : memref<2x18x18x4xf32, #tpu.memory_space<vmem>>, vector<2x18x18x4xf32>,
    %cst_3 = arith.constant 0.000000e+00 : f32
    %2 = vector.broadcast %cst_3 : f32 to vector<2x10x10x32xf32>
    %c0_4 = arith.constant 0 : index
    %c0_5 = arith.constant 0 : index
    %c0_6 = arith.constant 0 : index
    %c0_7 = arith.constant 0 : index
    %3 = vector.load %arg16[%c0_4, %c0_5, %c0_6, %c0_7] : memref<2x10x10x32xf32, #tpu.memory_space<vmem>>, vector<2x10x10x32xf32>
    tpu.vector_store %arg16[%c0_4, %c0_5, %c0_6, %c0_7], %2 {strides = array<i32>} : memref<2x10x10x32xf32, #tpu.memory_space<vmem>>, vector<2x10x10x32xf32>,
    %cst_8 = arith.constant 0.000000e+00 : f32
    %4 = vector.broadcast %cst_8 : f32 to vector<2x6x6x32xf32>
    %c0_9 = arith.constant 0 : index
    %c0_10 = arith.constant 0 : index
    %c0_11 = arith.constant 0 : index
    %c0_12 = arith.constant 0 : index
    %5 = vector.load %arg18[%c0_9, %c0_10, %c0_11, %c0_12] : memref<2x6x6x32xf32, #tpu.memory_space<vmem>>, vector<2x6x6x32xf32>
    tpu.vector_store %arg18[%c0_9, %c0_10, %c0_11, %c0_12], %4 {strides = array<i32>} : memref<2x6x6x32xf32, #tpu.memory_space<vmem>>, vector<2x6x6x32xf32>,
    %cst_13 = arith.constant 0.000000e+00 : f32
    %6 = vector.broadcast %cst_13 : f32 to vector<2x4x4x32xf32>
    %c0_14 = arith.constant 0 : index
    %c0_15 = arith.constant 0 : index
    %c0_16 = arith.constant 0 : index
    %c0_17 = arith.constant 0 : index
    %7 = vector.load %arg20[%c0_14, %c0_15, %c0_16, %c0_17] : memref<2x4x4x32xf32, #tpu.memory_space<vmem>>, vector<2x4x4x32xf32>
    tpu.vector_store %arg20[%c0_14, %c0_15, %c0_16, %c0_17], %6 {strides = array<i32>} : memref<2x4x4x32xf32, #tpu.memory_space<vmem>>, vector<2x4x4x32xf32>,
    %c0_18 = arith.constant 0 : index
    %c0_19 = arith.constant 0 : index
    %c0_20 = arith.constant 0 : index
    %c0_21 = arith.constant 0 : index
    %8 = vector.load %arg0[%c0_18, %c0_19, %c0_20, %c0_21] : memref<2x16x16x4xf32, #tpu.memory_space<vmem>>, vector<2x16x16x4xf32>
    %c0_22 = arith.constant 0 : index
    %c1 = arith.constant 1 : index
    %c1_23 = arith.constant 1 : index
    %c0_24 = arith.constant 0 : index
    %9 = vector.load %arg14[%c0_22, %c1, %c1_23, %c0_24] : memref<2x18x18x4xf32, #tpu.memory_space<vmem>>, vector<2x16x16x4xf32>
    tpu.vector_store %arg14[%c0_22, %c1, %c1_23, %c0_24], %8 {strides = array<i32>} : memref<2x18x18x4xf32, #tpu.memory_space<vmem>>, vector<2x16x16x4xf32>,
    %c0_25 = arith.constant 0 : index
    %c0_26 = arith.constant 0 : index
    %c0_27 = arith.constant 0 : index
    %c0_28 = arith.constant 0 : index
    %10 = vector.load %arg14[%c0_25, %c0_26, %c0_27, %c0_28] : memref<2x18x18x4xf32, #tpu.memory_space<vmem>>, vector<2x16x16x4xf32>
    %11 = vector.shape_cast %10 : vector<2x16x16x4xf32> to vector<32x16x4xf32>
    %c0_29 = arith.constant 0 : index
    %c0_30 = arith.constant 0 : index
    %c0_31 = arith.constant 0 : index
    %12 = vector.load %arg15[%c0_29, %c0_30, %c0_31] : memref<32x16x36xf32, #tpu.memory_space<vmem>>, vector<32x16x4xf32>
    tpu.vector_store %arg15[%c0_29, %c0_30, %c0_31], %11 {strides = array<i32>} : memref<32x16x36xf32, #tpu.memory_space<vmem>>, vector<32x16x4xf32>,
    %c0_32 = arith.constant 0 : index
    %c0_33 = arith.constant 0 : index
    %c1_34 = arith.constant 1 : index
    %c0_35 = arith.constant 0 : index
    %13 = vector.load %arg14[%c0_32, %c0_33, %c1_34, %c0_35] : memref<2x18x18x4xf32, #tpu.memory_space<vmem>>, vector<2x16x16x4xf32>
    %14 = vector.shape_cast %13 : vector<2x16x16x4xf32> to vector<32x16x4xf32>
    %c0_36 = arith.constant 0 : index
    %c0_37 = arith.constant 0 : index
    %c4 = arith.constant 4 : index
    %15 = vector.load %arg15[%c0_36, %c0_37, %c4] : memref<32x16x36xf32, #tpu.memory_space<vmem>>, vector<32x16x4xf32>
    tpu.vector_store %arg15[%c0_36, %c0_37, %c4], %14 {strides = array<i32>} : memref<32x16x36xf32, #tpu.memory_space<vmem>>, vector<32x16x4xf32>,
    %c0_38 = arith.constant 0 : index
    %c0_39 = arith.constant 0 : index
    %c2 = arith.constant 2 : index
    %c0_40 = arith.constant 0 : index
    %16 = vector.load %arg14[%c0_38, %c0_39, %c2, %c0_40] : memref<2x18x18x4xf32, #tpu.memory_space<vmem>>, vector<2x16x16x4xf32>
    %17 = vector.shape_cast %16 : vector<2x16x16x4xf32> to vector<32x16x4xf32>
    %c0_41 = arith.constant 0 : index
    %c0_42 = arith.constant 0 : index
    %c8 = arith.constant 8 : index
    %18 = vector.load %arg15[%c0_41, %c0_42, %c8] : memref<32x16x36xf32, #tpu.memory_space<vmem>>, vector<32x16x4xf32>
    tpu.vector_store %arg15[%c0_41, %c0_42, %c8], %17 {strides = array<i32>} : memref<32x16x36xf32, #tpu.memory_space<vmem>>, vector<32x16x4xf32>,
    %c0_43 = arith.constant 0 : index
    %c1_44 = arith.constant 1 : index
    %c0_45 = arith.constant 0 : index
    %c0_46 = arith.constant 0 : index
    %19 = vector.load %arg14[%c0_43, %c1_44, %c0_45, %c0_46] : memref<2x18x18x4xf32, #tpu.memory_space<vmem>>, vector<2x16x16x4xf32>
    %20 = vector.shape_cast %19 : vector<2x16x16x4xf32> to vector<32x16x4xf32>
    %c0_47 = arith.constant 0 : index
    %c0_48 = arith.constant 0 : index
    %c12 = arith.constant 12 : index
    %21 = vector.load %arg15[%c0_47, %c0_48, %c12] : memref<32x16x36xf32, #tpu.memory_space<vmem>>, vector<32x16x4xf32>
    tpu.vector_store %arg15[%c0_47, %c0_48, %c12], %20 {strides = array<i32>} : memref<32x16x36xf32, #tpu.memory_space<vmem>>, vector<32x16x4xf32>,
    %c0_49 = arith.constant 0 : index
    %c1_50 = arith.constant 1 : index
    %c1_51 = arith.constant 1 : index
    %c0_52 = arith.constant 0 : index
    %22 = vector.load %arg14[%c0_49, %c1_50, %c1_51, %c0_52] : memref<2x18x18x4xf32, #tpu.memory_space<vmem>>, vector<2x16x16x4xf32>
    %23 = vector.shape_cast %22 : vector<2x16x16x4xf32> to vector<32x16x4xf32>
    %c0_53 = arith.constant 0 : index
    %c0_54 = arith.constant 0 : index
    %c16 = arith.constant 16 : index
    %24 = vector.load %arg15[%c0_53, %c0_54, %c16] : memref<32x16x36xf32, #tpu.memory_space<vmem>>, vector<32x16x4xf32>
    tpu.vector_store %arg15[%c0_53, %c0_54, %c16], %23 {strides = array<i32>} : memref<32x16x36xf32, #tpu.memory_space<vmem>>, vector<32x16x4xf32>,
    %c0_55 = arith.constant 0 : index
    %c1_56 = arith.constant 1 : index
    %c2_57 = arith.constant 2 : index
    %c0_58 = arith.constant 0 : index
    %25 = vector.load %arg14[%c0_55, %c1_56, %c2_57, %c0_58] : memref<2x18x18x4xf32, #tpu.memory_space<vmem>>, vector<2x16x16x4xf32>
    %26 = vector.shape_cast %25 : vector<2x16x16x4xf32> to vector<32x16x4xf32>
    %c0_59 = arith.constant 0 : index
    %c0_60 = arith.constant 0 : index
    %c20 = arith.constant 20 : index
    %27 = vector.load %arg15[%c0_59, %c0_60, %c20] : memref<32x16x36xf32, #tpu.memory_space<vmem>>, vector<32x16x4xf32>
    tpu.vector_store %arg15[%c0_59, %c0_60, %c20], %26 {strides = array<i32>} : memref<32x16x36xf32, #tpu.memory_space<vmem>>, vector<32x16x4xf32>,
    %c0_61 = arith.constant 0 : index
    %c2_62 = arith.constant 2 : index
    %c0_63 = arith.constant 0 : index
    %c0_64 = arith.constant 0 : index
    %28 = vector.load %arg14[%c0_61, %c2_62, %c0_63, %c0_64] : memref<2x18x18x4xf32, #tpu.memory_space<vmem>>, vector<2x16x16x4xf32>
    %29 = vector.shape_cast %28 : vector<2x16x16x4xf32> to vector<32x16x4xf32>
    %c0_65 = arith.constant 0 : index
    %c0_66 = arith.constant 0 : index
    %c24 = arith.constant 24 : index
    %30 = vector.load %arg15[%c0_65, %c0_66, %c24] : memref<32x16x36xf32, #tpu.memory_space<vmem>>, vector<32x16x4xf32>
    tpu.vector_store %arg15[%c0_65, %c0_66, %c24], %29 {strides = array<i32>} : memref<32x16x36xf32, #tpu.memory_space<vmem>>, vector<32x16x4xf32>,
    %c0_67 = arith.constant 0 : index
    %c2_68 = arith.constant 2 : index
    %c1_69 = arith.constant 1 : index
    %c0_70 = arith.constant 0 : index
    %31 = vector.load %arg14[%c0_67, %c2_68, %c1_69, %c0_70] : memref<2x18x18x4xf32, #tpu.memory_space<vmem>>, vector<2x16x16x4xf32>
    %32 = vector.shape_cast %31 : vector<2x16x16x4xf32> to vector<32x16x4xf32>
    %c0_71 = arith.constant 0 : index
    %c0_72 = arith.constant 0 : index
    %c28 = arith.constant 28 : index
    %33 = vector.load %arg15[%c0_71, %c0_72, %c28] : memref<32x16x36xf32, #tpu.memory_space<vmem>>, vector<32x16x4xf32>
    tpu.vector_store %arg15[%c0_71, %c0_72, %c28], %32 {strides = array<i32>} : memref<32x16x36xf32, #tpu.memory_space<vmem>>, vector<32x16x4xf32>,
    %c0_73 = arith.constant 0 : index
    %c2_74 = arith.constant 2 : index
    %c2_75 = arith.constant 2 : index
    %c0_76 = arith.constant 0 : index
    %34 = vector.load %arg14[%c0_73, %c2_74, %c2_75, %c0_76] : memref<2x18x18x4xf32, #tpu.memory_space<vmem>>, vector<2x16x16x4xf32>
    %35 = vector.shape_cast %34 : vector<2x16x16x4xf32> to vector<32x16x4xf32>
    %c0_77 = arith.constant 0 : index
    %c0_78 = arith.constant 0 : index
    %c32 = arith.constant 32 : index
    %36 = vector.load %arg15[%c0_77, %c0_78, %c32] : memref<32x16x36xf32, #tpu.memory_space<vmem>>, vector<32x16x4xf32>
    tpu.vector_store %arg15[%c0_77, %c0_78, %c32], %35 {strides = array<i32>} : memref<32x16x36xf32, #tpu.memory_space<vmem>>, vector<32x16x4xf32>,
    %c0_79 = arith.constant 0 : index
    %c0_80 = arith.constant 0 : index
    %c0_81 = arith.constant 0 : index
    %37 = vector.load %arg15[%c0_79, %c0_80, %c0_81] : memref<32x16x36xf32, #tpu.memory_space<vmem>>, vector<32x16x36xf32>
    %38 = vector.shape_cast %37 : vector<32x16x36xf32> to vector<512x36xf32>
    %39 = arith.truncf %38 : vector<512x36xf32> to vector<512x36xbf16>
    %c0_82 = arith.constant 0 : index
    %c0_83 = arith.constant 0 : index
    %40 = vector.load %arg1[%c0_82, %c0_83] : memref<36x32xbf16, #tpu.memory_space<vmem>>, vector<36x32xbf16>
    %cst_84 = arith.constant dense<0.000000e+00> : vector<512x32xf32>
    %41 = tpu.matmul %39, %40, %cst_84 {dimension_numbers = #tpu.dot_dimension_numbers<[1], [0], [0], [1], [0, 0, 1, 1], [], []>} : vector<512x36xbf16>, vector<36x32xbf16>, vector<512x32xf32> -> vector<512x32xf32>
    %cst_85 = arith.constant dense<0.000000e+00> : vector<32xf32>
    %42 = vector.multi_reduction <add>, %41, %cst_85 [0] : vector<512x32xf32> to vector<32xf32>
    %43 = vector.shape_cast %42 : vector<32xf32> to vector<1x32xf32>
    %cst_86 = arith.constant 5.120000e+02 : f32
    %44 = vector.broadcast %cst_86 : f32 to vector<1x32xf32>
    %45 = arith.divf %43, %44 : vector<1x32xf32>
    %46 = arith.mulf %41, %41 : vector<512x32xf32>
    %cst_87 = arith.constant dense<0.000000e+00> : vector<32xf32>
    %47 = vector.multi_reduction <add>, %46, %cst_87 [0] : vector<512x32xf32> to vector<32xf32>
    %48 = vector.shape_cast %47 : vector<32xf32> to vector<1x32xf32>
    %cst_88 = arith.constant 5.120000e+02 : f32
    %49 = vector.broadcast %cst_88 : f32 to vector<1x32xf32>
    %50 = arith.divf %48, %49 : vector<1x32xf32>
    %51 = arith.mulf %45, %45 : vector<1x32xf32>
    %52 = arith.subf %50, %51 : vector<1x32xf32>
    %c0_89 = arith.constant 0 : index
    %c0_90 = arith.constant 0 : index
    %53 = vector.load %arg2[%c0_89, %c0_90] : memref<1x32xf32, #tpu.memory_space<vmem>>, vector<1x32xf32>
    %cst_91 = arith.constant 9.99999974E-6 : f32
    %54 = vector.broadcast %cst_91 : f32 to vector<1x32xf32>
    %55 = arith.addf %52, %54 : vector<1x32xf32>
    %56 = math.rsqrt %55 : vector<1x32xf32>
    %57 = arith.mulf %53, %56 : vector<1x32xf32>
    %c0_92 = arith.constant 0 : index
    %c0_93 = arith.constant 0 : index
    %58 = vector.load %arg3[%c0_92, %c0_93] : memref<1x32xf32, #tpu.memory_space<vmem>>, vector<1x32xf32>
    %59 = arith.mulf %45, %57 : vector<1x32xf32>
    %60 = arith.subf %58, %59 : vector<1x32xf32>
    %61 = vector.broadcast %57 : vector<1x32xf32> to vector<512x32xf32>
    %62 = arith.mulf %41, %61 : vector<512x32xf32>
    %63 = vector.broadcast %60 : vector<1x32xf32> to vector<512x32xf32>
    %64 = arith.addf %62, %63 : vector<512x32xf32>
    %cst_94 = arith.constant 0.000000e+00 : f32
    %65 = vector.broadcast %cst_94 : f32 to vector<512x32xf32>
    %66 = arith.maximumf %64, %65 : vector<512x32xf32>
    %67 = vector.shape_cast %66 : vector<512x32xf32> to vector<32x16x32xf32>
    %68 = vector.shape_cast %67 : vector<32x16x32xf32> to vector<16x2x16x32xf32>
    %69 = vector.extract_strided_slice %68 {offsets = [0, 0, 0, 0], sizes = [16, 1, 16, 32], strides = [1, 1, 1, 1]} : vector<16x2x16x32xf32> to vector<16x1x16x32xf32>
    %70 = vector.shape_cast %69 : vector<16x1x16x32xf32> to vector<16x16x32xf32>
    %71 = vector.extract_strided_slice %68 {offsets = [0, 1, 0, 0], sizes = [16, 1, 16, 32], strides = [1, 1, 1, 1]} : vector<16x2x16x32xf32> to vector<16x1x16x32xf32>
    %72 = vector.shape_cast %71 : vector<16x1x16x32xf32> to vector<16x16x32xf32>
    %73 = arith.maximumf %70, %72 : vector<16x16x32xf32>
    %74 = vector.extract_strided_slice %73 {offsets = [0, 0, 0], sizes = [16, 1, 32], strides = [1, 1, 1]} : vector<16x16x32xf32> to vector<16x1x32xf32>
    %75 = vector.extract_strided_slice %73 {offsets = [0, 1, 0], sizes = [16, 1, 32], strides = [1, 1, 1]} : vector<16x16x32xf32> to vector<16x1x32xf32>
    %76 = arith.maximumf %74, %75 : vector<16x1x32xf32>
    %77 = vector.shape_cast %76 : vector<16x1x32xf32> to vector<2x8x1x32xf32>
    %c0_95 = arith.constant 0 : index
    %c1_96 = arith.constant 1 : index
    %c1_97 = arith.constant 1 : index
    %c0_98 = arith.constant 0 : index
    %78 = vector.load %arg16[%c0_95, %c1_96, %c1_97, %c0_98] : memref<2x10x10x32xf32, #tpu.memory_space<vmem>>, vector<2x8x1x32xf32>
    tpu.vector_store %arg16[%c0_95, %c1_96, %c1_97, %c0_98], %77 {strides = array<i32>} : memref<2x10x10x32xf32, #tpu.memory_space<vmem>>, vector<2x8x1x32xf32>,
    %79 = vector.extract_strided_slice %73 {offsets = [0, 2, 0], sizes = [16, 1, 32], strides = [1, 1, 1]} : vector<16x16x32xf32> to vector<16x1x32xf32>
    %80 = vector.extract_strided_slice %73 {offsets = [0, 3, 0], sizes = [16, 1, 32], strides = [1, 1, 1]} : vector<16x16x32xf32> to vector<16x1x32xf32>
    %81 = arith.maximumf %79, %80 : vector<16x1x32xf32>
    %82 = vector.shape_cast %81 : vector<16x1x32xf32> to vector<2x8x1x32xf32>
    %c0_99 = arith.constant 0 : index
    %c1_100 = arith.constant 1 : index
    %c2_101 = arith.constant 2 : index
    %c0_102 = arith.constant 0 : index
    %83 = vector.load %arg16[%c0_99, %c1_100, %c2_101, %c0_102] : memref<2x10x10x32xf32, #tpu.memory_space<vmem>>, vector<2x8x1x32xf32>
    tpu.vector_store %arg16[%c0_99, %c1_100, %c2_101, %c0_102], %82 {strides = array<i32>} : memref<2x10x10x32xf32, #tpu.memory_space<vmem>>, vector<2x8x1x32xf32>,
    %84 = vector.extract_strided_slice %73 {offsets = [0, 4, 0], sizes = [16, 1, 32], strides = [1, 1, 1]} : vector<16x16x32xf32> to vector<16x1x32xf32>
    %85 = vector.extract_strided_slice %73 {offsets = [0, 5, 0], sizes = [16, 1, 32], strides = [1, 1, 1]} : vector<16x16x32xf32> to vector<16x1x32xf32>
    %86 = arith.maximumf %84, %85 : vector<16x1x32xf32>
    %87 = vector.shape_cast %86 : vector<16x1x32xf32> to vector<2x8x1x32xf32>
    %c0_103 = arith.constant 0 : index
    %c1_104 = arith.constant 1 : index
    %c3 = arith.constant 3 : index
    %c0_105 = arith.constant 0 : index
    %88 = vector.load %arg16[%c0_103, %c1_104, %c3, %c0_105] : memref<2x10x10x32xf32, #tpu.memory_space<vmem>>, vector<2x8x1x32xf32>
    tpu.vector_store %arg16[%c0_103, %c1_104, %c3, %c0_105], %87 {strides = array<i32>} : memref<2x10x10x32xf32, #tpu.memory_space<vmem>>, vector<2x8x1x32xf32>,
    %89 = vector.extract_strided_slice %73 {offsets = [0, 6, 0], sizes = [16, 1, 32], strides = [1, 1, 1]} : vector<16x16x32xf32> to vector<16x1x32xf32>
    %90 = vector.extract_strided_slice %73 {offsets = [0, 7, 0], sizes = [16, 1, 32], strides = [1, 1, 1]} : vector<16x16x32xf32> to vector<16x1x32xf32>
    %91 = arith.maximumf %89, %90 : vector<16x1x32xf32>
    %92 = vector.shape_cast %91 : vector<16x1x32xf32> to vector<2x8x1x32xf32>
    %c0_106 = arith.constant 0 : index
    %c1_107 = arith.constant 1 : index
    %c4_108 = arith.constant 4 : index
    %c0_109 = arith.constant 0 : index
    %93 = vector.load %arg16[%c0_106, %c1_107, %c4_108, %c0_109] : memref<2x10x10x32xf32, #tpu.memory_space<vmem>>, vector<2x8x1x32xf32>
    tpu.vector_store %arg16[%c0_106, %c1_107, %c4_108, %c0_109], %92 {strides = array<i32>} : memref<2x10x10x32xf32, #tpu.memory_space<vmem>>, vector<2x8x1x32xf32>,
    %94 = vector.extract_strided_slice %73 {offsets = [0, 8, 0], sizes = [16, 1, 32], strides = [1, 1, 1]} : vector<16x16x32xf32> to vector<16x1x32xf32>
    %95 = vector.extract_strided_slice %73 {offsets = [0, 9, 0], sizes = [16, 1, 32], strides = [1, 1, 1]} : vector<16x16x32xf32> to vector<16x1x32xf32>
    %96 = arith.maximumf %94, %95 : vector<16x1x32xf32>
    %97 = vector.shape_cast %96 : vector<16x1x32xf32> to vector<2x8x1x32xf32>
    %c0_110 = arith.constant 0 : index
    %c1_111 = arith.constant 1 : index
    %c5 = arith.constant 5 : index
    %c0_112 = arith.constant 0 : index
    %98 = vector.load %arg16[%c0_110, %c1_111, %c5, %c0_112] : memref<2x10x10x32xf32, #tpu.memory_space<vmem>>, vector<2x8x1x32xf32>
    tpu.vector_store %arg16[%c0_110, %c1_111, %c5, %c0_112], %97 {strides = array<i32>} : memref<2x10x10x32xf32, #tpu.memory_space<vmem>>, vector<2x8x1x32xf32>,
    %99 = vector.extract_strided_slice %73 {offsets = [0, 10, 0], sizes = [16, 1, 32], strides = [1, 1, 1]} : vector<16x16x32xf32> to vector<16x1x32xf32>
    %100 = vector.extract_strided_slice %73 {offsets = [0, 11, 0], sizes = [16, 1, 32], strides = [1, 1, 1]} : vector<16x16x32xf32> to vector<16x1x32xf32>
    %101 = arith.maximumf %99, %100 : vector<16x1x32xf32>
    %102 = vector.shape_cast %101 : vector<16x1x32xf32> to vector<2x8x1x32xf32>
    %c0_113 = arith.constant 0 : index
    %c1_114 = arith.constant 1 : index
    %c6 = arith.constant 6 : index
    %c0_115 = arith.constant 0 : index
    %103 = vector.load %arg16[%c0_113, %c1_114, %c6, %c0_115] : memref<2x10x10x32xf32, #tpu.memory_space<vmem>>, vector<2x8x1x32xf32>
    tpu.vector_store %arg16[%c0_113, %c1_114, %c6, %c0_115], %102 {strides = array<i32>} : memref<2x10x10x32xf32, #tpu.memory_space<vmem>>, vector<2x8x1x32xf32>,
    %104 = vector.extract_strided_slice %73 {offsets = [0, 12, 0], sizes = [16, 1, 32], strides = [1, 1, 1]} : vector<16x16x32xf32> to vector<16x1x32xf32>
    %105 = vector.extract_strided_slice %73 {offsets = [0, 13, 0], sizes = [16, 1, 32], strides = [1, 1, 1]} : vector<16x16x32xf32> to vector<16x1x32xf32>
    %106 = arith.maximumf %104, %105 : vector<16x1x32xf32>
    %107 = vector.shape_cast %106 : vector<16x1x32xf32> to vector<2x8x1x32xf32>
    %c0_116 = arith.constant 0 : index
    %c1_117 = arith.constant 1 : index
    %c7 = arith.constant 7 : index
    %c0_118 = arith.constant 0 : index
    %108 = vector.load %arg16[%c0_116, %c1_117, %c7, %c0_118] : memref<2x10x10x32xf32, #tpu.memory_space<vmem>>, vector<2x8x1x32xf32>
    tpu.vector_store %arg16[%c0_116, %c1_117, %c7, %c0_118], %107 {strides = array<i32>} : memref<2x10x10x32xf32, #tpu.memory_space<vmem>>, vector<2x8x1x32xf32>,
    %109 = vector.extract_strided_slice %73 {offsets = [0, 14, 0], sizes = [16, 1, 32], strides = [1, 1, 1]} : vector<16x16x32xf32> to vector<16x1x32xf32>
    %110 = vector.extract_strided_slice %73 {offsets = [0, 15, 0], sizes = [16, 1, 32], strides = [1, 1, 1]} : vector<16x16x32xf32> to vector<16x1x32xf32>
    %111 = arith.maximumf %109, %110 : vector<16x1x32xf32>
    %112 = vector.shape_cast %111 : vector<16x1x32xf32> to vector<2x8x1x32xf32>
    %c0_119 = arith.constant 0 : index
    %c1_120 = arith.constant 1 : index
    %c8_121 = arith.constant 8 : index
    %c0_122 = arith.constant 0 : index
    %113 = vector.load %arg16[%c0_119, %c1_120, %c8_121, %c0_122] : memref<2x10x10x32xf32, #tpu.memory_space<vmem>>, vector<2x8x1x32xf32>
    tpu.vector_store %arg16[%c0_119, %c1_120, %c8_121, %c0_122], %112 {strides = array<i32>} : memref<2x10x10x32xf32, #tpu.memory_space<vmem>>, vector<2x8x1x32xf32>,
    %c0_123 = arith.constant 0 : index
    %c0_124 = arith.constant 0 : index
    %c0_125 = arith.constant 0 : index
    %c0_126 = arith.constant 0 : index
    %114 = vector.load %arg16[%c0_123, %c0_124, %c0_125, %c0_126] : memref<2x10x10x32xf32, #tpu.memory_space<vmem>>, vector<2x8x8x32xf32>
    %115 = vector.shape_cast %114 : vector<2x8x8x32xf32> to vector<16x8x32xf32>
    %c0_127 = arith.constant 0 : index
    %c0_128 = arith.constant 0 : index
    %c0_129 = arith.constant 0 : index
    %116 = vector.load %arg17[%c0_127, %c0_128, %c0_129] : memref<16x8x288xf32, #tpu.memory_space<vmem>>, vector<16x8x32xf32>
    tpu.vector_store %arg17[%c0_127, %c0_128, %c0_129], %115 {strides = array<i32>} : memref<16x8x288xf32, #tpu.memory_space<vmem>>, vector<16x8x32xf32>,
    %c0_130 = arith.constant 0 : index
    %c0_131 = arith.constant 0 : index
    %c1_132 = arith.constant 1 : index
    %c0_133 = arith.constant 0 : index
    %117 = vector.load %arg16[%c0_130, %c0_131, %c1_132, %c0_133] : memref<2x10x10x32xf32, #tpu.memory_space<vmem>>, vector<2x8x8x32xf32>
    %118 = vector.shape_cast %117 : vector<2x8x8x32xf32> to vector<16x8x32xf32>
    %c0_134 = arith.constant 0 : index
    %c0_135 = arith.constant 0 : index
    %c32_136 = arith.constant 32 : index
    %119 = vector.load %arg17[%c0_134, %c0_135, %c32_136] : memref<16x8x288xf32, #tpu.memory_space<vmem>>, vector<16x8x32xf32>
    tpu.vector_store %arg17[%c0_134, %c0_135, %c32_136], %118 {strides = array<i32>} : memref<16x8x288xf32, #tpu.memory_space<vmem>>, vector<16x8x32xf32>,
    %c0_137 = arith.constant 0 : index
    %c0_138 = arith.constant 0 : index
    %c2_139 = arith.constant 2 : index
    %c0_140 = arith.constant 0 : index
    %120 = vector.load %arg16[%c0_137, %c0_138, %c2_139, %c0_140] : memref<2x10x10x32xf32, #tpu.memory_space<vmem>>, vector<2x8x8x32xf32>
    %121 = vector.shape_cast %120 : vector<2x8x8x32xf32> to vector<16x8x32xf32>
    %c0_141 = arith.constant 0 : index
    %c0_142 = arith.constant 0 : index
    %c64 = arith.constant 64 : index
    %122 = vector.load %arg17[%c0_141, %c0_142, %c64] : memref<16x8x288xf32, #tpu.memory_space<vmem>>, vector<16x8x32xf32>
    tpu.vector_store %arg17[%c0_141, %c0_142, %c64], %121 {strides = array<i32>} : memref<16x8x288xf32, #tpu.memory_space<vmem>>, vector<16x8x32xf32>,
    %c0_143 = arith.constant 0 : index
    %c1_144 = arith.constant 1 : index
    %c0_145 = arith.constant 0 : index
    %c0_146 = arith.constant 0 : index
    %123 = vector.load %arg16[%c0_143, %c1_144, %c0_145, %c0_146] : memref<2x10x10x32xf32, #tpu.memory_space<vmem>>, vector<2x8x8x32xf32>
    %124 = vector.shape_cast %123 : vector<2x8x8x32xf32> to vector<16x8x32xf32>
    %c0_147 = arith.constant 0 : index
    %c0_148 = arith.constant 0 : index
    %c96 = arith.constant 96 : index
    %125 = vector.load %arg17[%c0_147, %c0_148, %c96] : memref<16x8x288xf32, #tpu.memory_space<vmem>>, vector<16x8x32xf32>
    tpu.vector_store %arg17[%c0_147, %c0_148, %c96], %124 {strides = array<i32>} : memref<16x8x288xf32, #tpu.memory_space<vmem>>, vector<16x8x32xf32>,
    %c0_149 = arith.constant 0 : index
    %c1_150 = arith.constant 1 : index
    %c1_151 = arith.constant 1 : index
    %c0_152 = arith.constant 0 : index
    %126 = vector.load %arg16[%c0_149, %c1_150, %c1_151, %c0_152] : memref<2x10x10x32xf32, #tpu.memory_space<vmem>>, vector<2x8x8x32xf32>
    %127 = vector.shape_cast %126 : vector<2x8x8x32xf32> to vector<16x8x32xf32>
    %c0_153 = arith.constant 0 : index
    %c0_154 = arith.constant 0 : index
    %c128 = arith.constant 128 : index
    %128 = vector.load %arg17[%c0_153, %c0_154, %c128] : memref<16x8x288xf32, #tpu.memory_space<vmem>>, vector<16x8x32xf32>
    tpu.vector_store %arg17[%c0_153, %c0_154, %c128], %127 {strides = array<i32>} : memref<16x8x288xf32, #tpu.memory_space<vmem>>, vector<16x8x32xf32>,
    %c0_155 = arith.constant 0 : index
    %c1_156 = arith.constant 1 : index
    %c2_157 = arith.constant 2 : index
    %c0_158 = arith.constant 0 : index
    %129 = vector.load %arg16[%c0_155, %c1_156, %c2_157, %c0_158] : memref<2x10x10x32xf32, #tpu.memory_space<vmem>>, vector<2x8x8x32xf32>
    %130 = vector.shape_cast %129 : vector<2x8x8x32xf32> to vector<16x8x32xf32>
    %c0_159 = arith.constant 0 : index
    %c0_160 = arith.constant 0 : index
    %c160 = arith.constant 160 : index
    %131 = vector.load %arg17[%c0_159, %c0_160, %c160] : memref<16x8x288xf32, #tpu.memory_space<vmem>>, vector<16x8x32xf32>
    tpu.vector_store %arg17[%c0_159, %c0_160, %c160], %130 {strides = array<i32>} : memref<16x8x288xf32, #tpu.memory_space<vmem>>, vector<16x8x32xf32>,
    %c0_161 = arith.constant 0 : index
    %c2_162 = arith.constant 2 : index
    %c0_163 = arith.constant 0 : index
    %c0_164 = arith.constant 0 : index
    %132 = vector.load %arg16[%c0_161, %c2_162, %c0_163, %c0_164] : memref<2x10x10x32xf32, #tpu.memory_space<vmem>>, vector<2x8x8x32xf32>
    %133 = vector.shape_cast %132 : vector<2x8x8x32xf32> to vector<16x8x32xf32>
    %c0_165 = arith.constant 0 : index
    %c0_166 = arith.constant 0 : index
    %c192 = arith.constant 192 : index
    %134 = vector.load %arg17[%c0_165, %c0_166, %c192] : memref<16x8x288xf32, #tpu.memory_space<vmem>>, vector<16x8x32xf32>
    tpu.vector_store %arg17[%c0_165, %c0_166, %c192], %133 {strides = array<i32>} : memref<16x8x288xf32, #tpu.memory_space<vmem>>, vector<16x8x32xf32>,
    %c0_167 = arith.constant 0 : index
    %c2_168 = arith.constant 2 : index
    %c1_169 = arith.constant 1 : index
    %c0_170 = arith.constant 0 : index
    %135 = vector.load %arg16[%c0_167, %c2_168, %c1_169, %c0_170] : memref<2x10x10x32xf32, #tpu.memory_space<vmem>>, vector<2x8x8x32xf32>
    %136 = vector.shape_cast %135 : vector<2x8x8x32xf32> to vector<16x8x32xf32>
    %c0_171 = arith.constant 0 : index
    %c0_172 = arith.constant 0 : index
    %c224 = arith.constant 224 : index
    %137 = vector.load %arg17[%c0_171, %c0_172, %c224] : memref<16x8x288xf32, #tpu.memory_space<vmem>>, vector<16x8x32xf32>
    tpu.vector_store %arg17[%c0_171, %c0_172, %c224], %136 {strides = array<i32>} : memref<16x8x288xf32, #tpu.memory_space<vmem>>, vector<16x8x32xf32>,
    %c0_173 = arith.constant 0 : index
    %c2_174 = arith.constant 2 : index
    %c2_175 = arith.constant 2 : index
    %c0_176 = arith.constant 0 : index
    %138 = vector.load %arg16[%c0_173, %c2_174, %c2_175, %c0_176] : memref<2x10x10x32xf32, #tpu.memory_space<vmem>>, vector<2x8x8x32xf32>
    %139 = vector.shape_cast %138 : vector<2x8x8x32xf32> to vector<16x8x32xf32>
    %c0_177 = arith.constant 0 : index
    %c0_178 = arith.constant 0 : index
    %c256 = arith.constant 256 : index
    %140 = vector.load %arg17[%c0_177, %c0_178, %c256] : memref<16x8x288xf32, #tpu.memory_space<vmem>>, vector<16x8x32xf32>
    tpu.vector_store %arg17[%c0_177, %c0_178, %c256], %139 {strides = array<i32>} : memref<16x8x288xf32, #tpu.memory_space<vmem>>, vector<16x8x32xf32>,
    %c0_179 = arith.constant 0 : index
    %c0_180 = arith.constant 0 : index
    %c0_181 = arith.constant 0 : index
    %141 = vector.load %arg17[%c0_179, %c0_180, %c0_181] : memref<16x8x288xf32, #tpu.memory_space<vmem>>, vector<16x8x288xf32>
    %142 = vector.shape_cast %141 : vector<16x8x288xf32> to vector<128x288xf32>
    %143 = arith.truncf %142 : vector<128x288xf32> to vector<128x288xbf16>
    %c0_182 = arith.constant 0 : index
    %c0_183 = arith.constant 0 : index
    %144 = vector.load %arg4[%c0_182, %c0_183] : memref<288x32xbf16, #tpu.memory_space<vmem>>, vector<288x32xbf16>
    %cst_184 = arith.constant dense<0.000000e+00> : vector<128x32xf32>
    %145 = tpu.matmul %143, %144, %cst_184 {dimension_numbers = #tpu.dot_dimension_numbers<[1], [0], [0], [1], [0, 0, 1, 1], [], []>} : vector<128x288xbf16>, vector<288x32xbf16>, vector<128x32xf32> -> vector<128x32xf32>
    %cst_185 = arith.constant dense<0.000000e+00> : vector<32xf32>
    %146 = vector.multi_reduction <add>, %145, %cst_185 [0] : vector<128x32xf32> to vector<32xf32>
    %147 = vector.shape_cast %146 : vector<32xf32> to vector<1x32xf32>
    %cst_186 = arith.constant 1.280000e+02 : f32
    %148 = vector.broadcast %cst_186 : f32 to vector<1x32xf32>
    %149 = arith.divf %147, %148 : vector<1x32xf32>
    %150 = arith.mulf %145, %145 : vector<128x32xf32>
    %cst_187 = arith.constant dense<0.000000e+00> : vector<32xf32>
    %151 = vector.multi_reduction <add>, %150, %cst_187 [0] : vector<128x32xf32> to vector<32xf32>
    %152 = vector.shape_cast %151 : vector<32xf32> to vector<1x32xf32>
    %cst_188 = arith.constant 1.280000e+02 : f32
    %153 = vector.broadcast %cst_188 : f32 to vector<1x32xf32>
    %154 = arith.divf %152, %153 : vector<1x32xf32>
    %155 = arith.mulf %149, %149 : vector<1x32xf32>
    %156 = arith.subf %154, %155 : vector<1x32xf32>
    %c0_189 = arith.constant 0 : index
    %c0_190 = arith.constant 0 : index
    %157 = vector.load %arg5[%c0_189, %c0_190] : memref<1x32xf32, #tpu.memory_space<vmem>>, vector<1x32xf32>
    %cst_191 = arith.constant 9.99999974E-6 : f32
    %158 = vector.broadcast %cst_191 : f32 to vector<1x32xf32>
    %159 = arith.addf %156, %158 : vector<1x32xf32>
    %160 = math.rsqrt %159 : vector<1x32xf32>
    %161 = arith.mulf %157, %160 : vector<1x32xf32>
    %c0_192 = arith.constant 0 : index
    %c0_193 = arith.constant 0 : index
    %162 = vector.load %arg6[%c0_192, %c0_193] : memref<1x32xf32, #tpu.memory_space<vmem>>, vector<1x32xf32>
    %163 = arith.mulf %149, %161 : vector<1x32xf32>
    %164 = arith.subf %162, %163 : vector<1x32xf32>
    %165 = vector.broadcast %161 : vector<1x32xf32> to vector<128x32xf32>
    %166 = arith.mulf %145, %165 : vector<128x32xf32>
    %167 = vector.broadcast %164 : vector<1x32xf32> to vector<128x32xf32>
    %168 = arith.addf %166, %167 : vector<128x32xf32>
    %cst_194 = arith.constant 0.000000e+00 : f32
    %169 = vector.broadcast %cst_194 : f32 to vector<128x32xf32>
    %170 = arith.maximumf %168, %169 : vector<128x32xf32>
    %171 = vector.shape_cast %170 : vector<128x32xf32> to vector<16x8x32xf32>
    %172 = vector.shape_cast %171 : vector<16x8x32xf32> to vector<8x2x8x32xf32>
    %173 = vector.extract_strided_slice %172 {offsets = [0, 0, 0, 0], sizes = [8, 1, 8, 32], strides = [1, 1, 1, 1]} : vector<8x2x8x32xf32> to vector<8x1x8x32xf32>
    %174 = vector.shape_cast %173 : vector<8x1x8x32xf32> to vector<8x8x32xf32>
    %175 = vector.extract_strided_slice %172 {offsets = [0, 1, 0, 0], sizes = [8, 1, 8, 32], strides = [1, 1, 1, 1]} : vector<8x2x8x32xf32> to vector<8x1x8x32xf32>
    %176 = vector.shape_cast %175 : vector<8x1x8x32xf32> to vector<8x8x32xf32>
    %177 = arith.maximumf %174, %176 : vector<8x8x32xf32>
    %178 = vector.extract_strided_slice %177 {offsets = [0, 0, 0], sizes = [8, 1, 32], strides = [1, 1, 1]} : vector<8x8x32xf32> to vector<8x1x32xf32>
    %179 = vector.extract_strided_slice %177 {offsets = [0, 1, 0], sizes = [8, 1, 32], strides = [1, 1, 1]} : vector<8x8x32xf32> to vector<8x1x32xf32>
    %180 = arith.maximumf %178, %179 : vector<8x1x32xf32>
    %181 = vector.shape_cast %180 : vector<8x1x32xf32> to vector<2x4x1x32xf32>
    %c0_195 = arith.constant 0 : index
    %c1_196 = arith.constant 1 : index
    %c1_197 = arith.constant 1 : index
    %c0_198 = arith.constant 0 : index
    %182 = vector.load %arg18[%c0_195, %c1_196, %c1_197, %c0_198] : memref<2x6x6x32xf32, #tpu.memory_space<vmem>>, vector<2x4x1x32xf32>
    tpu.vector_store %arg18[%c0_195, %c1_196, %c1_197, %c0_198], %181 {strides = array<i32>} : memref<2x6x6x32xf32, #tpu.memory_space<vmem>>, vector<2x4x1x32xf32>,
    %183 = vector.extract_strided_slice %177 {offsets = [0, 2, 0], sizes = [8, 1, 32], strides = [1, 1, 1]} : vector<8x8x32xf32> to vector<8x1x32xf32>
    %184 = vector.extract_strided_slice %177 {offsets = [0, 3, 0], sizes = [8, 1, 32], strides = [1, 1, 1]} : vector<8x8x32xf32> to vector<8x1x32xf32>
    %185 = arith.maximumf %183, %184 : vector<8x1x32xf32>
    %186 = vector.shape_cast %185 : vector<8x1x32xf32> to vector<2x4x1x32xf32>
    %c0_199 = arith.constant 0 : index
    %c1_200 = arith.constant 1 : index
    %c2_201 = arith.constant 2 : index
    %c0_202 = arith.constant 0 : index
    %187 = vector.load %arg18[%c0_199, %c1_200, %c2_201, %c0_202] : memref<2x6x6x32xf32, #tpu.memory_space<vmem>>, vector<2x4x1x32xf32>
    tpu.vector_store %arg18[%c0_199, %c1_200, %c2_201, %c0_202], %186 {strides = array<i32>} : memref<2x6x6x32xf32, #tpu.memory_space<vmem>>, vector<2x4x1x32xf32>,
    %188 = vector.extract_strided_slice %177 {offsets = [0, 4, 0], sizes = [8, 1, 32], strides = [1, 1, 1]} : vector<8x8x32xf32> to vector<8x1x32xf32>
    %189 = vector.extract_strided_slice %177 {offsets = [0, 5, 0], sizes = [8, 1, 32], strides = [1, 1, 1]} : vector<8x8x32xf32> to vector<8x1x32xf32>
    %190 = arith.maximumf %188, %189 : vector<8x1x32xf32>
    %191 = vector.shape_cast %190 : vector<8x1x32xf32> to vector<2x4x1x32xf32>
    %c0_203 = arith.constant 0 : index
    %c1_204 = arith.constant 1 : index
    %c3_205 = arith.constant 3 : index
    %c0_206 = arith.constant 0 : index
    %192 = vector.load %arg18[%c0_203, %c1_204, %c3_205, %c0_206] : memref<2x6x6x32xf32, #tpu.memory_space<vmem>>, vector<2x4x1x32xf32>
    tpu.vector_store %arg18[%c0_203, %c1_204, %c3_205, %c0_206], %191 {strides = array<i32>} : memref<2x6x6x32xf32, #tpu.memory_space<vmem>>, vector<2x4x1x32xf32>,
    %193 = vector.extract_strided_slice %177 {offsets = [0, 6, 0], sizes = [8, 1, 32], strides = [1, 1, 1]} : vector<8x8x32xf32> to vector<8x1x32xf32>
    %194 = vector.extract_strided_slice %177 {offsets = [0, 7, 0], sizes = [8, 1, 32], strides = [1, 1, 1]} : vector<8x8x32xf32> to vector<8x1x32xf32>
    %195 = arith.maximumf %193, %194 : vector<8x1x32xf32>
    %196 = vector.shape_cast %195 : vector<8x1x32xf32> to vector<2x4x1x32xf32>
    %c0_207 = arith.constant 0 : index
    %c1_208 = arith.constant 1 : index
    %c4_209 = arith.constant 4 : index
    %c0_210 = arith.constant 0 : index
    %197 = vector.load %arg18[%c0_207, %c1_208, %c4_209, %c0_210] : memref<2x6x6x32xf32, #tpu.memory_space<vmem>>, vector<2x4x1x32xf32>
    tpu.vector_store %arg18[%c0_207, %c1_208, %c4_209, %c0_210], %196 {strides = array<i32>} : memref<2x6x6x32xf32, #tpu.memory_space<vmem>>, vector<2x4x1x32xf32>,
    %cst_211 = arith.constant 0.000000e+00 : f32
    %198 = vector.broadcast %cst_211 : f32 to vector<8x4x288xf32>
    %c0_212 = arith.constant 0 : index
    %c4_213 = arith.constant 4 : index
    %c0_214 = arith.constant 0 : index
    %199 = vector.load %arg19[%c0_212, %c4_213, %c0_214] : memref<8x8x288xf32, #tpu.memory_space<vmem>>, vector<8x4x288xf32>
    tpu.vector_store %arg19[%c0_212, %c4_213, %c0_214], %198 {strides = array<i32>} : memref<8x8x288xf32, #tpu.memory_space<vmem>>, vector<8x4x288xf32>,
    %c0_215 = arith.constant 0 : index
    %c0_216 = arith.constant 0 : index
    %c0_217 = arith.constant 0 : index
    %c0_218 = arith.constant 0 : index
    %200 = vector.load %arg18[%c0_215, %c0_216, %c0_217, %c0_218] : memref<2x6x6x32xf32, #tpu.memory_space<vmem>>, vector<2x4x4x32xf32>
    %201 = vector.shape_cast %200 : vector<2x4x4x32xf32> to vector<8x4x32xf32>
    %c0_219 = arith.constant 0 : index
    %c0_220 = arith.constant 0 : index
    %c0_221 = arith.constant 0 : index
    %202 = vector.load %arg19[%c0_219, %c0_220, %c0_221] : memref<8x8x288xf32, #tpu.memory_space<vmem>>, vector<8x4x32xf32>
    tpu.vector_store %arg19[%c0_219, %c0_220, %c0_221], %201 {strides = array<i32>} : memref<8x8x288xf32, #tpu.memory_space<vmem>>, vector<8x4x32xf32>,
    %c0_222 = arith.constant 0 : index
    %c0_223 = arith.constant 0 : index
    %c1_224 = arith.constant 1 : index
    %c0_225 = arith.constant 0 : index
    %203 = vector.load %arg18[%c0_222, %c0_223, %c1_224, %c0_225] : memref<2x6x6x32xf32, #tpu.memory_space<vmem>>, vector<2x4x4x32xf32>
    %204 = vector.shape_cast %203 : vector<2x4x4x32xf32> to vector<8x4x32xf32>
    %c0_226 = arith.constant 0 : index
    %c0_227 = arith.constant 0 : index
    %c32_228 = arith.constant 32 : index
    %205 = vector.load %arg19[%c0_226, %c0_227, %c32_228] : memref<8x8x288xf32, #tpu.memory_space<vmem>>, vector<8x4x32xf32>
    tpu.vector_store %arg19[%c0_226, %c0_227, %c32_228], %204 {strides = array<i32>} : memref<8x8x288xf32, #tpu.memory_space<vmem>>, vector<8x4x32xf32>,
    %c0_229 = arith.constant 0 : index
    %c0_230 = arith.constant 0 : index
    %c2_231 = arith.constant 2 : index
    %c0_232 = arith.constant 0 : index
    %206 = vector.load %arg18[%c0_229, %c0_230, %c2_231, %c0_232] : memref<2x6x6x32xf32, #tpu.memory_space<vmem>>, vector<2x4x4x32xf32>
    %207 = vector.shape_cast %206 : vector<2x4x4x32xf32> to vector<8x4x32xf32>
    %c0_233 = arith.constant 0 : index
    %c0_234 = arith.constant 0 : index
    %c64_235 = arith.constant 64 : index
    %208 = vector.load %arg19[%c0_233, %c0_234, %c64_235] : memref<8x8x288xf32, #tpu.memory_space<vmem>>, vector<8x4x32xf32>
    tpu.vector_store %arg19[%c0_233, %c0_234, %c64_235], %207 {strides = array<i32>} : memref<8x8x288xf32, #tpu.memory_space<vmem>>, vector<8x4x32xf32>,
    %c0_236 = arith.constant 0 : index
    %c1_237 = arith.constant 1 : index
    %c0_238 = arith.constant 0 : index
    %c0_239 = arith.constant 0 : index
    %209 = vector.load %arg18[%c0_236, %c1_237, %c0_238, %c0_239] : memref<2x6x6x32xf32, #tpu.memory_space<vmem>>, vector<2x4x4x32xf32>
    %210 = vector.shape_cast %209 : vector<2x4x4x32xf32> to vector<8x4x32xf32>
    %c0_240 = arith.constant 0 : index
    %c0_241 = arith.constant 0 : index
    %c96_242 = arith.constant 96 : index
    %211 = vector.load %arg19[%c0_240, %c0_241, %c96_242] : memref<8x8x288xf32, #tpu.memory_space<vmem>>, vector<8x4x32xf32>
    tpu.vector_store %arg19[%c0_240, %c0_241, %c96_242], %210 {strides = array<i32>} : memref<8x8x288xf32, #tpu.memory_space<vmem>>, vector<8x4x32xf32>,
    %c0_243 = arith.constant 0 : index
    %c1_244 = arith.constant 1 : index
    %c1_245 = arith.constant 1 : index
    %c0_246 = arith.constant 0 : index
    %212 = vector.load %arg18[%c0_243, %c1_244, %c1_245, %c0_246] : memref<2x6x6x32xf32, #tpu.memory_space<vmem>>, vector<2x4x4x32xf32>
    %213 = vector.shape_cast %212 : vector<2x4x4x32xf32> to vector<8x4x32xf32>
    %c0_247 = arith.constant 0 : index
    %c0_248 = arith.constant 0 : index
    %c128_249 = arith.constant 128 : index
    %214 = vector.load %arg19[%c0_247, %c0_248, %c128_249] : memref<8x8x288xf32, #tpu.memory_space<vmem>>, vector<8x4x32xf32>
    tpu.vector_store %arg19[%c0_247, %c0_248, %c128_249], %213 {strides = array<i32>} : memref<8x8x288xf32, #tpu.memory_space<vmem>>, vector<8x4x32xf32>,
    %c0_250 = arith.constant 0 : index
    %c1_251 = arith.constant 1 : index
    %c2_252 = arith.constant 2 : index
    %c0_253 = arith.constant 0 : index
    %215 = vector.load %arg18[%c0_250, %c1_251, %c2_252, %c0_253] : memref<2x6x6x32xf32, #tpu.memory_space<vmem>>, vector<2x4x4x32xf32>
    %216 = vector.shape_cast %215 : vector<2x4x4x32xf32> to vector<8x4x32xf32>
    %c0_254 = arith.constant 0 : index
    %c0_255 = arith.constant 0 : index
    %c160_256 = arith.constant 160 : index
    %217 = vector.load %arg19[%c0_254, %c0_255, %c160_256] : memref<8x8x288xf32, #tpu.memory_space<vmem>>, vector<8x4x32xf32>
    tpu.vector_store %arg19[%c0_254, %c0_255, %c160_256], %216 {strides = array<i32>} : memref<8x8x288xf32, #tpu.memory_space<vmem>>, vector<8x4x32xf32>,
    %c0_257 = arith.constant 0 : index
    %c2_258 = arith.constant 2 : index
    %c0_259 = arith.constant 0 : index
    %c0_260 = arith.constant 0 : index
    %218 = vector.load %arg18[%c0_257, %c2_258, %c0_259, %c0_260] : memref<2x6x6x32xf32, #tpu.memory_space<vmem>>, vector<2x4x4x32xf32>
    %219 = vector.shape_cast %218 : vector<2x4x4x32xf32> to vector<8x4x32xf32>
    %c0_261 = arith.constant 0 : index
    %c0_262 = arith.constant 0 : index
    %c192_263 = arith.constant 192 : index
    %220 = vector.load %arg19[%c0_261, %c0_262, %c192_263] : memref<8x8x288xf32, #tpu.memory_space<vmem>>, vector<8x4x32xf32>
    tpu.vector_store %arg19[%c0_261, %c0_262, %c192_263], %219 {strides = array<i32>} : memref<8x8x288xf32, #tpu.memory_space<vmem>>, vector<8x4x32xf32>,
    %c0_264 = arith.constant 0 : index
    %c2_265 = arith.constant 2 : index
    %c1_266 = arith.constant 1 : index
    %c0_267 = arith.constant 0 : index
    %221 = vector.load %arg18[%c0_264, %c2_265, %c1_266, %c0_267] : memref<2x6x6x32xf32, #tpu.memory_space<vmem>>, vector<2x4x4x32xf32>
    %222 = vector.shape_cast %221 : vector<2x4x4x32xf32> to vector<8x4x32xf32>
    %c0_268 = arith.constant 0 : index
    %c0_269 = arith.constant 0 : index
    %c224_270 = arith.constant 224 : index
    %223 = vector.load %arg19[%c0_268, %c0_269, %c224_270] : memref<8x8x288xf32, #tpu.memory_space<vmem>>, vector<8x4x32xf32>
    tpu.vector_store %arg19[%c0_268, %c0_269, %c224_270], %222 {strides = array<i32>} : memref<8x8x288xf32, #tpu.memory_space<vmem>>, vector<8x4x32xf32>,
    %c0_271 = arith.constant 0 : index
    %c2_272 = arith.constant 2 : index
    %c2_273 = arith.constant 2 : index
    %c0_274 = arith.constant 0 : index
    %224 = vector.load %arg18[%c0_271, %c2_272, %c2_273, %c0_274] : memref<2x6x6x32xf32, #tpu.memory_space<vmem>>, vector<2x4x4x32xf32>
    %225 = vector.shape_cast %224 : vector<2x4x4x32xf32> to vector<8x4x32xf32>
    %c0_275 = arith.constant 0 : index
    %c0_276 = arith.constant 0 : index
    %c256_277 = arith.constant 256 : index
    %226 = vector.load %arg19[%c0_275, %c0_276, %c256_277] : memref<8x8x288xf32, #tpu.memory_space<vmem>>, vector<8x4x32xf32>
    tpu.vector_store %arg19[%c0_275, %c0_276, %c256_277], %225 {strides = array<i32>} : memref<8x8x288xf32, #tpu.memory_space<vmem>>, vector<8x4x32xf32>,
    %c0_278 = arith.constant 0 : index
    %c0_279 = arith.constant 0 : index
    %c0_280 = arith.constant 0 : index
    %227 = vector.load %arg19[%c0_278, %c0_279, %c0_280] : memref<8x8x288xf32, #tpu.memory_space<vmem>>, vector<8x8x288xf32>
    %228 = vector.shape_cast %227 : vector<8x8x288xf32> to vector<64x288xf32>
    %229 = arith.truncf %228 : vector<64x288xf32> to vector<64x288xbf16>
    %c0_281 = arith.constant 0 : index
    %c0_282 = arith.constant 0 : index
    %230 = vector.load %arg7[%c0_281, %c0_282] : memref<288x32xbf16, #tpu.memory_space<vmem>>, vector<288x32xbf16>
    %cst_283 = arith.constant dense<0.000000e+00> : vector<64x32xf32>
    %231 = tpu.matmul %229, %230, %cst_283 {dimension_numbers = #tpu.dot_dimension_numbers<[1], [0], [0], [1], [0, 0, 1, 1], [], []>} : vector<64x288xbf16>, vector<288x32xbf16>, vector<64x32xf32> -> vector<64x32xf32>
    %cst_284 = arith.constant dense<0.000000e+00> : vector<32xf32>
    %232 = vector.multi_reduction <add>, %231, %cst_284 [0] : vector<64x32xf32> to vector<32xf32>
    %233 = vector.shape_cast %232 : vector<32xf32> to vector<1x32xf32>
    %cst_285 = arith.constant 3.200000e+01 : f32
    %234 = vector.broadcast %cst_285 : f32 to vector<1x32xf32>
    %235 = arith.divf %233, %234 : vector<1x32xf32>
    %236 = arith.mulf %231, %231 : vector<64x32xf32>
    %cst_286 = arith.constant dense<0.000000e+00> : vector<32xf32>
    %237 = vector.multi_reduction <add>, %236, %cst_286 [0] : vector<64x32xf32> to vector<32xf32>
    %238 = vector.shape_cast %237 : vector<32xf32> to vector<1x32xf32>
    %cst_287 = arith.constant 3.200000e+01 : f32
    %239 = vector.broadcast %cst_287 : f32 to vector<1x32xf32>
    %240 = arith.divf %238, %239 : vector<1x32xf32>
    %241 = arith.mulf %235, %235 : vector<1x32xf32>
    %242 = arith.subf %240, %241 : vector<1x32xf32>
    %c0_288 = arith.constant 0 : index
    %c0_289 = arith.constant 0 : index
    %243 = vector.load %arg8[%c0_288, %c0_289] : memref<1x32xf32, #tpu.memory_space<vmem>>, vector<1x32xf32>
    %cst_290 = arith.constant 9.99999974E-6 : f32
    %244 = vector.broadcast %cst_290 : f32 to vector<1x32xf32>
    %245 = arith.addf %242, %244 : vector<1x32xf32>
    %246 = math.rsqrt %245 : vector<1x32xf32>
    %247 = arith.mulf %243, %246 : vector<1x32xf32>
    %c0_291 = arith.constant 0 : index
    %c0_292 = arith.constant 0 : index
    %248 = vector.load %arg9[%c0_291, %c0_292] : memref<1x32xf32, #tpu.memory_space<vmem>>, vector<1x32xf32>
    %249 = arith.mulf %235, %247 : vector<1x32xf32>
    %250 = arith.subf %248, %249 : vector<1x32xf32>
    %251 = vector.broadcast %247 : vector<1x32xf32> to vector<64x32xf32>
    %252 = arith.mulf %231, %251 : vector<64x32xf32>
    %253 = vector.broadcast %250 : vector<1x32xf32> to vector<64x32xf32>
    %254 = arith.addf %252, %253 : vector<64x32xf32>
    %cst_293 = arith.constant 0.000000e+00 : f32
    %255 = vector.broadcast %cst_293 : f32 to vector<64x32xf32>
    %256 = arith.maximumf %254, %255 : vector<64x32xf32>
    %257 = vector.shape_cast %256 : vector<64x32xf32> to vector<8x8x32xf32>
    %258 = vector.shape_cast %257 : vector<8x8x32xf32> to vector<4x2x8x32xf32>
    %259 = vector.extract_strided_slice %258 {offsets = [0, 0, 0, 0], sizes = [4, 1, 8, 32], strides = [1, 1, 1, 1]} : vector<4x2x8x32xf32> to vector<4x1x8x32xf32>
    %260 = vector.shape_cast %259 : vector<4x1x8x32xf32> to vector<4x8x32xf32>
    %261 = vector.extract_strided_slice %258 {offsets = [0, 1, 0, 0], sizes = [4, 1, 8, 32], strides = [1, 1, 1, 1]} : vector<4x2x8x32xf32> to vector<4x1x8x32xf32>
    %262 = vector.shape_cast %261 : vector<4x1x8x32xf32> to vector<4x8x32xf32>
    %263 = arith.maximumf %260, %262 : vector<4x8x32xf32>
    %264 = vector.extract_strided_slice %263 {offsets = [0, 0, 0], sizes = [4, 1, 32], strides = [1, 1, 1]} : vector<4x8x32xf32> to vector<4x1x32xf32>
    %265 = vector.extract_strided_slice %263 {offsets = [0, 1, 0], sizes = [4, 1, 32], strides = [1, 1, 1]} : vector<4x8x32xf32> to vector<4x1x32xf32>
    %266 = arith.maximumf %264, %265 : vector<4x1x32xf32>
    %267 = vector.shape_cast %266 : vector<4x1x32xf32> to vector<2x2x1x32xf32>
    %c0_294 = arith.constant 0 : index
    %c1_295 = arith.constant 1 : index
    %c1_296 = arith.constant 1 : index
    %c0_297 = arith.constant 0 : index
    %268 = vector.load %arg20[%c0_294, %c1_295, %c1_296, %c0_297] : memref<2x4x4x32xf32, #tpu.memory_space<vmem>>, vector<2x2x1x32xf32>
    tpu.vector_store %arg20[%c0_294, %c1_295, %c1_296, %c0_297], %267 {strides = array<i32>} : memref<2x4x4x32xf32, #tpu.memory_space<vmem>>, vector<2x2x1x32xf32>,
    %269 = vector.extract_strided_slice %263 {offsets = [0, 2, 0], sizes = [4, 1, 32], strides = [1, 1, 1]} : vector<4x8x32xf32> to vector<4x1x32xf32>
    %270 = vector.extract_strided_slice %263 {offsets = [0, 3, 0], sizes = [4, 1, 32], strides = [1, 1, 1]} : vector<4x8x32xf32> to vector<4x1x32xf32>
    %271 = arith.maximumf %269, %270 : vector<4x1x32xf32>
    %272 = vector.shape_cast %271 : vector<4x1x32xf32> to vector<2x2x1x32xf32>
    %c0_298 = arith.constant 0 : index
    %c1_299 = arith.constant 1 : index
    %c2_300 = arith.constant 2 : index
    %c0_301 = arith.constant 0 : index
    %273 = vector.load %arg20[%c0_298, %c1_299, %c2_300, %c0_301] : memref<2x4x4x32xf32, #tpu.memory_space<vmem>>, vector<2x2x1x32xf32>
    tpu.vector_store %arg20[%c0_298, %c1_299, %c2_300, %c0_301], %272 {strides = array<i32>} : memref<2x4x4x32xf32, #tpu.memory_space<vmem>>, vector<2x2x1x32xf32>,
    %cst_302 = arith.constant 0.000000e+00 : f32
    %274 = vector.broadcast %cst_302 : f32 to vector<4x6x288xf32>
    %c0_303 = arith.constant 0 : index
    %c2_304 = arith.constant 2 : index
    %c0_305 = arith.constant 0 : index
    %275 = vector.load %arg21[%c0_303, %c2_304, %c0_305] : memref<4x8x288xf32, #tpu.memory_space<vmem>>, vector<4x6x288xf32>
    tpu.vector_store %arg21[%c0_303, %c2_304, %c0_305], %274 {strides = array<i32>} : memref<4x8x288xf32, #tpu.memory_space<vmem>>, vector<4x6x288xf32>,
    %c0_306 = arith.constant 0 : index
    %c0_307 = arith.constant 0 : index
    %c0_308 = arith.constant 0 : index
    %c0_309 = arith.constant 0 : index
    %276 = vector.load %arg20[%c0_306, %c0_307, %c0_308, %c0_309] : memref<2x4x4x32xf32, #tpu.memory_space<vmem>>, vector<2x2x2x32xf32>
    %277 = vector.shape_cast %276 : vector<2x2x2x32xf32> to vector<4x2x32xf32>
    %c0_310 = arith.constant 0 : index
    %c0_311 = arith.constant 0 : index
    %c0_312 = arith.constant 0 : index
    %278 = vector.load %arg21[%c0_310, %c0_311, %c0_312] : memref<4x8x288xf32, #tpu.memory_space<vmem>>, vector<4x2x32xf32>
    tpu.vector_store %arg21[%c0_310, %c0_311, %c0_312], %277 {strides = array<i32>} : memref<4x8x288xf32, #tpu.memory_space<vmem>>, vector<4x2x32xf32>,
    %c0_313 = arith.constant 0 : index
    %c0_314 = arith.constant 0 : index
    %c1_315 = arith.constant 1 : index
    %c0_316 = arith.constant 0 : index
    %279 = vector.load %arg20[%c0_313, %c0_314, %c1_315, %c0_316] : memref<2x4x4x32xf32, #tpu.memory_space<vmem>>, vector<2x2x2x32xf32>
    %280 = vector.shape_cast %279 : vector<2x2x2x32xf32> to vector<4x2x32xf32>
    %c0_317 = arith.constant 0 : index
    %c0_318 = arith.constant 0 : index
    %c32_319 = arith.constant 32 : index
    %281 = vector.load %arg21[%c0_317, %c0_318, %c32_319] : memref<4x8x288xf32, #tpu.memory_space<vmem>>, vector<4x2x32xf32>
    tpu.vector_store %arg21[%c0_317, %c0_318, %c32_319], %280 {strides = array<i32>} : memref<4x8x288xf32, #tpu.memory_space<vmem>>, vector<4x2x32xf32>,
    %c0_320 = arith.constant 0 : index
    %c0_321 = arith.constant 0 : index
    %c2_322 = arith.constant 2 : index
    %c0_323 = arith.constant 0 : index
    %282 = vector.load %arg20[%c0_320, %c0_321, %c2_322, %c0_323] : memref<2x4x4x32xf32, #tpu.memory_space<vmem>>, vector<2x2x2x32xf32>
    %283 = vector.shape_cast %282 : vector<2x2x2x32xf32> to vector<4x2x32xf32>
    %c0_324 = arith.constant 0 : index
    %c0_325 = arith.constant 0 : index
    %c64_326 = arith.constant 64 : index
    %284 = vector.load %arg21[%c0_324, %c0_325, %c64_326] : memref<4x8x288xf32, #tpu.memory_space<vmem>>, vector<4x2x32xf32>
    tpu.vector_store %arg21[%c0_324, %c0_325, %c64_326], %283 {strides = array<i32>} : memref<4x8x288xf32, #tpu.memory_space<vmem>>, vector<4x2x32xf32>,
    %c0_327 = arith.constant 0 : index
    %c1_328 = arith.constant 1 : index
    %c0_329 = arith.constant 0 : index
    %c0_330 = arith.constant 0 : index
    %285 = vector.load %arg20[%c0_327, %c1_328, %c0_329, %c0_330] : memref<2x4x4x32xf32, #tpu.memory_space<vmem>>, vector<2x2x2x32xf32>
    %286 = vector.shape_cast %285 : vector<2x2x2x32xf32> to vector<4x2x32xf32>
    %c0_331 = arith.constant 0 : index
    %c0_332 = arith.constant 0 : index
    %c96_333 = arith.constant 96 : index
    %287 = vector.load %arg21[%c0_331, %c0_332, %c96_333] : memref<4x8x288xf32, #tpu.memory_space<vmem>>, vector<4x2x32xf32>
    tpu.vector_store %arg21[%c0_331, %c0_332, %c96_333], %286 {strides = array<i32>} : memref<4x8x288xf32, #tpu.memory_space<vmem>>, vector<4x2x32xf32>,
    %c0_334 = arith.constant 0 : index
    %c1_335 = arith.constant 1 : index
    %c1_336 = arith.constant 1 : index
    %c0_337 = arith.constant 0 : index
    %288 = vector.load %arg20[%c0_334, %c1_335, %c1_336, %c0_337] : memref<2x4x4x32xf32, #tpu.memory_space<vmem>>, vector<2x2x2x32xf32>
    %289 = vector.shape_cast %288 : vector<2x2x2x32xf32> to vector<4x2x32xf32>
    %c0_338 = arith.constant 0 : index
    %c0_339 = arith.constant 0 : index
    %c128_340 = arith.constant 128 : index
    %290 = vector.load %arg21[%c0_338, %c0_339, %c128_340] : memref<4x8x288xf32, #tpu.memory_space<vmem>>, vector<4x2x32xf32>
    tpu.vector_store %arg21[%c0_338, %c0_339, %c128_340], %289 {strides = array<i32>} : memref<4x8x288xf32, #tpu.memory_space<vmem>>, vector<4x2x32xf32>,
    %c0_341 = arith.constant 0 : index
    %c1_342 = arith.constant 1 : index
    %c2_343 = arith.constant 2 : index
    %c0_344 = arith.constant 0 : index
    %291 = vector.load %arg20[%c0_341, %c1_342, %c2_343, %c0_344] : memref<2x4x4x32xf32, #tpu.memory_space<vmem>>, vector<2x2x2x32xf32>
    %292 = vector.shape_cast %291 : vector<2x2x2x32xf32> to vector<4x2x32xf32>
    %c0_345 = arith.constant 0 : index
    %c0_346 = arith.constant 0 : index
    %c160_347 = arith.constant 160 : index
    %293 = vector.load %arg21[%c0_345, %c0_346, %c160_347] : memref<4x8x288xf32, #tpu.memory_space<vmem>>, vector<4x2x32xf32>
    tpu.vector_store %arg21[%c0_345, %c0_346, %c160_347], %292 {strides = array<i32>} : memref<4x8x288xf32, #tpu.memory_space<vmem>>, vector<4x2x32xf32>,
    %c0_348 = arith.constant 0 : index
    %c2_349 = arith.constant 2 : index
    %c0_350 = arith.constant 0 : index
    %c0_351 = arith.constant 0 : index
    %294 = vector.load %arg20[%c0_348, %c2_349, %c0_350, %c0_351] : memref<2x4x4x32xf32, #tpu.memory_space<vmem>>, vector<2x2x2x32xf32>
    %295 = vector.shape_cast %294 : vector<2x2x2x32xf32> to vector<4x2x32xf32>
    %c0_352 = arith.constant 0 : index
    %c0_353 = arith.constant 0 : index
    %c192_354 = arith.constant 192 : index
    %296 = vector.load %arg21[%c0_352, %c0_353, %c192_354] : memref<4x8x288xf32, #tpu.memory_space<vmem>>, vector<4x2x32xf32>
    tpu.vector_store %arg21[%c0_352, %c0_353, %c192_354], %295 {strides = array<i32>} : memref<4x8x288xf32, #tpu.memory_space<vmem>>, vector<4x2x32xf32>,
    %c0_355 = arith.constant 0 : index
    %c2_356 = arith.constant 2 : index
    %c1_357 = arith.constant 1 : index
    %c0_358 = arith.constant 0 : index
    %297 = vector.load %arg20[%c0_355, %c2_356, %c1_357, %c0_358] : memref<2x4x4x32xf32, #tpu.memory_space<vmem>>, vector<2x2x2x32xf32>
    %298 = vector.shape_cast %297 : vector<2x2x2x32xf32> to vector<4x2x32xf32>
    %c0_359 = arith.constant 0 : index
    %c0_360 = arith.constant 0 : index
    %c224_361 = arith.constant 224 : index
    %299 = vector.load %arg21[%c0_359, %c0_360, %c224_361] : memref<4x8x288xf32, #tpu.memory_space<vmem>>, vector<4x2x32xf32>
    tpu.vector_store %arg21[%c0_359, %c0_360, %c224_361], %298 {strides = array<i32>} : memref<4x8x288xf32, #tpu.memory_space<vmem>>, vector<4x2x32xf32>,
    %c0_362 = arith.constant 0 : index
    %c2_363 = arith.constant 2 : index
    %c2_364 = arith.constant 2 : index
    %c0_365 = arith.constant 0 : index
    %300 = vector.load %arg20[%c0_362, %c2_363, %c2_364, %c0_365] : memref<2x4x4x32xf32, #tpu.memory_space<vmem>>, vector<2x2x2x32xf32>
    %301 = vector.shape_cast %300 : vector<2x2x2x32xf32> to vector<4x2x32xf32>
    %c0_366 = arith.constant 0 : index
    %c0_367 = arith.constant 0 : index
    %c256_368 = arith.constant 256 : index
    %302 = vector.load %arg21[%c0_366, %c0_367, %c256_368] : memref<4x8x288xf32, #tpu.memory_space<vmem>>, vector<4x2x32xf32>
    tpu.vector_store %arg21[%c0_366, %c0_367, %c256_368], %301 {strides = array<i32>} : memref<4x8x288xf32, #tpu.memory_space<vmem>>, vector<4x2x32xf32>,
    %c0_369 = arith.constant 0 : index
    %c0_370 = arith.constant 0 : index
    %c0_371 = arith.constant 0 : index
    %303 = vector.load %arg21[%c0_369, %c0_370, %c0_371] : memref<4x8x288xf32, #tpu.memory_space<vmem>>, vector<4x8x288xf32>
    %304 = vector.shape_cast %303 : vector<4x8x288xf32> to vector<32x288xf32>
    %305 = arith.truncf %304 : vector<32x288xf32> to vector<32x288xbf16>
    %c0_372 = arith.constant 0 : index
    %c0_373 = arith.constant 0 : index
    %306 = vector.load %arg10[%c0_372, %c0_373] : memref<288x32xbf16, #tpu.memory_space<vmem>>, vector<288x32xbf16>
    %cst_374 = arith.constant dense<0.000000e+00> : vector<32x32xf32>
    %307 = tpu.matmul %305, %306, %cst_374 {dimension_numbers = #tpu.dot_dimension_numbers<[1], [0], [0], [1], [0, 0, 1, 1], [], []>} : vector<32x288xbf16>, vector<288x32xbf16>, vector<32x32xf32> -> vector<32x32xf32>
    %cst_375 = arith.constant dense<0.000000e+00> : vector<32xf32>
    %308 = vector.multi_reduction <add>, %307, %cst_375 [0] : vector<32x32xf32> to vector<32xf32>
    %309 = vector.shape_cast %308 : vector<32xf32> to vector<1x32xf32>
    %cst_376 = arith.constant 8.000000e+00 : f32
    %310 = vector.broadcast %cst_376 : f32 to vector<1x32xf32>
    %311 = arith.divf %309, %310 : vector<1x32xf32>
    %312 = arith.mulf %307, %307 : vector<32x32xf32>
    %cst_377 = arith.constant dense<0.000000e+00> : vector<32xf32>
    %313 = vector.multi_reduction <add>, %312, %cst_377 [0] : vector<32x32xf32> to vector<32xf32>
    %314 = vector.shape_cast %313 : vector<32xf32> to vector<1x32xf32>
    %cst_378 = arith.constant 8.000000e+00 : f32
    %315 = vector.broadcast %cst_378 : f32 to vector<1x32xf32>
    %316 = arith.divf %314, %315 : vector<1x32xf32>
    %317 = arith.mulf %311, %311 : vector<1x32xf32>
    %318 = arith.subf %316, %317 : vector<1x32xf32>
    %c0_379 = arith.constant 0 : index
    %c0_380 = arith.constant 0 : index
    %319 = vector.load %arg11[%c0_379, %c0_380] : memref<1x32xf32, #tpu.memory_space<vmem>>, vector<1x32xf32>
    %cst_381 = arith.constant 9.99999974E-6 : f32
    %320 = vector.broadcast %cst_381 : f32 to vector<1x32xf32>
    %321 = arith.addf %318, %320 : vector<1x32xf32>
    %322 = math.rsqrt %321 : vector<1x32xf32>
    %323 = arith.mulf %319, %322 : vector<1x32xf32>
    %c0_382 = arith.constant 0 : index
    %c0_383 = arith.constant 0 : index
    %324 = vector.load %arg12[%c0_382, %c0_383] : memref<1x32xf32, #tpu.memory_space<vmem>>, vector<1x32xf32>
    %325 = arith.mulf %311, %323 : vector<1x32xf32>
    %326 = arith.subf %324, %325 : vector<1x32xf32>
    %327 = vector.broadcast %323 : vector<1x32xf32> to vector<32x32xf32>
    %328 = arith.mulf %307, %327 : vector<32x32xf32>
    %329 = vector.broadcast %326 : vector<1x32xf32> to vector<32x32xf32>
    %330 = arith.addf %328, %329 : vector<32x32xf32>
    %cst_384 = arith.constant 0.000000e+00 : f32
    %331 = vector.broadcast %cst_384 : f32 to vector<32x32xf32>
    %332 = arith.maximumf %330, %331 : vector<32x32xf32>
    %333 = vector.shape_cast %332 : vector<32x32xf32> to vector<4x8x32xf32>
    %334 = vector.shape_cast %333 : vector<4x8x32xf32> to vector<2x2x8x32xf32>
    %335 = vector.extract_strided_slice %334 {offsets = [0, 0, 0, 0], sizes = [2, 1, 8, 32], strides = [1, 1, 1, 1]} : vector<2x2x8x32xf32> to vector<2x1x8x32xf32>
    %336 = vector.shape_cast %335 : vector<2x1x8x32xf32> to vector<2x8x32xf32>
    %337 = vector.extract_strided_slice %334 {offsets = [0, 1, 0, 0], sizes = [2, 1, 8, 32], strides = [1, 1, 1, 1]} : vector<2x2x8x32xf32> to vector<2x1x8x32xf32>
    %338 = vector.shape_cast %337 : vector<2x1x8x32xf32> to vector<2x8x32xf32>
    %339 = arith.maximumf %336, %338 : vector<2x8x32xf32>
    %340 = vector.extract_strided_slice %339 {offsets = [0, 0, 0], sizes = [2, 1, 32], strides = [1, 1, 1]} : vector<2x8x32xf32> to vector<2x1x32xf32>
    %341 = vector.extract_strided_slice %339 {offsets = [0, 1, 0], sizes = [2, 1, 32], strides = [1, 1, 1]} : vector<2x8x32xf32> to vector<2x1x32xf32>
    %342 = arith.maximumf %340, %341 : vector<2x1x32xf32>
    %343 = vector.shape_cast %342 : vector<2x1x32xf32> to vector<2x1x1x32xf32>
    %c0_385 = arith.constant 0 : index
    %c0_386 = arith.constant 0 : index
    %c0_387 = arith.constant 0 : index
    %c0_388 = arith.constant 0 : index
    %344 = vector.load %arg13[%c0_385, %c0_386, %c0_387, %c0_388] : memref<2x1x1x32xf32, #tpu.memory_space<vmem>>, vector<2x1x1x32xf32>
    tpu.vector_store %arg13[%c0_385, %c0_386, %c0_387, %c0_388], %343 {strides = array<i32>} : memref<2x1x1x32xf32, #tpu.memory_space<vmem>>, vector<2x1x1x32xf32>,
    return
  }
}

</mosaic_0001>

<llo_original>
// kernel: quicdraw_cnn_forward.1
$region0: #{quicdraw_cnn_forward.1}
  #allocation0 [shape = 'u32[]', space=smem, size = 0x4, offset = 0x4, fixed_abs, tag = 'smem constant byte address 0x4 - core index']
  #allocation1 [shape = 'u32[144,128]{1,0:T(1,128)}', space=vmem, size = 0x12000, scoped, tag = 'internal scratch']
  #allocation2 [shape = 'f32[2,18,18,4]{3,2,1,0:T(8,128)}', space=vmem, size = 0x6c000, scoped, tag = 'scratch operand']
  #allocation3 [shape = 'f32[32,16,36]{2,1,0:T(8,128)}', space=vmem, size = 0x40000, scoped, tag = 'scratch operand']
  #allocation4 [shape = 'f32[2,10,10,32]{3,2,1,0:T(8,128)}', space=vmem, size = 0x28000, scoped, tag = 'scratch operand']
  #allocation5 [shape = 'f32[16,8,288]{2,1,0:T(8,128)}', space=vmem, size = 0x30000, scoped, tag = 'scratch operand']
  #allocation6 [shape = 'f32[2,6,6,32]{3,2,1,0:T(8,128)}', space=vmem, size = 0xc000, scoped, tag = 'scratch operand']
  #allocation7 [shape = 'f32[8,8,288]{2,1,0:T(8,128)}', space=vmem, size = 0x18000, scoped, tag = 'scratch operand']
  #allocation8 [shape = 'f32[2,4,4,32]{3,2,1,0:T(4,128)}', space=vmem, size = 0x4000, scoped, tag = 'scratch operand']
  #allocation9 [shape = 'f32[4,8,288]{2,1,0:T(8,128)}', space=vmem, size = 0xc000, scoped, tag = 'scratch operand']
  %s0 = inlined_call_operand.vmem [shape: f32[2,16,16,4], index: 0, kind: input, shape index: {}]
  %s1 = inlined_call_operand.vmem [shape: bf16[36,32], index: 1, kind: input, shape index: {}]
  %s2 = inlined_call_operand.vmem [shape: f32[1,32], index: 2, kind: input, shape index: {}]
  %s3 = inlined_call_operand.vmem [shape: f32[1,32], index: 3, kind: input, shape index: {}]
  %s4 = inlined_call_operand.vmem [shape: bf16[288,32], index: 4, kind: input, shape index: {}]
  %s5 = inlined_call_operand.vmem [shape: f32[1,32], index: 5, kind: input, shape index: {}]
  %s6 = inlined_call_operand.vmem [shape: f32[1,32], index: 6, kind: input, shape index: {}]
  %s7 = inlined_call_operand.vmem [shape: bf16[288,32], index: 7, kind: input, shape index: {}]
  %s8 = inlined_call_operand.vmem [shape: f32[1,32], index: 8, kind: input, shape index: {}]
  %s9 = inlined_call_operand.vmem [shape: f32[1,32], index: 9, kind: input, shape index: {}]
  %s10 = inlined_call_operand.vmem [shape: bf16[288,32], index: 10, kind: input, shape index: {}]
  %s11 = inlined_call_operand.vmem [shape: f32[1,32], index: 11, kind: input, shape index: {}]
  %s12 = inlined_call_operand.vmem [shape: f32[1,32], index: 12, kind: input, shape index: {}]
  %s13 = inlined_call_operand.hbm [shape: f32[2,1,1,32], index: 13, kind: output, shape index: {}]
  %s14 = sld [smem:[#allocation0]]
  $region62: #{quicdraw_cnn_forward.1} parent=0
    _
  %s16 = ssub.s32 1, %s14
  %s17 = scalar_select 0, %s16, %s14
  $region1: #{quicdraw_cnn_forward.1} parent=0
    #allocation10 [shape = 'u8[1024]{0}', space=vmem, size = 0x400, scoped, tag = 'output window, operand 0, single buffered']
    #allocation11 [shape = 's32[1]{0}', space=sflag, size = 0x4, scoped, tag = 'scoped memory for quicdraw_cnn_forward.1']
    %18 = vsyncpa [#allocation11], 0
    // Predicated region
    $region2: #{quicdraw_cnn_forward.1} parent=1 // pred_check
      _
    $region3: #{quicdraw_cnn_forward.1} parent=1 // pred_check_branch
      %20 = sbr.rel (0) target = $region5
    $region4: #{quicdraw_cnn_forward.1} parent=1 // pred_region
      _
    $region5: #{quicdraw_cnn_forward.1} parent=1 // pred_fallthru
      _
    // Predicated region
    $region6: #{quicdraw_cnn_forward.1} parent=1 // pred_check
      _
    $region7: #{quicdraw_cnn_forward.1} parent=1 // pred_check_branch
      %22 = sbr.rel (0) target = $region9
    $region8: #{quicdraw_cnn_forward.1} parent=1 // pred_region
      _
    $region9: #{quicdraw_cnn_forward.1} parent=1 // pred_fallthru
      _
    // Predicated region
    $region10: #{quicdraw_cnn_forward.1} parent=1 // pred_check
      _
    $region11: #{quicdraw_cnn_forward.1} parent=1 // pred_check_branch
      %24 = sbr.rel (0) target = $region13
    $region12: #{quicdraw_cnn_forward.1} parent=1 // pred_region
      _
    $region13: #{quicdraw_cnn_forward.1} parent=1 // pred_fallthru
      _
    // Predicated region
    $region14: #{quicdraw_cnn_forward.1} parent=1 // pred_check
      _
    $region15: #{quicdraw_cnn_forward.1} parent=1 // pred_check_branch
      %26 = sbr.rel (0) target = $region17
    $region16: #{quicdraw_cnn_forward.1} parent=1 // pred_region
      _
    $region17: #{quicdraw_cnn_forward.1} parent=1 // pred_fallthru
      _
    // Predicated region
    $region18: #{quicdraw_cnn_forward.1} parent=1 // pred_check
      _
    $region19: #{quicdraw_cnn_forward.1} parent=1 // pred_check_branch
      %28 = sbr.rel (0) target = $region21
    $region20: #{quicdraw_cnn_forward.1} parent=1 // pred_region
      _
    $region21: #{quicdraw_cnn_forward.1} parent=1 // pred_fallthru
      _
    // Predicated region
    $region22: #{quicdraw_cnn_forward.1} parent=1 // pred_check
      _
    $region23: #{quicdraw_cnn_forward.1} parent=1 // pred_check_branch
      %30 = sbr.rel (0) target = $region25
    $region24: #{quicdraw_cnn_forward.1} parent=1 // pred_region
      _
    $region25: #{quicdraw_cnn_forward.1} parent=1 // pred_fallthru
      _
    // Predicated region
    $region26: #{quicdraw_cnn_forward.1} parent=1 // pred_check
      _
    $region27: #{quicdraw_cnn_forward.1} parent=1 // pred_check_branch
      %32 = sbr.rel (0) target = $region29
    $region28: #{quicdraw_cnn_forward.1} parent=1 // pred_region
      _
    $region29: #{quicdraw_cnn_forward.1} parent=1 // pred_fallthru
      _
    // Predicated region
    $region30: #{quicdraw_cnn_forward.1} parent=1 // pred_check
      _
    $region31: #{quicdraw_cnn_forward.1} parent=1 // pred_check_branch
      %34 = sbr.rel (0) target = $region33
    $region32: #{quicdraw_cnn_forward.1} parent=1 // pred_region
      _
    $region33: #{quicdraw_cnn_forward.1} parent=1 // pred_fallthru
      _
    // Predicated region
    $region34: #{quicdraw_cnn_forward.1} parent=1 // pred_check
      _
    $region35: #{quicdraw_cnn_forward.1} parent=1 // pred_check_branch
      %36 = sbr.rel (0) target = $region37
    $region36: #{quicdraw_cnn_forward.1} parent=1 // pred_region
      _
    $region37: #{quicdraw_cnn_forward.1} parent=1 // pred_fallthru
      _
    // Predicated region
    $region38: #{quicdraw_cnn_forward.1} parent=1 // pred_check
      _
    $region39: #{quicdraw_cnn_forward.1} parent=1 // pred_check_branch
      %38 = sbr.rel (0) target = $region41
    $region40: #{quicdraw_cnn_forward.1} parent=1 // pred_region
      _
    $region41: #{quicdraw_cnn_forward.1} parent=1 // pred_fallthru
      _
    // Predicated region
    $region42: #{quicdraw_cnn_forward.1} parent=1 // pred_check
      _
    $region43: #{quicdraw_cnn_forward.1} parent=1 // pred_check_branch
      %40 = sbr.rel (0) target = $region45
    $region44: #{quicdraw_cnn_forward.1} parent=1 // pred_region
      _
    $region45: #{quicdraw_cnn_forward.1} parent=1 // pred_fallthru
      _
    // Predicated region
    $region46: #{quicdraw_cnn_forward.1} parent=1 // pred_check
      _
    $region47: #{quicdraw_cnn_forward.1} parent=1 // pred_check_branch
      %42 = sbr.rel (0) target = $region49
    $region48: #{quicdraw_cnn_forward.1} parent=1 // pred_region
      _
    $region49: #{quicdraw_cnn_forward.1} parent=1 // pred_fallthru
      _
    // Predicated region
    $region50: #{quicdraw_cnn_forward.1} parent=1 // pred_check
      _
    $region51: #{quicdraw_cnn_forward.1} parent=1 // pred_check_branch
      %44 = sbr.rel (0) target = $region53
    $region52: #{quicdraw_cnn_forward.1} parent=1 // pred_region
      _
    $region53: #{quicdraw_cnn_forward.1} parent=1 // pred_fallthru
      _
    %vm46 = vcmask 31744
    %47 = vst.msk [vmem:[#allocation2] sm:$0xff] %vm46, 0.0
    %48 = vst.msk [vmem:[#allocation2 + $0x8] sm:$0xff] %vm46, 0.0
    %vm49 = vcmask 25600
    %50 = vst.msk [vmem:[#allocation2 + $0x10] sm:$0x3] %vm49, 0.0
    %51 = vst.msk [vmem:[#allocation2 + $0x18] sm:$0xff] %vm46, 0.0
    %52 = vst.msk [vmem:[#allocation2 + $0x20] sm:$0xff] %vm46, 0.0
    %53 = vst.msk [vmem:[#allocation2 + $0x28] sm:$0x3] %vm49, 0.0
    %54 = vst.msk [vmem:[#allocation2 + $0x30] sm:$0xff] %vm46, 0.0
    %55 = vst.msk [vmem:[#allocation2 + $0x38] sm:$0xff] %vm46, 0.0
    %56 = vst.msk [vmem:[#allocation2 + $0x40] sm:$0x3] %vm49, 0.0
    %57 = vst.msk [vmem:[#allocation2 + $0x48] sm:$0xff] %vm46, 0.0
    %58 = vst.msk [vmem:[#allocation2 + $0x50] sm:$0xff] %vm46, 0.0
    %59 = vst.msk [vmem:[#allocation2 + $0x58] sm:$0x3] %vm49, 0.0
    %60 = vst.msk [vmem:[#allocation2 + $0x60] sm:$0xff] %vm46, 0.0
    %61 = vst.msk [vmem:[#allocation2 + $0x68] sm:$0xff] %vm46, 0.0
    %62 = vst.msk [vmem:[#allocation2 + $0x70] sm:$0x3] %vm49, 0.0
    %63 = vst.msk [vmem:[#allocation2 + $0x78] sm:$0xff] %vm46, 0.0
    %64 = vst.msk [vmem:[#allocation2 + $0x80] sm:$0xff] %vm46, 0.0
    %65 = vst.msk [vmem:[#allocation2 + $0x88] sm:$0x3] %vm49, 0.0
    %66 = vst.msk [vmem:[#allocation2 + $0x90] sm:$0xff] %vm46, 0.0
    %67 = vst.msk [vmem:[#allocation2 + $0x98] sm:$0xff] %vm46, 0.0
    %68 = vst.msk [vmem:[#allocation2 + $0xa0] sm:$0x3] %vm49, 0.0
    %69 = vst.msk [vmem:[#allocation2 + $0xa8] sm:$0xff] %vm46, 0.0
    %70 = vst.msk [vmem:[#allocation2 + $0xb0] sm:$0xff] %vm46, 0.0
    %71 = vst.msk [vmem:[#allocation2 + $0xb8] sm:$0x3] %vm49, 0.0
    %72 = vst.msk [vmem:[#allocation2 + $0xc0] sm:$0xff] %vm46, 0.0
    %73 = vst.msk [vmem:[#allocation2 + $0xc8] sm:$0xff] %vm46, 0.0
    %74 = vst.msk [vmem:[#allocation2 + $0xd0] sm:$0x3] %vm49, 0.0
    %75 = vst.msk [vmem:[#allocation2 + $0xd8] sm:$0xff] %vm46, 0.0
    %76 = vst.msk [vmem:[#allocation2 + $0xe0] sm:$0xff] %vm46, 0.0
    %77 = vst.msk [vmem:[#allocation2 + $0xe8] sm:$0x3] %vm49, 0.0
    %78 = vst.msk [vmem:[#allocation2 + $0xf0] sm:$0xff] %vm46, 0.0
    %79 = vst.msk [vmem:[#allocation2 + $0xf8] sm:$0xff] %vm46, 0.0
    %80 = vst.msk [vmem:[#allocation2 + $0x100] sm:$0x3] %vm49, 0.0
    %81 = vst.msk [vmem:[#allocation2 + $0x108] sm:$0xff] %vm46, 0.0
    %82 = vst.msk [vmem:[#allocation2 + $0x110] sm:$0xff] %vm46, 0.0
    %83 = vst.msk [vmem:[#allocation2 + $0x118] sm:$0x3] %vm49, 0.0
    %84 = vst.msk [vmem:[#allocation2 + $0x120] sm:$0xff] %vm46, 0.0
    %85 = vst.msk [vmem:[#allocation2 + $0x128] sm:$0xff] %vm46, 0.0
    %86 = vst.msk [vmem:[#allocation2 + $0x130] sm:$0x3] %vm49, 0.0
    %87 = vst.msk [vmem:[#allocation2 + $0x138] sm:$0xff] %vm46, 0.0
    %88 = vst.msk [vmem:[#allocation2 + $0x140] sm:$0xff] %vm46, 0.0
    %89 = vst.msk [vmem:[#allocation2 + $0x148] sm:$0x3] %vm49, 0.0
    %90 = vst.msk [vmem:[#allocation2 + $0x150] sm:$0xff] %vm46, 0.0
    %91 = vst.msk [vmem:[#allocation2 + $0x158] sm:$0xff] %vm46, 0.0
    %92 = vst.msk [vmem:[#allocation2 + $0x160] sm:$0x3] %vm49, 0.0
    %93 = vst.msk [vmem:[#allocation2 + $0x168] sm:$0xff] %vm46, 0.0
    %94 = vst.msk [vmem:[#allocation2 + $0x170] sm:$0xff] %vm46, 0.0
    %95 = vst.msk [vmem:[#allocation2 + $0x178] sm:$0x3] %vm49, 0.0
    %96 = vst.msk [vmem:[#allocation2 + $0x180] sm:$0xff] %vm46, 0.0
    %97 = vst.msk [vmem:[#allocation2 + $0x188] sm:$0xff] %vm46, 0.0
    %98 = vst.msk [vmem:[#allocation2 + $0x190] sm:$0x3] %vm49, 0.0
    %99 = vst.msk [vmem:[#allocation2 + $0x198] sm:$0xff] %vm46, 0.0
    %100 = vst.msk [vmem:[#allocation2 + $0x1a0] sm:$0xff] %vm46, 0.0
    %101 = vst.msk [vmem:[#allocation2 + $0x1a8] sm:$0x3] %vm49, 0.0
    %102 = vst.msk [vmem:[#allocation2 + $0x1b0] sm:$0xff] %vm46, 0.0
    %103 = vst.msk [vmem:[#allocation2 + $0x1b8] sm:$0xff] %vm46, 0.0
    %104 = vst.msk [vmem:[#allocation2 + $0x1c0] sm:$0x3] %vm49, 0.0
    %105 = vst.msk [vmem:[#allocation2 + $0x1c8] sm:$0xff] %vm46, 0.0
    %106 = vst.msk [vmem:[#allocation2 + $0x1d0] sm:$0xff] %vm46, 0.0
    %107 = vst.msk [vmem:[#allocation2 + $0x1d8] sm:$0x3] %vm49, 0.0
    %108 = vst.msk [vmem:[#allocation2 + $0x1e0] sm:$0xff] %vm46, 0.0
    %109 = vst.msk [vmem:[#allocation2 + $0x1e8] sm:$0xff] %vm46, 0.0
    %110 = vst.msk [vmem:[#allocation2 + $0x1f0] sm:$0x3] %vm49, 0.0
    %111 = vst.msk [vmem:[#allocation2 + $0x1f8] sm:$0xff] %vm46, 0.0
    %112 = vst.msk [vmem:[#allocation2 + $0x200] sm:$0xff] %vm46, 0.0
    %113 = vst.msk [vmem:[#allocation2 + $0x208] sm:$0x3] %vm49, 0.0
    %114 = vst.msk [vmem:[#allocation2 + $0x210] sm:$0xff] %vm46, 0.0
    %115 = vst.msk [vmem:[#allocation2 + $0x218] sm:$0xff] %vm46, 0.0
    %116 = vst.msk [vmem:[#allocation2 + $0x220] sm:$0x3] %vm49, 0.0
    %117 = vst.msk [vmem:[#allocation2 + $0x228] sm:$0xff] %vm46, 0.0
    %118 = vst.msk [vmem:[#allocation2 + $0x230] sm:$0xff] %vm46, 0.0
    %119 = vst.msk [vmem:[#allocation2 + $0x238] sm:$0x3] %vm49, 0.0
    %120 = vst.msk [vmem:[#allocation2 + $0x240] sm:$0xff] %vm46, 0.0
    %121 = vst.msk [vmem:[#allocation2 + $0x248] sm:$0xff] %vm46, 0.0
    %122 = vst.msk [vmem:[#allocation2 + $0x250] sm:$0x3] %vm49, 0.0
    %123 = vst.msk [vmem:[#allocation2 + $0x258] sm:$0xff] %vm46, 0.0
    %124 = vst.msk [vmem:[#allocation2 + $0x260] sm:$0xff] %vm46, 0.0
    %125 = vst.msk [vmem:[#allocation2 + $0x268] sm:$0x3] %vm49, 0.0
    %126 = vst.msk [vmem:[#allocation2 + $0x270] sm:$0xff] %vm46, 0.0
    %127 = vst.msk [vmem:[#allocation2 + $0x278] sm:$0xff] %vm46, 0.0
    %128 = vst.msk [vmem:[#allocation2 + $0x280] sm:$0x3] %vm49, 0.0
    %129 = vst.msk [vmem:[#allocation2 + $0x288] sm:$0xff] %vm46, 0.0
    %130 = vst.msk [vmem:[#allocation2 + $0x290] sm:$0xff] %vm46, 0.0
    %131 = vst.msk [vmem:[#allocation2 + $0x298] sm:$0x3] %vm49, 0.0
    %132 = vst.msk [vmem:[#allocation2 + $0x2a0] sm:$0xff] %vm46, 0.0
    %133 = vst.msk [vmem:[#allocation2 + $0x2a8] sm:$0xff] %vm46, 0.0
    %134 = vst.msk [vmem:[#allocation2 + $0x2b0] sm:$0x3] %vm49, 0.0
    %135 = vst.msk [vmem:[#allocation2 + $0x2b8] sm:$0xff] %vm46, 0.0
    %136 = vst.msk [vmem:[#allocation2 + $0x2c0] sm:$0xff] %vm46, 0.0
    %137 = vst.msk [vmem:[#allocation2 + $0x2c8] sm:$0x3] %vm49, 0.0
    %138 = vst.msk [vmem:[#allocation2 + $0x2d0] sm:$0xff] %vm46, 0.0
    %139 = vst.msk [vmem:[#allocation2 + $0x2d8] sm:$0xff] %vm46, 0.0
    %140 = vst.msk [vmem:[#allocation2 + $0x2e0] sm:$0x3] %vm49, 0.0
    %141 = vst.msk [vmem:[#allocation2 + $0x2e8] sm:$0xff] %vm46, 0.0
    %142 = vst.msk [vmem:[#allocation2 + $0x2f0] sm:$0xff] %vm46, 0.0
    %143 = vst.msk [vmem:[#allocation2 + $0x2f8] sm:$0x3] %vm49, 0.0
    %144 = vst.msk [vmem:[#allocation2 + $0x300] sm:$0xff] %vm46, 0.0
    %145 = vst.msk [vmem:[#allocation2 + $0x308] sm:$0xff] %vm46, 0.0
    %146 = vst.msk [vmem:[#allocation2 + $0x310] sm:$0x3] %vm49, 0.0
    %147 = vst.msk [vmem:[#allocation2 + $0x318] sm:$0xff] %vm46, 0.0
    %148 = vst.msk [vmem:[#allocation2 + $0x320] sm:$0xff] %vm46, 0.0
    %149 = vst.msk [vmem:[#allocation2 + $0x328] sm:$0x3] %vm49, 0.0
    %150 = vst.msk [vmem:[#allocation2 + $0x330] sm:$0xff] %vm46, 0.0
    %151 = vst.msk [vmem:[#allocation2 + $0x338] sm:$0xff] %vm46, 0.0
    %152 = vst.msk [vmem:[#allocation2 + $0x340] sm:$0x3] %vm49, 0.0
    %153 = vst.msk [vmem:[#allocation2 + $0x348] sm:$0xff] %vm46, 0.0
    %154 = vst.msk [vmem:[#allocation2 + $0x350] sm:$0xff] %vm46, 0.0
    %155 = vst.msk [vmem:[#allocation2 + $0x358] sm:$0x3] %vm49, 0.0
    %vm156 = vcmask 261120
    %157 = vst.msk [vmem:[#allocation4] sm:$0xff] %vm156, 0.0
    %vm158 = vcmask 254976
    %159 = vst.msk [vmem:[#allocation4 + $0x8] sm:$0x3] %vm158, 0.0
    %160 = vst.msk [vmem:[#allocation4 + $0x10] sm:$0xff] %vm156, 0.0
    %161 = vst.msk [vmem:[#allocation4 + $0x18] sm:$0x3] %vm158, 0.0
    %162 = vst.msk [vmem:[#allocation4 + $0x20] sm:$0xff] %vm156, 0.0
    %163 = vst.msk [vmem:[#allocation4 + $0x28] sm:$0x3] %vm158, 0.0
    %164 = vst.msk [vmem:[#allocation4 + $0x30] sm:$0xff] %vm156, 0.0
    %165 = vst.msk [vmem:[#allocation4 + $0x38] sm:$0x3] %vm158, 0.0
    %166 = vst.msk [vmem:[#allocation4 + $0x40] sm:$0xff] %vm156, 0.0
    %167 = vst.msk [vmem:[#allocation4 + $0x48] sm:$0x3] %vm158, 0.0
    %168 = vst.msk [vmem:[#allocation4 + $0x50] sm:$0xff] %vm156, 0.0
    %169 = vst.msk [vmem:[#allocation4 + $0x58] sm:$0x3] %vm158, 0.0
    %170 = vst.msk [vmem:[#allocation4 + $0x60] sm:$0xff] %vm156, 0.0
    %171 = vst.msk [vmem:[#allocation4 + $0x68] sm:$0x3] %vm158, 0.0
    %172 = vst.msk [vmem:[#allocation4 + $0x70] sm:$0xff] %vm156, 0.0
    %173 = vst.msk [vmem:[#allocation4 + $0x78] sm:$0x3] %vm158, 0.0
    %174 = vst.msk [vmem:[#allocation4 + $0x80] sm:$0xff] %vm156, 0.0
    %175 = vst.msk [vmem:[#allocation4 + $0x88] sm:$0x3] %vm158, 0.0
    %176 = vst.msk [vmem:[#allocation4 + $0x90] sm:$0xff] %vm156, 0.0
    %177 = vst.msk [vmem:[#allocation4 + $0x98] sm:$0x3] %vm158, 0.0
    %178 = vst.msk [vmem:[#allocation4 + $0xa0] sm:$0xff] %vm156, 0.0
    %179 = vst.msk [vmem:[#allocation4 + $0xa8] sm:$0x3] %vm158, 0.0
    %180 = vst.msk [vmem:[#allocation4 + $0xb0] sm:$0xff] %vm156, 0.0
    %181 = vst.msk [vmem:[#allocation4 + $0xb8] sm:$0x3] %vm158, 0.0
    %182 = vst.msk [vmem:[#allocation4 + $0xc0] sm:$0xff] %vm156, 0.0
    %183 = vst.msk [vmem:[#allocation4 + $0xc8] sm:$0x3] %vm158, 0.0
    %184 = vst.msk [vmem:[#allocation4 + $0xd0] sm:$0xff] %vm156, 0.0
    %185 = vst.msk [vmem:[#allocation4 + $0xd8] sm:$0x3] %vm158, 0.0
    %186 = vst.msk [vmem:[#allocation4 + $0xe0] sm:$0xff] %vm156, 0.0
    %187 = vst.msk [vmem:[#allocation4 + $0xe8] sm:$0x3] %vm158, 0.0
    %188 = vst.msk [vmem:[#allocation4 + $0xf0] sm:$0xff] %vm156, 0.0
    %189 = vst.msk [vmem:[#allocation4 + $0xf8] sm:$0x3] %vm158, 0.0
    %190 = vst.msk [vmem:[#allocation4 + $0x100] sm:$0xff] %vm156, 0.0
    %191 = vst.msk [vmem:[#allocation4 + $0x108] sm:$0x3] %vm158, 0.0
    %192 = vst.msk [vmem:[#allocation4 + $0x110] sm:$0xff] %vm156, 0.0
    %193 = vst.msk [vmem:[#allocation4 + $0x118] sm:$0x3] %vm158, 0.0
    %194 = vst.msk [vmem:[#allocation4 + $0x120] sm:$0xff] %vm156, 0.0
    %195 = vst.msk [vmem:[#allocation4 + $0x128] sm:$0x3] %vm158, 0.0
    %196 = vst.msk [vmem:[#allocation4 + $0x130] sm:$0xff] %vm156, 0.0
    %197 = vst.msk [vmem:[#allocation4 + $0x138] sm:$0x3] %vm158, 0.0
    %vm198 = vcmask 259072
    %199 = vst.msk [vmem:[#allocation6] sm:$0x3f] %vm198, 0.0
    %200 = vst.msk [vmem:[#allocation6 + $0x8] sm:$0x3f] %vm198, 0.0
    %201 = vst.msk [vmem:[#allocation6 + $0x10] sm:$0x3f] %vm198, 0.0
    %202 = vst.msk [vmem:[#allocation6 + $0x18] sm:$0x3f] %vm198, 0.0
    %203 = vst.msk [vmem:[#allocation6 + $0x20] sm:$0x3f] %vm198, 0.0
    %204 = vst.msk [vmem:[#allocation6 + $0x28] sm:$0x3f] %vm198, 0.0
    %205 = vst.msk [vmem:[#allocation6 + $0x30] sm:$0x3f] %vm198, 0.0
    %206 = vst.msk [vmem:[#allocation6 + $0x38] sm:$0x3f] %vm198, 0.0
    %207 = vst.msk [vmem:[#allocation6 + $0x40] sm:$0x3f] %vm198, 0.0
    %208 = vst.msk [vmem:[#allocation6 + $0x48] sm:$0x3f] %vm198, 0.0
    %209 = vst.msk [vmem:[#allocation6 + $0x50] sm:$0x3f] %vm198, 0.0
    %210 = vst.msk [vmem:[#allocation6 + $0x58] sm:$0x3f] %vm198, 0.0
    %vm211 = vcmask 257024
    %212 = vst.msk [vmem:[#allocation8] sm:$0xf] %vm211, 0.0
    %213 = vst.msk [vmem:[#allocation8 + $0x4] sm:$0xf] %vm211, 0.0
    %214 = vst.msk [vmem:[#allocation8 + $0x8] sm:$0xf] %vm211, 0.0
    %215 = vst.msk [vmem:[#allocation8 + $0xc] sm:$0xf] %vm211, 0.0
    %216 = vst.msk [vmem:[#allocation8 + $0x10] sm:$0xf] %vm211, 0.0
    %217 = vst.msk [vmem:[#allocation8 + $0x14] sm:$0xf] %vm211, 0.0
    %218 = vst.msk [vmem:[#allocation8 + $0x18] sm:$0xf] %vm211, 0.0
    %219 = vst.msk [vmem:[#allocation8 + $0x1c] sm:$0xf] %vm211, 0.0
    %v220 = vld [vmem:[%s0] sm:$0xff]
    %v221 = vld [vmem:[%s0 + $0x8] sm:$0xff]
    %v222 = vld [vmem:[%s0 + $0x10] sm:$0xff]
    %v223 = vld [vmem:[%s0 + $0x18] sm:$0xff]
    %v224 = vld [vmem:[%s0 + $0x20] sm:$0xff]
    %v225 = vld [vmem:[%s0 + $0x28] sm:$0xff]
    %v226 = vld [vmem:[%s0 + $0x30] sm:$0xff]
    %v227 = vld [vmem:[%s0 + $0x38] sm:$0xff]
    %v228 = vld [vmem:[%s0 + $0x40] sm:$0xff]
    %v229 = vld [vmem:[%s0 + $0x48] sm:$0xff]
    %v230 = vld [vmem:[%s0 + $0x50] sm:$0xff]
    %v231 = vld [vmem:[%s0 + $0x58] sm:$0xff]
    %v232 = vld [vmem:[%s0 + $0x60] sm:$0xff]
    %v233 = vld [vmem:[%s0 + $0x68] sm:$0xff]
    %v234 = vld [vmem:[%s0 + $0x70] sm:$0xff]
    %v235 = vld [vmem:[%s0 + $0x78] sm:$0xff]
    %v236 = vld [vmem:[%s0 + $0x80] sm:$0xff]
    %v237 = vld [vmem:[%s0 + $0x88] sm:$0xff]
    %v238 = vld [vmem:[%s0 + $0x90] sm:$0xff]
    %v239 = vld [vmem:[%s0 + $0x98] sm:$0xff]
    %v240 = vld [vmem:[%s0 + $0xa0] sm:$0xff]
    %v241 = vld [vmem:[%s0 + $0xa8] sm:$0xff]
    %v242 = vld [vmem:[%s0 + $0xb0] sm:$0xff]
    %v243 = vld [vmem:[%s0 + $0xb8] sm:$0xff]
    %v244 = vld [vmem:[%s0 + $0xc0] sm:$0xff]
    %v245 = vld [vmem:[%s0 + $0xc8] sm:$0xff]
    %v246 = vld [vmem:[%s0 + $0xd0] sm:$0xff]
    %v247 = vld [vmem:[%s0 + $0xd8] sm:$0xff]
    %v248 = vld [vmem:[%s0 + $0xe0] sm:$0xff]
    %v249 = vld [vmem:[%s0 + $0xe8] sm:$0xff]
    %v250 = vld [vmem:[%s0 + $0xf0] sm:$0xff]
    %v251 = vld [vmem:[%s0 + $0xf8] sm:$0xff]
    %v252 = vld [vmem:[%s0 + $0x100] sm:$0xff]
    %v253 = vld [vmem:[%s0 + $0x108] sm:$0xff]
    %v254 = vld [vmem:[%s0 + $0x110] sm:$0xff]
    %v255 = vld [vmem:[%s0 + $0x118] sm:$0xff]
    %v256 = vld [vmem:[%s0 + $0x120] sm:$0xff]
    %v257 = vld [vmem:[%s0 + $0x128] sm:$0xff]
    %v258 = vld [vmem:[%s0 + $0x130] sm:$0xff]
    %v259 = vld [vmem:[%s0 + $0x138] sm:$0xff]
    %v260 = vld [vmem:[%s0 + $0x140] sm:$0xff]
    %v261 = vld [vmem:[%s0 + $0x148] sm:$0xff]
    %v262 = vld [vmem:[%s0 + $0x150] sm:$0xff]
    %v263 = vld [vmem:[%s0 + $0x158] sm:$0xff]
    %v264 = vld [vmem:[%s0 + $0x160] sm:$0xff]
    %v265 = vld [vmem:[%s0 + $0x168] sm:$0xff]
    %v266 = vld [vmem:[%s0 + $0x170] sm:$0xff]
    %v267 = vld [vmem:[%s0 + $0x178] sm:$0xff]
    %v268 = vld [vmem:[%s0 + $0x180] sm:$0xff]
    %v269 = vld [vmem:[%s0 + $0x188] sm:$0xff]
    %v270 = vld [vmem:[%s0 + $0x190] sm:$0xff]
    %v271 = vld [vmem:[%s0 + $0x198] sm:$0xff]
    %v272 = vld [vmem:[%s0 + $0x1a0] sm:$0xff]
    %v273 = vld [vmem:[%s0 + $0x1a8] sm:$0xff]
    %v274 = vld [vmem:[%s0 + $0x1b0] sm:$0xff]
    %v275 = vld [vmem:[%s0 + $0x1b8] sm:$0xff]
    %v276 = vld [vmem:[%s0 + $0x1c0] sm:$0xff]
    %v277 = vld [vmem:[%s0 + $0x1c8] sm:$0xff]
    %v278 = vld [vmem:[%s0 + $0x1d0] sm:$0xff]
    %v279 = vld [vmem:[%s0 + $0x1d8] sm:$0xff]
    %v280 = vld [vmem:[%s0 + $0x1e0] sm:$0xff]
    %v281 = vld [vmem:[%s0 + $0x1e8] sm:$0xff]
    %v282 = vld [vmem:[%s0 + $0x1f0] sm:$0xff]
    %v283 = vld [vmem:[%s0 + $0x1f8] sm:$0xff]
    %s284 = scalar_lea.vmem [#allocation2], 24
    %285 = vst.msk [vmem:[%s284 + $0x1] sm:$0xff] %vm46, %v220
    %286 = vst.msk [vmem:[%s284 + $0x9] sm:$0xff] %vm46, %v221
    %287 = vst.msk [vmem:[%s284 + $0x19] sm:$0xff] %vm46, %v222
    %288 = vst.msk [vmem:[%s284 + $0x21] sm:$0xff] %vm46, %v223
    %289 = vst.msk [vmem:[%s284 + $0x31] sm:$0xff] %vm46, %v224
    %290 = vst.msk [vmem:[%s284 + $0x39] sm:$0xff] %vm46, %v225
    %291 = vst.msk [vmem:[%s284 + $0x49] sm:$0xff] %vm46, %v226
    %292 = vst.msk [vmem:[%s284 + $0x51] sm:$0xff] %vm46, %v227
    %293 = vst.msk [vmem:[%s284 + $0x61] sm:$0xff] %vm46, %v228
    %294 = vst.msk [vmem:[%s284 + $0x69] sm:$0xff] %vm46, %v229
    %295 = vst.msk [vmem:[%s284 + $0x79] sm:$0xff] %vm46, %v230
    %296 = vst.msk [vmem:[%s284 + $0x81] sm:$0xff] %vm46, %v231
    %297 = vst.msk [vmem:[%s284 + $0x91] sm:$0xff] %vm46, %v232
    %298 = vst.msk [vmem:[%s284 + $0x99] sm:$0xff] %vm46, %v233
    %299 = vst.msk [vmem:[%s284 + $0xa9] sm:$0xff] %vm46, %v234
    %300 = vst.msk [vmem:[%s284 + $0xb1] sm:$0xff] %vm46, %v235
    %301 = vst.msk [vmem:[%s284 + $0xc1] sm:$0xff] %vm46, %v236
    %302 = vst.msk [vmem:[%s284 + $0xc9] sm:$0xff] %vm46, %v237
    %303 = vst.msk [vmem:[%s284 + $0xd9] sm:$0xff] %vm46, %v238
    %304 = vst.msk [vmem:[%s284 + $0xe1] sm:$0xff] %vm46, %v239
    %305 = vst.msk [vmem:[%s284 + $0xf1] sm:$0xff] %vm46, %v240
    %306 = vst.msk [vmem:[%s284 + $0xf9] sm:$0xff] %vm46, %v241
    %307 = vst.msk [vmem:[%s284 + $0x109] sm:$0xff] %vm46, %v242
    %308 = vst.msk [vmem:[%s284 + $0x111] sm:$0xff] %vm46, %v243
    %309 = vst.msk [vmem:[%s284 + $0x121] sm:$0xff] %vm46, %v244
    %310 = vst.msk [vmem:[%s284 + $0x129] sm:$0xff] %vm46, %v245
    %311 = vst.msk [vmem:[%s284 + $0x139] sm:$0xff] %vm46, %v246
    %312 = vst.msk [vmem:[%s284 + $0x141] sm:$0xff] %vm46, %v247
    %313 = vst.msk [vmem:[%s284 + $0x151] sm:$0xff] %vm46, %v248
    %314 = vst.msk [vmem:[%s284 + $0x159] sm:$0xff] %vm46, %v249
    %315 = vst.msk [vmem:[%s284 + $0x169] sm:$0xff] %vm46, %v250
    %316 = vst.msk [vmem:[%s284 + $0x171] sm:$0xff] %vm46, %v251
    %317 = vst.msk [vmem:[%s284 + $0x1b1] sm:$0xff] %vm46, %v252
    %318 = vst.msk [vmem:[%s284 + $0x1b9] sm:$0xff] %vm46, %v253
    %319 = vst.msk [vmem:[%s284 + $0x1c9] sm:$0xff] %vm46, %v254
    %320 = vst.msk [vmem:[%s284 + $0x1d1] sm:$0xff] %vm46, %v255
    %321 = vst.msk [vmem:[%s284 + $0x1e1] sm:$0xff] %vm46, %v256
    %322 = vst.msk [vmem:[%s284 + $0x1e9] sm:$0xff] %vm46, %v257
    %323 = vst.msk [vmem:[%s284 + $0x1f9] sm:$0xff] %vm46, %v258
    %324 = vst.msk [vmem:[%s284 + $0x201] sm:$0xff] %vm46, %v259
    %325 = vst.msk [vmem:[%s284 + $0x211] sm:$0xff] %vm46, %v260
    %326 = vst.msk [vmem:[%s284 + $0x219] sm:$0xff] %vm46, %v261
    %327 = vst.msk [vmem:[%s284 + $0x229] sm:$0xff] %vm46, %v262
    %328 = vst.msk [vmem:[%s284 + $0x231] sm:$0xff] %vm46, %v263
    %329 = vst.msk [vmem:[%s284 + $0x241] sm:$0xff] %vm46, %v264
    %330 = vst.msk [vmem:[%s284 + $0x249] sm:$0xff] %vm46, %v265
    %331 = vst.msk [vmem:[%s284 + $0x259] sm:$0xff] %vm46, %v266
    %332 = vst.msk [vmem:[%s284 + $0x261] sm:$0xff] %vm46, %v267
    %333 = vst.msk [vmem:[%s284 + $0x271] sm:$0xff] %vm46, %v268
    %334 = vst.msk [vmem:[%s284 + $0x279] sm:$0xff] %vm46, %v269
    %335 = vst.msk [vmem:[%s284 + $0x289] sm:$0xff] %vm46, %v270
    %336 = vst.msk [vmem:[%s284 + $0x291] sm:$0xff] %vm46, %v271
    %337 = vst.msk [vmem:[%s284 + $0x2a1] sm:$0xff] %vm46, %v272
    %338 = vst.msk [vmem:[%s284 + $0x2a9] sm:$0xff] %vm46, %v273
    %339 = vst.msk [vmem:[%s284 + $0x2b9] sm:$0xff] %vm46, %v274
    %340 = vst.msk [vmem:[%s284 + $0x2c1] sm:$0xff] %vm46, %v275
    %341 = vst.msk [vmem:[%s284 + $0x2d1] sm:$0xff] %vm46, %v276
    %342 = vst.msk [vmem:[%s284 + $0x2d9] sm:$0xff] %vm46, %v277
    %343 = vst.msk [vmem:[%s284 + $0x2e9] sm:$0xff] %vm46, %v278
    %344 = vst.msk [vmem:[%s284 + $0x2f1] sm:$0xff] %vm46, %v279
    %345 = vst.msk [vmem:[%s284 + $0x301] sm:$0xff] %vm46, %v280
    %346 = vst.msk [vmem:[%s284 + $0x309] sm:$0xff] %vm46, %v281
    %347 = vst.msk [vmem:[%s284 + $0x319] sm:$0xff] %vm46, %v282
    %348 = vst.msk [vmem:[%s284 + $0x321] sm:$0xff] %vm46, %v283
    %v349 = vld [vmem:[#allocation2] sm:$0xff]
    %v350 = vld [vmem:[#allocation2 + $0x8] sm:$0xff]
    %v351 = vld [vmem:[#allocation2 + $0x18] sm:$0xff]
    %v352 = vld [vmem:[#allocation2 + $0x20] sm:$0xff]
    %v353 = vld [vmem:[#allocation2 + $0x30] sm:$0xff]
    %v354 = vld [vmem:[#allocation2 + $0x38] sm:$0xff]
    %v355 = vld [vmem:[#allocation2 + $0x48] sm:$0xff]
    %v356 = vld [vmem:[#allocation2 + $0x50] sm:$0xff]
    %v357 = vld [vmem:[#allocation2 + $0x60] sm:$0xff]
    %v358 = vld [vmem:[#allocation2 + $0x68] sm:$0xff]
    %v359 = vld [vmem:[#allocation2 + $0x78] sm:$0xff]
    %v360 = vld [vmem:[#allocation2 + $0x80] sm:$0xff]
    %v361 = vld [vmem:[#allocation2 + $0x90] sm:$0xff]
    %v362 = vld [vmem:[#allocation2 + $0x98] sm:$0xff]
    %v363 = vld [vmem:[#allocation2 + $0xa8] sm:$0xff]
    %v364 = vld [vmem:[#allocation2 + $0xb0] sm:$0xff]
    %v365 = vld [vmem:[#allocation2 + $0xc0] sm:$0xff]
    %v366 = vld [vmem:[#allocation2 + $0xc8] sm:$0xff]
    %v367 = vld [vmem:[#allocation2 + $0xd8] sm:$0xff]
    %v368 = vld [vmem:[#allocation2 + $0xe0] sm:$0xff]
    %v369 = vld [vmem:[#allocation2 + $0xf0] sm:$0xff]
    %v370 = vld [vmem:[#allocation2 + $0xf8] sm:$0xff]
    %v371 = vld [vmem:[#allocation2 + $0x108] sm:$0xff]
    %v372 = vld [vmem:[#allocation2 + $0x110] sm:$0xff]
    %v373 = vld [vmem:[#allocation2 + $0x120] sm:$0xff]
    %v374 = vld [vmem:[#allocation2 + $0x128] sm:$0xff]
    %v375 = vld [vmem:[#allocation2 + $0x138] sm:$0xff]
    %v376 = vld [vmem:[#allocation2 + $0x140] sm:$0xff]
    %v377 = vld [vmem:[#allocation2 + $0x150] sm:$0xff]
    %v378 = vld [vmem:[#allocation2 + $0x158] sm:$0xff]
    %v379 = vld [vmem:[#allocation2 + $0x168] sm:$0xff]
    %v380 = vld [vmem:[#allocation2 + $0x170] sm:$0xff]
    %v381 = vld [vmem:[#allocation2 + $0x1b0] sm:$0xff]
    %v382 = vld [vmem:[#allocation2 + $0x1b8] sm:$0xff]
    %v383 = vld [vmem:[#allocation2 + $0x1c8] sm:$0xff]
    %v384 = vld [vmem:[#allocation2 + $0x1d0] sm:$0xff]
    %v385 = vld [vmem:[#allocation2 + $0x1e0] sm:$0xff]
    %v386 = vld [vmem:[#allocation2 + $0x1e8] sm:$0xff]
    %v387 = vld [vmem:[#allocation2 + $0x1f8] sm:$0xff]
    %v388 = vld [vmem:[#allocation2 + $0x200] sm:$0xff]
    %v389 = vld [vmem:[#allocation2 + $0x210] sm:$0xff]
    %v390 = vld [vmem:[#allocation2 + $0x218] sm:$0xff]
    %v391 = vld [vmem:[#allocation2 + $0x228] sm:$0xff]
    %v392 = vld [vmem:[#allocation2 + $0x230] sm:$0xff]
    %v393 = vld [vmem:[#allocation2 + $0x240] sm:$0xff]
    %v394 = vld [vmem:[#allocation2 + $0x248] sm:$0xff]
    %v395 = vld [vmem:[#allocation2 + $0x258] sm:$0xff]
    %v396 = vld [vmem:[#allocation2 + $0x260] sm:$0xff]
    %v397 = vld [vmem:[#allocation2 + $0x270] sm:$0xff]
    %v398 = vld [vmem:[#allocation2 + $0x278] sm:$0xff]
    %v399 = vld [vmem:[#allocation2 + $0x288] sm:$0xff]
    %v400 = vld [vmem:[#allocation2 + $0x290] sm:$0xff]
    %v401 = vld [vmem:[#allocation2 + $0x2a0] sm:$0xff]
    %v402 = vld [vmem:[#allocation2 + $0x2a8] sm:$0xff]
    %v403 = vld [vmem:[#allocation2 + $0x2b8] sm:$0xff]
    %v404 = vld [vmem:[#allocation2 + $0x2c0] sm:$0xff]
    %v405 = vld [vmem:[#allocation2 + $0x2d0] sm:$0xff]
    %v406 = vld [vmem:[#allocation2 + $0x2d8] sm:$0xff]
    %v407 = vld [vmem:[#allocation2 + $0x2e8] sm:$0xff]
    %v408 = vld [vmem:[#allocation2 + $0x2f0] sm:$0xff]
    %v409 = vld [vmem:[#allocation2 + $0x300] sm:$0xff]
    %v410 = vld [vmem:[#allocation2 + $0x308] sm:$0xff]
    %v411 = vld [vmem:[#allocation2 + $0x318] sm:$0xff]
    %v412 = vld [vmem:[#allocation2 + $0x320] sm:$0xff]
    %413 = vst.msk [vmem:[#allocation3] sm:$0xff] %vm46, %v349
    %414 = vst.msk [vmem:[#allocation3 + $0x8] sm:$0xff] %vm46, %v350
    %415 = vst.msk [vmem:[#allocation3 + $0x10] sm:$0xff] %vm46, %v351
    %416 = vst.msk [vmem:[#allocation3 + $0x18] sm:$0xff] %vm46, %v352
    %417 = vst.msk [vmem:[#allocation3 + $0x20] sm:$0xff] %vm46, %v353
    %418 = vst.msk [vmem:[#allocation3 + $0x28] sm:$0xff] %vm46, %v354
    %419 = vst.msk [vmem:[#allocation3 + $0x30] sm:$0xff] %vm46, %v355
    %420 = vst.msk [vmem:[#allocation3 + $0x38] sm:$0xff] %vm46, %v356
    %421 = vst.msk [vmem:[#allocation3 + $0x40] sm:$0xff] %vm46, %v357
    %422 = vst.msk [vmem:[#allocation3 + $0x48] sm:$0xff] %vm46, %v358
    %423 = vst.msk [vmem:[#allocation3 + $0x50] sm:$0xff] %vm46, %v359
    %424 = vst.msk [vmem:[#allocation3 + $0x58] sm:$0xff] %vm46, %v360
    %425 = vst.msk [vmem:[#allocation3 + $0x60] sm:$0xff] %vm46, %v361
    %426 = vst.msk [vmem:[#allocation3 + $0x68] sm:$0xff] %vm46, %v362
    %427 = vst.msk [vmem:[#allocation3 + $0x70] sm:$0xff] %vm46, %v363
    %428 = vst.msk [vmem:[#allocation3 + $0x78] sm:$0xff] %vm46, %v364
    %429 = vst.msk [vmem:[#allocation3 + $0x80] sm:$0xff] %vm46, %v365
    %430 = vst.msk [vmem:[#allocation3 + $0x88] sm:$0xff] %vm46, %v366
    %431 = vst.msk [vmem:[#allocation3 + $0x90] sm:$0xff] %vm46, %v367
    %432 = vst.msk [vmem:[#allocation3 + $0x98] sm:$0xff] %vm46, %v368
    %433 = vst.msk [vmem:[#allocation3 + $0xa0] sm:$0xff] %vm46, %v369
    %434 = vst.msk [vmem:[#allocation3 + $0xa8] sm:$0xff] %vm46, %v370
    %435 = vst.msk [vmem:[#allocation3 + $0xb0] sm:$0xff] %vm46, %v371
    %436 = vst.msk [vmem:[#allocation3 + $0xb8] sm:$0xff] %vm46, %v372
    %437 = vst.msk [vmem:[#allocation3 + $0xc0] sm:$0xff] %vm46, %v373
    %438 = vst.msk [vmem:[#allocation3 + $0xc8] sm:$0xff] %vm46, %v374
    %439 = vst.msk [vmem:[#allocation3 + $0xd0] sm:$0xff] %vm46, %v375
    %440 = vst.msk [vmem:[#allocation3 + $0xd8] sm:$0xff] %vm46, %v376
    %441 = vst.msk [vmem:[#allocation3 + $0xe0] sm:$0xff] %vm46, %v377
    %442 = vst.msk [vmem:[#allocation3 + $0xe8] sm:$0xff] %vm46, %v378
    %443 = vst.msk [vmem:[#allocation3 + $0xf0] sm:$0xff] %vm46, %v379
    %444 = vst.msk [vmem:[#allocation3 + $0xf8] sm:$0xff] %vm46, %v380
    %445 = vst.msk [vmem:[#allocation3 + $0x100] sm:$0xff] %vm46, %v381
    %446 = vst.msk [vmem:[#allocation3 + $0x108] sm:$0xff] %vm46, %v382
    %447 = vst.msk [vmem:[#allocation3 + $0x110] sm:$0xff] %vm46, %v383
    %448 = vst.msk [vmem:[#allocation3 + $0x118] sm:$0xff] %vm46, %v384
    %449 = vst.msk [vmem:[#allocation3 + $0x120] sm:$0xff] %vm46, %v385
    %450 = vst.msk [vmem:[#allocation3 + $0x128] sm:$0xff] %vm46, %v386
    %451 = vst.msk [vmem:[#allocation3 + $0x130] sm:$0xff] %vm46, %v387
    %452 = vst.msk [vmem:[#allocation3 + $0x138] sm:$0xff] %vm46, %v388
    %453 = vst.msk [vmem:[#allocation3 + $0x140] sm:$0xff] %vm46, %v389
    %454 = vst.msk [vmem:[#allocation3 + $0x148] sm:$0xff] %vm46, %v390
    %455 = vst.msk [vmem:[#allocation3 + $0x150] sm:$0xff] %vm46, %v391
    %456 = vst.msk [vmem:[#allocation3 + $0x158] sm:$0xff] %vm46, %v392
    %457 = vst.msk [vmem:[#allocation3 + $0x160] sm:$0xff] %vm46, %v393
    %458 = vst.msk [vmem:[#allocation3 + $0x168] sm:$0xff] %vm46, %v394
    %459 = vst.msk [vmem:[#allocation3 + $0x170] sm:$0xff] %vm46, %v395
    %460 = vst.msk [vmem:[#allocation3 + $0x178] sm:$0xff] %vm46, %v396
    %461 = vst.msk [vmem:[#allocation3 + $0x180] sm:$0xff] %vm46, %v397
    %462 = vst.msk [vmem:[#allocation3 + $0x188] sm:$0xff] %vm46, %v398
    %463 = vst.msk [vmem:[#allocation3 + $0x190] sm:$0xff] %vm46, %v399
    %464 = vst.msk [vmem:[#allocation3 + $0x198] sm:$0xff] %vm46, %v400
    %465 = vst.msk [vmem:[#allocation3 + $0x1a0] sm:$0xff] %vm46, %v401
    %466 = vst.msk [vmem:[#allocation3 + $0x1a8] sm:$0xff] %vm46, %v402
    %467 = vst.msk [vmem:[#allocation3 + $0x1b0] sm:$0xff] %vm46, %v403
    %468 = vst.msk [vmem:[#allocation3 + $0x1b8] sm:$0xff] %vm46, %v404
    %469 = vst.msk [vmem:[#allocation3 + $0x1c0] sm:$0xff] %vm46, %v405
    %470 = vst.msk [vmem:[#allocation3 + $0x1c8] sm:$0xff] %vm46, %v406
    %471 = vst.msk [vmem:[#allocation3 + $0x1d0] sm:$0xff] %vm46, %v407
    %472 = vst.msk [vmem:[#allocation3 + $0x1d8] sm:$0xff] %vm46, %v408
    %473 = vst.msk [vmem:[#allocation3 + $0x1e0] sm:$0xff] %vm46, %v409
    %474 = vst.msk [vmem:[#allocation3 + $0x1e8] sm:$0xff] %vm46, %v410
    %475 = vst.msk [vmem:[#allocation3 + $0x1f0] sm:$0xff] %vm46, %v411
    %476 = vst.msk [vmem:[#allocation3 + $0x1f8] sm:$0xff] %vm46, %v412
    %v477 = vld [vmem:[#allocation2 + $0x1] sm:$0xff]
    %v478 = vld [vmem:[#allocation2 + $0x9] sm:$0xff]
    %v479 = vld [vmem:[#allocation2 + $0x19] sm:$0xff]
    %v480 = vld [vmem:[#allocation2 + $0x21] sm:$0xff]
    %v481 = vld [vmem:[#allocation2 + $0x31] sm:$0xff]
    %v482 = vld [vmem:[#allocation2 + $0x39] sm:$0xff]
    %v483 = vld [vmem:[#allocation2 + $0x49] sm:$0xff]
    %v484 = vld [vmem:[#allocation2 + $0x51] sm:$0xff]
    %v485 = vld [vmem:[#allocation2 + $0x61] sm:$0xff]
    %v486 = vld [vmem:[#allocation2 + $0x69] sm:$0xff]
    %v487 = vld [vmem:[#allocation2 + $0x79] sm:$0xff]
    %v488 = vld [vmem:[#allocation2 + $0x81] sm:$0xff]
    %v489 = vld [vmem:[#allocation2 + $0x91] sm:$0xff]
    %v490 = vld [vmem:[#allocation2 + $0x99] sm:$0xff]
    %v491 = vld [vmem:[#allocation2 + $0xa9] sm:$0xff]
    %v492 = vld [vmem:[#allocation2 + $0xb1] sm:$0xff]
    %v493 = vld [vmem:[#allocation2 + $0xc1] sm:$0xff]
    %v494 = vld [vmem:[#allocation2 + $0xc9] sm:$0xff]
    %v495 = vld [vmem:[#allocation2 + $0xd9] sm:$0xff]
    %v496 = vld [vmem:[#allocation2 + $0xe1] sm:$0xff]
    %v497 = vld [vmem:[#allocation2 + $0xf1] sm:$0xff]
    %v498 = vld [vmem:[#allocation2 + $0xf9] sm:$0xff]
    %v499 = vld [vmem:[#allocation2 + $0x109] sm:$0xff]
    %v500 = vld [vmem:[#allocation2 + $0x111] sm:$0xff]
    %v501 = vld [vmem:[#allocation2 + $0x121] sm:$0xff]
    %v502 = vld [vmem:[#allocation2 + $0x129] sm:$0xff]
    %v503 = vld [vmem:[#allocation2 + $0x139] sm:$0xff]
    %v504 = vld [vmem:[#allocation2 + $0x141] sm:$0xff]
    %v505 = vld [vmem:[#allocation2 + $0x151] sm:$0xff]
    %v506 = vld [vmem:[#allocation2 + $0x159] sm:$0xff]
    %v507 = vld [vmem:[#allocation2 + $0x169] sm:$0xff]
    %v508 = vld [vmem:[#allocation2 + $0x171] sm:$0xff]
    %v509 = vld [vmem:[#allocation2 + $0x1b1] sm:$0xff]
    %v510 = vld [vmem:[#allocation2 + $0x1b9] sm:$0xff]
    %v511 = vld [vmem:[#allocation2 + $0x1c9] sm:$0xff]
    %v512 = vld [vmem:[#allocation2 + $0x1d1] sm:$0xff]
    %v513 = vld [vmem:[#allocation2 + $0x1e1] sm:$0xff]
    %v514 = vld [vmem:[#allocation2 + $0x1e9] sm:$0xff]
    %v515 = vld [vmem:[#allocation2 + $0x1f9] sm:$0xff]
    %v516 = vld [vmem:[#allocation2 + $0x201] sm:$0xff]
    %v517 = vld [vmem:[#allocation2 + $0x211] sm:$0xff]
    %v518 = vld [vmem:[#allocation2 + $0x219] sm:$0xff]
    %v519 = vld [vmem:[#allocation2 + $0x229] sm:$0xff]
    %v520 = vld [vmem:[#allocation2 + $0x231] sm:$0xff]
    %v521 = vld [vmem:[#allocation2 + $0x241] sm:$0xff]
    %v522 = vld [vmem:[#allocation2 + $0x249] sm:$0xff]
    %v523 = vld [vmem:[#allocation2 + $0x259] sm:$0xff]
    %v524 = vld [vmem:[#allocation2 + $0x261] sm:$0xff]
    %v525 = vld [vmem:[#allocation2 + $0x271] sm:$0xff]
    %v526 = vld [vmem:[#allocation2 + $0x279] sm:$0xff]
    %v527 = vld [vmem:[#allocation2 + $0x289] sm:$0xff]
    %v528 = vld [vmem:[#allocation2 + $0x291] sm:$0xff]
    %v529 = vld [vmem:[#allocation2 + $0x2a1] sm:$0xff]
    %v530 = vld [vmem:[#allocation2 + $0x2a9] sm:$0xff]
    %v531 = vld [vmem:[#allocation2 + $0x2b9] sm:$0xff]
    %v532 = vld [vmem:[#allocation2 + $0x2c1] sm:$0xff]
    %v533 = vld [vmem:[#allocation2 + $0x2d1] sm:$0xff]
    %v534 = vld [vmem:[#allocation2 + $0x2d9] sm:$0xff]
    %v535 = vld [vmem:[#allocation2 + $0x2e9] sm:$0xff]
    %v536 = vld [vmem:[#allocation2 + $0x2f1] sm:$0xff]
    %v537 = vld [vmem:[#allocation2 + $0x301] sm:$0xff]
    %v538 = vld [vmem:[#allocation2 + $0x309] sm:$0xff]
    %v539 = vld [vmem:[#allocation2 + $0x319] sm:$0xff]
    %v540 = vld [vmem:[#allocation2 + $0x321] sm:$0xff]
    %605 = vrot.lane.b32.xlu0 %v477, 4
    %v606 = vpop.permute.xlu0 %605
    %607 = vrot.lane.b32.xlu0 %v478, 4
    %v608 = vpop.permute.xlu0 %607
    %609 = vrot.lane.b32.xlu0 %v479, 4
    %v610 = vpop.permute.xlu0 %609
    %611 = vrot.lane.b32.xlu0 %v480, 4
    %v612 = vpop.permute.xlu0 %611
    %613 = vrot.lane.b32.xlu0 %v481, 4
    %v614 = vpop.permute.xlu0 %613
    %615 = vrot.lane.b32.xlu0 %v482, 4
    %v616 = vpop.permute.xlu0 %615
    %617 = vrot.lane.b32.xlu0 %v483, 4
    %v618 = vpop.permute.xlu0 %617
    %619 = vrot.lane.b32.xlu0 %v484, 4
    %v620 = vpop.permute.xlu0 %619
    %621 = vrot.lane.b32.xlu0 %v485, 4
    %v622 = vpop.permute.xlu0 %621
    %623 = vrot.lane.b32.xlu0 %v486, 4
    %v624 = vpop.permute.xlu0 %623
    %625 = vrot.lane.b32.xlu0 %v487, 4
    %v626 = vpop.permute.xlu0 %625
    %627 = vrot.lane.b32.xlu0 %v488, 4
    %v628 = vpop.permute.xlu0 %627
    %629 = vrot.lane.b32.xlu0 %v489, 4
    %v630 = vpop.permute.xlu0 %629
    %631 = vrot.lane.b32.xlu0 %v490, 4
    %v632 = vpop.permute.xlu0 %631
    %633 = vrot.lane.b32.xlu0 %v491, 4
    %v634 = vpop.permute.xlu0 %633
    %635 = vrot.lane.b32.xlu0 %v492, 4
    %v636 = vpop.permute.xlu0 %635
    %637 = vrot.lane.b32.xlu0 %v493, 4
    %v638 = vpop.permute.xlu0 %637
    %639 = vrot.lane.b32.xlu0 %v494, 4
    %v640 = vpop.permute.xlu0 %639
    %641 = vrot.lane.b32.xlu0 %v495, 4
    %v642 = vpop.permute.xlu0 %641
    %643 = vrot.lane.b32.xlu0 %v496, 4
    %v644 = vpop.permute.xlu0 %643
    %645 = vrot.lane.b32.xlu0 %v497, 4
    %v646 = vpop.permute.xlu0 %645
    %647 = vrot.lane.b32.xlu0 %v498, 4
    %v648 = vpop.permute.xlu0 %647
    %649 = vrot.lane.b32.xlu0 %v499, 4
    %v650 = vpop.permute.xlu0 %649
    %651 = vrot.lane.b32.xlu0 %v500, 4
    %v652 = vpop.permute.xlu0 %651
    %653 = vrot.lane.b32.xlu0 %v501, 4
    %v654 = vpop.permute.xlu0 %653
    %655 = vrot.lane.b32.xlu0 %v502, 4
    %v656 = vpop.permute.xlu0 %655
    %657 = vrot.lane.b32.xlu0 %v503, 4
    %v658 = vpop.permute.xlu0 %657
    %659 = vrot.lane.b32.xlu0 %v504, 4
    %v660 = vpop.permute.xlu0 %659
    %661 = vrot.lane.b32.xlu0 %v505, 4
    %v662 = vpop.permute.xlu0 %661
    %663 = vrot.lane.b32.xlu0 %v506, 4
    %v664 = vpop.permute.xlu0 %663
    %665 = vrot.lane.b32.xlu0 %v507, 4
    %v666 = vpop.permute.xlu0 %665
    %667 = vrot.lane.b32.xlu0 %v508, 4
    %v668 = vpop.permute.xlu0 %667
    %669 = vrot.lane.b32.xlu0 %v509, 4
    %v670 = vpop.permute.xlu0 %669
    %671 = vrot.lane.b32.xlu0 %v510, 4
    %v672 = vpop.permute.xlu0 %671
    %673 = vrot.lane.b32.xlu0 %v511, 4
    %v674 = vpop.permute.xlu0 %673
    %675 = vrot.lane.b32.xlu0 %v512, 4
    %v676 = vpop.permute.xlu0 %675
    %677 = vrot.lane.b32.xlu0 %v513, 4
    %v678 = vpop.permute.xlu0 %677
    %679 = vrot.lane.b32.xlu0 %v514, 4
    %v680 = vpop.permute.xlu0 %679
    %681 = vrot.lane.b32.xlu0 %v515, 4
    %v682 = vpop.permute.xlu0 %681
    %683 = vrot.lane.b32.xlu0 %v516, 4
    %v684 = vpop.permute.xlu0 %683
    %685 = vrot.lane.b32.xlu0 %v517, 4
    %v686 = vpop.permute.xlu0 %685
    %687 = vrot.lane.b32.xlu0 %v518, 4
    %v688 = vpop.permute.xlu0 %687
    %689 = vrot.lane.b32.xlu0 %v519, 4
    %v690 = vpop.permute.xlu0 %689
    %691 = vrot.lane.b32.xlu0 %v520, 4
    %v692 = vpop.permute.xlu0 %691
    %693 = vrot.lane.b32.xlu0 %v521, 4
    %v694 = vpop.permute.xlu0 %693
    %695 = vrot.lane.b32.xlu0 %v522, 4
    %v696 = vpop.permute.xlu0 %695
    %697 = vrot.lane.b32.xlu0 %v523, 4
    %v698 = vpop.permute.xlu0 %697
    %699 = vrot.lane.b32.xlu0 %v524, 4
    %v700 = vpop.permute.xlu0 %699
    %701 = vrot.lane.b32.xlu0 %v525, 4
    %v702 = vpop.permute.xlu0 %701
    %703 = vrot.lane.b32.xlu0 %v526, 4
    %v704 = vpop.permute.xlu0 %703
    %705 = vrot.lane.b32.xlu0 %v527, 4
    %v706 = vpop.permute.xlu0 %705
    %707 = vrot.lane.b32.xlu0 %v528, 4
    %v708 = vpop.permute.xlu0 %707
    %709 = vrot.lane.b32.xlu0 %v529, 4
    %v710 = vpop.permute.xlu0 %709
    %711 = vrot.lane.b32.xlu0 %v530, 4
    %v712 = vpop.permute.xlu0 %711
    %713 = vrot.lane.b32.xlu0 %v531, 4
    %v714 = vpop.permute.xlu0 %713
    %715 = vrot.lane.b32.xlu0 %v532, 4
    %v716 = vpop.permute.xlu0 %715
    %717 = vrot.lane.b32.xlu0 %v533, 4
    %v718 = vpop.permute.xlu0 %717
    %719 = vrot.lane.b32.xlu0 %v534, 4
    %v720 = vpop.permute.xlu0 %719
    %721 = vrot.lane.b32.xlu0 %v535, 4
    %v722 = vpop.permute.xlu0 %721
    %723 = vrot.lane.b32.xlu0 %v536, 4
    %v724 = vpop.permute.xlu0 %723
    %725 = vrot.lane.b32.xlu0 %v537, 4
    %v726 = vpop.permute.xlu0 %725
    %727 = vrot.lane.b32.xlu0 %v538, 4
    %v728 = vpop.permute.xlu0 %727
    %729 = vrot.lane.b32.xlu0 %v539, 4
    %v730 = vpop.permute.xlu0 %729
    %731 = vrot.lane.b32.xlu0 %v540, 4
    %v732 = vpop.permute.xlu0 %731
    %vm797 = vcmask 64544
    %798 = vst.msk [vmem:[#allocation3] sm:$0xff] %vm797, %v606
    %799 = vst.msk [vmem:[#allocation3 + $0x8] sm:$0xff] %vm797, %v608
    %800 = vst.msk [vmem:[#allocation3 + $0x10] sm:$0xff] %vm797, %v610
    %801 = vst.msk [vmem:[#allocation3 + $0x18] sm:$0xff] %vm797, %v612
    %802 = vst.msk [vmem:[#allocation3 + $0x20] sm:$0xff] %vm797, %v614
    %803 = vst.msk [vmem:[#allocation3 + $0x28] sm:$0xff] %vm797, %v616
    %804 = vst.msk [vmem:[#allocation3 + $0x30] sm:$0xff] %vm797, %v618
    %805 = vst.msk [vmem:[#allocation3 + $0x38] sm:$0xff] %vm797, %v620
    %806 = vst.msk [vmem:[#allocation3 + $0x40] sm:$0xff] %vm797, %v622
    %807 = vst.msk [vmem:[#allocation3 + $0x48] sm:$0xff] %vm797, %v624
    %808 = vst.msk [vmem:[#allocation3 + $0x50] sm:$0xff] %vm797, %v626
    %809 = vst.msk [vmem:[#allocation3 + $0x58] sm:$0xff] %vm797, %v628
    %810 = vst.msk [vmem:[#allocation3 + $0x60] sm:$0xff] %vm797, %v630
    %811 = vst.msk [vmem:[#allocation3 + $0x68] sm:$0xff] %vm797, %v632
    %812 = vst.msk [vmem:[#allocation3 + $0x70] sm:$0xff] %vm797, %v634
    %813 = vst.msk [vmem:[#allocation3 + $0x78] sm:$0xff] %vm797, %v636
    %814 = vst.msk [vmem:[#allocation3 + $0x80] sm:$0xff] %vm797, %v638
    %815 = vst.msk [vmem:[#allocation3 + $0x88] sm:$0xff] %vm797, %v640
    %816 = vst.msk [vmem:[#allocation3 + $0x90] sm:$0xff] %vm797, %v642
    %817 = vst.msk [vmem:[#allocation3 + $0x98] sm:$0xff] %vm797, %v644
    %818 = vst.msk [vmem:[#allocation3 + $0xa0] sm:$0xff] %vm797, %v646
    %819 = vst.msk [vmem:[#allocation3 + $0xa8] sm:$0xff] %vm797, %v648
    %820 = vst.msk [vmem:[#allocation3 + $0xb0] sm:$0xff] %vm797, %v650
    %821 = vst.msk [vmem:[#allocation3 + $0xb8] sm:$0xff] %vm797, %v652
    %822 = vst.msk [vmem:[#allocation3 + $0xc0] sm:$0xff] %vm797, %v654
    %823 = vst.msk [vmem:[#allocation3 + $0xc8] sm:$0xff] %vm797, %v656
    %824 = vst.msk [vmem:[#allocation3 + $0xd0] sm:$0xff] %vm797, %v658
    %825 = vst.msk [vmem:[#allocation3 + $0xd8] sm:$0xff] %vm797, %v660
    %826 = vst.msk [vmem:[#allocation3 + $0xe0] sm:$0xff] %vm797, %v662
    %827 = vst.msk [vmem:[#allocation3 + $0xe8] sm:$0xff] %vm797, %v664
    %828 = vst.msk [vmem:[#allocation3 + $0xf0] sm:$0xff] %vm797, %v666
    %829 = vst.msk [vmem:[#allocation3 + $0xf8] sm:$0xff] %vm797, %v668
    %830 = vst.msk [vmem:[#allocation3 + $0x100] sm:$0xff] %vm797, %v670
    %831 = vst.msk [vmem:[#allocation3 + $0x108] sm:$0xff] %vm797, %v672
    %832 = vst.msk [vmem:[#allocation3 + $0x110] sm:$0xff] %vm797, %v674
    %833 = vst.msk [vmem:[#allocation3 + $0x118] sm:$0xff] %vm797, %v676
    %834 = vst.msk [vmem:[#allocation3 + $0x120] sm:$0xff] %vm797, %v678
    %835 = vst.msk [vmem:[#allocation3 + $0x128] sm:$0xff] %vm797, %v680
    %836 = vst.msk [vmem:[#allocation3 + $0x130] sm:$0xff] %vm797, %v682
    %837 = vst.msk [vmem:[#allocation3 + $0x138] sm:$0xff] %vm797, %v684
    %838 = vst.msk [vmem:[#allocation3 + $0x140] sm:$0xff] %vm797, %v686
    %839 = vst.msk [vmem:[#allocation3 + $0x148] sm:$0xff] %vm797, %v688
    %840 = vst.msk [vmem:[#allocation3 + $0x150] sm:$0xff] %vm797, %v690
    %841 = vst.msk [vmem:[#allocation3 + $0x158] sm:$0xff] %vm797, %v692
    %842 = vst.msk [vmem:[#allocation3 + $0x160] sm:$0xff] %vm797, %v694
    %843 = vst.msk [vmem:[#allocation3 + $0x168] sm:$0xff] %vm797, %v696
    %844 = vst.msk [vmem:[#allocation3 + $0x170] sm:$0xff] %vm797, %v698
    %845 = vst.msk [vmem:[#allocation3 + $0x178] sm:$0xff] %vm797, %v700
    %846 = vst.msk [vmem:[#allocation3 + $0x180] sm:$0xff] %vm797, %v702
    %847 = vst.msk [vmem:[#allocation3 + $0x188] sm:$0xff] %vm797, %v704
    %848 = vst.msk [vmem:[#allocation3 + $0x190] sm:$0xff] %vm797, %v706
    %849 = vst.msk [vmem:[#allocation3 + $0x198] sm:$0xff] %vm797, %v708
    %850 = vst.msk [vmem:[#allocation3 + $0x1a0] sm:$0xff] %vm797, %v710
    %851 = vst.msk [vmem:[#allocation3 + $0x1a8] sm:$0xff] %vm797, %v712
    %852 = vst.msk [vmem:[#allocation3 + $0x1b0] sm:$0xff] %vm797, %v714
    %853 = vst.msk [vmem:[#allocation3 + $0x1b8] sm:$0xff] %vm797, %v716
    %854 = vst.msk [vmem:[#allocation3 + $0x1c0] sm:$0xff] %vm797, %v718
    %855 = vst.msk [vmem:[#allocation3 + $0x1c8] sm:$0xff] %vm797, %v720
    %856 = vst.msk [vmem:[#allocation3 + $0x1d0] sm:$0xff] %vm797, %v722
    %857 = vst.msk [vmem:[#allocation3 + $0x1d8] sm:$0xff] %vm797, %v724
    %858 = vst.msk [vmem:[#allocation3 + $0x1e0] sm:$0xff] %vm797, %v726
    %859 = vst.msk [vmem:[#allocation3 + $0x1e8] sm:$0xff] %vm797, %v728
    %860 = vst.msk [vmem:[#allocation3 + $0x1f0] sm:$0xff] %vm797, %v730
    %861 = vst.msk [vmem:[#allocation3 + $0x1f8] sm:$0xff] %vm797, %v732
    %v862 = vld [vmem:[#allocation2 + $0x2] sm:$0xff]
    %v863 = vld [vmem:[#allocation2 + $0xa] sm:$0xff]
    %v864 = vld [vmem:[#allocation2 + $0x1a] sm:$0xff]
    %v865 = vld [vmem:[#allocation2 + $0x22] sm:$0xff]
    %v866 = vld [vmem:[#allocation2 + $0x32] sm:$0xff]
    %v867 = vld [vmem:[#allocation2 + $0x3a] sm:$0xff]
    %v868 = vld [vmem:[#allocation2 + $0x4a] sm:$0xff]
    %v869 = vld [vmem:[#allocation2 + $0x52] sm:$0xff]
    %v870 = vld [vmem:[#allocation2 + $0x62] sm:$0xff]
    %v871 = vld [vmem:[#allocation2 + $0x6a] sm:$0xff]
    %v872 = vld [vmem:[#allocation2 + $0x7a] sm:$0xff]
    %v873 = vld [vmem:[#allocation2 + $0x82] sm:$0xff]
    %v874 = vld [vmem:[#allocation2 + $0x92] sm:$0xff]
    %v875 = vld [vmem:[#allocation2 + $0x9a] sm:$0xff]
    %v876 = vld [vmem:[#allocation2 + $0xaa] sm:$0xff]
    %v877 = vld [vmem:[#allocation2 + $0xb2] sm:$0xff]
    %v878 = vld [vmem:[#allocation2 + $0xc2] sm:$0xff]
    %v879 = vld [vmem:[#allocation2 + $0xca] sm:$0xff]
    %v880 = vld [vmem:[#allocation2 + $0xda] sm:$0xff]
    %v881 = vld [vmem:[#allocation2 + $0xe2] sm:$0xff]
    %v882 = vld [vmem:[#allocation2 + $0xf2] sm:$0xff]
    %v883 = vld [vmem:[#allocation2 + $0xfa] sm:$0xff]
    %v884 = vld [vmem:[#allocation2 + $0x10a] sm:$0xff]
    %v885 = vld [vmem:[#allocation2 + $0x112] sm:$0xff]
    %v886 = vld [vmem:[#allocation2 + $0x122] sm:$0xff]
    %v887 = vld [vmem:[#allocation2 + $0x12a] sm:$0xff]
    %v888 = vld [vmem:[#allocation2 + $0x13a] sm:$0xff]
    %v889 = vld [vmem:[#allocation2 + $0x142] sm:$0xff]
    %v890 = vld [vmem:[#allocation2 + $0x152] sm:$0xff]
    %v891 = vld [vmem:[#allocation2 + $0x15a] sm:$0xff]
    %v892 = vld [vmem:[#allocation2 + $0x16a] sm:$0xff]
    %v893 = vld [vmem:[#allocation2 + $0x172] sm:$0xff]
    %v894 = vld [vmem:[#allocation2 + $0x1b2] sm:$0xff]
    %v895 = vld [vmem:[#allocation2 + $0x1ba] sm:$0xff]
    %v896 = vld [vmem:[#allocation2 + $0x1ca] sm:$0xff]
    %v897 = vld [vmem:[#allocation2 + $0x1d2] sm:$0xff]
    %v898 = vld [vmem:[#allocation2 + $0x1e2] sm:$0xff]
    %v899 = vld [vmem:[#allocation2 + $0x1ea] sm:$0xff]
    %v900 = vld [vmem:[#allocation2 + $0x1fa] sm:$0xff]
    %v901 = vld [vmem:[#allocation2 + $0x202] sm:$0xff]
    %v902 = vld [vmem:[#allocation2 + $0x212] sm:$0xff]
    %v903 = vld [vmem:[#allocation2 + $0x21a] sm:$0xff]
    %v904 = vld [vmem:[#allocation2 + $0x22a] sm:$0xff]
    %v905 = vld [vmem:[#allocation2 + $0x232] sm:$0xff]
    %v906 = vld [vmem:[#allocation2 + $0x242] sm:$0xff]
    %v907 = vld [vmem:[#allocation2 + $0x24a] sm:$0xff]
    %v908 = vld [vmem:[#allocation2 + $0x25a] sm:$0xff]
    %v909 = vld [vmem:[#allocation2 + $0x262] sm:$0xff]
    %v910 = vld [vmem:[#allocation2 + $0x272] sm:$0xff]
    %v911 = vld [vmem:[#allocation2 + $0x27a] sm:$0xff]
    %v912 = vld [vmem:[#allocation2 + $0x28a] sm:$0xff]
    %v913 = vld [vmem:[#allocation2 + $0x292] sm:$0xff]
    %v914 = vld [vmem:[#allocation2 + $0x2a2] sm:$0xff]
    %v915 = vld [vmem:[#allocation2 + $0x2aa] sm:$0xff]
    %v916 = vld [vmem:[#allocation2 + $0x2ba] sm:$0xff]
    %v917 = vld [vmem:[#allocation2 + $0x2c2] sm:$0xff]
    %v918 = vld [vmem:[#allocation2 + $0x2d2] sm:$0xff]
    %v919 = vld [vmem:[#allocation2 + $0x2da] sm:$0xff]
    %v920 = vld [vmem:[#allocation2 + $0x2ea] sm:$0xff]
    %v921 = vld [vmem:[#allocation2 + $0x2f2] sm:$0xff]
    %v922 = vld [vmem:[#allocation2 + $0x302] sm:$0xff]
    %v923 = vld [vmem:[#allocation2 + $0x30a] sm:$0xff]
    %v924 = vld [vmem:[#allocation2 + $0x31a] sm:$0xff]
    %v925 = vld [vmem:[#allocation2 + $0x322] sm:$0xff]
    %990 = vrot.lane.b32.xlu0 %v862, 8
    %v991 = vpop.permute.xlu0 %990
    %992 = vrot.lane.b32.xlu0 %v863, 8
    %v993 = vpop.permute.xlu0 %992
    %994 = vrot.lane.b32.xlu0 %v864, 8
    %v995 = vpop.permute.xlu0 %994
    %996 = vrot.lane.b32.xlu0 %v865, 8
    %v997 = vpop.permute.xlu0 %996
    %998 = vrot.lane.b32.xlu0 %v866, 8
    %v999 = vpop.permute.xlu0 %998
    %1000 = vrot.lane.b32.xlu0 %v867, 8
    %v1001 = vpop.permute.xlu0 %1000
    %1002 = vrot.lane.b32.xlu0 %v868, 8
    %v1003 = vpop.permute.xlu0 %1002
    %1004 = vrot.lane.b32.xlu0 %v869, 8
    %v1005 = vpop.permute.xlu0 %1004
    %1006 = vrot.lane.b32.xlu0 %v870, 8
    %v1007 = vpop.permute.xlu0 %1006
    %1008 = vrot.lane.b32.xlu0 %v871, 8
    %v1009 = vpop.permute.xlu0 %1008
    %1010 = vrot.lane.b32.xlu0 %v872, 8
    %v1011 = vpop.permute.xlu0 %1010
    %1012 = vrot.lane.b32.xlu0 %v873, 8
    %v1013 = vpop.permute.xlu0 %1012
    %1014 = vrot.lane.b32.xlu0 %v874, 8
    %v1015 = vpop.permute.xlu0 %1014
    %1016 = vrot.lane.b32.xlu0 %v875, 8
    %v1017 = vpop.permute.xlu0 %1016
    %1018 = vrot.lane.b32.xlu0 %v876, 8
    %v1019 = vpop.permute.xlu0 %1018
    %1020 = vrot.lane.b32.xlu0 %v877, 8
    %v1021 = vpop.permute.xlu0 %1020
    %1022 = vrot.lane.b32.xlu0 %v878, 8
    %v1023 = vpop.permute.xlu0 %1022
    %1024 = vrot.lane.b32.xlu0 %v879, 8
    %v1025 = vpop.permute.xlu0 %1024
    %1026 = vrot.lane.b32.xlu0 %v880, 8
    %v1027 = vpop.permute.xlu0 %1026
    %1028 = vrot.lane.b32.xlu0 %v881, 8
    %v1029 = vpop.permute.xlu0 %1028
    %1030 = vrot.lane.b32.xlu0 %v882, 8
    %v1031 = vpop.permute.xlu0 %1030
    %1032 = vrot.lane.b32.xlu0 %v883, 8
    %v1033 = vpop.permute.xlu0 %1032
    %1034 = vrot.lane.b32.xlu0 %v884, 8
    %v1035 = vpop.permute.xlu0 %1034
    %1036 = vrot.lane.b32.xlu0 %v885, 8
    %v1037 = vpop.permute.xlu0 %1036
    %1038 = vrot.lane.b32.xlu0 %v886, 8
    %v1039 = vpop.permute.xlu0 %1038
    %1040 = vrot.lane.b32.xlu0 %v887, 8
    %v1041 = vpop.permute.xlu0 %1040
    %1042 = vrot.lane.b32.xlu0 %v888, 8
    %v1043 = vpop.permute.xlu0 %1042
    %1044 = vrot.lane.b32.xlu0 %v889, 8
    %v1045 = vpop.permute.xlu0 %1044
    %1046 = vrot.lane.b32.xlu0 %v890, 8
    %v1047 = vpop.permute.xlu0 %1046
    %1048 = vrot.lane.b32.xlu0 %v891, 8
    %v1049 = vpop.permute.xlu0 %1048
    %1050 = vrot.lane.b32.xlu0 %v892, 8
    %v1051 = vpop.permute.xlu0 %1050
    %1052 = vrot.lane.b32.xlu0 %v893, 8
    %v1053 = vpop.permute.xlu0 %1052
    %1054 = vrot.lane.b32.xlu0 %v894, 8
    %v1055 = vpop.permute.xlu0 %1054
    %1056 = vrot.lane.b32.xlu0 %v895, 8
    %v1057 = vpop.permute.xlu0 %1056
    %1058 = vrot.lane.b32.xlu0 %v896, 8
    %v1059 = vpop.permute.xlu0 %1058
    %1060 = vrot.lane.b32.xlu0 %v897, 8
    %v1061 = vpop.permute.xlu0 %1060
    %1062 = vrot.lane.b32.xlu0 %v898, 8
    %v1063 = vpop.permute.xlu0 %1062
    %1064 = vrot.lane.b32.xlu0 %v899, 8
    %v1065 = vpop.permute.xlu0 %1064
    %1066 = vrot.lane.b32.xlu0 %v900, 8
    %v1067 = vpop.permute.xlu0 %1066
    %1068 = vrot.lane.b32.xlu0 %v901, 8
    %v1069 = vpop.permute.xlu0 %1068
    %1070 = vrot.lane.b32.xlu0 %v902, 8
    %v1071 = vpop.permute.xlu0 %1070
    %1072 = vrot.lane.b32.xlu0 %v903, 8
    %v1073 = vpop.permute.xlu0 %1072
    %1074 = vrot.lane.b32.xlu0 %v904, 8
    %v1075 = vpop.permute.xlu0 %1074
    %1076 = vrot.lane.b32.xlu0 %v905, 8
    %v1077 = vpop.permute.xlu0 %1076
    %1078 = vrot.lane.b32.xlu0 %v906, 8
    %v1079 = vpop.permute.xlu0 %1078
    %1080 = vrot.lane.b32.xlu0 %v907, 8
    %v1081 = vpop.permute.xlu0 %1080
    %1082 = vrot.lane.b32.xlu0 %v908, 8
    %v1083 = vpop.permute.xlu0 %1082
    %1084 = vrot.lane.b32.xlu0 %v909, 8
    %v1085 = vpop.permute.xlu0 %1084
    %1086 = vrot.lane.b32.xlu0 %v910, 8
    %v1087 = vpop.permute.xlu0 %1086
    %1088 = vrot.lane.b32.xlu0 %v911, 8
    %v1089 = vpop.permute.xlu0 %1088
    %1090 = vrot.lane.b32.xlu0 %v912, 8
    %v1091 = vpop.permute.xlu0 %1090
    %1092 = vrot.lane.b32.xlu0 %v913, 8
    %v1093 = vpop.permute.xlu0 %1092
    %1094 = vrot.lane.b32.xlu0 %v914, 8
    %v1095 = vpop.permute.xlu0 %1094
    %1096 = vrot.lane.b32.xlu0 %v915, 8
    %v1097 = vpop.permute.xlu0 %1096
    %1098 = vrot.lane.b32.xlu0 %v916, 8
    %v1099 = vpop.permute.xlu0 %1098
    %1100 = vrot.lane.b32.xlu0 %v917, 8
    %v1101 = vpop.permute.xlu0 %1100
    %1102 = vrot.lane.b32.xlu0 %v918, 8
    %v1103 = vpop.permute.xlu0 %1102
    %1104 = vrot.lane.b32.xlu0 %v919, 8
    %v1105 = vpop.permute.xlu0 %1104
    %1106 = vrot.lane.b32.xlu0 %v920, 8
    %v1107 = vpop.permute.xlu0 %1106
    %1108 = vrot.lane.b32.xlu0 %v921, 8
    %v1109 = vpop.permute.xlu0 %1108
    %1110 = vrot.lane.b32.xlu0 %v922, 8
    %v1111 = vpop.permute.xlu0 %1110
    %1112 = vrot.lane.b32.xlu0 %v923, 8
    %v1113 = vpop.permute.xlu0 %1112
    %1114 = vrot.lane.b32.xlu0 %v924, 8
    %v1115 = vpop.permute.xlu0 %1114
    %1116 = vrot.lane.b32.xlu0 %v925, 8
    %v1117 = vpop.permute.xlu0 %1116
    %vm1182 = vcmask 97344
    %1183 = vst.msk [vmem:[#allocation3] sm:$0xff] %vm1182, %v991
    %1184 = vst.msk [vmem:[#allocation3 + $0x8] sm:$0xff] %vm1182, %v993
    %1185 = vst.msk [vmem:[#allocation3 + $0x10] sm:$0xff] %vm1182, %v995
    %1186 = vst.msk [vmem:[#allocation3 + $0x18] sm:$0xff] %vm1182, %v997
    %1187 = vst.msk [vmem:[#allocation3 + $0x20] sm:$0xff] %vm1182, %v999
    %1188 = vst.msk [vmem:[#allocation3 + $0x28] sm:$0xff] %vm1182, %v1001
    %1189 = vst.msk [vmem:[#allocation3 + $0x30] sm:$0xff] %vm1182, %v1003
    %1190 = vst.msk [vmem:[#allocation3 + $0x38] sm:$0xff] %vm1182, %v1005
    %1191 = vst.msk [vmem:[#allocation3 + $0x40] sm:$0xff] %vm1182, %v1007
    %1192 = vst.msk [vmem:[#allocation3 + $0x48] sm:$0xff] %vm1182, %v1009
    %1193 = vst.msk [vmem:[#allocation3 + $0x50] sm:$0xff] %vm1182, %v1011
    %1194 = vst.msk [vmem:[#allocation3 + $0x58] sm:$0xff] %vm1182, %v1013
    %1195 = vst.msk [vmem:[#allocation3 + $0x60] sm:$0xff] %vm1182, %v1015
    %1196 = vst.msk [vmem:[#allocation3 + $0x68] sm:$0xff] %vm1182, %v1017
    %1197 = vst.msk [vmem:[#allocation3 + $0x70] sm:$0xff] %vm1182, %v1019
    %1198 = vst.msk [vmem:[#allocation3 + $0x78] sm:$0xff] %vm1182, %v1021
    %1199 = vst.msk [vmem:[#allocation3 + $0x80] sm:$0xff] %vm1182, %v1023
    %1200 = vst.msk [vmem:[#allocation3 + $0x88] sm:$0xff] %vm1182, %v1025
    %1201 = vst.msk [vmem:[#allocation3 + $0x90] sm:$0xff] %vm1182, %v1027
    %1202 = vst.msk [vmem:[#allocation3 + $0x98] sm:$0xff] %vm1182, %v1029
    %1203 = vst.msk [vmem:[#allocation3 + $0xa0] sm:$0xff] %vm1182, %v1031
    %1204 = vst.msk [vmem:[#allocation3 + $0xa8] sm:$0xff] %vm1182, %v1033
    %1205 = vst.msk [vmem:[#allocation3 + $0xb0] sm:$0xff] %vm1182, %v1035
    %1206 = vst.msk [vmem:[#allocation3 + $0xb8] sm:$0xff] %vm1182, %v1037
    %1207 = vst.msk [vmem:[#allocation3 + $0xc0] sm:$0xff] %vm1182, %v1039
    %1208 = vst.msk [vmem:[#allocation3 + $0xc8] sm:$0xff] %vm1182, %v1041
    %1209 = vst.msk [vmem:[#allocation3 + $0xd0] sm:$0xff] %vm1182, %v1043
    %1210 = vst.msk [vmem:[#allocation3 + $0xd8] sm:$0xff] %vm1182, %v1045
    %1211 = vst.msk [vmem:[#allocation3 + $0xe0] sm:$0xff] %vm1182, %v1047
    %1212 = vst.msk [vmem:[#allocation3 + $0xe8] sm:$0xff] %vm1182, %v1049
    %1213 = vst.msk [vmem:[#allocation3 + $0xf0] sm:$0xff] %vm1182, %v1051
    %1214 = vst.msk [vmem:[#allocation3 + $0xf8] sm:$0xff] %vm1182, %v1053
    %1215 = vst.msk [vmem:[#allocation3 + $0x100] sm:$0xff] %vm1182, %v1055
    %1216 = vst.msk [vmem:[#allocation3 + $0x108] sm:$0xff] %vm1182, %v1057
    %1217 = vst.msk [vmem:[#allocation3 + $0x110] sm:$0xff] %vm1182, %v1059
    %1218 = vst.msk [vmem:[#allocation3 + $0x118] sm:$0xff] %vm1182, %v1061
    %1219 = vst.msk [vmem:[#allocation3 + $0x120] sm:$0xff] %vm1182, %v1063
    %1220 = vst.msk [vmem:[#allocation3 + $0x128] sm:$0xff] %vm1182, %v1065
    %1221 = vst.msk [vmem:[#allocation3 + $0x130] sm:$0xff] %vm1182, %v1067
    %1222 = vst.msk [vmem:[#allocation3 + $0x138] sm:$0xff] %vm1182, %v1069
    %1223 = vst.msk [vmem:[#allocation3 + $0x140] sm:$0xff] %vm1182, %v1071
    %1224 = vst.msk [vmem:[#allocation3 + $0x148] sm:$0xff] %vm1182, %v1073
    %1225 = vst.msk [vmem:[#allocation3 + $0x150] sm:$0xff] %vm1182, %v1075
    %1226 = vst.msk [vmem:[#allocation3 + $0x158] sm:$0xff] %vm1182, %v1077
    %1227 = vst.msk [vmem:[#allocation3 + $0x160] sm:$0xff] %vm1182, %v1079
    %1228 = vst.msk [vmem:[#allocation3 + $0x168] sm:$0xff] %vm1182, %v1081
    %1229 = vst.msk [vmem:[#allocation3 + $0x170] sm:$0xff] %vm1182, %v1083
    %1230 = vst.msk [vmem:[#allocation3 + $0x178] sm:$0xff] %vm1182, %v1085
    %1231 = vst.msk [vmem:[#allocation3 + $0x180] sm:$0xff] %vm1182, %v1087
    %1232 = vst.msk [vmem:[#allocation3 + $0x188] sm:$0xff] %vm1182, %v1089
    %1233 = vst.msk [vmem:[#allocation3 + $0x190] sm:$0xff] %vm1182, %v1091
    %1234 = vst.msk [vmem:[#allocation3 + $0x198] sm:$0xff] %vm1182, %v1093
    %1235 = vst.msk [vmem:[#allocation3 + $0x1a0] sm:$0xff] %vm1182, %v1095
    %1236 = vst.msk [vmem:[#allocation3 + $0x1a8] sm:$0xff] %vm1182, %v1097
    %1237 = vst.msk [vmem:[#allocation3 + $0x1b0] sm:$0xff] %vm1182, %v1099
    %1238 = vst.msk [vmem:[#allocation3 + $0x1b8] sm:$0xff] %vm1182, %v1101
    %1239 = vst.msk [vmem:[#allocation3 + $0x1c0] sm:$0xff] %vm1182, %v1103
    %1240 = vst.msk [vmem:[#allocation3 + $0x1c8] sm:$0xff] %vm1182, %v1105
    %1241 = vst.msk [vmem:[#allocation3 + $0x1d0] sm:$0xff] %vm1182, %v1107
    %1242 = vst.msk [vmem:[#allocation3 + $0x1d8] sm:$0xff] %vm1182, %v1109
    %1243 = vst.msk [vmem:[#allocation3 + $0x1e0] sm:$0xff] %vm1182, %v1111
    %1244 = vst.msk [vmem:[#allocation3 + $0x1e8] sm:$0xff] %vm1182, %v1113
    %1245 = vst.msk [vmem:[#allocation3 + $0x1f0] sm:$0xff] %vm1182, %v1115
    %1246 = vst.msk [vmem:[#allocation3 + $0x1f8] sm:$0xff] %vm1182, %v1117
    %v1247 = vld [vmem:[%s284] sm:$0xff]
    %v1248 = vld [vmem:[%s284 + $0x8] sm:$0xff]
    %v1249 = vld [vmem:[%s284 + $0x18] sm:$0xff]
    %v1250 = vld [vmem:[%s284 + $0x20] sm:$0xff]
    %v1251 = vld [vmem:[%s284 + $0x30] sm:$0xff]
    %v1252 = vld [vmem:[%s284 + $0x38] sm:$0xff]
    %v1253 = vld [vmem:[%s284 + $0x48] sm:$0xff]
    %v1254 = vld [vmem:[%s284 + $0x50] sm:$0xff]
    %v1255 = vld [vmem:[%s284 + $0x60] sm:$0xff]
    %v1256 = vld [vmem:[%s284 + $0x68] sm:$0xff]
    %v1257 = vld [vmem:[%s284 + $0x78] sm:$0xff]
    %v1258 = vld [vmem:[%s284 + $0x80] sm:$0xff]
    %v1259 = vld [vmem:[%s284 + $0x90] sm:$0xff]
    %v1260 = vld [vmem:[%s284 + $0x98] sm:$0xff]
    %v1261 = vld [vmem:[%s284 + $0xa8] sm:$0xff]
    %v1262 = vld [vmem:[%s284 + $0xb0] sm:$0xff]
    %v1263 = vld [vmem:[%s284 + $0xc0] sm:$0xff]
    %v1264 = vld [vmem:[%s284 + $0xc8] sm:$0xff]
    %v1265 = vld [vmem:[%s284 + $0xd8] sm:$0xff]
    %v1266 = vld [vmem:[%s284 + $0xe0] sm:$0xff]
    %v1267 = vld [vmem:[%s284 + $0xf0] sm:$0xff]
    %v1268 = vld [vmem:[%s284 + $0xf8] sm:$0xff]
    %v1269 = vld [vmem:[%s284 + $0x108] sm:$0xff]
    %v1270 = vld [vmem:[%s284 + $0x110] sm:$0xff]
    %v1271 = vld [vmem:[%s284 + $0x120] sm:$0xff]
    %v1272 = vld [vmem:[%s284 + $0x128] sm:$0xff]
    %v1273 = vld [vmem:[%s284 + $0x138] sm:$0xff]
    %v1274 = vld [vmem:[%s284 + $0x140] sm:$0xff]
    %v1275 = vld [vmem:[%s284 + $0x150] sm:$0xff]
    %v1276 = vld [vmem:[%s284 + $0x158] sm:$0xff]
    %v1277 = vld [vmem:[%s284 + $0x168] sm:$0xff]
    %v1278 = vld [vmem:[%s284 + $0x170] sm:$0xff]
    %v1279 = vld [vmem:[%s284 + $0x1b0] sm:$0xff]
    %v1280 = vld [vmem:[%s284 + $0x1b8] sm:$0xff]
    %v1281 = vld [vmem:[%s284 + $0x1c8] sm:$0xff]
    %v1282 = vld [vmem:[%s284 + $0x1d0] sm:$0xff]
    %v1283 = vld [vmem:[%s284 + $0x1e0] sm:$0xff]
    %v1284 = vld [vmem:[%s284 + $0x1e8] sm:$0xff]
    %v1285 = vld [vmem:[%s284 + $0x1f8] sm:$0xff]
    %v1286 = vld [vmem:[%s284 + $0x200] sm:$0xff]
    %v1287 = vld [vmem:[%s284 + $0x210] sm:$0xff]
    %v1288 = vld [vmem:[%s284 + $0x218] sm:$0xff]
    %v1289 = vld [vmem:[%s284 + $0x228] sm:$0xff]
    %v1290 = vld [vmem:[%s284 + $0x230] sm:$0xff]
    %v1291 = vld [vmem:[%s284 + $0x240] sm:$0xff]
    %v1292 = vld [vmem:[%s284 + $0x248] sm:$0xff]
    %v1293 = vld [vmem:[%s284 + $0x258] sm:$0xff]
    %v1294 = vld [vmem:[%s284 + $0x260] sm:$0xff]
    %v1295 = vld [vmem:[%s284 + $0x270] sm:$0xff]
    %v1296 = vld [vmem:[%s284 + $0x278] sm:$0xff]
    %v1297 = vld [vmem:[%s284 + $0x288] sm:$0xff]
    %v1298 = vld [vmem:[%s284 + $0x290] sm:$0xff]
    %v1299 = vld [vmem:[%s284 + $0x2a0] sm:$0xff]
    %v1300 = vld [vmem:[%s284 + $0x2a8] sm:$0xff]
    %v1301 = vld [vmem:[%s284 + $0x2b8] sm:$0xff]
    %v1302 = vld [vmem:[%s284 + $0x2c0] sm:$0xff]
    %v1303 = vld [vmem:[%s284 + $0x2d0] sm:$0xff]
    %v1304 = vld [vmem:[%s284 + $0x2d8] sm:$0xff]
    %v1305 = vld [vmem:[%s284 + $0x2e8] sm:$0xff]
    %v1306 = vld [vmem:[%s284 + $0x2f0] sm:$0xff]
    %v1307 = vld [vmem:[%s284 + $0x300] sm:$0xff]
    %v1308 = vld [vmem:[%s284 + $0x308] sm:$0xff]
    %v1309 = vld [vmem:[%s284 + $0x318] sm:$0xff]
    %v1310 = vld [vmem:[%s284 + $0x320] sm:$0xff]
    %1375 = vrot.lane.b32.xlu0 %v1247, 12
    %v1376 = vpop.permute.xlu0 %1375
    %1377 = vrot.lane.b32.xlu0 %v1248, 12
    %v1378 = vpop.permute.xlu0 %1377
    %1379 = vrot.lane.b32.xlu0 %v1249, 12
    %v1380 = vpop.permute.xlu0 %1379
    %1381 = vrot.lane.b32.xlu0 %v1250, 12
    %v1382 = vpop.permute.xlu0 %1381
    %1383 = vrot.lane.b32.xlu0 %v1251, 12
    %v1384 = vpop.permute.xlu0 %1383
    %1385 = vrot.lane.b32.xlu0 %v1252, 12
    %v1386 = vpop.permute.xlu0 %1385
    %1387 = vrot.lane.b32.xlu0 %v1253, 12
    %v1388 = vpop.permute.xlu0 %1387
    %1389 = vrot.lane.b32.xlu0 %v1254, 12
    %v1390 = vpop.permute.xlu0 %1389
    %1391 = vrot.lane.b32.xlu0 %v1255, 12
    %v1392 = vpop.permute.xlu0 %1391
    %1393 = vrot.lane.b32.xlu0 %v1256, 12
    %v1394 = vpop.permute.xlu0 %1393
    %1395 = vrot.lane.b32.xlu0 %v1257, 12
    %v1396 = vpop.permute.xlu0 %1395
    %1397 = vrot.lane.b32.xlu0 %v1258, 12
    %v1398 = vpop.permute.xlu0 %1397
    %1399 = vrot.lane.b32.xlu0 %v1259, 12
    %v1400 = vpop.permute.xlu0 %1399
    %1401 = vrot.lane.b32.xlu0 %v1260, 12
    %v1402 = vpop.permute.xlu0 %1401
    %1403 = vrot.lane.b32.xlu0 %v1261, 12
    %v1404 = vpop.permute.xlu0 %1403
    %1405 = vrot.lane.b32.xlu0 %v1262, 12
    %v1406 = vpop.permute.xlu0 %1405
    %1407 = vrot.lane.b32.xlu0 %v1263, 12
    %v1408 = vpop.permute.xlu0 %1407
    %1409 = vrot.lane.b32.xlu0 %v1264, 12
    %v1410 = vpop.permute.xlu0 %1409
    %1411 = vrot.lane.b32.xlu0 %v1265, 12
    %v1412 = vpop.permute.xlu0 %1411
    %1413 = vrot.lane.b32.xlu0 %v1266, 12
    %v1414 = vpop.permute.xlu0 %1413
    %1415 = vrot.lane.b32.xlu0 %v1267, 12
    %v1416 = vpop.permute.xlu0 %1415
    %1417 = vrot.lane.b32.xlu0 %v1268, 12
    %v1418 = vpop.permute.xlu0 %1417
    %1419 = vrot.lane.b32.xlu0 %v1269, 12
    %v1420 = vpop.permute.xlu0 %1419
    %1421 = vrot.lane.b32.xlu0 %v1270, 12
    %v1422 = vpop.permute.xlu0 %1421
    %1423 = vrot.lane.b32.xlu0 %v1271, 12
    %v1424 = vpop.permute.xlu0 %1423
    %1425 = vrot.lane.b32.xlu0 %v1272, 12
    %v1426 = vpop.permute.xlu0 %1425
    %1427 = vrot.lane.b32.xlu0 %v1273, 12
    %v1428 = vpop.permute.xlu0 %1427
    %1429 = vrot.lane.b32.xlu0 %v1274, 12
    %v1430 = vpop.permute.xlu0 %1429
    %1431 = vrot.lane.b32.xlu0 %v1275, 12
    %v1432 = vpop.permute.xlu0 %1431
    %1433 = vrot.lane.b32.xlu0 %v1276, 12
    %v1434 = vpop.permute.xlu0 %1433
    %1435 = vrot.lane.b32.xlu0 %v1277, 12
    %v1436 = vpop.permute.xlu0 %1435
    %1437 = vrot.lane.b32.xlu0 %v1278, 12
    %v1438 = vpop.permute.xlu0 %1437
    %1439 = vrot.lane.b32.xlu0 %v1279, 12
    %v1440 = vpop.permute.xlu0 %1439
    %1441 = vrot.lane.b32.xlu0 %v1280, 12
    %v1442 = vpop.permute.xlu0 %1441
    %1443 = vrot.lane.b32.xlu0 %v1281, 12
    %v1444 = vpop.permute.xlu0 %1443
    %1445 = vrot.lane.b32.xlu0 %v1282, 12
    %v1446 = vpop.permute.xlu0 %1445
    %1447 = vrot.lane.b32.xlu0 %v1283, 12
    %v1448 = vpop.permute.xlu0 %1447
    %1449 = vrot.lane.b32.xlu0 %v1284, 12
    %v1450 = vpop.permute.xlu0 %1449
    %1451 = vrot.lane.b32.xlu0 %v1285, 12
    %v1452 = vpop.permute.xlu0 %1451
    %1453 = vrot.lane.b32.xlu0 %v1286, 12
    %v1454 = vpop.permute.xlu0 %1453
    %1455 = vrot.lane.b32.xlu0 %v1287, 12
    %v1456 = vpop.permute.xlu0 %1455
    %1457 = vrot.lane.b32.xlu0 %v1288, 12
    %v1458 = vpop.permute.xlu0 %1457
    %1459 = vrot.lane.b32.xlu0 %v1289, 12
    %v1460 = vpop.permute.xlu0 %1459
    %1461 = vrot.lane.b32.xlu0 %v1290, 12
    %v1462 = vpop.permute.xlu0 %1461
    %1463 = vrot.lane.b32.xlu0 %v1291, 12
    %v1464 = vpop.permute.xlu0 %1463
    %1465 = vrot.lane.b32.xlu0 %v1292, 12
    %v1466 = vpop.permute.xlu0 %1465
    %1467 = vrot.lane.b32.xlu0 %v1293, 12
    %v1468 = vpop.permute.xlu0 %1467
    %1469 = vrot.lane.b32.xlu0 %v1294, 12
    %v1470 = vpop.permute.xlu0 %1469
    %1471 = vrot.lane.b32.xlu0 %v1295, 12
    %v1472 = vpop.permute.xlu0 %1471
    %1473 = vrot.lane.b32.xlu0 %v1296, 12
    %v1474 = vpop.permute.xlu0 %1473
    %1475 = vrot.lane.b32.xlu0 %v1297, 12
    %v1476 = vpop.permute.xlu0 %1475
    %1477 = vrot.lane.b32.xlu0 %v1298, 12
    %v1478 = vpop.permute.xlu0 %1477
    %1479 = vrot.lane.b32.xlu0 %v1299, 12
    %v1480 = vpop.permute.xlu0 %1479
    %1481 = vrot.lane.b32.xlu0 %v1300, 12
    %v1482 = vpop.permute.xlu0 %1481
    %1483 = vrot.lane.b32.xlu0 %v1301, 12
    %v1484 = vpop.permute.xlu0 %1483
    %1485 = vrot.lane.b32.xlu0 %v1302, 12
    %v1486 = vpop.permute.xlu0 %1485
    %1487 = vrot.lane.b32.xlu0 %v1303, 12
    %v1488 = vpop.permute.xlu0 %1487
    %1489 = vrot.lane.b32.xlu0 %v1304, 12
    %v1490 = vpop.permute.xlu0 %1489
    %1491 = vrot.lane.b32.xlu0 %v1305, 12
    %v1492 = vpop.permute.xlu0 %1491
    %1493 = vrot.lane.b32.xlu0 %v1306, 12
    %v1494 = vpop.permute.xlu0 %1493
    %1495 = vrot.lane.b32.xlu0 %v1307, 12
    %v1496 = vpop.permute.xlu0 %1495
    %1497 = vrot.lane.b32.xlu0 %v1308, 12
    %v1498 = vpop.permute.xlu0 %1497
    %1499 = vrot.lane.b32.xlu0 %v1309, 12
    %v1500 = vpop.permute.xlu0 %1499
    %1501 = vrot.lane.b32.xlu0 %v1310, 12
    %v1502 = vpop.permute.xlu0 %1501
    %vm1567 = vcmask 130144
    %1568 = vst.msk [vmem:[#allocation3] sm:$0xff] %vm1567, %v1376
    %1569 = vst.msk [vmem:[#allocation3 + $0x8] sm:$0xff] %vm1567, %v1378
    %1570 = vst.msk [vmem:[#allocation3 + $0x10] sm:$0xff] %vm1567, %v1380
    %1571 = vst.msk [vmem:[#allocation3 + $0x18] sm:$0xff] %vm1567, %v1382
    %1572 = vst.msk [vmem:[#allocation3 + $0x20] sm:$0xff] %vm1567, %v1384
    %1573 = vst.msk [vmem:[#allocation3 + $0x28] sm:$0xff] %vm1567, %v1386
    %1574 = vst.msk [vmem:[#allocation3 + $0x30] sm:$0xff] %vm1567, %v1388
    %1575 = vst.msk [vmem:[#allocation3 + $0x38] sm:$0xff] %vm1567, %v1390
    %1576 = vst.msk [vmem:[#allocation3 + $0x40] sm:$0xff] %vm1567, %v1392
    %1577 = vst.msk [vmem:[#allocation3 + $0x48] sm:$0xff] %vm1567, %v1394
    %1578 = vst.msk [vmem:[#allocation3 + $0x50] sm:$0xff] %vm1567, %v1396
    %1579 = vst.msk [vmem:[#allocation3 + $0x58] sm:$0xff] %vm1567, %v1398
    %1580 = vst.msk [vmem:[#allocation3 + $0x60] sm:$0xff] %vm1567, %v1400
    %1581 = vst.msk [vmem:[#allocation3 + $0x68] sm:$0xff] %vm1567, %v1402
    %1582 = vst.msk [vmem:[#allocation3 + $0x70] sm:$0xff] %vm1567, %v1404
    %1583 = vst.msk [vmem:[#allocation3 + $0x78] sm:$0xff] %vm1567, %v1406
    %1584 = vst.msk [vmem:[#allocation3 + $0x80] sm:$0xff] %vm1567, %v1408
    %1585 = vst.msk [vmem:[#allocation3 + $0x88] sm:$0xff] %vm1567, %v1410
    %1586 = vst.msk [vmem:[#allocation3 + $0x90] sm:$0xff] %vm1567, %v1412
    %1587 = vst.msk [vmem:[#allocation3 + $0x98] sm:$0xff] %vm1567, %v1414
    %1588 = vst.msk [vmem:[#allocation3 + $0xa0] sm:$0xff] %vm1567, %v1416
    %1589 = vst.msk [vmem:[#allocation3 + $0xa8] sm:$0xff] %vm1567, %v1418
    %1590 = vst.msk [vmem:[#allocation3 + $0xb0] sm:$0xff] %vm1567, %v1420
    %1591 = vst.msk [vmem:[#allocation3 + $0xb8] sm:$0xff] %vm1567, %v1422
    %1592 = vst.msk [vmem:[#allocation3 + $0xc0] sm:$0xff] %vm1567, %v1424
    %1593 = vst.msk [vmem:[#allocation3 + $0xc8] sm:$0xff] %vm1567, %v1426
    %1594 = vst.msk [vmem:[#allocation3 + $0xd0] sm:$0xff] %vm1567, %v1428
    %1595 = vst.msk [vmem:[#allocation3 + $0xd8] sm:$0xff] %vm1567, %v1430
    %1596 = vst.msk [vmem:[#allocation3 + $0xe0] sm:$0xff] %vm1567, %v1432
    %1597 = vst.msk [vmem:[#allocation3 + $0xe8] sm:$0xff] %vm1567, %v1434
    %1598 = vst.msk [vmem:[#allocation3 + $0xf0] sm:$0xff] %vm1567, %v1436
    %1599 = vst.msk [vmem:[#allocation3 + $0xf8] sm:$0xff] %vm1567, %v1438
    %1600 = vst.msk [vmem:[#allocation3 + $0x100] sm:$0xff] %vm1567, %v1440
    %1601 = vst.msk [vmem:[#allocation3 + $0x108] sm:$0xff] %vm1567, %v1442
    %1602 = vst.msk [vmem:[#allocation3 + $0x110] sm:$0xff] %vm1567, %v1444
    %1603 = vst.msk [vmem:[#allocation3 + $0x118] sm:$0xff] %vm1567, %v1446
    %1604 = vst.msk [vmem:[#allocation3 + $0x120] sm:$0xff] %vm1567, %v1448
    %1605 = vst.msk [vmem:[#allocation3 + $0x128] sm:$0xff] %vm1567, %v1450
    %1606 = vst.msk [vmem:[#allocation3 + $0x130] sm:$0xff] %vm1567, %v1452
    %1607 = vst.msk [vmem:[#allocation3 + $0x138] sm:$0xff] %vm1567, %v1454
    %1608 = vst.msk [vmem:[#allocation3 + $0x140] sm:$0xff] %vm1567, %v1456
    %1609 = vst.msk [vmem:[#allocation3 + $0x148] sm:$0xff] %vm1567, %v1458
    %1610 = vst.msk [vmem:[#allocation3 + $0x150] sm:$0xff] %vm1567, %v1460
    %1611 = vst.msk [vmem:[#allocation3 + $0x158] sm:$0xff] %vm1567, %v1462
    %1612 = vst.msk [vmem:[#allocation3 + $0x160] sm:$0xff] %vm1567, %v1464
    %1613 = vst.msk [vmem:[#allocation3 + $0x168] sm:$0xff] %vm1567, %v1466
    %1614 = vst.msk [vmem:[#allocation3 + $0x170] sm:$0xff] %vm1567, %v1468
    %1615 = vst.msk [vmem:[#allocation3 + $0x178] sm:$0xff] %vm1567, %v1470
    %1616 = vst.msk [vmem:[#allocation3 + $0x180] sm:$0xff] %vm1567, %v1472
    %1617 = vst.msk [vmem:[#allocation3 + $0x188] sm:$0xff] %vm1567, %v1474
    %1618 = vst.msk [vmem:[#allocation3 + $0x190] sm:$0xff] %vm1567, %v1476
    %1619 = vst.msk [vmem:[#allocation3 + $0x198] sm:$0xff] %vm1567, %v1478
    %1620 = vst.msk [vmem:[#allocation3 + $0x1a0] sm:$0xff] %vm1567, %v1480
    %1621 = vst.msk [vmem:[#allocation3 + $0x1a8] sm:$0xff] %vm1567, %v1482
    %1622 = vst.msk [vmem:[#allocation3 + $0x1b0] sm:$0xff] %vm1567, %v1484
    %1623 = vst.msk [vmem:[#allocation3 + $0x1b8] sm:$0xff] %vm1567, %v1486
    %1624 = vst.msk [vmem:[#allocation3 + $0x1c0] sm:$0xff] %vm1567, %v1488
    %1625 = vst.msk [vmem:[#allocation3 + $0x1c8] sm:$0xff] %vm1567, %v1490
    %1626 = vst.msk [vmem:[#allocation3 + $0x1d0] sm:$0xff] %vm1567, %v1492
    %1627 = vst.msk [vmem:[#allocation3 + $0x1d8] sm:$0xff] %vm1567, %v1494
    %1628 = vst.msk [vmem:[#allocation3 + $0x1e0] sm:$0xff] %vm1567, %v1496
    %1629 = vst.msk [vmem:[#allocation3 + $0x1e8] sm:$0xff] %vm1567, %v1498
    %1630 = vst.msk [vmem:[#allocation3 + $0x1f0] sm:$0xff] %vm1567, %v1500
    %1631 = vst.msk [vmem:[#allocation3 + $0x1f8] sm:$0xff] %vm1567, %v1502
    %v1632 = vld [vmem:[%s284 + $0x1] sm:$0xff]
    %v1633 = vld [vmem:[%s284 + $0x9] sm:$0xff]
    %v1634 = vld [vmem:[%s284 + $0x19] sm:$0xff]
    %v1635 = vld [vmem:[%s284 + $0x21] sm:$0xff]
    %v1636 = vld [vmem:[%s284 + $0x31] sm:$0xff]
    %v1637 = vld [vmem:[%s284 + $0x39] sm:$0xff]
    %v1638 = vld [vmem:[%s284 + $0x49] sm:$0xff]
    %v1639 = vld [vmem:[%s284 + $0x51] sm:$0xff]
    %v1640 = vld [vmem:[%s284 + $0x61] sm:$0xff]
    %v1641 = vld [vmem:[%s284 + $0x69] sm:$0xff]
    %v1642 = vld [vmem:[%s284 + $0x79] sm:$0xff]
    %v1643 = vld [vmem:[%s284 + $0x81] sm:$0xff]
    %v1644 = vld [vmem:[%s284 + $0x91] sm:$0xff]
    %v1645 = vld [vmem:[%s284 + $0x99] sm:$0xff]
    %v1646 = vld [vmem:[%s284 + $0xa9] sm:$0xff]
    %v1647 = vld [vmem:[%s284 + $0xb1] sm:$0xff]
    %v1648 = vld [vmem:[%s284 + $0xc1] sm:$0xff]
    %v1649 = vld [vmem:[%s284 + $0xc9] sm:$0xff]
    %v1650 = vld [vmem:[%s284 + $0xd9] sm:$0xff]
    %v1651 = vld [vmem:[%s284 + $0xe1] sm:$0xff]
    %v1652 = vld [vmem:[%s284 + $0xf1] sm:$0xff]
    %v1653 = vld [vmem:[%s284 + $0xf9] sm:$0xff]
    %v1654 = vld [vmem:[%s284 + $0x109] sm:$0xff]
    %v1655 = vld [vmem:[%s284 + $0x111] sm:$0xff]
    %v1656 = vld [vmem:[%s284 + $0x121] sm:$0xff]
    %v1657 = vld [vmem:[%s284 + $0x129] sm:$0xff]
    %v1658 = vld [vmem:[%s284 + $0x139] sm:$0xff]
    %v1659 = vld [vmem:[%s284 + $0x141] sm:$0xff]
    %v1660 = vld [vmem:[%s284 + $0x151] sm:$0xff]
    %v1661 = vld [vmem:[%s284 + $0x159] sm:$0xff]
    %v1662 = vld [vmem:[%s284 + $0x169] sm:$0xff]
    %v1663 = vld [vmem:[%s284 + $0x171] sm:$0xff]
    %v1664 = vld [vmem:[%s284 + $0x1b1] sm:$0xff]
    %v1665 = vld [vmem:[%s284 + $0x1b9] sm:$0xff]
    %v1666 = vld [vmem:[%s284 + $0x1c9] sm:$0xff]
    %v1667 = vld [vmem:[%s284 + $0x1d1] sm:$0xff]
    %v1668 = vld [vmem:[%s284 + $0x1e1] sm:$0xff]
    %v1669 = vld [vmem:[%s284 + $0x1e9] sm:$0xff]
    %v1670 = vld [vmem:[%s284 + $0x1f9] sm:$0xff]
    %v1671 = vld [vmem:[%s284 + $0x201] sm:$0xff]
    %v1672 = vld [vmem:[%s284 + $0x211] sm:$0xff]
    %v1673 = vld [vmem:[%s284 + $0x219] sm:$0xff]
    %v1674 = vld [vmem:[%s284 + $0x229] sm:$0xff]
    %v1675 = vld [vmem:[%s284 + $0x231] sm:$0xff]
    %v1676 = vld [vmem:[%s284 + $0x241] sm:$0xff]
    %v1677 = vld [vmem:[%s284 + $0x249] sm:$0xff]
    %v1678 = vld [vmem:[%s284 + $0x259] sm:$0xff]
    %v1679 = vld [vmem:[%s284 + $0x261] sm:$0xff]
    %v1680 = vld [vmem:[%s284 + $0x271] sm:$0xff]
    %v1681 = vld [vmem:[%s284 + $0x279] sm:$0xff]
    %v1682 = vld [vmem:[%s284 + $0x289] sm:$0xff]
    %v1683 = vld [vmem:[%s284 + $0x291] sm:$0xff]
    %v1684 = vld [vmem:[%s284 + $0x2a1] sm:$0xff]
    %v1685 = vld [vmem:[%s284 + $0x2a9] sm:$0xff]
    %v1686 = vld [vmem:[%s284 + $0x2b9] sm:$0xff]
    %v1687 = vld [vmem:[%s284 + $0x2c1] sm:$0xff]
    %v1688 = vld [vmem:[%s284 + $0x2d1] sm:$0xff]
    %v1689 = vld [vmem:[%s284 + $0x2d9] sm:$0xff]
    %v1690 = vld [vmem:[%s284 + $0x2e9] sm:$0xff]
    %v1691 = vld [vmem:[%s284 + $0x2f1] sm:$0xff]
    %v1692 = vld [vmem:[%s284 + $0x301] sm:$0xff]
    %v1693 = vld [vmem:[%s284 + $0x309] sm:$0xff]
    %v1694 = vld [vmem:[%s284 + $0x319] sm:$0xff]
    %v1695 = vld [vmem:[%s284 + $0x321] sm:$0xff]
    %1760 = vrot.lane.b32.xlu0 %v1632, 16
    %v1761 = vpop.permute.xlu0 %1760
    %1762 = vrot.lane.b32.xlu0 %v1633, 16
    %v1763 = vpop.permute.xlu0 %1762
    %1764 = vrot.lane.b32.xlu0 %v1634, 16
    %v1765 = vpop.permute.xlu0 %1764
    %1766 = vrot.lane.b32.xlu0 %v1635, 16
    %v1767 = vpop.permute.xlu0 %1766
    %1768 = vrot.lane.b32.xlu0 %v1636, 16
    %v1769 = vpop.permute.xlu0 %1768
    %1770 = vrot.lane.b32.xlu0 %v1637, 16
    %v1771 = vpop.permute.xlu0 %1770
    %1772 = vrot.lane.b32.xlu0 %v1638, 16
    %v1773 = vpop.permute.xlu0 %1772
    %1774 = vrot.lane.b32.xlu0 %v1639, 16
    %v1775 = vpop.permute.xlu0 %1774
    %1776 = vrot.lane.b32.xlu0 %v1640, 16
    %v1777 = vpop.permute.xlu0 %1776
    %1778 = vrot.lane.b32.xlu0 %v1641, 16
    %v1779 = vpop.permute.xlu0 %1778
    %1780 = vrot.lane.b32.xlu0 %v1642, 16
    %v1781 = vpop.permute.xlu0 %1780
    %1782 = vrot.lane.b32.xlu0 %v1643, 16
    %v1783 = vpop.permute.xlu0 %1782
    %1784 = vrot.lane.b32.xlu0 %v1644, 16
    %v1785 = vpop.permute.xlu0 %1784
    %1786 = vrot.lane.b32.xlu0 %v1645, 16
    %v1787 = vpop.permute.xlu0 %1786
    %1788 = vrot.lane.b32.xlu0 %v1646, 16
    %v1789 = vpop.permute.xlu0 %1788
    %1790 = vrot.lane.b32.xlu0 %v1647, 16
    %v1791 = vpop.permute.xlu0 %1790
    %1792 = vrot.lane.b32.xlu0 %v1648, 16
    %v1793 = vpop.permute.xlu0 %1792
    %1794 = vrot.lane.b32.xlu0 %v1649, 16
    %v1795 = vpop.permute.xlu0 %1794
    %1796 = vrot.lane.b32.xlu0 %v1650, 16
    %v1797 = vpop.permute.xlu0 %1796
    %1798 = vrot.lane.b32.xlu0 %v1651, 16
    %v1799 = vpop.permute.xlu0 %1798
    %1800 = vrot.lane.b32.xlu0 %v1652, 16
    %v1801 = vpop.permute.xlu0 %1800
    %1802 = vrot.lane.b32.xlu0 %v1653, 16
    %v1803 = vpop.permute.xlu0 %1802
    %1804 = vrot.lane.b32.xlu0 %v1654, 16
    %v1805 = vpop.permute.xlu0 %1804
    %1806 = vrot.lane.b32.xlu0 %v1655, 16
    %v1807 = vpop.permute.xlu0 %1806
    %1808 = vrot.lane.b32.xlu0 %v1656, 16
    %v1809 = vpop.permute.xlu0 %1808
    %1810 = vrot.lane.b32.xlu0 %v1657, 16
    %v1811 = vpop.permute.xlu0 %1810
    %1812 = vrot.lane.b32.xlu0 %v1658, 16
    %v1813 = vpop.permute.xlu0 %1812
    %1814 = vrot.lane.b32.xlu0 %v1659, 16
    %v1815 = vpop.permute.xlu0 %1814
    %1816 = vrot.lane.b32.xlu0 %v1660, 16
    %v1817 = vpop.permute.xlu0 %1816
    %1818 = vrot.lane.b32.xlu0 %v1661, 16
    %v1819 = vpop.permute.xlu0 %1818
    %1820 = vrot.lane.b32.xlu0 %v1662, 16
    %v1821 = vpop.permute.xlu0 %1820
    %1822 = vrot.lane.b32.xlu0 %v1663, 16
    %v1823 = vpop.permute.xlu0 %1822
    %1824 = vrot.lane.b32.xlu0 %v1664, 16
    %v1825 = vpop.permute.xlu0 %1824
    %1826 = vrot.lane.b32.xlu0 %v1665, 16
    %v1827 = vpop.permute.xlu0 %1826
    %1828 = vrot.lane.b32.xlu0 %v1666, 16
    %v1829 = vpop.permute.xlu0 %1828
    %1830 = vrot.lane.b32.xlu0 %v1667, 16
    %v1831 = vpop.permute.xlu0 %1830
    %1832 = vrot.lane.b32.xlu0 %v1668, 16
    %v1833 = vpop.permute.xlu0 %1832
    %1834 = vrot.lane.b32.xlu0 %v1669, 16
    %v1835 = vpop.permute.xlu0 %1834
    %1836 = vrot.lane.b32.xlu0 %v1670, 16
    %v1837 = vpop.permute.xlu0 %1836
    %1838 = vrot.lane.b32.xlu0 %v1671, 16
    %v1839 = vpop.permute.xlu0 %1838
    %1840 = vrot.lane.b32.xlu0 %v1672, 16
    %v1841 = vpop.permute.xlu0 %1840
    %1842 = vrot.lane.b32.xlu0 %v1673, 16
    %v1843 = vpop.permute.xlu0 %1842
    %1844 = vrot.lane.b32.xlu0 %v1674, 16
    %v1845 = vpop.permute.xlu0 %1844
    %1846 = vrot.lane.b32.xlu0 %v1675, 16
    %v1847 = vpop.permute.xlu0 %1846
    %1848 = vrot.lane.b32.xlu0 %v1676, 16
    %v1849 = vpop.permute.xlu0 %1848
    %1850 = vrot.lane.b32.xlu0 %v1677, 16
    %v1851 = vpop.permute.xlu0 %1850
    %1852 = vrot.lane.b32.xlu0 %v1678, 16
    %v1853 = vpop.permute.xlu0 %1852
    %1854 = vrot.lane.b32.xlu0 %v1679, 16
    %v1855 = vpop.permute.xlu0 %1854
    %1856 = vrot.lane.b32.xlu0 %v1680, 16
    %v1857 = vpop.permute.xlu0 %1856
    %1858 = vrot.lane.b32.xlu0 %v1681, 16
    %v1859 = vpop.permute.xlu0 %1858
    %1860 = vrot.lane.b32.xlu0 %v1682, 16
    %v1861 = vpop.permute.xlu0 %1860
    %1862 = vrot.lane.b32.xlu0 %v1683, 16
    %v1863 = vpop.permute.xlu0 %1862
    %1864 = vrot.lane.b32.xlu0 %v1684, 16
    %v1865 = vpop.permute.xlu0 %1864
    %1866 = vrot.lane.b32.xlu0 %v1685, 16
    %v1867 = vpop.permute.xlu0 %1866
    %1868 = vrot.lane.b32.xlu0 %v1686, 16
    %v1869 = vpop.permute.xlu0 %1868
    %1870 = vrot.lane.b32.xlu0 %v1687, 16
    %v1871 = vpop.permute.xlu0 %1870
    %1872 = vrot.lane.b32.xlu0 %v1688, 16
    %v1873 = vpop.permute.xlu0 %1872
    %1874 = vrot.lane.b32.xlu0 %v1689, 16
    %v1875 = vpop.permute.xlu0 %1874
    %1876 = vrot.lane.b32.xlu0 %v1690, 16
    %v1877 = vpop.permute.xlu0 %1876
    %1878 = vrot.lane.b32.xlu0 %v1691, 16
    %v1879 = vpop.permute.xlu0 %1878
    %1880 = vrot.lane.b32.xlu0 %v1692, 16
    %v1881 = vpop.permute.xlu0 %1880
    %1882 = vrot.lane.b32.xlu0 %v1693, 16
    %v1883 = vpop.permute.xlu0 %1882
    %1884 = vrot.lane.b32.xlu0 %v1694, 16
    %v1885 = vpop.permute.xlu0 %1884
    %1886 = vrot.lane.b32.xlu0 %v1695, 16
    %v1887 = vpop.permute.xlu0 %1886
    %vm1952 = vcmask 162944
    %1953 = vst.msk [vmem:[#allocation3] sm:$0xff] %vm1952, %v1761
    %1954 = vst.msk [vmem:[#allocation3 + $0x8] sm:$0xff] %vm1952, %v1763
    %1955 = vst.msk [vmem:[#allocation3 + $0x10] sm:$0xff] %vm1952, %v1765
    %1956 = vst.msk [vmem:[#allocation3 + $0x18] sm:$0xff] %vm1952, %v1767
    %1957 = vst.msk [vmem:[#allocation3 + $0x20] sm:$0xff] %vm1952, %v1769
    %1958 = vst.msk [vmem:[#allocation3 + $0x28] sm:$0xff] %vm1952, %v1771
    %1959 = vst.msk [vmem:[#allocation3 + $0x30] sm:$0xff] %vm1952, %v1773
    %1960 = vst.msk [vmem:[#allocation3 + $0x38] sm:$0xff] %vm1952, %v1775
    %1961 = vst.msk [vmem:[#allocation3 + $0x40] sm:$0xff] %vm1952, %v1777
    %1962 = vst.msk [vmem:[#allocation3 + $0x48] sm:$0xff] %vm1952, %v1779
    %1963 = vst.msk [vmem:[#allocation3 + $0x50] sm:$0xff] %vm1952, %v1781
    %1964 = vst.msk [vmem:[#allocation3 + $0x58] sm:$0xff] %vm1952, %v1783
    %1965 = vst.msk [vmem:[#allocation3 + $0x60] sm:$0xff] %vm1952, %v1785
    %1966 = vst.msk [vmem:[#allocation3 + $0x68] sm:$0xff] %vm1952, %v1787
    %1967 = vst.msk [vmem:[#allocation3 + $0x70] sm:$0xff] %vm1952, %v1789
    %1968 = vst.msk [vmem:[#allocation3 + $0x78] sm:$0xff] %vm1952, %v1791
    %1969 = vst.msk [vmem:[#allocation3 + $0x80] sm:$0xff] %vm1952, %v1793
    %1970 = vst.msk [vmem:[#allocation3 + $0x88] sm:$0xff] %vm1952, %v1795
    %1971 = vst.msk [vmem:[#allocation3 + $0x90] sm:$0xff] %vm1952, %v1797
    %1972 = vst.msk [vmem:[#allocation3 + $0x98] sm:$0xff] %vm1952, %v1799
    %1973 = vst.msk [vmem:[#allocation3 + $0xa0] sm:$0xff] %vm1952, %v1801
    %1974 = vst.msk [vmem:[#allocation3 + $0xa8] sm:$0xff] %vm1952, %v1803
    %1975 = vst.msk [vmem:[#allocation3 + $0xb0] sm:$0xff] %vm1952, %v1805
    %1976 = vst.msk [vmem:[#allocation3 + $0xb8] sm:$0xff] %vm1952, %v1807
    %1977 = vst.msk [vmem:[#allocation3 + $0xc0] sm:$0xff] %vm1952, %v1809
    %1978 = vst.msk [vmem:[#allocation3 + $0xc8] sm:$0xff] %vm1952, %v1811
    %1979 = vst.msk [vmem:[#allocation3 + $0xd0] sm:$0xff] %vm1952, %v1813
    %1980 = vst.msk [vmem:[#allocation3 + $0xd8] sm:$0xff] %vm1952, %v1815
    %1981 = vst.msk [vmem:[#allocation3 + $0xe0] sm:$0xff] %vm1952, %v1817
    %1982 = vst.msk [vmem:[#allocation3 + $0xe8] sm:$0xff] %vm1952, %v1819
    %1983 = vst.msk [vmem:[#allocation3 + $0xf0] sm:$0xff] %vm1952, %v1821
    %1984 = vst.msk [vmem:[#allocation3 + $0xf8] sm:$0xff] %vm1952, %v1823
    %1985 = vst.msk [vmem:[#allocation3 + $0x100] sm:$0xff] %vm1952, %v1825
    %1986 = vst.msk [vmem:[#allocation3 + $0x108] sm:$0xff] %vm1952, %v1827
    %1987 = vst.msk [vmem:[#allocation3 + $0x110] sm:$0xff] %vm1952, %v1829
    %1988 = vst.msk [vmem:[#allocation3 + $0x118] sm:$0xff] %vm1952, %v1831
    %1989 = vst.msk [vmem:[#allocation3 + $0x120] sm:$0xff] %vm1952, %v1833
    %1990 = vst.msk [vmem:[#allocation3 + $0x128] sm:$0xff] %vm1952, %v1835
    %1991 = vst.msk [vmem:[#allocation3 + $0x130] sm:$0xff] %vm1952, %v1837
    %1992 = vst.msk [vmem:[#allocation3 + $0x138] sm:$0xff] %vm1952, %v1839
    %1993 = vst.msk [vmem:[#allocation3 + $0x140] sm:$0xff] %vm1952, %v1841
    %1994 = vst.msk [vmem:[#allocation3 + $0x148] sm:$0xff] %vm1952, %v1843
    %1995 = vst.msk [vmem:[#allocation3 + $0x150] sm:$0xff] %vm1952, %v1845
    %1996 = vst.msk [vmem:[#allocation3 + $0x158] sm:$0xff] %vm1952, %v1847
    %1997 = vst.msk [vmem:[#allocation3 + $0x160] sm:$0xff] %vm1952, %v1849
    %1998 = vst.msk [vmem:[#allocation3 + $0x168] sm:$0xff] %vm1952, %v1851
    %1999 = vst.msk [vmem:[#allocation3 + $0x170] sm:$0xff] %vm1952, %v1853
    %2000 = vst.msk [vmem:[#allocation3 + $0x178] sm:$0xff] %vm1952, %v1855
    %2001 = vst.msk [vmem:[#allocation3 + $0x180] sm:$0xff] %vm1952, %v1857
    %2002 = vst.msk [vmem:[#allocation3 + $0x188] sm:$0xff] %vm1952, %v1859
    %2003 = vst.msk [vmem:[#allocation3 + $0x190] sm:$0xff] %vm1952, %v1861
    %2004 = vst.msk [vmem:[#allocation3 + $0x198] sm:$0xff] %vm1952, %v1863
    %2005 = vst.msk [vmem:[#allocation3 + $0x1a0] sm:$0xff] %vm1952, %v1865
    %2006 = vst.msk [vmem:[#allocation3 + $0x1a8] sm:$0xff] %vm1952, %v1867
    %2007 = vst.msk [vmem:[#allocation3 + $0x1b0] sm:$0xff] %vm1952, %v1869
    %2008 = vst.msk [vmem:[#allocation3 + $0x1b8] sm:$0xff] %vm1952, %v1871
    %2009 = vst.msk [vmem:[#allocation3 + $0x1c0] sm:$0xff] %vm1952, %v1873
    %2010 = vst.msk [vmem:[#allocation3 + $0x1c8] sm:$0xff] %vm1952, %v1875
    %2011 = vst.msk [vmem:[#allocation3 + $0x1d0] sm:$0xff] %vm1952, %v1877
    %2012 = vst.msk [vmem:[#allocation3 + $0x1d8] sm:$0xff] %vm1952, %v1879
    %2013 = vst.msk [vmem:[#allocation3 + $0x1e0] sm:$0xff] %vm1952, %v1881
    %2014 = vst.msk [vmem:[#allocation3 + $0x1e8] sm:$0xff] %vm1952, %v1883
    %2015 = vst.msk [vmem:[#allocation3 + $0x1f0] sm:$0xff] %vm1952, %v1885
    %2016 = vst.msk [vmem:[#allocation3 + $0x1f8] sm:$0xff] %vm1952, %v1887
    %v2017 = vld [vmem:[%s284 + $0x2] sm:$0xff]
    %v2018 = vld [vmem:[%s284 + $0xa] sm:$0xff]
    %v2019 = vld [vmem:[%s284 + $0x1a] sm:$0xff]
    %v2020 = vld [vmem:[%s284 + $0x22] sm:$0xff]
    %v2021 = vld [vmem:[%s284 + $0x32] sm:$0xff]
    %v2022 = vld [vmem:[%s284 + $0x3a] sm:$0xff]
    %v2023 = vld [vmem:[%s284 + $0x4a] sm:$0xff]
    %v2024 = vld [vmem:[%s284 + $0x52] sm:$0xff]
    %v2025 = vld [vmem:[%s284 + $0x62] sm:$0xff]
    %v2026 = vld [vmem:[%s284 + $0x6a] sm:$0xff]
    %v2027 = vld [vmem:[%s284 + $0x7a] sm:$0xff]
    %v2028 = vld [vmem:[%s284 + $0x82] sm:$0xff]
    %v2029 = vld [vmem:[%s284 + $0x92] sm:$0xff]
    %v2030 = vld [vmem:[%s284 + $0x9a] sm:$0xff]
    %v2031 = vld [vmem:[%s284 + $0xaa] sm:$0xff]
    %v2032 = vld [vmem:[%s284 + $0xb2] sm:$0xff]
    %v2033 = vld [vmem:[%s284 + $0xc2] sm:$0xff]
    %v2034 = vld [vmem:[%s284 + $0xca] sm:$0xff]
    %v2035 = vld [vmem:[%s284 + $0xda] sm:$0xff]
    %v2036 = vld [vmem:[%s284 + $0xe2] sm:$0xff]
    %v2037 = vld [vmem:[%s284 + $0xf2] sm:$0xff]
    %v2038 = vld [vmem:[%s284 + $0xfa] sm:$0xff]
    %v2039 = vld [vmem:[%s284 + $0x10a] sm:$0xff]
    %v2040 = vld [vmem:[%s284 + $0x112] sm:$0xff]
    %v2041 = vld [vmem:[%s284 + $0x122] sm:$0xff]
    %v2042 = vld [vmem:[%s284 + $0x12a] sm:$0xff]
    %v2043 = vld [vmem:[%s284 + $0x13a] sm:$0xff]
    %v2044 = vld [vmem:[%s284 + $0x142] sm:$0xff]
    %v2045 = vld [vmem:[%s284 + $0x152] sm:$0xff]
    %v2046 = vld [vmem:[%s284 + $0x15a] sm:$0xff]
    %v2047 = vld [vmem:[%s284 + $0x16a] sm:$0xff]
    %v2048 = vld [vmem:[%s284 + $0x172] sm:$0xff]
    %v2049 = vld [vmem:[%s284 + $0x1b2] sm:$0xff]
    %v2050 = vld [vmem:[%s284 + $0x1ba] sm:$0xff]
    %v2051 = vld [vmem:[%s284 + $0x1ca] sm:$0xff]
    %v2052 = vld [vmem:[%s284 + $0x1d2] sm:$0xff]
    %v2053 = vld [vmem:[%s284 + $0x1e2] sm:$0xff]
    %v2054 = vld [vmem:[%s284 + $0x1ea] sm:$0xff]
    %v2055 = vld [vmem:[%s284 + $0x1fa] sm:$0xff]
    %v2056 = vld [vmem:[%s284 + $0x202] sm:$0xff]
    %v2057 = vld [vmem:[%s284 + $0x212] sm:$0xff]
    %v2058 = vld [vmem:[%s284 + $0x21a] sm:$0xff]
    %v2059 = vld [vmem:[%s284 + $0x22a] sm:$0xff]
    %v2060 = vld [vmem:[%s284 + $0x232] sm:$0xff]
    %v2061 = vld [vmem:[%s284 + $0x242] sm:$0xff]
    %v2062 = vld [vmem:[%s284 + $0x24a] sm:$0xff]
    %v2063 = vld [vmem:[%s284 + $0x25a] sm:$0xff]
    %v2064 = vld [vmem:[%s284 + $0x262] sm:$0xff]
    %v2065 = vld [vmem:[%s284 + $0x272] sm:$0xff]
    %v2066 = vld [vmem:[%s284 + $0x27a] sm:$0xff]
    %v2067 = vld [vmem:[%s284 + $0x28a] sm:$0xff]
    %v2068 = vld [vmem:[%s284 + $0x292] sm:$0xff]
    %v2069 = vld [vmem:[%s284 + $0x2a2] sm:$0xff]
    %v2070 = vld [vmem:[%s284 + $0x2aa] sm:$0xff]
    %v2071 = vld [vmem:[%s284 + $0x2ba] sm:$0xff]
    %v2072 = vld [vmem:[%s284 + $0x2c2] sm:$0xff]
    %v2073 = vld [vmem:[%s284 + $0x2d2] sm:$0xff]
    %v2074 = vld [vmem:[%s284 + $0x2da] sm:$0xff]
    %v2075 = vld [vmem:[%s284 + $0x2ea] sm:$0xff]
    %v2076 = vld [vmem:[%s284 + $0x2f2] sm:$0xff]
    %v2077 = vld [vmem:[%s284 + $0x302] sm:$0xff]
    %v2078 = vld [vmem:[%s284 + $0x30a] sm:$0xff]
    %v2079 = vld [vmem:[%s284 + $0x31a] sm:$0xff]
    %v2080 = vld [vmem:[%s284 + $0x322] sm:$0xff]
    %2145 = vrot.lane.b32.xlu0 %v2017, 20
    %v2146 = vpop.permute.xlu0 %2145
    %2147 = vrot.lane.b32.xlu0 %v2018, 20
    %v2148 = vpop.permute.xlu0 %2147
    %2149 = vrot.lane.b32.xlu0 %v2019, 20
    %v2150 = vpop.permute.xlu0 %2149
    %2151 = vrot.lane.b32.xlu0 %v2020, 20
    %v2152 = vpop.permute.xlu0 %2151
    %2153 = vrot.lane.b32.xlu0 %v2021, 20
    %v2154 = vpop.permute.xlu0 %2153
    %2155 = vrot.lane.b32.xlu0 %v2022, 20
    %v2156 = vpop.permute.xlu0 %2155
    %2157 = vrot.lane.b32.xlu0 %v2023, 20
    %v2158 = vpop.permute.xlu0 %2157
    %2159 = vrot.lane.b32.xlu0 %v2024, 20
    %v2160 = vpop.permute.xlu0 %2159
    %2161 = vrot.lane.b32.xlu0 %v2025, 20
    %v2162 = vpop.permute.xlu0 %2161
    %2163 = vrot.lane.b32.xlu0 %v2026, 20
    %v2164 = vpop.permute.xlu0 %2163
    %2165 = vrot.lane.b32.xlu0 %v2027, 20
    %v2166 = vpop.permute.xlu0 %2165
    %2167 = vrot.lane.b32.xlu0 %v2028, 20
    %v2168 = vpop.permute.xlu0 %2167
    %2169 = vrot.lane.b32.xlu0 %v2029, 20
    %v2170 = vpop.permute.xlu0 %2169
    %2171 = vrot.lane.b32.xlu0 %v2030, 20
    %v2172 = vpop.permute.xlu0 %2171
    %2173 = vrot.lane.b32.xlu0 %v2031, 20
    %v2174 = vpop.permute.xlu0 %2173
    %2175 = vrot.lane.b32.xlu0 %v2032, 20
    %v2176 = vpop.permute.xlu0 %2175
    %2177 = vrot.lane.b32.xlu0 %v2033, 20
    %v2178 = vpop.permute.xlu0 %2177
    %2179 = vrot.lane.b32.xlu0 %v2034, 20
    %v2180 = vpop.permute.xlu0 %2179
    %2181 = vrot.lane.b32.xlu0 %v2035, 20
    %v2182 = vpop.permute.xlu0 %2181
    %2183 = vrot.lane.b32.xlu0 %v2036, 20
    %v2184 = vpop.permute.xlu0 %2183
    %2185 = vrot.lane.b32.xlu0 %v2037, 20
    %v2186 = vpop.permute.xlu0 %2185
    %2187 = vrot.lane.b32.xlu0 %v2038, 20
    %v2188 = vpop.permute.xlu0 %2187
    %2189 = vrot.lane.b32.xlu0 %v2039, 20
    %v2190 = vpop.permute.xlu0 %2189
    %2191 = vrot.lane.b32.xlu0 %v2040, 20
    %v2192 = vpop.permute.xlu0 %2191
    %2193 = vrot.lane.b32.xlu0 %v2041, 20
    %v2194 = vpop.permute.xlu0 %2193
    %2195 = vrot.lane.b32.xlu0 %v2042, 20
    %v2196 = vpop.permute.xlu0 %2195
    %2197 = vrot.lane.b32.xlu0 %v2043, 20
    %v2198 = vpop.permute.xlu0 %2197
    %2199 = vrot.lane.b32.xlu0 %v2044, 20
    %v2200 = vpop.permute.xlu0 %2199
    %2201 = vrot.lane.b32.xlu0 %v2045, 20
    %v2202 = vpop.permute.xlu0 %2201
    %2203 = vrot.lane.b32.xlu0 %v2046, 20
    %v2204 = vpop.permute.xlu0 %2203
    %2205 = vrot.lane.b32.xlu0 %v2047, 20
    %v2206 = vpop.permute.xlu0 %2205
    %2207 = vrot.lane.b32.xlu0 %v2048, 20
    %v2208 = vpop.permute.xlu0 %2207
    %2209 = vrot.lane.b32.xlu0 %v2049, 20
    %v2210 = vpop.permute.xlu0 %2209
    %2211 = vrot.lane.b32.xlu0 %v2050, 20
    %v2212 = vpop.permute.xlu0 %2211
    %2213 = vrot.lane.b32.xlu0 %v2051, 20
    %v2214 = vpop.permute.xlu0 %2213
    %2215 = vrot.lane.b32.xlu0 %v2052, 20
    %v2216 = vpop.permute.xlu0 %2215
    %2217 = vrot.lane.b32.xlu0 %v2053, 20
    %v2218 = vpop.permute.xlu0 %2217
    %2219 = vrot.lane.b32.xlu0 %v2054, 20
    %v2220 = vpop.permute.xlu0 %2219
    %2221 = vrot.lane.b32.xlu0 %v2055, 20
    %v2222 = vpop.permute.xlu0 %2221
    %2223 = vrot.lane.b32.xlu0 %v2056, 20
    %v2224 = vpop.permute.xlu0 %2223
    %2225 = vrot.lane.b32.xlu0 %v2057, 20
    %v2226 = vpop.permute.xlu0 %2225
    %2227 = vrot.lane.b32.xlu0 %v2058, 20
    %v2228 = vpop.permute.xlu0 %2227
    %2229 = vrot.lane.b32.xlu0 %v2059, 20
    %v2230 = vpop.permute.xlu0 %2229
    %2231 = vrot.lane.b32.xlu0 %v2060, 20
    %v2232 = vpop.permute.xlu0 %2231
    %2233 = vrot.lane.b32.xlu0 %v2061, 20
    %v2234 = vpop.permute.xlu0 %2233
    %2235 = vrot.lane.b32.xlu0 %v2062, 20
    %v2236 = vpop.permute.xlu0 %2235
    %2237 = vrot.lane.b32.xlu0 %v2063, 20
    %v2238 = vpop.permute.xlu0 %2237
    %2239 = vrot.lane.b32.xlu0 %v2064, 20
    %v2240 = vpop.permute.xlu0 %2239
    %2241 = vrot.lane.b32.xlu0 %v2065, 20
    %v2242 = vpop.permute.xlu0 %2241
    %2243 = vrot.lane.b32.xlu0 %v2066, 20
    %v2244 = vpop.permute.xlu0 %2243
    %2245 = vrot.lane.b32.xlu0 %v2067, 20
    %v2246 = vpop.permute.xlu0 %2245
    %2247 = vrot.lane.b32.xlu0 %v2068, 20
    %v2248 = vpop.permute.xlu0 %2247
    %2249 = vrot.lane.b32.xlu0 %v2069, 20
    %v2250 = vpop.permute.xlu0 %2249
    %2251 = vrot.lane.b32.xlu0 %v2070, 20
    %v2252 = vpop.permute.xlu0 %2251
    %2253 = vrot.lane.b32.xlu0 %v2071, 20
    %v2254 = vpop.permute.xlu0 %2253
    %2255 = vrot.lane.b32.xlu0 %v2072, 20
    %v2256 = vpop.permute.xlu0 %2255
    %2257 = vrot.lane.b32.xlu0 %v2073, 20
    %v2258 = vpop.permute.xlu0 %2257
    %2259 = vrot.lane.b32.xlu0 %v2074, 20
    %v2260 = vpop.permute.xlu0 %2259
    %2261 = vrot.lane.b32.xlu0 %v2075, 20
    %v2262 = vpop.permute.xlu0 %2261
    %2263 = vrot.lane.b32.xlu0 %v2076, 20
    %v2264 = vpop.permute.xlu0 %2263
    %2265 = vrot.lane.b32.xlu0 %v2077, 20
    %v2266 = vpop.permute.xlu0 %2265
    %2267 = vrot.lane.b32.xlu0 %v2078, 20
    %v2268 = vpop.permute.xlu0 %2267
    %2269 = vrot.lane.b32.xlu0 %v2079, 20
    %v2270 = vpop.permute.xlu0 %2269
    %2271 = vrot.lane.b32.xlu0 %v2080, 20
    %v2272 = vpop.permute.xlu0 %2271
    %vm2337 = vcmask 195744
    %2338 = vst.msk [vmem:[#allocation3] sm:$0xff] %vm2337, %v2146
    %2339 = vst.msk [vmem:[#allocation3 + $0x8] sm:$0xff] %vm2337, %v2148
    %2340 = vst.msk [vmem:[#allocation3 + $0x10] sm:$0xff] %vm2337, %v2150
    %2341 = vst.msk [vmem:[#allocation3 + $0x18] sm:$0xff] %vm2337, %v2152
    %2342 = vst.msk [vmem:[#allocation3 + $0x20] sm:$0xff] %vm2337, %v2154
    %2343 = vst.msk [vmem:[#allocation3 + $0x28] sm:$0xff] %vm2337, %v2156
    %2344 = vst.msk [vmem:[#allocation3 + $0x30] sm:$0xff] %vm2337, %v2158
    %2345 = vst.msk [vmem:[#allocation3 + $0x38] sm:$0xff] %vm2337, %v2160
    %2346 = vst.msk [vmem:[#allocation3 + $0x40] sm:$0xff] %vm2337, %v2162
    %2347 = vst.msk [vmem:[#allocation3 + $0x48] sm:$0xff] %vm2337, %v2164
    %2348 = vst.msk [vmem:[#allocation3 + $0x50] sm:$0xff] %vm2337, %v2166
    %2349 = vst.msk [vmem:[#allocation3 + $0x58] sm:$0xff] %vm2337, %v2168
    %2350 = vst.msk [vmem:[#allocation3 + $0x60] sm:$0xff] %vm2337, %v2170
    %2351 = vst.msk [vmem:[#allocation3 + $0x68] sm:$0xff] %vm2337, %v2172
    %2352 = vst.msk [vmem:[#allocation3 + $0x70] sm:$0xff] %vm2337, %v2174
    %2353 = vst.msk [vmem:[#allocation3 + $0x78] sm:$0xff] %vm2337, %v2176
    %2354 = vst.msk [vmem:[#allocation3 + $0x80] sm:$0xff] %vm2337, %v2178
    %2355 = vst.msk [vmem:[#allocation3 + $0x88] sm:$0xff] %vm2337, %v2180
    %2356 = vst.msk [vmem:[#allocation3 + $0x90] sm:$0xff] %vm2337, %v2182
    %2357 = vst.msk [vmem:[#allocation3 + $0x98] sm:$0xff] %vm2337, %v2184
    %2358 = vst.msk [vmem:[#allocation3 + $0xa0] sm:$0xff] %vm2337, %v2186
    %2359 = vst.msk [vmem:[#allocation3 + $0xa8] sm:$0xff] %vm2337, %v2188
    %2360 = vst.msk [vmem:[#allocation3 + $0xb0] sm:$0xff] %vm2337, %v2190
    %2361 = vst.msk [vmem:[#allocation3 + $0xb8] sm:$0xff] %vm2337, %v2192
    %2362 = vst.msk [vmem:[#allocation3 + $0xc0] sm:$0xff] %vm2337, %v2194
    %2363 = vst.msk [vmem:[#allocation3 + $0xc8] sm:$0xff] %vm2337, %v2196
    %2364 = vst.msk [vmem:[#allocation3 + $0xd0] sm:$0xff] %vm2337, %v2198
    %2365 = vst.msk [vmem:[#allocation3 + $0xd8] sm:$0xff] %vm2337, %v2200
    %2366 = vst.msk [vmem:[#allocation3 + $0xe0] sm:$0xff] %vm2337, %v2202
    %2367 = vst.msk [vmem:[#allocation3 + $0xe8] sm:$0xff] %vm2337, %v2204
    %2368 = vst.msk [vmem:[#allocation3 + $0xf0] sm:$0xff] %vm2337, %v2206
    %2369 = vst.msk [vmem:[#allocation3 + $0xf8] sm:$0xff] %vm2337, %v2208
    %2370 = vst.msk [vmem:[#allocation3 + $0x100] sm:$0xff] %vm2337, %v2210
    %2371 = vst.msk [vmem:[#allocation3 + $0x108] sm:$0xff] %vm2337, %v2212
    %2372 = vst.msk [vmem:[#allocation3 + $0x110] sm:$0xff] %vm2337, %v2214
    %2373 = vst.msk [vmem:[#allocation3 + $0x118] sm:$0xff] %vm2337, %v2216
    %2374 = vst.msk [vmem:[#allocation3 + $0x120] sm:$0xff] %vm2337, %v2218
    %2375 = vst.msk [vmem:[#allocation3 + $0x128] sm:$0xff] %vm2337, %v2220
    %2376 = vst.msk [vmem:[#allocation3 + $0x130] sm:$0xff] %vm2337, %v2222
    %2377 = vst.msk [vmem:[#allocation3 + $0x138] sm:$0xff] %vm2337, %v2224
    %2378 = vst.msk [vmem:[#allocation3 + $0x140] sm:$0xff] %vm2337, %v2226
    %2379 = vst.msk [vmem:[#allocation3 + $0x148] sm:$0xff] %vm2337, %v2228
    %2380 = vst.msk [vmem:[#allocation3 + $0x150] sm:$0xff] %vm2337, %v2230
    %2381 = vst.msk [vmem:[#allocation3 + $0x158] sm:$0xff] %vm2337, %v2232
    %2382 = vst.msk [vmem:[#allocation3 + $0x160] sm:$0xff] %vm2337, %v2234
    %2383 = vst.msk [vmem:[#allocation3 + $0x168] sm:$0xff] %vm2337, %v2236
    %2384 = vst.msk [vmem:[#allocation3 + $0x170] sm:$0xff] %vm2337, %v2238
    %2385 = vst.msk [vmem:[#allocation3 + $0x178] sm:$0xff] %vm2337, %v2240
    %2386 = vst.msk [vmem:[#allocation3 + $0x180] sm:$0xff] %vm2337, %v2242
    %2387 = vst.msk [vmem:[#allocation3 + $0x188] sm:$0xff] %vm2337, %v2244
    %2388 = vst.msk [vmem:[#allocation3 + $0x190] sm:$0xff] %vm2337, %v2246
    %2389 = vst.msk [vmem:[#allocation3 + $0x198] sm:$0xff] %vm2337, %v2248
    %2390 = vst.msk [vmem:[#allocation3 + $0x1a0] sm:$0xff] %vm2337, %v2250
    %2391 = vst.msk [vmem:[#allocation3 + $0x1a8] sm:$0xff] %vm2337, %v2252
    %2392 = vst.msk [vmem:[#allocation3 + $0x1b0] sm:$0xff] %vm2337, %v2254
    %2393 = vst.msk [vmem:[#allocation3 + $0x1b8] sm:$0xff] %vm2337, %v2256
    %2394 = vst.msk [vmem:[#allocation3 + $0x1c0] sm:$0xff] %vm2337, %v2258
    %2395 = vst.msk [vmem:[#allocation3 + $0x1c8] sm:$0xff] %vm2337, %v2260
    %2396 = vst.msk [vmem:[#allocation3 + $0x1d0] sm:$0xff] %vm2337, %v2262
    %2397 = vst.msk [vmem:[#allocation3 + $0x1d8] sm:$0xff] %vm2337, %v2264
    %2398 = vst.msk [vmem:[#allocation3 + $0x1e0] sm:$0xff] %vm2337, %v2266
    %2399 = vst.msk [vmem:[#allocation3 + $0x1e8] sm:$0xff] %vm2337, %v2268
    %2400 = vst.msk [vmem:[#allocation3 + $0x1f0] sm:$0xff] %vm2337, %v2270
    %2401 = vst.msk [vmem:[#allocation3 + $0x1f8] sm:$0xff] %vm2337, %v2272
    %s2402 = scalar_lea.vmem [#allocation2], 48
    %v2403 = vld [vmem:[%s2402] sm:$0xff]
    %v2404 = vld [vmem:[%s2402 + $0x8] sm:$0xff]
    %v2405 = vld [vmem:[%s2402 + $0x18] sm:$0xff]
    %v2406 = vld [vmem:[%s2402 + $0x20] sm:$0xff]
    %v2407 = vld [vmem:[%s2402 + $0x30] sm:$0xff]
    %v2408 = vld [vmem:[%s2402 + $0x38] sm:$0xff]
    %v2409 = vld [vmem:[%s2402 + $0x48] sm:$0xff]
    %v2410 = vld [vmem:[%s2402 + $0x50] sm:$0xff]
    %v2411 = vld [vmem:[%s2402 + $0x60] sm:$0xff]
    %v2412 = vld [vmem:[%s2402 + $0x68] sm:$0xff]
    %v2413 = vld [vmem:[%s2402 + $0x78] sm:$0xff]
    %v2414 = vld [vmem:[%s2402 + $0x80] sm:$0xff]
    %v2415 = vld [vmem:[%s2402 + $0x90] sm:$0xff]
    %v2416 = vld [vmem:[%s2402 + $0x98] sm:$0xff]
    %v2417 = vld [vmem:[%s2402 + $0xa8] sm:$0xff]
    %v2418 = vld [vmem:[%s2402 + $0xb0] sm:$0xff]
    %v2419 = vld [vmem:[%s2402 + $0xc0] sm:$0xff]
    %v2420 = vld [vmem:[%s2402 + $0xc8] sm:$0xff]
    %v2421 = vld [vmem:[%s2402 + $0xd8] sm:$0xff]
    %v2422 = vld [vmem:[%s2402 + $0xe0] sm:$0xff]
    %v2423 = vld [vmem:[%s2402 + $0xf0] sm:$0xff]
    %v2424 = vld [vmem:[%s2402 + $0xf8] sm:$0xff]
    %v2425 = vld [vmem:[%s2402 + $0x108] sm:$0xff]
    %v2426 = vld [vmem:[%s2402 + $0x110] sm:$0xff]
    %v2427 = vld [vmem:[%s2402 + $0x120] sm:$0xff]
    %v2428 = vld [vmem:[%s2402 + $0x128] sm:$0xff]
    %v2429 = vld [vmem:[%s2402 + $0x138] sm:$0xff]
    %v2430 = vld [vmem:[%s2402 + $0x140] sm:$0xff]
    %v2431 = vld [vmem:[%s2402 + $0x150] sm:$0xff]
    %v2432 = vld [vmem:[%s2402 + $0x158] sm:$0xff]
    %v2433 = vld [vmem:[%s2402 + $0x168] sm:$0xff]
    %v2434 = vld [vmem:[%s2402 + $0x170] sm:$0xff]
    %v2435 = vld [vmem:[%s2402 + $0x1b0] sm:$0xff]
    %v2436 = vld [vmem:[%s2402 + $0x1b8] sm:$0xff]
    %v2437 = vld [vmem:[%s2402 + $0x1c8] sm:$0xff]
    %v2438 = vld [vmem:[%s2402 + $0x1d0] sm:$0xff]
    %v2439 = vld [vmem:[%s2402 + $0x1e0] sm:$0xff]
    %v2440 = vld [vmem:[%s2402 + $0x1e8] sm:$0xff]
    %v2441 = vld [vmem:[%s2402 + $0x1f8] sm:$0xff]
    %v2442 = vld [vmem:[%s2402 + $0x200] sm:$0xff]
    %v2443 = vld [vmem:[%s2402 + $0x210] sm:$0xff]
    %v2444 = vld [vmem:[%s2402 + $0x218] sm:$0xff]
    %v2445 = vld [vmem:[%s2402 + $0x228] sm:$0xff]
    %v2446 = vld [vmem:[%s2402 + $0x230] sm:$0xff]
    %v2447 = vld [vmem:[%s2402 + $0x240] sm:$0xff]
    %v2448 = vld [vmem:[%s2402 + $0x248] sm:$0xff]
    %v2449 = vld [vmem:[%s2402 + $0x258] sm:$0xff]
    %v2450 = vld [vmem:[%s2402 + $0x260] sm:$0xff]
    %v2451 = vld [vmem:[%s2402 + $0x270] sm:$0xff]
    %v2452 = vld [vmem:[%s2402 + $0x278] sm:$0xff]
    %v2453 = vld [vmem:[%s2402 + $0x288] sm:$0xff]
    %v2454 = vld [vmem:[%s2402 + $0x290] sm:$0xff]
    %v2455 = vld [vmem:[%s2402 + $0x2a0] sm:$0xff]
    %v2456 = vld [vmem:[%s2402 + $0x2a8] sm:$0xff]
    %v2457 = vld [vmem:[%s2402 + $0x2b8] sm:$0xff]
    %v2458 = vld [vmem:[%s2402 + $0x2c0] sm:$0xff]
    %v2459 = vld [vmem:[%s2402 + $0x2d0] sm:$0xff]
    %v2460 = vld [vmem:[%s2402 + $0x2d8] sm:$0xff]
    %v2461 = vld [vmem:[%s2402 + $0x2e8] sm:$0xff]
    %v2462 = vld [vmem:[%s2402 + $0x2f0] sm:$0xff]
    %v2463 = vld [vmem:[%s2402 + $0x300] sm:$0xff]
    %v2464 = vld [vmem:[%s2402 + $0x308] sm:$0xff]
    %v2465 = vld [vmem:[%s2402 + $0x318] sm:$0xff]
    %v2466 = vld [vmem:[%s2402 + $0x320] sm:$0xff]
    %2531 = vrot.lane.b32.xlu0 %v2403, 24
    %v2532 = vpop.permute.xlu0 %2531
    %2533 = vrot.lane.b32.xlu0 %v2404, 24
    %v2534 = vpop.permute.xlu0 %2533
    %2535 = vrot.lane.b32.xlu0 %v2405, 24
    %v2536 = vpop.permute.xlu0 %2535
    %2537 = vrot.lane.b32.xlu0 %v2406, 24
    %v2538 = vpop.permute.xlu0 %2537
    %2539 = vrot.lane.b32.xlu0 %v2407, 24
    %v2540 = vpop.permute.xlu0 %2539
    %2541 = vrot.lane.b32.xlu0 %v2408, 24
    %v2542 = vpop.permute.xlu0 %2541
    %2543 = vrot.lane.b32.xlu0 %v2409, 24
    %v2544 = vpop.permute.xlu0 %2543
    %2545 = vrot.lane.b32.xlu0 %v2410, 24
    %v2546 = vpop.permute.xlu0 %2545
    %2547 = vrot.lane.b32.xlu0 %v2411, 24
    %v2548 = vpop.permute.xlu0 %2547
    %2549 = vrot.lane.b32.xlu0 %v2412, 24
    %v2550 = vpop.permute.xlu0 %2549
    %2551 = vrot.lane.b32.xlu0 %v2413, 24
    %v2552 = vpop.permute.xlu0 %2551
    %2553 = vrot.lane.b32.xlu0 %v2414, 24
    %v2554 = vpop.permute.xlu0 %2553
    %2555 = vrot.lane.b32.xlu0 %v2415, 24
    %v2556 = vpop.permute.xlu0 %2555
    %2557 = vrot.lane.b32.xlu0 %v2416, 24
    %v2558 = vpop.permute.xlu0 %2557
    %2559 = vrot.lane.b32.xlu0 %v2417, 24
    %v2560 = vpop.permute.xlu0 %2559
    %2561 = vrot.lane.b32.xlu0 %v2418, 24
    %v2562 = vpop.permute.xlu0 %2561
    %2563 = vrot.lane.b32.xlu0 %v2419, 24
    %v2564 = vpop.permute.xlu0 %2563
    %2565 = vrot.lane.b32.xlu0 %v2420, 24
    %v2566 = vpop.permute.xlu0 %2565
    %2567 = vrot.lane.b32.xlu0 %v2421, 24
    %v2568 = vpop.permute.xlu0 %2567
    %2569 = vrot.lane.b32.xlu0 %v2422, 24
    %v2570 = vpop.permute.xlu0 %2569
    %2571 = vrot.lane.b32.xlu0 %v2423, 24
    %v2572 = vpop.permute.xlu0 %2571
    %2573 = vrot.lane.b32.xlu0 %v2424, 24
    %v2574 = vpop.permute.xlu0 %2573
    %2575 = vrot.lane.b32.xlu0 %v2425, 24
    %v2576 = vpop.permute.xlu0 %2575
    %2577 = vrot.lane.b32.xlu0 %v2426, 24
    %v2578 = vpop.permute.xlu0 %2577
    %2579 = vrot.lane.b32.xlu0 %v2427, 24
    %v2580 = vpop.permute.xlu0 %2579
    %2581 = vrot.lane.b32.xlu0 %v2428, 24
    %v2582 = vpop.permute.xlu0 %2581
    %2583 = vrot.lane.b32.xlu0 %v2429, 24
    %v2584 = vpop.permute.xlu0 %2583
    %2585 = vrot.lane.b32.xlu0 %v2430, 24
    %v2586 = vpop.permute.xlu0 %2585
    %2587 = vrot.lane.b32.xlu0 %v2431, 24
    %v2588 = vpop.permute.xlu0 %2587
    %2589 = vrot.lane.b32.xlu0 %v2432, 24
    %v2590 = vpop.permute.xlu0 %2589
    %2591 = vrot.lane.b32.xlu0 %v2433, 24
    %v2592 = vpop.permute.xlu0 %2591
    %2593 = vrot.lane.b32.xlu0 %v2434, 24
    %v2594 = vpop.permute.xlu0 %2593
    %2595 = vrot.lane.b32.xlu0 %v2435, 24
    %v2596 = vpop.permute.xlu0 %2595
    %2597 = vrot.lane.b32.xlu0 %v2436, 24
    %v2598 = vpop.permute.xlu0 %2597
    %2599 = vrot.lane.b32.xlu0 %v2437, 24
    %v2600 = vpop.permute.xlu0 %2599
    %2601 = vrot.lane.b32.xlu0 %v2438, 24
    %v2602 = vpop.permute.xlu0 %2601
    %2603 = vrot.lane.b32.xlu0 %v2439, 24
    %v2604 = vpop.permute.xlu0 %2603
    %2605 = vrot.lane.b32.xlu0 %v2440, 24
    %v2606 = vpop.permute.xlu0 %2605
    %2607 = vrot.lane.b32.xlu0 %v2441, 24
    %v2608 = vpop.permute.xlu0 %2607
    %2609 = vrot.lane.b32.xlu0 %v2442, 24
    %v2610 = vpop.permute.xlu0 %2609
    %2611 = vrot.lane.b32.xlu0 %v2443, 24
    %v2612 = vpop.permute.xlu0 %2611
    %2613 = vrot.lane.b32.xlu0 %v2444, 24
    %v2614 = vpop.permute.xlu0 %2613
    %2615 = vrot.lane.b32.xlu0 %v2445, 24
    %v2616 = vpop.permute.xlu0 %2615
    %2617 = vrot.lane.b32.xlu0 %v2446, 24
    %v2618 = vpop.permute.xlu0 %2617
    %2619 = vrot.lane.b32.xlu0 %v2447, 24
    %v2620 = vpop.permute.xlu0 %2619
    %2621 = vrot.lane.b32.xlu0 %v2448, 24
    %v2622 = vpop.permute.xlu0 %2621
    %2623 = vrot.lane.b32.xlu0 %v2449, 24
    %v2624 = vpop.permute.xlu0 %2623
    %2625 = vrot.lane.b32.xlu0 %v2450, 24
    %v2626 = vpop.permute.xlu0 %2625
    %2627 = vrot.lane.b32.xlu0 %v2451, 24
    %v2628 = vpop.permute.xlu0 %2627
    %2629 = vrot.lane.b32.xlu0 %v2452, 24
    %v2630 = vpop.permute.xlu0 %2629
    %2631 = vrot.lane.b32.xlu0 %v2453, 24
    %v2632 = vpop.permute.xlu0 %2631
    %2633 = vrot.lane.b32.xlu0 %v2454, 24
    %v2634 = vpop.permute.xlu0 %2633
    %2635 = vrot.lane.b32.xlu0 %v2455, 24
    %v2636 = vpop.permute.xlu0 %2635
    %2637 = vrot.lane.b32.xlu0 %v2456, 24
    %v2638 = vpop.permute.xlu0 %2637
    %2639 = vrot.lane.b32.xlu0 %v2457, 24
    %v2640 = vpop.permute.xlu0 %2639
    %2641 = vrot.lane.b32.xlu0 %v2458, 24
    %v2642 = vpop.permute.xlu0 %2641
    %2643 = vrot.lane.b32.xlu0 %v2459, 24
    %v2644 = vpop.permute.xlu0 %2643
    %2645 = vrot.lane.b32.xlu0 %v2460, 24
    %v2646 = vpop.permute.xlu0 %2645
    %2647 = vrot.lane.b32.xlu0 %v2461, 24
    %v2648 = vpop.permute.xlu0 %2647
    %2649 = vrot.lane.b32.xlu0 %v2462, 24
    %v2650 = vpop.permute.xlu0 %2649
    %2651 = vrot.lane.b32.xlu0 %v2463, 24
    %v2652 = vpop.permute.xlu0 %2651
    %2653 = vrot.lane.b32.xlu0 %v2464, 24
    %v2654 = vpop.permute.xlu0 %2653
    %2655 = vrot.lane.b32.xlu0 %v2465, 24
    %v2656 = vpop.permute.xlu0 %2655
    %2657 = vrot.lane.b32.xlu0 %v2466, 24
    %v2658 = vpop.permute.xlu0 %2657
    %vm2723 = vcmask 228544
    %2724 = vst.msk [vmem:[#allocation3] sm:$0xff] %vm2723, %v2532
    %2725 = vst.msk [vmem:[#allocation3 + $0x8] sm:$0xff] %vm2723, %v2534
    %2726 = vst.msk [vmem:[#allocation3 + $0x10] sm:$0xff] %vm2723, %v2536
    %2727 = vst.msk [vmem:[#allocation3 + $0x18] sm:$0xff] %vm2723, %v2538
    %2728 = vst.msk [vmem:[#allocation3 + $0x20] sm:$0xff] %vm2723, %v2540
    %2729 = vst.msk [vmem:[#allocation3 + $0x28] sm:$0xff] %vm2723, %v2542
    %2730 = vst.msk [vmem:[#allocation3 + $0x30] sm:$0xff] %vm2723, %v2544
    %2731 = vst.msk [vmem:[#allocation3 + $0x38] sm:$0xff] %vm2723, %v2546
    %2732 = vst.msk [vmem:[#allocation3 + $0x40] sm:$0xff] %vm2723, %v2548
    %2733 = vst.msk [vmem:[#allocation3 + $0x48] sm:$0xff] %vm2723, %v2550
    %2734 = vst.msk [vmem:[#allocation3 + $0x50] sm:$0xff] %vm2723, %v2552
    %2735 = vst.msk [vmem:[#allocation3 + $0x58] sm:$0xff] %vm2723, %v2554
    %2736 = vst.msk [vmem:[#allocation3 + $0x60] sm:$0xff] %vm2723, %v2556
    %2737 = vst.msk [vmem:[#allocation3 + $0x68] sm:$0xff] %vm2723, %v2558
    %2738 = vst.msk [vmem:[#allocation3 + $0x70] sm:$0xff] %vm2723, %v2560
    %2739 = vst.msk [vmem:[#allocation3 + $0x78] sm:$0xff] %vm2723, %v2562
    %2740 = vst.msk [vmem:[#allocation3 + $0x80] sm:$0xff] %vm2723, %v2564
    %2741 = vst.msk [vmem:[#allocation3 + $0x88] sm:$0xff] %vm2723, %v2566
    %2742 = vst.msk [vmem:[#allocation3 + $0x90] sm:$0xff] %vm2723, %v2568
    %2743 = vst.msk [vmem:[#allocation3 + $0x98] sm:$0xff] %vm2723, %v2570
    %2744 = vst.msk [vmem:[#allocation3 + $0xa0] sm:$0xff] %vm2723, %v2572
    %2745 = vst.msk [vmem:[#allocation3 + $0xa8] sm:$0xff] %vm2723, %v2574
    %2746 = vst.msk [vmem:[#allocation3 + $0xb0] sm:$0xff] %vm2723, %v2576
    %2747 = vst.msk [vmem:[#allocation3 + $0xb8] sm:$0xff] %vm2723, %v2578
    %2748 = vst.msk [vmem:[#allocation3 + $0xc0] sm:$0xff] %vm2723, %v2580
    %2749 = vst.msk [vmem:[#allocation3 + $0xc8] sm:$0xff] %vm2723, %v2582
    %2750 = vst.msk [vmem:[#allocation3 + $0xd0] sm:$0xff] %vm2723, %v2584
    %2751 = vst.msk [vmem:[#allocation3 + $0xd8] sm:$0xff] %vm2723, %v2586
    %2752 = vst.msk [vmem:[#allocation3 + $0xe0] sm:$0xff] %vm2723, %v2588
    %2753 = vst.msk [vmem:[#allocation3 + $0xe8] sm:$0xff] %vm2723, %v2590
    %2754 = vst.msk [vmem:[#allocation3 + $0xf0] sm:$0xff] %vm2723, %v2592
    %2755 = vst.msk [vmem:[#allocation3 + $0xf8] sm:$0xff] %vm2723, %v2594
    %2756 = vst.msk [vmem:[#allocation3 + $0x100] sm:$0xff] %vm2723, %v2596
    %2757 = vst.msk [vmem:[#allocation3 + $0x108] sm:$0xff] %vm2723, %v2598
    %2758 = vst.msk [vmem:[#allocation3 + $0x110] sm:$0xff] %vm2723, %v2600
    %2759 = vst.msk [vmem:[#allocation3 + $0x118] sm:$0xff] %vm2723, %v2602
    %2760 = vst.msk [vmem:[#allocation3 + $0x120] sm:$0xff] %vm2723, %v2604
    %2761 = vst.msk [vmem:[#allocation3 + $0x128] sm:$0xff] %vm2723, %v2606
    %2762 = vst.msk [vmem:[#allocation3 + $0x130] sm:$0xff] %vm2723, %v2608
    %2763 = vst.msk [vmem:[#allocation3 + $0x138] sm:$0xff] %vm2723, %v2610
    %2764 = vst.msk [vmem:[#allocation3 + $0x140] sm:$0xff] %vm2723, %v2612
    %2765 = vst.msk [vmem:[#allocation3 + $0x148] sm:$0xff] %vm2723, %v2614
    %2766 = vst.msk [vmem:[#allocation3 + $0x150] sm:$0xff] %vm2723, %v2616
    %2767 = vst.msk [vmem:[#allocation3 + $0x158] sm:$0xff] %vm2723, %v2618
    %2768 = vst.msk [vmem:[#allocation3 + $0x160] sm:$0xff] %vm2723, %v2620
    %2769 = vst.msk [vmem:[#allocation3 + $0x168] sm:$0xff] %vm2723, %v2622
    %2770 = vst.msk [vmem:[#allocation3 + $0x170] sm:$0xff] %vm2723, %v2624
    %2771 = vst.msk [vmem:[#allocation3 + $0x178] sm:$0xff] %vm2723, %v2626
    %2772 = vst.msk [vmem:[#allocation3 + $0x180] sm:$0xff] %vm2723, %v2628
    %2773 = vst.msk [vmem:[#allocation3 + $0x188] sm:$0xff] %vm2723, %v2630
    %2774 = vst.msk [vmem:[#allocation3 + $0x190] sm:$0xff] %vm2723, %v2632
    %2775 = vst.msk [vmem:[#allocation3 + $0x198] sm:$0xff] %vm2723, %v2634
    %2776 = vst.msk [vmem:[#allocation3 + $0x1a0] sm:$0xff] %vm2723, %v2636
    %2777 = vst.msk [vmem:[#allocation3 + $0x1a8] sm:$0xff] %vm2723, %v2638
    %2778 = vst.msk [vmem:[#allocation3 + $0x1b0] sm:$0xff] %vm2723, %v2640
    %2779 = vst.msk [vmem:[#allocation3 + $0x1b8] sm:$0xff] %vm2723, %v2642
    %2780 = vst.msk [vmem:[#allocation3 + $0x1c0] sm:$0xff] %vm2723, %v2644
    %2781 = vst.msk [vmem:[#allocation3 + $0x1c8] sm:$0xff] %vm2723, %v2646
    %2782 = vst.msk [vmem:[#allocation3 + $0x1d0] sm:$0xff] %vm2723, %v2648
    %2783 = vst.msk [vmem:[#allocation3 + $0x1d8] sm:$0xff] %vm2723, %v2650
    %2784 = vst.msk [vmem:[#allocation3 + $0x1e0] sm:$0xff] %vm2723, %v2652
    %2785 = vst.msk [vmem:[#allocation3 + $0x1e8] sm:$0xff] %vm2723, %v2654
    %2786 = vst.msk [vmem:[#allocation3 + $0x1f0] sm:$0xff] %vm2723, %v2656
    %2787 = vst.msk [vmem:[#allocation3 + $0x1f8] sm:$0xff] %vm2723, %v2658
    %v2788 = vld [vmem:[%s2402 + $0x1] sm:$0xff]
    %v2789 = vld [vmem:[%s2402 + $0x9] sm:$0xff]
    %v2790 = vld [vmem:[%s2402 + $0x19] sm:$0xff]
    %v2791 = vld [vmem:[%s2402 + $0x21] sm:$0xff]
    %v2792 = vld [vmem:[%s2402 + $0x31] sm:$0xff]
    %v2793 = vld [vmem:[%s2402 + $0x39] sm:$0xff]
    %v2794 = vld [vmem:[%s2402 + $0x49] sm:$0xff]
    %v2795 = vld [vmem:[%s2402 + $0x51] sm:$0xff]
    %v2796 = vld [vmem:[%s2402 + $0x61] sm:$0xff]
    %v2797 = vld [vmem:[%s2402 + $0x69] sm:$0xff]
    %v2798 = vld [vmem:[%s2402 + $0x79] sm:$0xff]
    %v2799 = vld [vmem:[%s2402 + $0x81] sm:$0xff]
    %v2800 = vld [vmem:[%s2402 + $0x91] sm:$0xff]
    %v2801 = vld [vmem:[%s2402 + $0x99] sm:$0xff]
    %v2802 = vld [vmem:[%s2402 + $0xa9] sm:$0xff]
    %v2803 = vld [vmem:[%s2402 + $0xb1] sm:$0xff]
    %v2804 = vld [vmem:[%s2402 + $0xc1] sm:$0xff]
    %v2805 = vld [vmem:[%s2402 + $0xc9] sm:$0xff]
    %v2806 = vld [vmem:[%s2402 + $0xd9] sm:$0xff]
    %v2807 = vld [vmem:[%s2402 + $0xe1] sm:$0xff]
    %v2808 = vld [vmem:[%s2402 + $0xf1] sm:$0xff]
    %v2809 = vld [vmem:[%s2402 + $0xf9] sm:$0xff]
    %v2810 = vld [vmem:[%s2402 + $0x109] sm:$0xff]
    %v2811 = vld [vmem:[%s2402 + $0x111] sm:$0xff]
    %v2812 = vld [vmem:[%s2402 + $0x121] sm:$0xff]
    %v2813 = vld [vmem:[%s2402 + $0x129] sm:$0xff]
    %v2814 = vld [vmem:[%s2402 + $0x139] sm:$0xff]
    %v2815 = vld [vmem:[%s2402 + $0x141] sm:$0xff]
    %v2816 = vld [vmem:[%s2402 + $0x151] sm:$0xff]
    %v2817 = vld [vmem:[%s2402 + $0x159] sm:$0xff]
    %v2818 = vld [vmem:[%s2402 + $0x169] sm:$0xff]
    %v2819 = vld [vmem:[%s2402 + $0x171] sm:$0xff]
    %v2820 = vld [vmem:[%s2402 + $0x1b1] sm:$0xff]
    %v2821 = vld [vmem:[%s2402 + $0x1b9] sm:$0xff]
    %v2822 = vld [vmem:[%s2402 + $0x1c9] sm:$0xff]
    %v2823 = vld [vmem:[%s2402 + $0x1d1] sm:$0xff]
    %v2824 = vld [vmem:[%s2402 + $0x1e1] sm:$0xff]
    %v2825 = vld [vmem:[%s2402 + $0x1e9] sm:$0xff]
    %v2826 = vld [vmem:[%s2402 + $0x1f9] sm:$0xff]
    %v2827 = vld [vmem:[%s2402 + $0x201] sm:$0xff]
    %v2828 = vld [vmem:[%s2402 + $0x211] sm:$0xff]
    %v2829 = vld [vmem:[%s2402 + $0x219] sm:$0xff]
    %v2830 = vld [vmem:[%s2402 + $0x229] sm:$0xff]
    %v2831 = vld [vmem:[%s2402 + $0x231] sm:$0xff]
    %v2832 = vld [vmem:[%s2402 + $0x241] sm:$0xff]
    %v2833 = vld [vmem:[%s2402 + $0x249] sm:$0xff]
    %v2834 = vld [vmem:[%s2402 + $0x259] sm:$0xff]
    %v2835 = vld [vmem:[%s2402 + $0x261] sm:$0xff]
    %v2836 = vld [vmem:[%s2402 + $0x271] sm:$0xff]
    %v2837 = vld [vmem:[%s2402 + $0x279] sm:$0xff]
    %v2838 = vld [vmem:[%s2402 + $0x289] sm:$0xff]
    %v2839 = vld [vmem:[%s2402 + $0x291] sm:$0xff]
    %v2840 = vld [vmem:[%s2402 + $0x2a1] sm:$0xff]
    %v2841 = vld [vmem:[%s2402 + $0x2a9] sm:$0xff]
    %v2842 = vld [vmem:[%s2402 + $0x2b9] sm:$0xff]
    %v2843 = vld [vmem:[%s2402 + $0x2c1] sm:$0xff]
    %v2844 = vld [vmem:[%s2402 + $0x2d1] sm:$0xff]
    %v2845 = vld [vmem:[%s2402 + $0x2d9] sm:$0xff]
    %v2846 = vld [vmem:[%s2402 + $0x2e9] sm:$0xff]
    %v2847 = vld [vmem:[%s2402 + $0x2f1] sm:$0xff]
    %v2848 = vld [vmem:[%s2402 + $0x301] sm:$0xff]
    %v2849 = vld [vmem:[%s2402 + $0x309] sm:$0xff]
    %v2850 = vld [vmem:[%s2402 + $0x319] sm:$0xff]
    %v2851 = vld [vmem:[%s2402 + $0x321] sm:$0xff]
    %2916 = vrot.lane.b32.xlu0 %v2788, 28
    %v2917 = vpop.permute.xlu0 %2916
    %2918 = vrot.lane.b32.xlu0 %v2789, 28
    %v2919 = vpop.permute.xlu0 %2918
    %2920 = vrot.lane.b32.xlu0 %v2790, 28
    %v2921 = vpop.permute.xlu0 %2920
    %2922 = vrot.lane.b32.xlu0 %v2791, 28
    %v2923 = vpop.permute.xlu0 %2922
    %2924 = vrot.lane.b32.xlu0 %v2792, 28
    %v2925 = vpop.permute.xlu0 %2924
    %2926 = vrot.lane.b32.xlu0 %v2793, 28
    %v2927 = vpop.permute.xlu0 %2926
    %2928 = vrot.lane.b32.xlu0 %v2794, 28
    %v2929 = vpop.permute.xlu0 %2928
    %2930 = vrot.lane.b32.xlu0 %v2795, 28
    %v2931 = vpop.permute.xlu0 %2930
    %2932 = vrot.lane.b32.xlu0 %v2796, 28
    %v2933 = vpop.permute.xlu0 %2932
    %2934 = vrot.lane.b32.xlu0 %v2797, 28
    %v2935 = vpop.permute.xlu0 %2934
    %2936 = vrot.lane.b32.xlu0 %v2798, 28
    %v2937 = vpop.permute.xlu0 %2936
    %2938 = vrot.lane.b32.xlu0 %v2799, 28
    %v2939 = vpop.permute.xlu0 %2938
    %2940 = vrot.lane.b32.xlu0 %v2800, 28
    %v2941 = vpop.permute.xlu0 %2940
    %2942 = vrot.lane.b32.xlu0 %v2801, 28
    %v2943 = vpop.permute.xlu0 %2942
    %2944 = vrot.lane.b32.xlu0 %v2802, 28
    %v2945 = vpop.permute.xlu0 %2944
    %2946 = vrot.lane.b32.xlu0 %v2803, 28
    %v2947 = vpop.permute.xlu0 %2946
    %2948 = vrot.lane.b32.xlu0 %v2804, 28
    %v2949 = vpop.permute.xlu0 %2948
    %2950 = vrot.lane.b32.xlu0 %v2805, 28
    %v2951 = vpop.permute.xlu0 %2950
    %2952 = vrot.lane.b32.xlu0 %v2806, 28
    %v2953 = vpop.permute.xlu0 %2952
    %2954 = vrot.lane.b32.xlu0 %v2807, 28
    %v2955 = vpop.permute.xlu0 %2954
    %2956 = vrot.lane.b32.xlu0 %v2808, 28
    %v2957 = vpop.permute.xlu0 %2956
    %2958 = vrot.lane.b32.xlu0 %v2809, 28
    %v2959 = vpop.permute.xlu0 %2958
    %2960 = vrot.lane.b32.xlu0 %v2810, 28
    %v2961 = vpop.permute.xlu0 %2960
    %2962 = vrot.lane.b32.xlu0 %v2811, 28
    %v2963 = vpop.permute.xlu0 %2962
    %2964 = vrot.lane.b32.xlu0 %v2812, 28
    %v2965 = vpop.permute.xlu0 %2964
    %2966 = vrot.lane.b32.xlu0 %v2813, 28
    %v2967 = vpop.permute.xlu0 %2966
    %2968 = vrot.lane.b32.xlu0 %v2814, 28
    %v2969 = vpop.permute.xlu0 %2968
    %2970 = vrot.lane.b32.xlu0 %v2815, 28
    %v2971 = vpop.permute.xlu0 %2970
    %2972 = vrot.lane.b32.xlu0 %v2816, 28
    %v2973 = vpop.permute.xlu0 %2972
    %2974 = vrot.lane.b32.xlu0 %v2817, 28
    %v2975 = vpop.permute.xlu0 %2974
    %2976 = vrot.lane.b32.xlu0 %v2818, 28
    %v2977 = vpop.permute.xlu0 %2976
    %2978 = vrot.lane.b32.xlu0 %v2819, 28
    %v2979 = vpop.permute.xlu0 %2978
    %2980 = vrot.lane.b32.xlu0 %v2820, 28
    %v2981 = vpop.permute.xlu0 %2980
    %2982 = vrot.lane.b32.xlu0 %v2821, 28
    %v2983 = vpop.permute.xlu0 %2982
    %2984 = vrot.lane.b32.xlu0 %v2822, 28
    %v2985 = vpop.permute.xlu0 %2984
    %2986 = vrot.lane.b32.xlu0 %v2823, 28
    %v2987 = vpop.permute.xlu0 %2986
    %2988 = vrot.lane.b32.xlu0 %v2824, 28
    %v2989 = vpop.permute.xlu0 %2988
    %2990 = vrot.lane.b32.xlu0 %v2825, 28
    %v2991 = vpop.permute.xlu0 %2990
    %2992 = vrot.lane.b32.xlu0 %v2826, 28
    %v2993 = vpop.permute.xlu0 %2992
    %2994 = vrot.lane.b32.xlu0 %v2827, 28
    %v2995 = vpop.permute.xlu0 %2994
    %2996 = vrot.lane.b32.xlu0 %v2828, 28
    %v2997 = vpop.permute.xlu0 %2996
    %2998 = vrot.lane.b32.xlu0 %v2829, 28
    %v2999 = vpop.permute.xlu0 %2998
    %3000 = vrot.lane.b32.xlu0 %v2830, 28
    %v3001 = vpop.permute.xlu0 %3000
    %3002 = vrot.lane.b32.xlu0 %v2831, 28
    %v3003 = vpop.permute.xlu0 %3002
    %3004 = vrot.lane.b32.xlu0 %v2832, 28
    %v3005 = vpop.permute.xlu0 %3004
    %3006 = vrot.lane.b32.xlu0 %v2833, 28
    %v3007 = vpop.permute.xlu0 %3006
    %3008 = vrot.lane.b32.xlu0 %v2834, 28
    %v3009 = vpop.permute.xlu0 %3008
    %3010 = vrot.lane.b32.xlu0 %v2835, 28
    %v3011 = vpop.permute.xlu0 %3010
    %3012 = vrot.lane.b32.xlu0 %v2836, 28
    %v3013 = vpop.permute.xlu0 %3012
    %3014 = vrot.lane.b32.xlu0 %v2837, 28
    %v3015 = vpop.permute.xlu0 %3014
    %3016 = vrot.lane.b32.xlu0 %v2838, 28
    %v3017 = vpop.permute.xlu0 %3016
    %3018 = vrot.lane.b32.xlu0 %v2839, 28
    %v3019 = vpop.permute.xlu0 %3018
    %3020 = vrot.lane.b32.xlu0 %v2840, 28
    %v3021 = vpop.permute.xlu0 %3020
    %3022 = vrot.lane.b32.xlu0 %v2841, 28
    %v3023 = vpop.permute.xlu0 %3022
    %3024 = vrot.lane.b32.xlu0 %v2842, 28
    %v3025 = vpop.permute.xlu0 %3024
    %3026 = vrot.lane.b32.xlu0 %v2843, 28
    %v3027 = vpop.permute.xlu0 %3026
    %3028 = vrot.lane.b32.xlu0 %v2844, 28
    %v3029 = vpop.permute.xlu0 %3028
    %3030 = vrot.lane.b32.xlu0 %v2845, 28
    %v3031 = vpop.permute.xlu0 %3030
    %3032 = vrot.lane.b32.xlu0 %v2846, 28
    %v3033 = vpop.permute.xlu0 %3032
    %3034 = vrot.lane.b32.xlu0 %v2847, 28
    %v3035 = vpop.permute.xlu0 %3034
    %3036 = vrot.lane.b32.xlu0 %v2848, 28
    %v3037 = vpop.permute.xlu0 %3036
    %3038 = vrot.lane.b32.xlu0 %v2849, 28
    %v3039 = vpop.permute.xlu0 %3038
    %3040 = vrot.lane.b32.xlu0 %v2850, 28
    %v3041 = vpop.permute.xlu0 %3040
    %3042 = vrot.lane.b32.xlu0 %v2851, 28
    %v3043 = vpop.permute.xlu0 %3042
    %vm3108 = vcmask 261344
    %3109 = vst.msk [vmem:[#allocation3] sm:$0xff] %vm3108, %v2917
    %3110 = vst.msk [vmem:[#allocation3 + $0x8] sm:$0xff] %vm3108, %v2919
    %3111 = vst.msk [vmem:[#allocation3 + $0x10] sm:$0xff] %vm3108, %v2921
    %3112 = vst.msk [vmem:[#allocation3 + $0x18] sm:$0xff] %vm3108, %v2923
    %3113 = vst.msk [vmem:[#allocation3 + $0x20] sm:$0xff] %vm3108, %v2925
    %3114 = vst.msk [vmem:[#allocation3 + $0x28] sm:$0xff] %vm3108, %v2927
    %3115 = vst.msk [vmem:[#allocation3 + $0x30] sm:$0xff] %vm3108, %v2929
    %3116 = vst.msk [vmem:[#allocation3 + $0x38] sm:$0xff] %vm3108, %v2931
    %3117 = vst.msk [vmem:[#allocation3 + $0x40] sm:$0xff] %vm3108, %v2933
    %3118 = vst.msk [vmem:[#allocation3 + $0x48] sm:$0xff] %vm3108, %v2935
    %3119 = vst.msk [vmem:[#allocation3 + $0x50] sm:$0xff] %vm3108, %v2937
    %3120 = vst.msk [vmem:[#allocation3 + $0x58] sm:$0xff] %vm3108, %v2939
    %3121 = vst.msk [vmem:[#allocation3 + $0x60] sm:$0xff] %vm3108, %v2941
    %3122 = vst.msk [vmem:[#allocation3 + $0x68] sm:$0xff] %vm3108, %v2943
    %3123 = vst.msk [vmem:[#allocation3 + $0x70] sm:$0xff] %vm3108, %v2945
    %3124 = vst.msk [vmem:[#allocation3 + $0x78] sm:$0xff] %vm3108, %v2947
    %3125 = vst.msk [vmem:[#allocation3 + $0x80] sm:$0xff] %vm3108, %v2949
    %3126 = vst.msk [vmem:[#allocation3 + $0x88] sm:$0xff] %vm3108, %v2951
    %3127 = vst.msk [vmem:[#allocation3 + $0x90] sm:$0xff] %vm3108, %v2953
    %3128 = vst.msk [vmem:[#allocation3 + $0x98] sm:$0xff] %vm3108, %v2955
    %3129 = vst.msk [vmem:[#allocation3 + $0xa0] sm:$0xff] %vm3108, %v2957
    %3130 = vst.msk [vmem:[#allocation3 + $0xa8] sm:$0xff] %vm3108, %v2959
    %3131 = vst.msk [vmem:[#allocation3 + $0xb0] sm:$0xff] %vm3108, %v2961
    %3132 = vst.msk [vmem:[#allocation3 + $0xb8] sm:$0xff] %vm3108, %v2963
    %3133 = vst.msk [vmem:[#allocation3 + $0xc0] sm:$0xff] %vm3108, %v2965
    %3134 = vst.msk [vmem:[#allocation3 + $0xc8] sm:$0xff] %vm3108, %v2967
    %3135 = vst.msk [vmem:[#allocation3 + $0xd0] sm:$0xff] %vm3108, %v2969
    %3136 = vst.msk [vmem:[#allocation3 + $0xd8] sm:$0xff] %vm3108, %v2971
    %3137 = vst.msk [vmem:[#allocation3 + $0xe0] sm:$0xff] %vm3108, %v2973
    %3138 = vst.msk [vmem:[#allocation3 + $0xe8] sm:$0xff] %vm3108, %v2975
    %3139 = vst.msk [vmem:[#allocation3 + $0xf0] sm:$0xff] %vm3108, %v2977
    %3140 = vst.msk [vmem:[#allocation3 + $0xf8] sm:$0xff] %vm3108, %v2979
    %3141 = vst.msk [vmem:[#allocation3 + $0x100] sm:$0xff] %vm3108, %v2981
    %3142 = vst.msk [vmem:[#allocation3 + $0x108] sm:$0xff] %vm3108, %v2983
    %3143 = vst.msk [vmem:[#allocation3 + $0x110] sm:$0xff] %vm3108, %v2985
    %3144 = vst.msk [vmem:[#allocation3 + $0x118] sm:$0xff] %vm3108, %v2987
    %3145 = vst.msk [vmem:[#allocation3 + $0x120] sm:$0xff] %vm3108, %v2989
    %3146 = vst.msk [vmem:[#allocation3 + $0x128] sm:$0xff] %vm3108, %v2991
    %3147 = vst.msk [vmem:[#allocation3 + $0x130] sm:$0xff] %vm3108, %v2993
    %3148 = vst.msk [vmem:[#allocation3 + $0x138] sm:$0xff] %vm3108, %v2995
    %3149 = vst.msk [vmem:[#allocation3 + $0x140] sm:$0xff] %vm3108, %v2997
    %3150 = vst.msk [vmem:[#allocation3 + $0x148] sm:$0xff] %vm3108, %v2999
    %3151 = vst.msk [vmem:[#allocation3 + $0x150] sm:$0xff] %vm3108, %v3001
    %3152 = vst.msk [vmem:[#allocation3 + $0x158] sm:$0xff] %vm3108, %v3003
    %3153 = vst.msk [vmem:[#allocation3 + $0x160] sm:$0xff] %vm3108, %v3005
    %3154 = vst.msk [vmem:[#allocation3 + $0x168] sm:$0xff] %vm3108, %v3007
    %3155 = vst.msk [vmem:[#allocation3 + $0x170] sm:$0xff] %vm3108, %v3009
    %3156 = vst.msk [vmem:[#allocation3 + $0x178] sm:$0xff] %vm3108, %v3011
    %3157 = vst.msk [vmem:[#allocation3 + $0x180] sm:$0xff] %vm3108, %v3013
    %3158 = vst.msk [vmem:[#allocation3 + $0x188] sm:$0xff] %vm3108, %v3015
    %3159 = vst.msk [vmem:[#allocation3 + $0x190] sm:$0xff] %vm3108, %v3017
    %3160 = vst.msk [vmem:[#allocation3 + $0x198] sm:$0xff] %vm3108, %v3019
    %3161 = vst.msk [vmem:[#allocation3 + $0x1a0] sm:$0xff] %vm3108, %v3021
    %3162 = vst.msk [vmem:[#allocation3 + $0x1a8] sm:$0xff] %vm3108, %v3023
    %3163 = vst.msk [vmem:[#allocation3 + $0x1b0] sm:$0xff] %vm3108, %v3025
    %3164 = vst.msk [vmem:[#allocation3 + $0x1b8] sm:$0xff] %vm3108, %v3027
    %3165 = vst.msk [vmem:[#allocation3 + $0x1c0] sm:$0xff] %vm3108, %v3029
    %3166 = vst.msk [vmem:[#allocation3 + $0x1c8] sm:$0xff] %vm3108, %v3031
    %3167 = vst.msk [vmem:[#allocation3 + $0x1d0] sm:$0xff] %vm3108, %v3033
    %3168 = vst.msk [vmem:[#allocation3 + $0x1d8] sm:$0xff] %vm3108, %v3035
    %3169 = vst.msk [vmem:[#allocation3 + $0x1e0] sm:$0xff] %vm3108, %v3037
    %3170 = vst.msk [vmem:[#allocation3 + $0x1e8] sm:$0xff] %vm3108, %v3039
    %3171 = vst.msk [vmem:[#allocation3 + $0x1f0] sm:$0xff] %vm3108, %v3041
    %3172 = vst.msk [vmem:[#allocation3 + $0x1f8] sm:$0xff] %vm3108, %v3043
    %v3173 = vld [vmem:[%s2402 + $0x2] sm:$0xff]
    %v3174 = vld [vmem:[%s2402 + $0xa] sm:$0xff]
    %v3175 = vld [vmem:[%s2402 + $0x1a] sm:$0xff]
    %v3176 = vld [vmem:[%s2402 + $0x22] sm:$0xff]
    %v3177 = vld [vmem:[%s2402 + $0x32] sm:$0xff]
    %v3178 = vld [vmem:[%s2402 + $0x3a] sm:$0xff]
    %v3179 = vld [vmem:[%s2402 + $0x4a] sm:$0xff]
    %v3180 = vld [vmem:[%s2402 + $0x52] sm:$0xff]
    %v3181 = vld [vmem:[%s2402 + $0x62] sm:$0xff]
    %v3182 = vld [vmem:[%s2402 + $0x6a] sm:$0xff]
    %v3183 = vld [vmem:[%s2402 + $0x7a] sm:$0xff]
    %v3184 = vld [vmem:[%s2402 + $0x82] sm:$0xff]
    %v3185 = vld [vmem:[%s2402 + $0x92] sm:$0xff]
    %v3186 = vld [vmem:[%s2402 + $0x9a] sm:$0xff]
    %v3187 = vld [vmem:[%s2402 + $0xaa] sm:$0xff]
    %v3188 = vld [vmem:[%s2402 + $0xb2] sm:$0xff]
    %v3189 = vld [vmem:[%s2402 + $0xc2] sm:$0xff]
    %v3190 = vld [vmem:[%s2402 + $0xca] sm:$0xff]
    %v3191 = vld [vmem:[%s2402 + $0xda] sm:$0xff]
    %v3192 = vld [vmem:[%s2402 + $0xe2] sm:$0xff]
    %v3193 = vld [vmem:[%s2402 + $0xf2] sm:$0xff]
    %v3194 = vld [vmem:[%s2402 + $0xfa] sm:$0xff]
    %v3195 = vld [vmem:[%s2402 + $0x10a] sm:$0xff]
    %v3196 = vld [vmem:[%s2402 + $0x112] sm:$0xff]
    %v3197 = vld [vmem:[%s2402 + $0x122] sm:$0xff]
    %v3198 = vld [vmem:[%s2402 + $0x12a] sm:$0xff]
    %v3199 = vld [vmem:[%s2402 + $0x13a] sm:$0xff]
    %v3200 = vld [vmem:[%s2402 + $0x142] sm:$0xff]
    %v3201 = vld [vmem:[%s2402 + $0x152] sm:$0xff]
    %v3202 = vld [vmem:[%s2402 + $0x15a] sm:$0xff]
    %v3203 = vld [vmem:[%s2402 + $0x16a] sm:$0xff]
    %v3204 = vld [vmem:[%s2402 + $0x172] sm:$0xff]
    %v3205 = vld [vmem:[%s2402 + $0x1b2] sm:$0xff]
    %v3206 = vld [vmem:[%s2402 + $0x1ba] sm:$0xff]
    %v3207 = vld [vmem:[%s2402 + $0x1ca] sm:$0xff]
    %v3208 = vld [vmem:[%s2402 + $0x1d2] sm:$0xff]
    %v3209 = vld [vmem:[%s2402 + $0x1e2] sm:$0xff]
    %v3210 = vld [vmem:[%s2402 + $0x1ea] sm:$0xff]
    %v3211 = vld [vmem:[%s2402 + $0x1fa] sm:$0xff]
    %v3212 = vld [vmem:[%s2402 + $0x202] sm:$0xff]
    %v3213 = vld [vmem:[%s2402 + $0x212] sm:$0xff]
    %v3214 = vld [vmem:[%s2402 + $0x21a] sm:$0xff]
    %v3215 = vld [vmem:[%s2402 + $0x22a] sm:$0xff]
    %v3216 = vld [vmem:[%s2402 + $0x232] sm:$0xff]
    %v3217 = vld [vmem:[%s2402 + $0x242] sm:$0xff]
    %v3218 = vld [vmem:[%s2402 + $0x24a] sm:$0xff]
    %v3219 = vld [vmem:[%s2402 + $0x25a] sm:$0xff]
    %v3220 = vld [vmem:[%s2402 + $0x262] sm:$0xff]
    %v3221 = vld [vmem:[%s2402 + $0x272] sm:$0xff]
    %v3222 = vld [vmem:[%s2402 + $0x27a] sm:$0xff]
    %v3223 = vld [vmem:[%s2402 + $0x28a] sm:$0xff]
    %v3224 = vld [vmem:[%s2402 + $0x292] sm:$0xff]
    %v3225 = vld [vmem:[%s2402 + $0x2a2] sm:$0xff]
    %v3226 = vld [vmem:[%s2402 + $0x2aa] sm:$0xff]
    %v3227 = vld [vmem:[%s2402 + $0x2ba] sm:$0xff]
    %v3228 = vld [vmem:[%s2402 + $0x2c2] sm:$0xff]
    %v3229 = vld [vmem:[%s2402 + $0x2d2] sm:$0xff]
    %v3230 = vld [vmem:[%s2402 + $0x2da] sm:$0xff]
    %v3231 = vld [vmem:[%s2402 + $0x2ea] sm:$0xff]
    %v3232 = vld [vmem:[%s2402 + $0x2f2] sm:$0xff]
    %v3233 = vld [vmem:[%s2402 + $0x302] sm:$0xff]
    %v3234 = vld [vmem:[%s2402 + $0x30a] sm:$0xff]
    %v3235 = vld [vmem:[%s2402 + $0x31a] sm:$0xff]
    %v3236 = vld [vmem:[%s2402 + $0x322] sm:$0xff]
    %3301 = vrot.lane.b32.xlu0 %v3173, 32
    %v3302 = vpop.permute.xlu0 %3301
    %3303 = vrot.lane.b32.xlu0 %v3174, 32
    %v3304 = vpop.permute.xlu0 %3303
    %3305 = vrot.lane.b32.xlu0 %v3175, 32
    %v3306 = vpop.permute.xlu0 %3305
    %3307 = vrot.lane.b32.xlu0 %v3176, 32
    %v3308 = vpop.permute.xlu0 %3307
    %3309 = vrot.lane.b32.xlu0 %v3177, 32
    %v3310 = vpop.permute.xlu0 %3309
    %3311 = vrot.lane.b32.xlu0 %v3178, 32
    %v3312 = vpop.permute.xlu0 %3311
    %3313 = vrot.lane.b32.xlu0 %v3179, 32
    %v3314 = vpop.permute.xlu0 %3313
    %3315 = vrot.lane.b32.xlu0 %v3180, 32
    %v3316 = vpop.permute.xlu0 %3315
    %3317 = vrot.lane.b32.xlu0 %v3181, 32
    %v3318 = vpop.permute.xlu0 %3317
    %3319 = vrot.lane.b32.xlu0 %v3182, 32
    %v3320 = vpop.permute.xlu0 %3319
    %3321 = vrot.lane.b32.xlu0 %v3183, 32
    %v3322 = vpop.permute.xlu0 %3321
    %3323 = vrot.lane.b32.xlu0 %v3184, 32
    %v3324 = vpop.permute.xlu0 %3323
    %3325 = vrot.lane.b32.xlu0 %v3185, 32
    %v3326 = vpop.permute.xlu0 %3325
    %3327 = vrot.lane.b32.xlu0 %v3186, 32
    %v3328 = vpop.permute.xlu0 %3327
    %3329 = vrot.lane.b32.xlu0 %v3187, 32
    %v3330 = vpop.permute.xlu0 %3329
    %3331 = vrot.lane.b32.xlu0 %v3188, 32
    %v3332 = vpop.permute.xlu0 %3331
    %3333 = vrot.lane.b32.xlu0 %v3189, 32
    %v3334 = vpop.permute.xlu0 %3333
    %3335 = vrot.lane.b32.xlu0 %v3190, 32
    %v3336 = vpop.permute.xlu0 %3335
    %3337 = vrot.lane.b32.xlu0 %v3191, 32
    %v3338 = vpop.permute.xlu0 %3337
    %3339 = vrot.lane.b32.xlu0 %v3192, 32
    %v3340 = vpop.permute.xlu0 %3339
    %3341 = vrot.lane.b32.xlu0 %v3193, 32
    %v3342 = vpop.permute.xlu0 %3341
    %3343 = vrot.lane.b32.xlu0 %v3194, 32
    %v3344 = vpop.permute.xlu0 %3343
    %3345 = vrot.lane.b32.xlu0 %v3195, 32
    %v3346 = vpop.permute.xlu0 %3345
    %3347 = vrot.lane.b32.xlu0 %v3196, 32
    %v3348 = vpop.permute.xlu0 %3347
    %3349 = vrot.lane.b32.xlu0 %v3197, 32
    %v3350 = vpop.permute.xlu0 %3349
    %3351 = vrot.lane.b32.xlu0 %v3198, 32
    %v3352 = vpop.permute.xlu0 %3351
    %3353 = vrot.lane.b32.xlu0 %v3199, 32
    %v3354 = vpop.permute.xlu0 %3353
    %3355 = vrot.lane.b32.xlu0 %v3200, 32
    %v3356 = vpop.permute.xlu0 %3355
    %3357 = vrot.lane.b32.xlu0 %v3201, 32
    %v3358 = vpop.permute.xlu0 %3357
    %3359 = vrot.lane.b32.xlu0 %v3202, 32
    %v3360 = vpop.permute.xlu0 %3359
    %3361 = vrot.lane.b32.xlu0 %v3203, 32
    %v3362 = vpop.permute.xlu0 %3361
    %3363 = vrot.lane.b32.xlu0 %v3204, 32
    %v3364 = vpop.permute.xlu0 %3363
    %3365 = vrot.lane.b32.xlu0 %v3205, 32
    %v3366 = vpop.permute.xlu0 %3365
    %3367 = vrot.lane.b32.xlu0 %v3206, 32
    %v3368 = vpop.permute.xlu0 %3367
    %3369 = vrot.lane.b32.xlu0 %v3207, 32
    %v3370 = vpop.permute.xlu0 %3369
    %3371 = vrot.lane.b32.xlu0 %v3208, 32
    %v3372 = vpop.permute.xlu0 %3371
    %3373 = vrot.lane.b32.xlu0 %v3209, 32
    %v3374 = vpop.permute.xlu0 %3373
    %3375 = vrot.lane.b32.xlu0 %v3210, 32
    %v3376 = vpop.permute.xlu0 %3375
    %3377 = vrot.lane.b32.xlu0 %v3211, 32
    %v3378 = vpop.permute.xlu0 %3377
    %3379 = vrot.lane.b32.xlu0 %v3212, 32
    %v3380 = vpop.permute.xlu0 %3379
    %3381 = vrot.lane.b32.xlu0 %v3213, 32
    %v3382 = vpop.permute.xlu0 %3381
    %3383 = vrot.lane.b32.xlu0 %v3214, 32
    %v3384 = vpop.permute.xlu0 %3383
    %3385 = vrot.lane.b32.xlu0 %v3215, 32
    %v3386 = vpop.permute.xlu0 %3385
    %3387 = vrot.lane.b32.xlu0 %v3216, 32
    %v3388 = vpop.permute.xlu0 %3387
    %3389 = vrot.lane.b32.xlu0 %v3217, 32
    %v3390 = vpop.permute.xlu0 %3389
    %3391 = vrot.lane.b32.xlu0 %v3218, 32
    %v3392 = vpop.permute.xlu0 %3391
    %3393 = vrot.lane.b32.xlu0 %v3219, 32
    %v3394 = vpop.permute.xlu0 %3393
    %3395 = vrot.lane.b32.xlu0 %v3220, 32
    %v3396 = vpop.permute.xlu0 %3395
    %3397 = vrot.lane.b32.xlu0 %v3221, 32
    %v3398 = vpop.permute.xlu0 %3397
    %3399 = vrot.lane.b32.xlu0 %v3222, 32
    %v3400 = vpop.permute.xlu0 %3399
    %3401 = vrot.lane.b32.xlu0 %v3223, 32
    %v3402 = vpop.permute.xlu0 %3401
    %3403 = vrot.lane.b32.xlu0 %v3224, 32
    %v3404 = vpop.permute.xlu0 %3403
    %3405 = vrot.lane.b32.xlu0 %v3225, 32
    %v3406 = vpop.permute.xlu0 %3405
    %3407 = vrot.lane.b32.xlu0 %v3226, 32
    %v3408 = vpop.permute.xlu0 %3407
    %3409 = vrot.lane.b32.xlu0 %v3227, 32
    %v3410 = vpop.permute.xlu0 %3409
    %3411 = vrot.lane.b32.xlu0 %v3228, 32
    %v3412 = vpop.permute.xlu0 %3411
    %3413 = vrot.lane.b32.xlu0 %v3229, 32
    %v3414 = vpop.permute.xlu0 %3413
    %3415 = vrot.lane.b32.xlu0 %v3230, 32
    %v3416 = vpop.permute.xlu0 %3415
    %3417 = vrot.lane.b32.xlu0 %v3231, 32
    %v3418 = vpop.permute.xlu0 %3417
    %3419 = vrot.lane.b32.xlu0 %v3232, 32
    %v3420 = vpop.permute.xlu0 %3419
    %3421 = vrot.lane.b32.xlu0 %v3233, 32
    %v3422 = vpop.permute.xlu0 %3421
    %3423 = vrot.lane.b32.xlu0 %v3234, 32
    %v3424 = vpop.permute.xlu0 %3423
    %3425 = vrot.lane.b32.xlu0 %v3235, 32
    %v3426 = vpop.permute.xlu0 %3425
    %3427 = vrot.lane.b32.xlu0 %v3236, 32
    %v3428 = vpop.permute.xlu0 %3427
    %vm3493 = vcmask 294144
    %3494 = vst.msk [vmem:[#allocation3] sm:$0xff] %vm3493, %v3302
    %3495 = vst.msk [vmem:[#allocation3 + $0x8] sm:$0xff] %vm3493, %v3304
    %3496 = vst.msk [vmem:[#allocation3 + $0x10] sm:$0xff] %vm3493, %v3306
    %3497 = vst.msk [vmem:[#allocation3 + $0x18] sm:$0xff] %vm3493, %v3308
    %3498 = vst.msk [vmem:[#allocation3 + $0x20] sm:$0xff] %vm3493, %v3310
    %3499 = vst.msk [vmem:[#allocation3 + $0x28] sm:$0xff] %vm3493, %v3312
    %3500 = vst.msk [vmem:[#allocation3 + $0x30] sm:$0xff] %vm3493, %v3314
    %3501 = vst.msk [vmem:[#allocation3 + $0x38] sm:$0xff] %vm3493, %v3316
    %3502 = vst.msk [vmem:[#allocation3 + $0x40] sm:$0xff] %vm3493, %v3318
    %3503 = vst.msk [vmem:[#allocation3 + $0x48] sm:$0xff] %vm3493, %v3320
    %3504 = vst.msk [vmem:[#allocation3 + $0x50] sm:$0xff] %vm3493, %v3322
    %3505 = vst.msk [vmem:[#allocation3 + $0x58] sm:$0xff] %vm3493, %v3324
    %3506 = vst.msk [vmem:[#allocation3 + $0x60] sm:$0xff] %vm3493, %v3326
    %3507 = vst.msk [vmem:[#allocation3 + $0x68] sm:$0xff] %vm3493, %v3328
    %3508 = vst.msk [vmem:[#allocation3 + $0x70] sm:$0xff] %vm3493, %v3330
    %3509 = vst.msk [vmem:[#allocation3 + $0x78] sm:$0xff] %vm3493, %v3332
    %3510 = vst.msk [vmem:[#allocation3 + $0x80] sm:$0xff] %vm3493, %v3334
    %3511 = vst.msk [vmem:[#allocation3 + $0x88] sm:$0xff] %vm3493, %v3336
    %3512 = vst.msk [vmem:[#allocation3 + $0x90] sm:$0xff] %vm3493, %v3338
    %3513 = vst.msk [vmem:[#allocation3 + $0x98] sm:$0xff] %vm3493, %v3340
    %3514 = vst.msk [vmem:[#allocation3 + $0xa0] sm:$0xff] %vm3493, %v3342
    %3515 = vst.msk [vmem:[#allocation3 + $0xa8] sm:$0xff] %vm3493, %v3344
    %3516 = vst.msk [vmem:[#allocation3 + $0xb0] sm:$0xff] %vm3493, %v3346
    %3517 = vst.msk [vmem:[#allocation3 + $0xb8] sm:$0xff] %vm3493, %v3348
    %3518 = vst.msk [vmem:[#allocation3 + $0xc0] sm:$0xff] %vm3493, %v3350
    %3519 = vst.msk [vmem:[#allocation3 + $0xc8] sm:$0xff] %vm3493, %v3352
    %3520 = vst.msk [vmem:[#allocation3 + $0xd0] sm:$0xff] %vm3493, %v3354
    %3521 = vst.msk [vmem:[#allocation3 + $0xd8] sm:$0xff] %vm3493, %v3356
    %3522 = vst.msk [vmem:[#allocation3 + $0xe0] sm:$0xff] %vm3493, %v3358
    %3523 = vst.msk [vmem:[#allocation3 + $0xe8] sm:$0xff] %vm3493, %v3360
    %3524 = vst.msk [vmem:[#allocation3 + $0xf0] sm:$0xff] %vm3493, %v3362
    %3525 = vst.msk [vmem:[#allocation3 + $0xf8] sm:$0xff] %vm3493, %v3364
    %3526 = vst.msk [vmem:[#allocation3 + $0x100] sm:$0xff] %vm3493, %v3366
    %3527 = vst.msk [vmem:[#allocation3 + $0x108] sm:$0xff] %vm3493, %v3368
    %3528 = vst.msk [vmem:[#allocation3 + $0x110] sm:$0xff] %vm3493, %v3370
    %3529 = vst.msk [vmem:[#allocation3 + $0x118] sm:$0xff] %vm3493, %v3372
    %3530 = vst.msk [vmem:[#allocation3 + $0x120] sm:$0xff] %vm3493, %v3374
    %3531 = vst.msk [vmem:[#allocation3 + $0x128] sm:$0xff] %vm3493, %v3376
    %3532 = vst.msk [vmem:[#allocation3 + $0x130] sm:$0xff] %vm3493, %v3378
    %3533 = vst.msk [vmem:[#allocation3 + $0x138] sm:$0xff] %vm3493, %v3380
    %3534 = vst.msk [vmem:[#allocation3 + $0x140] sm:$0xff] %vm3493, %v3382
    %3535 = vst.msk [vmem:[#allocation3 + $0x148] sm:$0xff] %vm3493, %v3384
    %3536 = vst.msk [vmem:[#allocation3 + $0x150] sm:$0xff] %vm3493, %v3386
    %3537 = vst.msk [vmem:[#allocation3 + $0x158] sm:$0xff] %vm3493, %v3388
    %3538 = vst.msk [vmem:[#allocation3 + $0x160] sm:$0xff] %vm3493, %v3390
    %3539 = vst.msk [vmem:[#allocation3 + $0x168] sm:$0xff] %vm3493, %v3392
    %3540 = vst.msk [vmem:[#allocation3 + $0x170] sm:$0xff] %vm3493, %v3394
    %3541 = vst.msk [vmem:[#allocation3 + $0x178] sm:$0xff] %vm3493, %v3396
    %3542 = vst.msk [vmem:[#allocation3 + $0x180] sm:$0xff] %vm3493, %v3398
    %3543 = vst.msk [vmem:[#allocation3 + $0x188] sm:$0xff] %vm3493, %v3400
    %3544 = vst.msk [vmem:[#allocation3 + $0x190] sm:$0xff] %vm3493, %v3402
    %3545 = vst.msk [vmem:[#allocation3 + $0x198] sm:$0xff] %vm3493, %v3404
    %3546 = vst.msk [vmem:[#allocation3 + $0x1a0] sm:$0xff] %vm3493, %v3406
    %3547 = vst.msk [vmem:[#allocation3 + $0x1a8] sm:$0xff] %vm3493, %v3408
    %3548 = vst.msk [vmem:[#allocation3 + $0x1b0] sm:$0xff] %vm3493, %v3410
    %3549 = vst.msk [vmem:[#allocation3 + $0x1b8] sm:$0xff] %vm3493, %v3412
    %3550 = vst.msk [vmem:[#allocation3 + $0x1c0] sm:$0xff] %vm3493, %v3414
    %3551 = vst.msk [vmem:[#allocation3 + $0x1c8] sm:$0xff] %vm3493, %v3416
    %3552 = vst.msk [vmem:[#allocation3 + $0x1d0] sm:$0xff] %vm3493, %v3418
    %3553 = vst.msk [vmem:[#allocation3 + $0x1d8] sm:$0xff] %vm3493, %v3420
    %3554 = vst.msk [vmem:[#allocation3 + $0x1e0] sm:$0xff] %vm3493, %v3422
    %3555 = vst.msk [vmem:[#allocation3 + $0x1e8] sm:$0xff] %vm3493, %v3424
    %3556 = vst.msk [vmem:[#allocation3 + $0x1f0] sm:$0xff] %vm3493, %v3426
    %3557 = vst.msk [vmem:[#allocation3 + $0x1f8] sm:$0xff] %vm3493, %v3428
    %v3558 = vld [vmem:[#allocation3] sm:$0xff]
    %v3559 = vld [vmem:[#allocation3 + $0x8] sm:$0xff]
    %v3560 = vld [vmem:[#allocation3 + $0x10] sm:$0xff]
    %v3561 = vld [vmem:[#allocation3 + $0x18] sm:$0xff]
    %v3562 = vld [vmem:[#allocation3 + $0x20] sm:$0xff]
    %v3563 = vld [vmem:[#allocation3 + $0x28] sm:$0xff]
    %v3564 = vld [vmem:[#allocation3 + $0x30] sm:$0xff]
    %v3565 = vld [vmem:[#allocation3 + $0x38] sm:$0xff]
    %v3566 = vld [vmem:[#allocation3 + $0x40] sm:$0xff]
    %v3567 = vld [vmem:[#allocation3 + $0x48] sm:$0xff]
    %v3568 = vld [vmem:[#allocation3 + $0x50] sm:$0xff]
    %v3569 = vld [vmem:[#allocation3 + $0x58] sm:$0xff]
    %v3570 = vld [vmem:[#allocation3 + $0x60] sm:$0xff]
    %v3571 = vld [vmem:[#allocation3 + $0x68] sm:$0xff]
    %v3572 = vld [vmem:[#allocation3 + $0x70] sm:$0xff]
    %v3573 = vld [vmem:[#allocation3 + $0x78] sm:$0xff]
    %v3574 = vld [vmem:[#allocation3 + $0x80] sm:$0xff]
    %v3575 = vld [vmem:[#allocation3 + $0x88] sm:$0xff]
    %v3576 = vld [vmem:[#allocation3 + $0x90] sm:$0xff]
    %v3577 = vld [vmem:[#allocation3 + $0x98] sm:$0xff]
    %v3578 = vld [vmem:[#allocation3 + $0xa0] sm:$0xff]
    %v3579 = vld [vmem:[#allocation3 + $0xa8] sm:$0xff]
    %v3580 = vld [vmem:[#allocation3 + $0xb0] sm:$0xff]
    %v3581 = vld [vmem:[#allocation3 + $0xb8] sm:$0xff]
    %v3582 = vld [vmem:[#allocation3 + $0xc0] sm:$0xff]
    %v3583 = vld [vmem:[#allocation3 + $0xc8] sm:$0xff]
    %v3584 = vld [vmem:[#allocation3 + $0xd0] sm:$0xff]
    %v3585 = vld [vmem:[#allocation3 + $0xd8] sm:$0xff]
    %v3586 = vld [vmem:[#allocation3 + $0xe0] sm:$0xff]
    %v3587 = vld [vmem:[#allocation3 + $0xe8] sm:$0xff]
    %v3588 = vld [vmem:[#allocation3 + $0xf0] sm:$0xff]
    %v3589 = vld [vmem:[#allocation3 + $0xf8] sm:$0xff]
    %v3590 = vld [vmem:[#allocation3 + $0x100] sm:$0xff]
    %v3591 = vld [vmem:[#allocation3 + $0x108] sm:$0xff]
    %v3592 = vld [vmem:[#allocation3 + $0x110] sm:$0xff]
    %v3593 = vld [vmem:[#allocation3 + $0x118] sm:$0xff]
    %v3594 = vld [vmem:[#allocation3 + $0x120] sm:$0xff]
    %v3595 = vld [vmem:[#allocation3 + $0x128] sm:$0xff]
    %v3596 = vld [vmem:[#allocation3 + $0x130] sm:$0xff]
    %v3597 = vld [vmem:[#allocation3 + $0x138] sm:$0xff]
    %v3598 = vld [vmem:[#allocation3 + $0x140] sm:$0xff]
    %v3599 = vld [vmem:[#allocation3 + $0x148] sm:$0xff]
    %v3600 = vld [vmem:[#allocation3 + $0x150] sm:$0xff]
    %v3601 = vld [vmem:[#allocation3 + $0x158] sm:$0xff]
    %v3602 = vld [vmem:[#allocation3 + $0x160] sm:$0xff]
    %v3603 = vld [vmem:[#allocation3 + $0x168] sm:$0xff]
    %v3604 = vld [vmem:[#allocation3 + $0x170] sm:$0xff]
    %v3605 = vld [vmem:[#allocation3 + $0x178] sm:$0xff]
    %v3606 = vld [vmem:[#allocation3 + $0x180] sm:$0xff]
    %v3607 = vld [vmem:[#allocation3 + $0x188] sm:$0xff]
    %v3608 = vld [vmem:[#allocation3 + $0x190] sm:$0xff]
    %v3609 = vld [vmem:[#allocation3 + $0x198] sm:$0xff]
    %v3610 = vld [vmem:[#allocation3 + $0x1a0] sm:$0xff]
    %v3611 = vld [vmem:[#allocation3 + $0x1a8] sm:$0xff]
    %v3612 = vld [vmem:[#allocation3 + $0x1b0] sm:$0xff]
    %v3613 = vld [vmem:[#allocation3 + $0x1b8] sm:$0xff]
    %v3614 = vld [vmem:[#allocation3 + $0x1c0] sm:$0xff]
    %v3615 = vld [vmem:[#allocation3 + $0x1c8] sm:$0xff]
    %v3616 = vld [vmem:[#allocation3 + $0x1d0] sm:$0xff]
    %v3617 = vld [vmem:[#allocation3 + $0x1d8] sm:$0xff]
    %v3618 = vld [vmem:[#allocation3 + $0x1e0] sm:$0xff]
    %v3619 = vld [vmem:[#allocation3 + $0x1e8] sm:$0xff]
    %v3620 = vld [vmem:[#allocation3 + $0x1f0] sm:$0xff]
    %v3621 = vld [vmem:[#allocation3 + $0x1f8] sm:$0xff]
    %v3622 = vpack.c.bf16 %v3559, %v3558
    %v3623 = vpack.c.bf16 %v3561, %v3560
    %v3624 = vpack.c.bf16 %v3563, %v3562
    %v3625 = vpack.c.bf16 %v3565, %v3564
    %v3626 = vpack.c.bf16 %v3567, %v3566
    %v3627 = vpack.c.bf16 %v3569, %v3568
    %v3628 = vpack.c.bf16 %v3571, %v3570
    %v3629 = vpack.c.bf16 %v3573, %v3572
    %v3630 = vpack.c.bf16 %v3575, %v3574
    %v3631 = vpack.c.bf16 %v3577, %v3576
    %v3632 = vpack.c.bf16 %v3579, %v3578
    %v3633 = vpack.c.bf16 %v3581, %v3580
    %v3634 = vpack.c.bf16 %v3583, %v3582
    %v3635 = vpack.c.bf16 %v3585, %v3584
    %v3636 = vpack.c.bf16 %v3587, %v3586
    %v3637 = vpack.c.bf16 %v3589, %v3588
    %v3638 = vpack.c.bf16 %v3591, %v3590
    %v3639 = vpack.c.bf16 %v3593, %v3592
    %v3640 = vpack.c.bf16 %v3595, %v3594
    %v3641 = vpack.c.bf16 %v3597, %v3596
    %v3642 = vpack.c.bf16 %v3599, %v3598
    %v3643 = vpack.c.bf16 %v3601, %v3600
    %v3644 = vpack.c.bf16 %v3603, %v3602
    %v3645 = vpack.c.bf16 %v3605, %v3604
    %v3646 = vpack.c.bf16 %v3607, %v3606
    %v3647 = vpack.c.bf16 %v3609, %v3608
    %v3648 = vpack.c.bf16 %v3611, %v3610
    %v3649 = vpack.c.bf16 %v3613, %v3612
    %v3650 = vpack.c.bf16 %v3615, %v3614
    %v3651 = vpack.c.bf16 %v3617, %v3616
    %v3652 = vpack.c.bf16 %v3619, %v3618
    %v3653 = vpack.c.bf16 %v3621, %v3620
    %v3654 = vld [vmem:[%s1] sm:$0xf]
    %v3655 = vld [vmem:[%s1 + $0x4] sm:$0xf]
    %v3656 = vld [vmem:[%s1 + $0x8] sm:$0xf]
    %v3657 = vld [vmem:[%s1 + $0xc] sm:$0xf]
    %v3658 = vld [vmem:[%s1 + $0x10] sm:$0x3]
    %v3664 = vunpack.c.l.b16 %v3654
    %v3665 = vunpack.c.l.b16 %v3655
    %v3666 = vunpack.c.l.b16 %v3656
    %v3667 = vunpack.c.l.b16 %v3657
    %v3668 = vunpack.c.l.b16 %v3658
    %v3669 = vpack.c.b16 %v3665, %v3664
    %v3670 = vpack.c.b16 %v3667, %v3666
    %v3671 = vpack.c.b16 %v3668, %v3668
    %vm3674 = vcmask 293888
    %v3676 = vsel %vm3674, %v3622, 0
    %v3679 = vsel %vm3674, %v3623, 0
    %v3682 = vsel %vm3674, %v3624, 0
    %v3685 = vsel %vm3674, %v3625, 0
    %v3688 = vsel %vm3674, %v3626, 0
    %v3691 = vsel %vm3674, %v3627, 0
    %v3694 = vsel %vm3674, %v3628, 0
    %v3697 = vsel %vm3674, %v3629, 0
    %v3700 = vsel %vm3674, %v3630, 0
    %v3703 = vsel %vm3674, %v3631, 0
    %v3706 = vsel %vm3674, %v3632, 0
    %v3709 = vsel %vm3674, %v3633, 0
    %v3712 = vsel %vm3674, %v3634, 0
    %v3715 = vsel %vm3674, %v3635, 0
    %v3718 = vsel %vm3674, %v3636, 0
    %v3721 = vsel %vm3674, %v3637, 0
    %v3724 = vsel %vm3674, %v3638, 0
    %v3727 = vsel %vm3674, %v3639, 0
    %v3730 = vsel %vm3674, %v3640, 0
    %v3733 = vsel %vm3674, %v3641, 0
    %v3736 = vsel %vm3674, %v3642, 0
    %v3739 = vsel %vm3674, %v3643, 0
    %v3742 = vsel %vm3674, %v3644, 0
    %v3745 = vsel %vm3674, %v3645, 0
    %v3748 = vsel %vm3674, %v3646, 0
    %v3751 = vsel %vm3674, %v3647, 0
    %v3754 = vsel %vm3674, %v3648, 0
    %v3757 = vsel %vm3674, %v3649, 0
    %v3760 = vsel %vm3674, %v3650, 0
    %v3763 = vsel %vm3674, %v3651, 0
    %v3766 = vsel %vm3674, %v3652, 0
    %v3769 = vsel %vm3674, %v3653, 0
    %vm3771 = vcmask 1041408
    %v3773 = vsel %vm3771, %v3671, 0
    %3775 = vmatprep.subr.bf16.mxu0 0
    %3776 = vmatpush1.bf16.msra.mxu0 %v3669
    %3777 = vmatprep.subr.bf16.mxu0 0
    %3778 = vmatpush1.bf16.msra.mxu0 %v3670
    %3779 = vmatprep.subr.bf16.mxu0 0
    %3780 = vmatpush1.bf16.msra.mxu0 %v3773
    %3781 = vmatprep.subr.bf16.mxu0 0
    %3782 = vmatpush1.bf16.msra.mxu0 0
    %3783 = vmatprep.subr.bf16.mxu0 0
    %3784 = vmatpush1.bf16.msra.mxu0 0
    %3785 = vmatprep.subr.bf16.mxu0 0
    %3786 = vmatpush1.bf16.msra.mxu0 0
    %3787 = vmatprep.subr.bf16.mxu0 0
    %3788 = vmatpush1.bf16.msra.mxu0 0
    %3789 = vmatprep.subr.bf16.mxu0 0
    %3790 = vmatpush1.bf16.msra.mxu0 0
    %3791 = vmatprep.subr.bf16.mxu0 0
    %3792 = vmatpush1.bf16.msra.mxu0 0
    %3793 = vmatprep.subr.bf16.mxu0 0
    %3794 = vmatpush1.bf16.msra.mxu0 0
    %3795 = vmatprep.subr.bf16.mxu0 0
    %3796 = vmatpush1.bf16.msra.mxu0 0
    %3797 = vmatprep.subr.bf16.mxu0 0
    %3798 = vmatpush1.bf16.msra.mxu0 0
    %3799 = vmatprep.subr.bf16.mxu0 0
    %3800 = vmatpush1.bf16.msra.mxu0 0
    %3801 = vmatprep.subr.bf16.mxu0 0
    %3802 = vmatpush1.bf16.msra.mxu0 0
    %3803 = vmatprep.subr.bf16.mxu0 0
    %3804 = vmatpush1.bf16.msra.mxu0 0
    %3805 = vmatprep.subr.bf16.mxu0 0
    %3806 = vmatpush1.bf16.msra.mxu0 0
    %3807 = vmatprep.mubr.bf16.mxu0 0
    %3808 = vmatmul.mubr.bf16.gmra.mrb[0].mxu0 %v3676
    %v3809 = vpop.f32.mrb[0].mxu0
    %v3810 = vadd.f32 0.0, %v3809
    %v3811 = vpop.f32.mrb[0].mxu0
    %v3812 = vpop.f32.mrb[0].mxu0
    %v3813 = vadd.f32 0.0, %v3812
    %v3814 = vpop.f32.mrb[0].mxu0
    %3815 = vmatprep.mubr.bf16.mxu0 0
    %3816 = vmatmul.mubr.bf16.gmra.mrb[0].mxu0 %v3679
    %v3817 = vpop.f32.mrb[0].mxu0
    %v3818 = vadd.f32 0.0, %v3817
    %v3819 = vpop.f32.mrb[0].mxu0
    %v3820 = vpop.f32.mrb[0].mxu0
    %v3821 = vadd.f32 0.0, %v3820
    %v3822 = vpop.f32.mrb[0].mxu0
    %3823 = vmatprep.mubr.bf16.mxu0 0
    %3824 = vmatmul.mubr.bf16.gmra.mrb[0].mxu0 %v3682
    %v3825 = vpop.f32.mrb[0].mxu0
    %v3826 = vadd.f32 0.0, %v3825
    %v3827 = vpop.f32.mrb[0].mxu0
    %v3828 = vpop.f32.mrb[0].mxu0
    %v3829 = vadd.f32 0.0, %v3828
    %v3830 = vpop.f32.mrb[0].mxu0
    %3831 = vmatprep.mubr.bf16.mxu0 0
    %3832 = vmatmul.mubr.bf16.gmra.mrb[0].mxu0 %v3685
    %v3833 = vpop.f32.mrb[0].mxu0
    %v3834 = vadd.f32 0.0, %v3833
    %v3835 = vpop.f32.mrb[0].mxu0
    %v3836 = vpop.f32.mrb[0].mxu0
    %v3837 = vadd.f32 0.0, %v3836
    %v3838 = vpop.f32.mrb[0].mxu0
    %3839 = vmatprep.mubr.bf16.mxu0 0
    %3840 = vmatmul.mubr.bf16.gmra.mrb[0].mxu0 %v3688
    %v3841 = vpop.f32.mrb[0].mxu0
    %v3842 = vadd.f32 0.0, %v3841
    %v3843 = vpop.f32.mrb[0].mxu0
    %v3844 = vpop.f32.mrb[0].mxu0
    %v3845 = vadd.f32 0.0, %v3844
    %v3846 = vpop.f32.mrb[0].mxu0
    %3847 = vmatprep.mubr.bf16.mxu0 0
    %3848 = vmatmul.mubr.bf16.gmra.mrb[0].mxu0 %v3691
    %v3849 = vpop.f32.mrb[0].mxu0
    %v3850 = vadd.f32 0.0, %v3849
    %v3851 = vpop.f32.mrb[0].mxu0
    %v3852 = vpop.f32.mrb[0].mxu0
    %v3853 = vadd.f32 0.0, %v3852
    %v3854 = vpop.f32.mrb[0].mxu0
    %3855 = vmatprep.mubr.bf16.mxu0 0
    %3856 = vmatmul.mubr.bf16.gmra.mrb[0].mxu0 %v3694
    %v3857 = vpop.f32.mrb[0].mxu0
    %v3858 = vadd.f32 0.0, %v3857
    %v3859 = vpop.f32.mrb[0].mxu0
    %v3860 = vpop.f32.mrb[0].mxu0
    %v3861 = vadd.f32 0.0, %v3860
    %v3862 = vpop.f32.mrb[0].mxu0
    %3863 = vmatprep.mubr.bf16.mxu0 0
    %3864 = vmatmul.mubr.bf16.gmra.mrb[0].mxu0 %v3697
    %v3865 = vpop.f32.mrb[0].mxu0
    %v3866 = vadd.f32 0.0, %v3865
    %v3867 = vpop.f32.mrb[0].mxu0
    %v3868 = vpop.f32.mrb[0].mxu0
    %v3869 = vadd.f32 0.0, %v3868
    %v3870 = vpop.f32.mrb[0].mxu0
    %3871 = vmatprep.mubr.bf16.mxu0 0
    %3872 = vmatmul.mubr.bf16.gmra.mrb[0].mxu0 %v3700
    %v3873 = vpop.f32.mrb[0].mxu0
    %v3874 = vadd.f32 0.0, %v3873
    %v3875 = vpop.f32.mrb[0].mxu0
    %v3876 = vpop.f32.mrb[0].mxu0
    %v3877 = vadd.f32 0.0, %v3876
    %v3878 = vpop.f32.mrb[0].mxu0
    %3879 = vmatprep.mubr.bf16.mxu0 0
    %3880 = vmatmul.mubr.bf16.gmra.mrb[0].mxu0 %v3703
    %v3881 = vpop.f32.mrb[0].mxu0
    %v3882 = vadd.f32 0.0, %v3881
    %v3883 = vpop.f32.mrb[0].mxu0
    %v3884 = vpop.f32.mrb[0].mxu0
    %v3885 = vadd.f32 0.0, %v3884
    %v3886 = vpop.f32.mrb[0].mxu0
    %3887 = vmatprep.mubr.bf16.mxu0 0
    %3888 = vmatmul.mubr.bf16.gmra.mrb[0].mxu0 %v3706
    %v3889 = vpop.f32.mrb[0].mxu0
    %v3890 = vadd.f32 0.0, %v3889
    %v3891 = vpop.f32.mrb[0].mxu0
    %v3892 = vpop.f32.mrb[0].mxu0
    %v3893 = vadd.f32 0.0, %v3892
    %v3894 = vpop.f32.mrb[0].mxu0
    %3895 = vmatprep.mubr.bf16.mxu0 0
    %3896 = vmatmul.mubr.bf16.gmra.mrb[0].mxu0 %v3709
    %v3897 = vpop.f32.mrb[0].mxu0
    %v3898 = vadd.f32 0.0, %v3897
    %v3899 = vpop.f32.mrb[0].mxu0
    %v3900 = vpop.f32.mrb[0].mxu0
    %v3901 = vadd.f32 0.0, %v3900
    %v3902 = vpop.f32.mrb[0].mxu0
    %3903 = vmatprep.mubr.bf16.mxu0 0
    %3904 = vmatmul.mubr.bf16.gmra.mrb[0].mxu0 %v3712
    %v3905 = vpop.f32.mrb[0].mxu0
    %v3906 = vadd.f32 0.0, %v3905
    %v3907 = vpop.f32.mrb[0].mxu0
    %v3908 = vpop.f32.mrb[0].mxu0
    %v3909 = vadd.f32 0.0, %v3908
    %v3910 = vpop.f32.mrb[0].mxu0
    %3911 = vmatprep.mubr.bf16.mxu0 0
    %3912 = vmatmul.mubr.bf16.gmra.mrb[0].mxu0 %v3715
    %v3913 = vpop.f32.mrb[0].mxu0
    %v3914 = vadd.f32 0.0, %v3913
    %v3915 = vpop.f32.mrb[0].mxu0
    %v3916 = vpop.f32.mrb[0].mxu0
    %v3917 = vadd.f32 0.0, %v3916
    %v3918 = vpop.f32.mrb[0].mxu0
    %3919 = vmatprep.mubr.bf16.mxu0 0
    %3920 = vmatmul.mubr.bf16.gmra.mrb[0].mxu0 %v3718
    %v3921 = vpop.f32.mrb[0].mxu0
    %v3922 = vadd.f32 0.0, %v3921
    %v3923 = vpop.f32.mrb[0].mxu0
    %v3924 = vpop.f32.mrb[0].mxu0
    %v3925 = vadd.f32 0.0, %v3924
    %v3926 = vpop.f32.mrb[0].mxu0
    %3927 = vmatprep.mubr.bf16.mxu0 0
    %3928 = vmatmul.mubr.bf16.gmra.mrb[0].mxu0 %v3721
    %v3929 = vpop.f32.mrb[0].mxu0
    %v3930 = vadd.f32 0.0, %v3929
    %v3931 = vpop.f32.mrb[0].mxu0
    %v3932 = vpop.f32.mrb[0].mxu0
    %v3933 = vadd.f32 0.0, %v3932
    %v3934 = vpop.f32.mrb[0].mxu0
    %3935 = vmatprep.mubr.bf16.mxu0 0
    %3936 = vmatmul.mubr.bf16.gmra.mrb[0].mxu0 %v3724
    %v3937 = vpop.f32.mrb[0].mxu0
    %v3938 = vadd.f32 0.0, %v3937
    %v3939 = vpop.f32.mrb[0].mxu0
    %v3940 = vpop.f32.mrb[0].mxu0
    %v3941 = vadd.f32 0.0, %v3940
    %v3942 = vpop.f32.mrb[0].mxu0
    %3943 = vmatprep.mubr.bf16.mxu0 0
    %3944 = vmatmul.mubr.bf16.gmra.mrb[0].mxu0 %v3727
    %v3945 = vpop.f32.mrb[0].mxu0
    %v3946 = vadd.f32 0.0, %v3945
    %v3947 = vpop.f32.mrb[0].mxu0
    %v3948 = vpop.f32.mrb[0].mxu0
    %v3949 = vadd.f32 0.0, %v3948
    %v3950 = vpop.f32.mrb[0].mxu0
    %3951 = vmatprep.mubr.bf16.mxu0 0
    %3952 = vmatmul.mubr.bf16.gmra.mrb[0].mxu0 %v3730
    %v3953 = vpop.f32.mrb[0].mxu0
    %v3954 = vadd.f32 0.0, %v3953
    %v3955 = vpop.f32.mrb[0].mxu0
    %v3956 = vpop.f32.mrb[0].mxu0
    %v3957 = vadd.f32 0.0, %v3956
    %v3958 = vpop.f32.mrb[0].mxu0
    %3959 = vmatprep.mubr.bf16.mxu0 0
    %3960 = vmatmul.mubr.bf16.gmra.mrb[0].mxu0 %v3733
    %v3961 = vpop.f32.mrb[0].mxu0
    %v3962 = vadd.f32 0.0, %v3961
    %v3963 = vpop.f32.mrb[0].mxu0
    %v3964 = vpop.f32.mrb[0].mxu0
    %v3965 = vadd.f32 0.0, %v3964
    %v3966 = vpop.f32.mrb[0].mxu0
    %3967 = vmatprep.mubr.bf16.mxu0 0
    %3968 = vmatmul.mubr.bf16.gmra.mrb[0].mxu0 %v3736
    %v3969 = vpop.f32.mrb[0].mxu0
    %v3970 = vadd.f32 0.0, %v3969
    %v3971 = vpop.f32.mrb[0].mxu0
    %v3972 = vpop.f32.mrb[0].mxu0
    %v3973 = vadd.f32 0.0, %v3972
    %v3974 = vpop.f32.mrb[0].mxu0
    %3975 = vmatprep.mubr.bf16.mxu0 0
    %3976 = vmatmul.mubr.bf16.gmra.mrb[0].mxu0 %v3739
    %v3977 = vpop.f32.mrb[0].mxu0
    %v3978 = vadd.f32 0.0, %v3977
    %v3979 = vpop.f32.mrb[0].mxu0
    %v3980 = vpop.f32.mrb[0].mxu0
    %v3981 = vadd.f32 0.0, %v3980
    %v3982 = vpop.f32.mrb[0].mxu0
    %3983 = vmatprep.mubr.bf16.mxu0 0
    %3984 = vmatmul.mubr.bf16.gmra.mrb[0].mxu0 %v3742
    %v3985 = vpop.f32.mrb[0].mxu0
    %v3986 = vadd.f32 0.0, %v3985
    %v3987 = vpop.f32.mrb[0].mxu0
    %v3988 = vpop.f32.mrb[0].mxu0
    %v3989 = vadd.f32 0.0, %v3988
    %v3990 = vpop.f32.mrb[0].mxu0
    %3991 = vmatprep.mubr.bf16.mxu0 0
    %3992 = vmatmul.mubr.bf16.gmra.mrb[0].mxu0 %v3745
    %v3993 = vpop.f32.mrb[0].mxu0
    %v3994 = vadd.f32 0.0, %v3993
    %v3995 = vpop.f32.mrb[0].mxu0
    %v3996 = vpop.f32.mrb[0].mxu0
    %v3997 = vadd.f32 0.0, %v3996
    %v3998 = vpop.f32.mrb[0].mxu0
    %3999 = vmatprep.mubr.bf16.mxu0 0
    %4000 = vmatmul.mubr.bf16.gmra.mrb[0].mxu0 %v3748
    %v4001 = vpop.f32.mrb[0].mxu0
    %v4002 = vadd.f32 0.0, %v4001
    %v4003 = vpop.f32.mrb[0].mxu0
    %v4004 = vpop.f32.mrb[0].mxu0
    %v4005 = vadd.f32 0.0, %v4004
    %v4006 = vpop.f32.mrb[0].mxu0
    %4007 = vmatprep.mubr.bf16.mxu0 0
    %4008 = vmatmul.mubr.bf16.gmra.mrb[0].mxu0 %v3751
    %v4009 = vpop.f32.mrb[0].mxu0
    %v4010 = vadd.f32 0.0, %v4009
    %v4011 = vpop.f32.mrb[0].mxu0
    %v4012 = vpop.f32.mrb[0].mxu0
    %v4013 = vadd.f32 0.0, %v4012
    %v4014 = vpop.f32.mrb[0].mxu0
    %4015 = vmatprep.mubr.bf16.mxu0 0
    %4016 = vmatmul.mubr.bf16.gmra.mrb[0].mxu0 %v3754
    %v4017 = vpop.f32.mrb[0].mxu0
    %v4018 = vadd.f32 0.0, %v4017
    %v4019 = vpop.f32.mrb[0].mxu0
    %v4020 = vpop.f32.mrb[0].mxu0
    %v4021 = vadd.f32 0.0, %v4020
    %v4022 = vpop.f32.mrb[0].mxu0
    %4023 = vmatprep.mubr.bf16.mxu0 0
    %4024 = vmatmul.mubr.bf16.gmra.mrb[0].mxu0 %v3757
    %v4025 = vpop.f32.mrb[0].mxu0
    %v4026 = vadd.f32 0.0, %v4025
    %v4027 = vpop.f32.mrb[0].mxu0
    %v4028 = vpop.f32.mrb[0].mxu0
    %v4029 = vadd.f32 0.0, %v4028
    %v4030 = vpop.f32.mrb[0].mxu0
    %4031 = vmatprep.mubr.bf16.mxu0 0
    %4032 = vmatmul.mubr.bf16.gmra.mrb[0].mxu0 %v3760
    %v4033 = vpop.f32.mrb[0].mxu0
    %v4034 = vadd.f32 0.0, %v4033
    %v4035 = vpop.f32.mrb[0].mxu0
    %v4036 = vpop.f32.mrb[0].mxu0
    %v4037 = vadd.f32 0.0, %v4036
    %v4038 = vpop.f32.mrb[0].mxu0
    %4039 = vmatprep.mubr.bf16.mxu0 0
    %4040 = vmatmul.mubr.bf16.gmra.mrb[0].mxu0 %v3763
    %v4041 = vpop.f32.mrb[0].mxu0
    %v4042 = vadd.f32 0.0, %v4041
    %v4043 = vpop.f32.mrb[0].mxu0
    %v4044 = vpop.f32.mrb[0].mxu0
    %v4045 = vadd.f32 0.0, %v4044
    %v4046 = vpop.f32.mrb[0].mxu0
    %4047 = vmatprep.mubr.bf16.mxu0 0
    %4048 = vmatmul.mubr.bf16.gmra.mrb[0].mxu0 %v3766
    %v4049 = vpop.f32.mrb[0].mxu0
    %v4050 = vadd.f32 0.0, %v4049
    %v4051 = vpop.f32.mrb[0].mxu0
    %v4052 = vpop.f32.mrb[0].mxu0
    %v4053 = vadd.f32 0.0, %v4052
    %v4054 = vpop.f32.mrb[0].mxu0
    %4055 = vmatprep.mubr.bf16.mxu0 0
    %4056 = vmatmul.mubr.bf16.gmra.mrb[0].mxu0 %v3769
    %v4057 = vpop.f32.mrb[0].mxu0
    %v4058 = vadd.f32 0.0, %v4057
    %v4059 = vpop.f32.mrb[0].mxu0
    %v4060 = vpop.f32.mrb[0].mxu0
    %v4061 = vadd.f32 0.0, %v4060
    %v4062 = vpop.f32.mrb[0].mxu0
    %4063 = vdwg.mxu0
    %v4064 = vsel %vm156, %v3810, 0.0
    %v4065 = vsel %vm156, %v3813, 0.0
    %v4066 = vadd.f32 %v4064, %v4065
    %v4067 = vsel %vm156, %v3818, 0.0
    %v4068 = vadd.f32 %v4066, %v4067
    %v4069 = vsel %vm156, %v3821, 0.0
    %v4070 = vadd.f32 %v4068, %v4069
    %v4071 = vsel %vm156, %v3826, 0.0
    %v4072 = vadd.f32 %v4070, %v4071
    %v4073 = vsel %vm156, %v3829, 0.0
    %v4074 = vadd.f32 %v4072, %v4073
    %v4075 = vsel %vm156, %v3834, 0.0
    %v4076 = vadd.f32 %v4074, %v4075
    %v4077 = vsel %vm156, %v3837, 0.0
    %v4078 = vadd.f32 %v4076, %v4077
    %v4079 = vsel %vm156, %v3842, 0.0
    %v4080 = vadd.f32 %v4078, %v4079
    %v4081 = vsel %vm156, %v3845, 0.0
    %v4082 = vadd.f32 %v4080, %v4081
    %v4083 = vsel %vm156, %v3850, 0.0
    %v4084 = vadd.f32 %v4082, %v4083
    %v4085 = vsel %vm156, %v3853, 0.0
    %v4086 = vadd.f32 %v4084, %v4085
    %v4087 = vsel %vm156, %v3858, 0.0
    %v4088 = vadd.f32 %v4086, %v4087
    %v4089 = vsel %vm156, %v3861, 0.0
    %v4090 = vadd.f32 %v4088, %v4089
    %v4091 = vsel %vm156, %v3866, 0.0
    %v4092 = vadd.f32 %v4090, %v4091
    %v4093 = vsel %vm156, %v3869, 0.0
    %v4094 = vadd.f32 %v4092, %v4093
    %v4095 = vsel %vm156, %v3874, 0.0
    %v4096 = vadd.f32 %v4094, %v4095
    %v4097 = vsel %vm156, %v3877, 0.0
    %v4098 = vadd.f32 %v4096, %v4097
    %v4099 = vsel %vm156, %v3882, 0.0
    %v4100 = vadd.f32 %v4098, %v4099
    %v4101 = vsel %vm156, %v3885, 0.0
    %v4102 = vadd.f32 %v4100, %v4101
    %v4103 = vsel %vm156, %v3890, 0.0
    %v4104 = vadd.f32 %v4102, %v4103
    %v4105 = vsel %vm156, %v3893, 0.0
    %v4106 = vadd.f32 %v4104, %v4105
    %v4107 = vsel %vm156, %v3898, 0.0
    %v4108 = vadd.f32 %v4106, %v4107
    %v4109 = vsel %vm156, %v3901, 0.0
    %v4110 = vadd.f32 %v4108, %v4109
    %v4111 = vsel %vm156, %v3906, 0.0
    %v4112 = vadd.f32 %v4110, %v4111
    %v4113 = vsel %vm156, %v3909, 0.0
    %v4114 = vadd.f32 %v4112, %v4113
    %v4115 = vsel %vm156, %v3914, 0.0
    %v4116 = vadd.f32 %v4114, %v4115
    %v4117 = vsel %vm156, %v3917, 0.0
    %v4118 = vadd.f32 %v4116, %v4117
    %v4119 = vsel %vm156, %v3922, 0.0
    %v4120 = vadd.f32 %v4118, %v4119
    %v4121 = vsel %vm156, %v3925, 0.0
    %v4122 = vadd.f32 %v4120, %v4121
    %v4123 = vsel %vm156, %v3930, 0.0
    %v4124 = vadd.f32 %v4122, %v4123
    %v4125 = vsel %vm156, %v3933, 0.0
    %v4126 = vadd.f32 %v4124, %v4125
    %v4127 = vsel %vm156, %v3938, 0.0
    %v4128 = vadd.f32 %v4126, %v4127
    %v4129 = vsel %vm156, %v3941, 0.0
    %v4130 = vadd.f32 %v4128, %v4129
    %v4131 = vsel %vm156, %v3946, 0.0
    %v4132 = vadd.f32 %v4130, %v4131
    %v4133 = vsel %vm156, %v3949, 0.0
    %v4134 = vadd.f32 %v4132, %v4133
    %v4135 = vsel %vm156, %v3954, 0.0
    %v4136 = vadd.f32 %v4134, %v4135
    %v4137 = vsel %vm156, %v3957, 0.0
    %v4138 = vadd.f32 %v4136, %v4137
    %v4139 = vsel %vm156, %v3962, 0.0
    %v4140 = vadd.f32 %v4138, %v4139
    %v4141 = vsel %vm156, %v3965, 0.0
    %v4142 = vadd.f32 %v4140, %v4141
    %v4143 = vsel %vm156, %v3970, 0.0
    %v4144 = vadd.f32 %v4142, %v4143
    %v4145 = vsel %vm156, %v3973, 0.0
    %v4146 = vadd.f32 %v4144, %v4145
    %v4147 = vsel %vm156, %v3978, 0.0
    %v4148 = vadd.f32 %v4146, %v4147
    %v4149 = vsel %vm156, %v3981, 0.0
    %v4150 = vadd.f32 %v4148, %v4149
    %v4151 = vsel %vm156, %v3986, 0.0
    %v4152 = vadd.f32 %v4150, %v4151
    %v4153 = vsel %vm156, %v3989, 0.0
    %v4154 = vadd.f32 %v4152, %v4153
    %v4155 = vsel %vm156, %v3994, 0.0
    %v4156 = vadd.f32 %v4154, %v4155
    %v4157 = vsel %vm156, %v3997, 0.0
    %v4158 = vadd.f32 %v4156, %v4157
    %v4159 = vsel %vm156, %v4002, 0.0
    %v4160 = vadd.f32 %v4158, %v4159
    %v4161 = vsel %vm156, %v4005, 0.0
    %v4162 = vadd.f32 %v4160, %v4161
    %v4163 = vsel %vm156, %v4010, 0.0
    %v4164 = vadd.f32 %v4162, %v4163
    %v4165 = vsel %vm156, %v4013, 0.0
    %v4166 = vadd.f32 %v4164, %v4165
    %v4167 = vsel %vm156, %v4018, 0.0
    %v4168 = vadd.f32 %v4166, %v4167
    %v4169 = vsel %vm156, %v4021, 0.0
    %v4170 = vadd.f32 %v4168, %v4169
    %v4171 = vsel %vm156, %v4026, 0.0
    %v4172 = vadd.f32 %v4170, %v4171
    %v4173 = vsel %vm156, %v4029, 0.0
    %v4174 = vadd.f32 %v4172, %v4173
    %v4175 = vsel %vm156, %v4034, 0.0
    %v4176 = vadd.f32 %v4174, %v4175
    %v4177 = vsel %vm156, %v4037, 0.0
    %v4178 = vadd.f32 %v4176, %v4177
    %v4179 = vsel %vm156, %v4042, 0.0
    %v4180 = vadd.f32 %v4178, %v4179
    %v4181 = vsel %vm156, %v4045, 0.0
    %v4182 = vadd.f32 %v4180, %v4181
    %v4183 = vsel %vm156, %v4050, 0.0
    %v4184 = vadd.f32 %v4182, %v4183
    %v4185 = vsel %vm156, %v4053, 0.0
    %v4186 = vadd.f32 %v4184, %v4185
    %v4187 = vsel %vm156, %v4058, 0.0
    %v4188 = vadd.f32 %v4186, %v4187
    %v4189 = vsel %vm156, %v4061, 0.0
    %v4190 = vadd.f32 %v4188, %v4189
    %v4191 = vrot.slane %v4190, 4
    %v4192 = vadd.f32 %v4190, %v4191
    %v4193 = vrot.slane %v4192, 2
    %v4194 = vadd.f32 %v4192, %v4193
    %v4195 = vrot.slane %v4194, 1
    %v4196 = vadd.f32 %v4194, %v4195
    %v4197 = vrcp.pop 512.0
    %v4198 = vmul.f32 %v4196, %v4197
    %v4199 = vmul.f32 %v3810, %v3810
    %v4200 = vmul.f32 %v3813, %v3813
    %v4201 = vmul.f32 %v3818, %v3818
    %v4202 = vmul.f32 %v3821, %v3821
    %v4203 = vmul.f32 %v3826, %v3826
    %v4204 = vmul.f32 %v3829, %v3829
    %v4205 = vmul.f32 %v3834, %v3834
    %v4206 = vmul.f32 %v3837, %v3837
    %v4207 = vmul.f32 %v3842, %v3842
    %v4208 = vmul.f32 %v3845, %v3845
    %v4209 = vmul.f32 %v3850, %v3850
    %v4210 = vmul.f32 %v3853, %v3853
    %v4211 = vmul.f32 %v3858, %v3858
    %v4212 = vmul.f32 %v3861, %v3861
    %v4213 = vmul.f32 %v3866, %v3866
    %v4214 = vmul.f32 %v3869, %v3869
    %v4215 = vmul.f32 %v3874, %v3874
    %v4216 = vmul.f32 %v3877, %v3877
    %v4217 = vmul.f32 %v3882, %v3882
    %v4218 = vmul.f32 %v3885, %v3885
    %v4219 = vmul.f32 %v3890, %v3890
    %v4220 = vmul.f32 %v3893, %v3893
    %v4221 = vmul.f32 %v3898, %v3898
    %v4222 = vmul.f32 %v3901, %v3901
    %v4223 = vmul.f32 %v3906, %v3906
    %v4224 = vmul.f32 %v3909, %v3909
    %v4225 = vmul.f32 %v3914, %v3914
    %v4226 = vmul.f32 %v3917, %v3917
    %v4227 = vmul.f32 %v3922, %v3922
    %v4228 = vmul.f32 %v3925, %v3925
    %v4229 = vmul.f32 %v3930, %v3930
    %v4230 = vmul.f32 %v3933, %v3933
    %v4231 = vmul.f32 %v3938, %v3938
    %v4232 = vmul.f32 %v3941, %v3941
    %v4233 = vmul.f32 %v3946, %v3946
    %v4234 = vmul.f32 %v3949, %v3949
    %v4235 = vmul.f32 %v3954, %v3954
    %v4236 = vmul.f32 %v3957, %v3957
    %v4237 = vmul.f32 %v3962, %v3962
    %v4238 = vmul.f32 %v3965, %v3965
    %v4239 = vmul.f32 %v3970, %v3970
    %v4240 = vmul.f32 %v3973, %v3973
    %v4241 = vmul.f32 %v3978, %v3978
    %v4242 = vmul.f32 %v3981, %v3981
    %v4243 = vmul.f32 %v3986, %v3986
    %v4244 = vmul.f32 %v3989, %v3989
    %v4245 = vmul.f32 %v3994, %v3994
    %v4246 = vmul.f32 %v3997, %v3997
    %v4247 = vmul.f32 %v4002, %v4002
    %v4248 = vmul.f32 %v4005, %v4005
    %v4249 = vmul.f32 %v4010, %v4010
    %v4250 = vmul.f32 %v4013, %v4013
    %v4251 = vmul.f32 %v4018, %v4018
    %v4252 = vmul.f32 %v4021, %v4021
    %v4253 = vmul.f32 %v4026, %v4026
    %v4254 = vmul.f32 %v4029, %v4029
    %v4255 = vmul.f32 %v4034, %v4034
    %v4256 = vmul.f32 %v4037, %v4037
    %v4257 = vmul.f32 %v4042, %v4042
    %v4258 = vmul.f32 %v4045, %v4045
    %v4259 = vmul.f32 %v4050, %v4050
    %v4260 = vmul.f32 %v4053, %v4053
    %v4261 = vmul.f32 %v4058, %v4058
    %v4262 = vmul.f32 %v4061, %v4061
    %v4263 = vsel %vm156, %v4199, 0.0
    %v4264 = vsel %vm156, %v4200, 0.0
    %v4265 = vadd.f32 %v4263, %v4264
    %v4266 = vsel %vm156, %v4201, 0.0
    %v4267 = vadd.f32 %v4265, %v4266
    %v4268 = vsel %vm156, %v4202, 0.0
    %v4269 = vadd.f32 %v4267, %v4268
    %v4270 = vsel %vm156, %v4203, 0.0
    %v4271 = vadd.f32 %v4269, %v4270
    %v4272 = vsel %vm156, %v4204, 0.0
    %v4273 = vadd.f32 %v4271, %v4272
    %v4274 = vsel %vm156, %v4205, 0.0
    %v4275 = vadd.f32 %v4273, %v4274
    %v4276 = vsel %vm156, %v4206, 0.0
    %v4277 = vadd.f32 %v4275, %v4276
    %v4278 = vsel %vm156, %v4207, 0.0
    %v4279 = vadd.f32 %v4277, %v4278
    %v4280 = vsel %vm156, %v4208, 0.0
    %v4281 = vadd.f32 %v4279, %v4280
    %v4282 = vsel %vm156, %v4209, 0.0
    %v4283 = vadd.f32 %v4281, %v4282
    %v4284 = vsel %vm156, %v4210, 0.0
    %v4285 = vadd.f32 %v4283, %v4284
    %v4286 = vsel %vm156, %v4211, 0.0
    %v4287 = vadd.f32 %v4285, %v4286
    %v4288 = vsel %vm156, %v4212, 0.0
    %v4289 = vadd.f32 %v4287, %v4288
    %v4290 = vsel %vm156, %v4213, 0.0
    %v4291 = vadd.f32 %v4289, %v4290
    %v4292 = vsel %vm156, %v4214, 0.0
    %v4293 = vadd.f32 %v4291, %v4292
    %v4294 = vsel %vm156, %v4215, 0.0
    %v4295 = vadd.f32 %v4293, %v4294
    %v4296 = vsel %vm156, %v4216, 0.0
    %v4297 = vadd.f32 %v4295, %v4296
    %v4298 = vsel %vm156, %v4217, 0.0
    %v4299 = vadd.f32 %v4297, %v4298
    %v4300 = vsel %vm156, %v4218, 0.0
    %v4301 = vadd.f32 %v4299, %v4300
    %v4302 = vsel %vm156, %v4219, 0.0
    %v4303 = vadd.f32 %v4301, %v4302
    %v4304 = vsel %vm156, %v4220, 0.0
    %v4305 = vadd.f32 %v4303, %v4304
    %v4306 = vsel %vm156, %v4221, 0.0
    %v4307 = vadd.f32 %v4305, %v4306
    %v4308 = vsel %vm156, %v4222, 0.0
    %v4309 = vadd.f32 %v4307, %v4308
    %v4310 = vsel %vm156, %v4223, 0.0
    %v4311 = vadd.f32 %v4309, %v4310
    %v4312 = vsel %vm156, %v4224, 0.0
    %v4313 = vadd.f32 %v4311, %v4312
    %v4314 = vsel %vm156, %v4225, 0.0
    %v4315 = vadd.f32 %v4313, %v4314
    %v4316 = vsel %vm156, %v4226, 0.0
    %v4317 = vadd.f32 %v4315, %v4316
    %v4318 = vsel %vm156, %v4227, 0.0
    %v4319 = vadd.f32 %v4317, %v4318
    %v4320 = vsel %vm156, %v4228, 0.0
    %v4321 = vadd.f32 %v4319, %v4320
    %v4322 = vsel %vm156, %v4229, 0.0
    %v4323 = vadd.f32 %v4321, %v4322
    %v4324 = vsel %vm156, %v4230, 0.0
    %v4325 = vadd.f32 %v4323, %v4324
    %v4326 = vsel %vm156, %v4231, 0.0
    %v4327 = vadd.f32 %v4325, %v4326
    %v4328 = vsel %vm156, %v4232, 0.0
    %v4329 = vadd.f32 %v4327, %v4328
    %v4330 = vsel %vm156, %v4233, 0.0
    %v4331 = vadd.f32 %v4329, %v4330
    %v4332 = vsel %vm156, %v4234, 0.0
    %v4333 = vadd.f32 %v4331, %v4332
    %v4334 = vsel %vm156, %v4235, 0.0
    %v4335 = vadd.f32 %v4333, %v4334
    %v4336 = vsel %vm156, %v4236, 0.0
    %v4337 = vadd.f32 %v4335, %v4336
    %v4338 = vsel %vm156, %v4237, 0.0
    %v4339 = vadd.f32 %v4337, %v4338
    %v4340 = vsel %vm156, %v4238, 0.0
    %v4341 = vadd.f32 %v4339, %v4340
    %v4342 = vsel %vm156, %v4239, 0.0
    %v4343 = vadd.f32 %v4341, %v4342
    %v4344 = vsel %vm156, %v4240, 0.0
    %v4345 = vadd.f32 %v4343, %v4344
    %v4346 = vsel %vm156, %v4241, 0.0
    %v4347 = vadd.f32 %v4345, %v4346
    %v4348 = vsel %vm156, %v4242, 0.0
    %v4349 = vadd.f32 %v4347, %v4348
    %v4350 = vsel %vm156, %v4243, 0.0
    %v4351 = vadd.f32 %v4349, %v4350
    %v4352 = vsel %vm156, %v4244, 0.0
    %v4353 = vadd.f32 %v4351, %v4352
    %v4354 = vsel %vm156, %v4245, 0.0
    %v4355 = vadd.f32 %v4353, %v4354
    %v4356 = vsel %vm156, %v4246, 0.0
    %v4357 = vadd.f32 %v4355, %v4356
    %v4358 = vsel %vm156, %v4247, 0.0
    %v4359 = vadd.f32 %v4357, %v4358
    %v4360 = vsel %vm156, %v4248, 0.0
    %v4361 = vadd.f32 %v4359, %v4360
    %v4362 = vsel %vm156, %v4249, 0.0
    %v4363 = vadd.f32 %v4361, %v4362
    %v4364 = vsel %vm156, %v4250, 0.0
    %v4365 = vadd.f32 %v4363, %v4364
    %v4366 = vsel %vm156, %v4251, 0.0
    %v4367 = vadd.f32 %v4365, %v4366
    %v4368 = vsel %vm156, %v4252, 0.0
    %v4369 = vadd.f32 %v4367, %v4368
    %v4370 = vsel %vm156, %v4253, 0.0
    %v4371 = vadd.f32 %v4369, %v4370
    %v4372 = vsel %vm156, %v4254, 0.0
    %v4373 = vadd.f32 %v4371, %v4372
    %v4374 = vsel %vm156, %v4255, 0.0
    %v4375 = vadd.f32 %v4373, %v4374
    %v4376 = vsel %vm156, %v4256, 0.0
    %v4377 = vadd.f32 %v4375, %v4376
    %v4378 = vsel %vm156, %v4257, 0.0
    %v4379 = vadd.f32 %v4377, %v4378
    %v4380 = vsel %vm156, %v4258, 0.0
    %v4381 = vadd.f32 %v4379, %v4380
    %v4382 = vsel %vm156, %v4259, 0.0
    %v4383 = vadd.f32 %v4381, %v4382
    %v4384 = vsel %vm156, %v4260, 0.0
    %v4385 = vadd.f32 %v4383, %v4384
    %v4386 = vsel %vm156, %v4261, 0.0
    %v4387 = vadd.f32 %v4385, %v4386
    %v4388 = vsel %vm156, %v4262, 0.0
    %v4389 = vadd.f32 %v4387, %v4388
    %v4390 = vrot.slane %v4389, 4
    %v4391 = vadd.f32 %v4389, %v4390
    %v4392 = vrot.slane %v4391, 2
    %v4393 = vadd.f32 %v4391, %v4392
    %v4394 = vrot.slane %v4393, 1
    %v4395 = vadd.f32 %v4393, %v4394
    %v4396 = vmul.f32 %v4395, %v4197
    %v4397 = vmul.f32 %v4198, %v4198
    %v4398 = vsub.f32 %v4396, %v4397
    %v4399 = vld [vmem:[%s2] sm:$0x1]
    %v4400 = vadd.f32 %v4398, 1e-05
    %v4401 = vrsqrt.pop %v4400
    %v4402 = vmul.f32 %v4399, %v4401
    %v4403 = vld [vmem:[%s3] sm:$0x1]
    %v4404 = vmul.f32 %v4198, %v4402
    %v4405 = vsub.f32 %v4403, %v4404
    %v4407 = vlaneseq
    %v4408 = vshrl.u32 %v4407, 7
    %v4409 = vsub.s32 0, %v4408
    %v4410 = vrot.slane %v4402, %v4409
    %v4412 = vmul.f32 %v3810, %v4410
    %v4413 = vmul.f32 %v3813, %v4410
    %v4414 = vmul.f32 %v3818, %v4410
    %v4415 = vmul.f32 %v3821, %v4410
    %v4416 = vmul.f32 %v3826, %v4410
    %v4417 = vmul.f32 %v3829, %v4410
    %v4418 = vmul.f32 %v3834, %v4410
    %v4419 = vmul.f32 %v3837, %v4410
    %v4420 = vmul.f32 %v3842, %v4410
    %v4421 = vmul.f32 %v3845, %v4410
    %v4422 = vmul.f32 %v3850, %v4410
    %v4423 = vmul.f32 %v3853, %v4410
    %v4424 = vmul.f32 %v3858, %v4410
    %v4425 = vmul.f32 %v3861, %v4410
    %v4426 = vmul.f32 %v3866, %v4410
    %v4427 = vmul.f32 %v3869, %v4410
    %v4428 = vmul.f32 %v3874, %v4410
    %v4429 = vmul.f32 %v3877, %v4410
    %v4430 = vmul.f32 %v3882, %v4410
    %v4431 = vmul.f32 %v3885, %v4410
    %v4432 = vmul.f32 %v3890, %v4410
    %v4433 = vmul.f32 %v3893, %v4410
    %v4434 = vmul.f32 %v3898, %v4410
    %v4435 = vmul.f32 %v3901, %v4410
    %v4436 = vmul.f32 %v3906, %v4410
    %v4437 = vmul.f32 %v3909, %v4410
    %v4438 = vmul.f32 %v3914, %v4410
    %v4439 = vmul.f32 %v3917, %v4410
    %v4440 = vmul.f32 %v3922, %v4410
    %v4441 = vmul.f32 %v3925, %v4410
    %v4442 = vmul.f32 %v3930, %v4410
    %v4443 = vmul.f32 %v3933, %v4410
    %v4444 = vmul.f32 %v3938, %v4410
    %v4445 = vmul.f32 %v3941, %v4410
    %v4446 = vmul.f32 %v3946, %v4410
    %v4447 = vmul.f32 %v3949, %v4410
    %v4448 = vmul.f32 %v3954, %v4410
    %v4449 = vmul.f32 %v3957, %v4410
    %v4450 = vmul.f32 %v3962, %v4410
    %v4451 = vmul.f32 %v3965, %v4410
    %v4452 = vmul.f32 %v3970, %v4410
    %v4453 = vmul.f32 %v3973, %v4410
    %v4454 = vmul.f32 %v3978, %v4410
    %v4455 = vmul.f32 %v3981, %v4410
    %v4456 = vmul.f32 %v3986, %v4410
    %v4457 = vmul.f32 %v3989, %v4410
    %v4458 = vmul.f32 %v3994, %v4410
    %v4459 = vmul.f32 %v3997, %v4410
    %v4460 = vmul.f32 %v4002, %v4410
    %v4461 = vmul.f32 %v4005, %v4410
    %v4462 = vmul.f32 %v4010, %v4410
    %v4463 = vmul.f32 %v4013, %v4410
    %v4464 = vmul.f32 %v4018, %v4410
    %v4465 = vmul.f32 %v4021, %v4410
    %v4466 = vmul.f32 %v4026, %v4410
    %v4467 = vmul.f32 %v4029, %v4410
    %v4468 = vmul.f32 %v4034, %v4410
    %v4469 = vmul.f32 %v4037, %v4410
    %v4470 = vmul.f32 %v4042, %v4410
    %v4471 = vmul.f32 %v4045, %v4410
    %v4472 = vmul.f32 %v4050, %v4410
    %v4473 = vmul.f32 %v4053, %v4410
    %v4474 = vmul.f32 %v4058, %v4410
    %v4475 = vmul.f32 %v4061, %v4410
    %v4477 = vlaneseq
    %v4478 = vshrl.u32 %v4477, 7
    %v4479 = vsub.s32 0, %v4478
    %v4480 = vrot.slane %v4405, %v4479
    %v4482 = vadd.f32 %v4412, %v4480
    %v4483 = vadd.f32 %v4413, %v4480
    %v4484 = vadd.f32 %v4414, %v4480
    %v4485 = vadd.f32 %v4415, %v4480
    %v4486 = vadd.f32 %v4416, %v4480
    %v4487 = vadd.f32 %v4417, %v4480
    %v4488 = vadd.f32 %v4418, %v4480
    %v4489 = vadd.f32 %v4419, %v4480
    %v4490 = vadd.f32 %v4420, %v4480
    %v4491 = vadd.f32 %v4421, %v4480
    %v4492 = vadd.f32 %v4422, %v4480
    %v4493 = vadd.f32 %v4423, %v4480
    %v4494 = vadd.f32 %v4424, %v4480
    %v4495 = vadd.f32 %v4425, %v4480
    %v4496 = vadd.f32 %v4426, %v4480
    %v4497 = vadd.f32 %v4427, %v4480
    %v4498 = vadd.f32 %v4428, %v4480
    %v4499 = vadd.f32 %v4429, %v4480
    %v4500 = vadd.f32 %v4430, %v4480
    %v4501 = vadd.f32 %v4431, %v4480
    %v4502 = vadd.f32 %v4432, %v4480
    %v4503 = vadd.f32 %v4433, %v4480
    %v4504 = vadd.f32 %v4434, %v4480
    %v4505 = vadd.f32 %v4435, %v4480
    %v4506 = vadd.f32 %v4436, %v4480
    %v4507 = vadd.f32 %v4437, %v4480
    %v4508 = vadd.f32 %v4438, %v4480
    %v4509 = vadd.f32 %v4439, %v4480
    %v4510 = vadd.f32 %v4440, %v4480
    %v4511 = vadd.f32 %v4441, %v4480
    %v4512 = vadd.f32 %v4442, %v4480
    %v4513 = vadd.f32 %v4443, %v4480
    %v4514 = vadd.f32 %v4444, %v4480
    %v4515 = vadd.f32 %v4445, %v4480
    %v4516 = vadd.f32 %v4446, %v4480
    %v4517 = vadd.f32 %v4447, %v4480
    %v4518 = vadd.f32 %v4448, %v4480
    %v4519 = vadd.f32 %v4449, %v4480
    %v4520 = vadd.f32 %v4450, %v4480
    %v4521 = vadd.f32 %v4451, %v4480
    %v4522 = vadd.f32 %v4452, %v4480
    %v4523 = vadd.f32 %v4453, %v4480
    %v4524 = vadd.f32 %v4454, %v4480
    %v4525 = vadd.f32 %v4455, %v4480
    %v4526 = vadd.f32 %v4456, %v4480
    %v4527 = vadd.f32 %v4457, %v4480
    %v4528 = vadd.f32 %v4458, %v4480
    %v4529 = vadd.f32 %v4459, %v4480
    %v4530 = vadd.f32 %v4460, %v4480
    %v4531 = vadd.f32 %v4461, %v4480
    %v4532 = vadd.f32 %v4462, %v4480
    %v4533 = vadd.f32 %v4463, %v4480
    %v4534 = vadd.f32 %v4464, %v4480
    %v4535 = vadd.f32 %v4465, %v4480
    %v4536 = vadd.f32 %v4466, %v4480
    %v4537 = vadd.f32 %v4467, %v4480
    %v4538 = vadd.f32 %v4468, %v4480
    %v4539 = vadd.f32 %v4469, %v4480
    %v4540 = vadd.f32 %v4470, %v4480
    %v4541 = vadd.f32 %v4471, %v4480
    %v4542 = vadd.f32 %v4472, %v4480
    %v4543 = vadd.f32 %v4473, %v4480
    %v4544 = vadd.f32 %v4474, %v4480
    %v4545 = vadd.f32 %v4475, %v4480
    %v4546 = vmax.f32 %v4482, 0.0
    %v4547 = vmax.f32 %v4483, 0.0
    %v4548 = vmax.f32 %v4484, 0.0
    %v4549 = vmax.f32 %v4485, 0.0
    %v4550 = vmax.f32 %v4486, 0.0
    %v4551 = vmax.f32 %v4487, 0.0
    %v4552 = vmax.f32 %v4488, 0.0
    %v4553 = vmax.f32 %v4489, 0.0
    %v4554 = vmax.f32 %v4490, 0.0
    %v4555 = vmax.f32 %v4491, 0.0
    %v4556 = vmax.f32 %v4492, 0.0
    %v4557 = vmax.f32 %v4493, 0.0
    %v4558 = vmax.f32 %v4494, 0.0
    %v4559 = vmax.f32 %v4495, 0.0
    %v4560 = vmax.f32 %v4496, 0.0
    %v4561 = vmax.f32 %v4497, 0.0
    %v4562 = vmax.f32 %v4498, 0.0
    %v4563 = vmax.f32 %v4499, 0.0
    %v4564 = vmax.f32 %v4500, 0.0
    %v4565 = vmax.f32 %v4501, 0.0
    %v4566 = vmax.f32 %v4502, 0.0
    %v4567 = vmax.f32 %v4503, 0.0
    %v4568 = vmax.f32 %v4504, 0.0
    %v4569 = vmax.f32 %v4505, 0.0
    %v4570 = vmax.f32 %v4506, 0.0
    %v4571 = vmax.f32 %v4507, 0.0
    %v4572 = vmax.f32 %v4508, 0.0
    %v4573 = vmax.f32 %v4509, 0.0
    %v4574 = vmax.f32 %v4510, 0.0
    %v4575 = vmax.f32 %v4511, 0.0
    %v4576 = vmax.f32 %v4512, 0.0
    %v4577 = vmax.f32 %v4513, 0.0
    %v4578 = vmax.f32 %v4514, 0.0
    %v4579 = vmax.f32 %v4515, 0.0
    %v4580 = vmax.f32 %v4516, 0.0
    %v4581 = vmax.f32 %v4517, 0.0
    %v4582 = vmax.f32 %v4518, 0.0
    %v4583 = vmax.f32 %v4519, 0.0
    %v4584 = vmax.f32 %v4520, 0.0
    %v4585 = vmax.f32 %v4521, 0.0
    %v4586 = vmax.f32 %v4522, 0.0
    %v4587 = vmax.f32 %v4523, 0.0
    %v4588 = vmax.f32 %v4524, 0.0
    %v4589 = vmax.f32 %v4525, 0.0
    %v4590 = vmax.f32 %v4526, 0.0
    %v4591 = vmax.f32 %v4527, 0.0
    %v4592 = vmax.f32 %v4528, 0.0
    %v4593 = vmax.f32 %v4529, 0.0
    %v4594 = vmax.f32 %v4530, 0.0
    %v4595 = vmax.f32 %v4531, 0.0
    %v4596 = vmax.f32 %v4532, 0.0
    %v4597 = vmax.f32 %v4533, 0.0
    %v4598 = vmax.f32 %v4534, 0.0
    %v4599 = vmax.f32 %v4535, 0.0
    %v4600 = vmax.f32 %v4536, 0.0
    %v4601 = vmax.f32 %v4537, 0.0
    %v4602 = vmax.f32 %v4538, 0.0
    %v4603 = vmax.f32 %v4539, 0.0
    %v4604 = vmax.f32 %v4540, 0.0
    %v4605 = vmax.f32 %v4541, 0.0
    %v4606 = vmax.f32 %v4542, 0.0
    %v4607 = vmax.f32 %v4543, 0.0
    %v4608 = vmax.f32 %v4544, 0.0
    %v4609 = vmax.f32 %v4545, 0.0
    %v4610 = vmax.f32 %v4546, %v4548
    %v4611 = vmax.f32 %v4547, %v4549
    %v4612 = vmax.f32 %v4550, %v4552
    %v4613 = vmax.f32 %v4551, %v4553
    %v4614 = vmax.f32 %v4554, %v4556
    %v4615 = vmax.f32 %v4555, %v4557
    %v4616 = vmax.f32 %v4558, %v4560
    %v4617 = vmax.f32 %v4559, %v4561
    %v4618 = vmax.f32 %v4562, %v4564
    %v4619 = vmax.f32 %v4563, %v4565
    %v4620 = vmax.f32 %v4566, %v4568
    %v4621 = vmax.f32 %v4567, %v4569
    %v4622 = vmax.f32 %v4570, %v4572
    %v4623 = vmax.f32 %v4571, %v4573
    %v4624 = vmax.f32 %v4574, %v4576
    %v4625 = vmax.f32 %v4575, %v4577
    %v4626 = vmax.f32 %v4578, %v4580
    %v4627 = vmax.f32 %v4579, %v4581
    %v4628 = vmax.f32 %v4582, %v4584
    %v4629 = vmax.f32 %v4583, %v4585
    %v4630 = vmax.f32 %v4586, %v4588
    %v4631 = vmax.f32 %v4587, %v4589
    %v4632 = vmax.f32 %v4590, %v4592
    %v4633 = vmax.f32 %v4591, %v4593
    %v4634 = vmax.f32 %v4594, %v4596
    %v4635 = vmax.f32 %v4595, %v4597
    %v4636 = vmax.f32 %v4598, %v4600
    %v4637 = vmax.f32 %v4599, %v4601
    %v4638 = vmax.f32 %v4602, %v4604
    %v4639 = vmax.f32 %v4603, %v4605
    %v4640 = vmax.f32 %v4606, %v4608
    %v4641 = vmax.f32 %v4607, %v4609
    %v4658 = vrot.slane %v4610, 1
    %v4659 = vrot.slane %v4612, 1
    %v4660 = vrot.slane %v4614, 1
    %v4661 = vrot.slane %v4616, 1
    %v4662 = vrot.slane %v4618, 1
    %v4663 = vrot.slane %v4620, 1
    %v4664 = vrot.slane %v4622, 1
    %v4665 = vrot.slane %v4624, 1
    %v4666 = vrot.slane %v4626, 1
    %v4667 = vrot.slane %v4628, 1
    %v4668 = vrot.slane %v4630, 1
    %v4669 = vrot.slane %v4632, 1
    %v4670 = vrot.slane %v4634, 1
    %v4671 = vrot.slane %v4636, 1
    %v4672 = vrot.slane %v4638, 1
    %v4673 = vrot.slane %v4640, 1
    %v4690 = vmax.f32 %v4610, %v4658
    %v4691 = vmax.f32 %v4612, %v4659
    %v4692 = vmax.f32 %v4614, %v4660
    %v4693 = vmax.f32 %v4616, %v4661
    %v4694 = vmax.f32 %v4618, %v4662
    %v4695 = vmax.f32 %v4620, %v4663
    %v4696 = vmax.f32 %v4622, %v4664
    %v4697 = vmax.f32 %v4624, %v4665
    %v4698 = vmax.f32 %v4626, %v4666
    %v4699 = vmax.f32 %v4628, %v4667
    %v4700 = vmax.f32 %v4630, %v4668
    %v4701 = vmax.f32 %v4632, %v4669
    %v4702 = vmax.f32 %v4634, %v4670
    %v4703 = vmax.f32 %v4636, %v4671
    %v4704 = vmax.f32 %v4638, %v4672
    %v4705 = vmax.f32 %v4640, %v4673
    %s4706 = scalar_lea.vmem [#allocation4], 16
    %vm4707 = vcmask 253952
    %4708 = vst.msk [vmem:[%s4706 + $0x1] sm:$0x1] %vm4707, %v4690
    %4709 = vst.msk [vmem:[%s4706 + $0x11] sm:$0x1] %vm4707, %v4691
    %4710 = vst.msk [vmem:[%s4706 + $0x21] sm:$0x1] %vm4707, %v4692
    %4711 = vst.msk [vmem:[%s4706 + $0x31] sm:$0x1] %vm4707, %v4693
    %4712 = vst.msk [vmem:[%s4706 + $0x41] sm:$0x1] %vm4707, %v4694
    %4713 = vst.msk [vmem:[%s4706 + $0x51] sm:$0x1] %vm4707, %v4695
    %4714 = vst.msk [vmem:[%s4706 + $0x61] sm:$0x1] %vm4707, %v4696
    %4715 = vst.msk [vmem:[%s4706 + $0x71] sm:$0x1] %vm4707, %v4697
    %4716 = vst.msk [vmem:[%s4706 + $0xa1] sm:$0x1] %vm4707, %v4698
    %4717 = vst.msk [vmem:[%s4706 + $0xb1] sm:$0x1] %vm4707, %v4699
    %4718 = vst.msk [vmem:[%s4706 + $0xc1] sm:$0x1] %vm4707, %v4700
    %4719 = vst.msk [vmem:[%s4706 + $0xd1] sm:$0x1] %vm4707, %v4701
    %4720 = vst.msk [vmem:[%s4706 + $0xe1] sm:$0x1] %vm4707, %v4702
    %4721 = vst.msk [vmem:[%s4706 + $0xf1] sm:$0x1] %vm4707, %v4703
    %4722 = vst.msk [vmem:[%s4706 + $0x101] sm:$0x1] %vm4707, %v4704
    %4723 = vst.msk [vmem:[%s4706 + $0x111] sm:$0x1] %vm4707, %v4705
    %vm4724 = vcmask 256002
    %4725 = vst.msk [vmem:[%s4706] sm:$0x4] %vm4724, %v4690
    %4726 = vst.msk [vmem:[%s4706 + $0x10] sm:$0x4] %vm4724, %v4691
    %4727 = vst.msk [vmem:[%s4706 + $0x20] sm:$0x4] %vm4724, %v4692
    %4728 = vst.msk [vmem:[%s4706 + $0x30] sm:$0x4] %vm4724, %v4693
    %4729 = vst.msk [vmem:[%s4706 + $0x40] sm:$0x4] %vm4724, %v4694
    %4730 = vst.msk [vmem:[%s4706 + $0x50] sm:$0x4] %vm4724, %v4695
    %4731 = vst.msk [vmem:[%s4706 + $0x60] sm:$0x4] %vm4724, %v4696
    %4732 = vst.msk [vmem:[%s4706 + $0x70] sm:$0x4] %vm4724, %v4697
    %4733 = vst.msk [vmem:[%s4706 + $0xa0] sm:$0x4] %vm4724, %v4698
    %4734 = vst.msk [vmem:[%s4706 + $0xb0] sm:$0x4] %vm4724, %v4699
    %4735 = vst.msk [vmem:[%s4706 + $0xc0] sm:$0x4] %vm4724, %v4700
    %4736 = vst.msk [vmem:[%s4706 + $0xd0] sm:$0x4] %vm4724, %v4701
    %4737 = vst.msk [vmem:[%s4706 + $0xe0] sm:$0x4] %vm4724, %v4702
    %4738 = vst.msk [vmem:[%s4706 + $0xf0] sm:$0x4] %vm4724, %v4703
    %4739 = vst.msk [vmem:[%s4706 + $0x100] sm:$0x4] %vm4724, %v4704
    %4740 = vst.msk [vmem:[%s4706 + $0x110] sm:$0x4] %vm4724, %v4705
    %vm4741 = vcmask 258052
    %4742 = vst.msk [vmem:[%s4706 - $0x1] sm:$0x10] %vm4741, %v4690
    %4743 = vst.msk [vmem:[%s4706 + $0xf] sm:$0x10] %vm4741, %v4691
    %4744 = vst.msk [vmem:[%s4706 + $0x1f] sm:$0x10] %vm4741, %v4692
    %4745 = vst.msk [vmem:[%s4706 + $0x2f] sm:$0x10] %vm4741, %v4693
    %4746 = vst.msk [vmem:[%s4706 + $0x3f] sm:$0x10] %vm4741, %v4694
    %4747 = vst.msk [vmem:[%s4706 + $0x4f] sm:$0x10] %vm4741, %v4695
    %4748 = vst.msk [vmem:[%s4706 + $0x5f] sm:$0x10] %vm4741, %v4696
    %4749 = vst.msk [vmem:[%s4706 + $0x6f] sm:$0x10] %vm4741, %v4697
    %4750 = vst.msk [vmem:[%s4706 + $0x9f] sm:$0x10] %vm4741, %v4698
    %4751 = vst.msk [vmem:[%s4706 + $0xaf] sm:$0x10] %vm4741, %v4699
    %4752 = vst.msk [vmem:[%s4706 + $0xbf] sm:$0x10] %vm4741, %v4700
    %4753 = vst.msk [vmem:[%s4706 + $0xcf] sm:$0x10] %vm4741, %v4701
    %4754 = vst.msk [vmem:[%s4706 + $0xdf] sm:$0x10] %vm4741, %v4702
    %4755 = vst.msk [vmem:[%s4706 + $0xef] sm:$0x10] %vm4741, %v4703
    %4756 = vst.msk [vmem:[%s4706 + $0xff] sm:$0x10] %vm4741, %v4704
    %4757 = vst.msk [vmem:[%s4706 + $0x10f] sm:$0x10] %vm4741, %v4705
    %vm4758 = vcmask 260102
    %4759 = vst.msk [vmem:[%s4706 - $0x2] sm:$0x40] %vm4758, %v4690
    %4760 = vst.msk [vmem:[%s4706 + $0xe] sm:$0x40] %vm4758, %v4691
    %4761 = vst.msk [vmem:[%s4706 + $0x1e] sm:$0x40] %vm4758, %v4692
    %4762 = vst.msk [vmem:[%s4706 + $0x2e] sm:$0x40] %vm4758, %v4693
    %4763 = vst.msk [vmem:[%s4706 + $0x3e] sm:$0x40] %vm4758, %v4694
    %4764 = vst.msk [vmem:[%s4706 + $0x4e] sm:$0x40] %vm4758, %v4695
    %4765 = vst.msk [vmem:[%s4706 + $0x5e] sm:$0x40] %vm4758, %v4696
    %4766 = vst.msk [vmem:[%s4706 + $0x6e] sm:$0x40] %vm4758, %v4697
    %4767 = vst.msk [vmem:[%s4706 + $0x9e] sm:$0x40] %vm4758, %v4698
    %4768 = vst.msk [vmem:[%s4706 + $0xae] sm:$0x40] %vm4758, %v4699
    %4769 = vst.msk [vmem:[%s4706 + $0xbe] sm:$0x40] %vm4758, %v4700
    %4770 = vst.msk [vmem:[%s4706 + $0xce] sm:$0x40] %vm4758, %v4701
    %4771 = vst.msk [vmem:[%s4706 + $0xde] sm:$0x40] %vm4758, %v4702
    %4772 = vst.msk [vmem:[%s4706 + $0xee] sm:$0x40] %vm4758, %v4703
    %4773 = vst.msk [vmem:[%s4706 + $0xfe] sm:$0x40] %vm4758, %v4704
    %4774 = vst.msk [vmem:[%s4706 + $0x10e] sm:$0x40] %vm4758, %v4705
    %v4791 = vrot.slane %v4611, 1
    %v4792 = vrot.slane %v4613, 1
    %v4793 = vrot.slane %v4615, 1
    %v4794 = vrot.slane %v4617, 1
    %v4795 = vrot.slane %v4619, 1
    %v4796 = vrot.slane %v4621, 1
    %v4797 = vrot.slane %v4623, 1
    %v4798 = vrot.slane %v4625, 1
    %v4799 = vrot.slane %v4627, 1
    %v4800 = vrot.slane %v4629, 1
    %v4801 = vrot.slane %v4631, 1
    %v4802 = vrot.slane %v4633, 1
    %v4803 = vrot.slane %v4635, 1
    %v4804 = vrot.slane %v4637, 1
    %v4805 = vrot.slane %v4639, 1
    %v4806 = vrot.slane %v4641, 1
    %v4823 = vmax.f32 %v4611, %v4791
    %v4824 = vmax.f32 %v4613, %v4792
    %v4825 = vmax.f32 %v4615, %v4793
    %v4826 = vmax.f32 %v4617, %v4794
    %v4827 = vmax.f32 %v4619, %v4795
    %v4828 = vmax.f32 %v4621, %v4796
    %v4829 = vmax.f32 %v4623, %v4797
    %v4830 = vmax.f32 %v4625, %v4798
    %v4831 = vmax.f32 %v4627, %v4799
    %v4832 = vmax.f32 %v4629, %v4800
    %v4833 = vmax.f32 %v4631, %v4801
    %v4834 = vmax.f32 %v4633, %v4802
    %v4835 = vmax.f32 %v4635, %v4803
    %v4836 = vmax.f32 %v4637, %v4804
    %v4837 = vmax.f32 %v4639, %v4805
    %v4838 = vmax.f32 %v4641, %v4806
    %4839 = vst.msk [vmem:[%s4706 + $0x5] sm:$0x1] %vm4707, %v4823
    %4840 = vst.msk [vmem:[%s4706 + $0x15] sm:$0x1] %vm4707, %v4824
    %4841 = vst.msk [vmem:[%s4706 + $0x25] sm:$0x1] %vm4707, %v4825
    %4842 = vst.msk [vmem:[%s4706 + $0x35] sm:$0x1] %vm4707, %v4826
    %4843 = vst.msk [vmem:[%s4706 + $0x45] sm:$0x1] %vm4707, %v4827
    %4844 = vst.msk [vmem:[%s4706 + $0x55] sm:$0x1] %vm4707, %v4828
    %4845 = vst.msk [vmem:[%s4706 + $0x65] sm:$0x1] %vm4707, %v4829
    %4846 = vst.msk [vmem:[%s4706 + $0x75] sm:$0x1] %vm4707, %v4830
    %4847 = vst.msk [vmem:[%s4706 + $0xa5] sm:$0x1] %vm4707, %v4831
    %4848 = vst.msk [vmem:[%s4706 + $0xb5] sm:$0x1] %vm4707, %v4832
    %4849 = vst.msk [vmem:[%s4706 + $0xc5] sm:$0x1] %vm4707, %v4833
    %4850 = vst.msk [vmem:[%s4706 + $0xd5] sm:$0x1] %vm4707, %v4834
    %4851 = vst.msk [vmem:[%s4706 + $0xe5] sm:$0x1] %vm4707, %v4835
    %4852 = vst.msk [vmem:[%s4706 + $0xf5] sm:$0x1] %vm4707, %v4836
    %4853 = vst.msk [vmem:[%s4706 + $0x105] sm:$0x1] %vm4707, %v4837
    %4854 = vst.msk [vmem:[%s4706 + $0x115] sm:$0x1] %vm4707, %v4838
    %4855 = vst.msk [vmem:[%s4706 + $0x4] sm:$0x4] %vm4724, %v4823
    %4856 = vst.msk [vmem:[%s4706 + $0x14] sm:$0x4] %vm4724, %v4824
    %4857 = vst.msk [vmem:[%s4706 + $0x24] sm:$0x4] %vm4724, %v4825
    %4858 = vst.msk [vmem:[%s4706 + $0x34] sm:$0x4] %vm4724, %v4826
    %4859 = vst.msk [vmem:[%s4706 + $0x44] sm:$0x4] %vm4724, %v4827
    %4860 = vst.msk [vmem:[%s4706 + $0x54] sm:$0x4] %vm4724, %v4828
    %4861 = vst.msk [vmem:[%s4706 + $0x64] sm:$0x4] %vm4724, %v4829
    %4862 = vst.msk [vmem:[%s4706 + $0x74] sm:$0x4] %vm4724, %v4830
    %4863 = vst.msk [vmem:[%s4706 + $0xa4] sm:$0x4] %vm4724, %v4831
    %4864 = vst.msk [vmem:[%s4706 + $0xb4] sm:$0x4] %vm4724, %v4832
    %4865 = vst.msk [vmem:[%s4706 + $0xc4] sm:$0x4] %vm4724, %v4833
    %4866 = vst.msk [vmem:[%s4706 + $0xd4] sm:$0x4] %vm4724, %v4834
    %4867 = vst.msk [vmem:[%s4706 + $0xe4] sm:$0x4] %vm4724, %v4835
    %4868 = vst.msk [vmem:[%s4706 + $0xf4] sm:$0x4] %vm4724, %v4836
    %4869 = vst.msk [vmem:[%s4706 + $0x104] sm:$0x4] %vm4724, %v4837
    %4870 = vst.msk [vmem:[%s4706 + $0x114] sm:$0x4] %vm4724, %v4838
    %4871 = vst.msk [vmem:[%s4706 + $0x3] sm:$0x10] %vm4741, %v4823
    %4872 = vst.msk [vmem:[%s4706 + $0x13] sm:$0x10] %vm4741, %v4824
    %4873 = vst.msk [vmem:[%s4706 + $0x23] sm:$0x10] %vm4741, %v4825
    %4874 = vst.msk [vmem:[%s4706 + $0x33] sm:$0x10] %vm4741, %v4826
    %4875 = vst.msk [vmem:[%s4706 + $0x43] sm:$0x10] %vm4741, %v4827
    %4876 = vst.msk [vmem:[%s4706 + $0x53] sm:$0x10] %vm4741, %v4828
    %4877 = vst.msk [vmem:[%s4706 + $0x63] sm:$0x10] %vm4741, %v4829
    %4878 = vst.msk [vmem:[%s4706 + $0x73] sm:$0x10] %vm4741, %v4830
    %4879 = vst.msk [vmem:[%s4706 + $0xa3] sm:$0x10] %vm4741, %v4831
    %4880 = vst.msk [vmem:[%s4706 + $0xb3] sm:$0x10] %vm4741, %v4832
    %4881 = vst.msk [vmem:[%s4706 + $0xc3] sm:$0x10] %vm4741, %v4833
    %4882 = vst.msk [vmem:[%s4706 + $0xd3] sm:$0x10] %vm4741, %v4834
    %4883 = vst.msk [vmem:[%s4706 + $0xe3] sm:$0x10] %vm4741, %v4835
    %4884 = vst.msk [vmem:[%s4706 + $0xf3] sm:$0x10] %vm4741, %v4836
    %4885 = vst.msk [vmem:[%s4706 + $0x103] sm:$0x10] %vm4741, %v4837
    %4886 = vst.msk [vmem:[%s4706 + $0x113] sm:$0x10] %vm4741, %v4838
    %4887 = vst.msk [vmem:[%s4706 + $0x2] sm:$0x40] %vm4758, %v4823
    %4888 = vst.msk [vmem:[%s4706 + $0x12] sm:$0x40] %vm4758, %v4824
    %4889 = vst.msk [vmem:[%s4706 + $0x22] sm:$0x40] %vm4758, %v4825
    %4890 = vst.msk [vmem:[%s4706 + $0x32] sm:$0x40] %vm4758, %v4826
    %4891 = vst.msk [vmem:[%s4706 + $0x42] sm:$0x40] %vm4758, %v4827
    %4892 = vst.msk [vmem:[%s4706 + $0x52] sm:$0x40] %vm4758, %v4828
    %4893 = vst.msk [vmem:[%s4706 + $0x62] sm:$0x40] %vm4758, %v4829
    %4894 = vst.msk [vmem:[%s4706 + $0x72] sm:$0x40] %vm4758, %v4830
    %4895 = vst.msk [vmem:[%s4706 + $0xa2] sm:$0x40] %vm4758, %v4831
    %4896 = vst.msk [vmem:[%s4706 + $0xb2] sm:$0x40] %vm4758, %v4832
    %4897 = vst.msk [vmem:[%s4706 + $0xc2] sm:$0x40] %vm4758, %v4833
    %4898 = vst.msk [vmem:[%s4706 + $0xd2] sm:$0x40] %vm4758, %v4834
    %4899 = vst.msk [vmem:[%s4706 + $0xe2] sm:$0x40] %vm4758, %v4835
    %4900 = vst.msk [vmem:[%s4706 + $0xf2] sm:$0x40] %vm4758, %v4836
    %4901 = vst.msk [vmem:[%s4706 + $0x102] sm:$0x40] %vm4758, %v4837
    %4902 = vst.msk [vmem:[%s4706 + $0x112] sm:$0x40] %vm4758, %v4838
    %v4903 = vld [vmem:[#allocation4] sm:$0xff]
    %v4904 = vld [vmem:[#allocation4 + $0x10] sm:$0xff]
    %v4905 = vld [vmem:[#allocation4 + $0x20] sm:$0xff]
    %v4906 = vld [vmem:[#allocation4 + $0x30] sm:$0xff]
    %v4907 = vld [vmem:[#allocation4 + $0x40] sm:$0xff]
    %v4908 = vld [vmem:[#allocation4 + $0x50] sm:$0xff]
    %v4909 = vld [vmem:[#allocation4 + $0x60] sm:$0xff]
    %v4910 = vld [vmem:[#allocation4 + $0x70] sm:$0xff]
    %v4911 = vld [vmem:[#allocation4 + $0xa0] sm:$0xff]
    %v4912 = vld [vmem:[#allocation4 + $0xb0] sm:$0xff]
    %v4913 = vld [vmem:[#allocation4 + $0xc0] sm:$0xff]
    %v4914 = vld [vmem:[#allocation4 + $0xd0] sm:$0xff]
    %v4915 = vld [vmem:[#allocation4 + $0xe0] sm:$0xff]
    %v4916 = vld [vmem:[#allocation4 + $0xf0] sm:$0xff]
    %v4917 = vld [vmem:[#allocation4 + $0x100] sm:$0xff]
    %v4918 = vld [vmem:[#allocation4 + $0x110] sm:$0xff]
    %4919 = vst.msk [vmem:[#allocation5] sm:$0xff] %vm156, %v4903
    %4920 = vst.msk [vmem:[#allocation5 + $0x18] sm:$0xff] %vm156, %v4904
    %4921 = vst.msk [vmem:[#allocation5 + $0x30] sm:$0xff] %vm156, %v4905
    %4922 = vst.msk [vmem:[#allocation5 + $0x48] sm:$0xff] %vm156, %v4906
    %4923 = vst.msk [vmem:[#allocation5 + $0x60] sm:$0xff] %vm156, %v4907
    %4924 = vst.msk [vmem:[#allocation5 + $0x78] sm:$0xff] %vm156, %v4908
    %4925 = vst.msk [vmem:[#allocation5 + $0x90] sm:$0xff] %vm156, %v4909
    %4926 = vst.msk [vmem:[#allocation5 + $0xa8] sm:$0xff] %vm156, %v4910
    %4927 = vst.msk [vmem:[#allocation5 + $0xc0] sm:$0xff] %vm156, %v4911
    %4928 = vst.msk [vmem:[#allocation5 + $0xd8] sm:$0xff] %vm156, %v4912
    %4929 = vst.msk [vmem:[#allocation5 + $0xf0] sm:$0xff] %vm156, %v4913
    %4930 = vst.msk [vmem:[#allocation5 + $0x108] sm:$0xff] %vm156, %v4914
    %4931 = vst.msk [vmem:[#allocation5 + $0x120] sm:$0xff] %vm156, %v4915
    %4932 = vst.msk [vmem:[#allocation5 + $0x138] sm:$0xff] %vm156, %v4916
    %4933 = vst.msk [vmem:[#allocation5 + $0x150] sm:$0xff] %vm156, %v4917
    %4934 = vst.msk [vmem:[#allocation5 + $0x168] sm:$0xff] %vm156, %v4918
    %v4935 = vld [vmem:[#allocation4 + $0x1] sm:$0xff]
    %v4936 = vld [vmem:[#allocation4 + $0x11] sm:$0xff]
    %v4937 = vld [vmem:[#allocation4 + $0x21] sm:$0xff]
    %v4938 = vld [vmem:[#allocation4 + $0x31] sm:$0xff]
    %v4939 = vld [vmem:[#allocation4 + $0x41] sm:$0xff]
    %v4940 = vld [vmem:[#allocation4 + $0x51] sm:$0xff]
    %v4941 = vld [vmem:[#allocation4 + $0x61] sm:$0xff]
    %v4942 = vld [vmem:[#allocation4 + $0x71] sm:$0xff]
    %v4943 = vld [vmem:[#allocation4 + $0xa1] sm:$0xff]
    %v4944 = vld [vmem:[#allocation4 + $0xb1] sm:$0xff]
    %v4945 = vld [vmem:[#allocation4 + $0xc1] sm:$0xff]
    %v4946 = vld [vmem:[#allocation4 + $0xd1] sm:$0xff]
    %v4947 = vld [vmem:[#allocation4 + $0xe1] sm:$0xff]
    %v4948 = vld [vmem:[#allocation4 + $0xf1] sm:$0xff]
    %v4949 = vld [vmem:[#allocation4 + $0x101] sm:$0xff]
    %v4950 = vld [vmem:[#allocation4 + $0x111] sm:$0xff]
    %4967 = vrot.lane.b32.xlu0 %v4935, 32
    %v4968 = vpop.permute.xlu0 %4967
    %4969 = vrot.lane.b32.xlu0 %v4936, 32
    %v4970 = vpop.permute.xlu0 %4969
    %4971 = vrot.lane.b32.xlu0 %v4937, 32
    %v4972 = vpop.permute.xlu0 %4971
    %4973 = vrot.lane.b32.xlu0 %v4938, 32
    %v4974 = vpop.permute.xlu0 %4973
    %4975 = vrot.lane.b32.xlu0 %v4939, 32
    %v4976 = vpop.permute.xlu0 %4975
    %4977 = vrot.lane.b32.xlu0 %v4940, 32
    %v4978 = vpop.permute.xlu0 %4977
    %4979 = vrot.lane.b32.xlu0 %v4941, 32
    %v4980 = vpop.permute.xlu0 %4979
    %4981 = vrot.lane.b32.xlu0 %v4942, 32
    %v4982 = vpop.permute.xlu0 %4981
    %4983 = vrot.lane.b32.xlu0 %v4943, 32
    %v4984 = vpop.permute.xlu0 %4983
    %4985 = vrot.lane.b32.xlu0 %v4944, 32
    %v4986 = vpop.permute.xlu0 %4985
    %4987 = vrot.lane.b32.xlu0 %v4945, 32
    %v4988 = vpop.permute.xlu0 %4987
    %4989 = vrot.lane.b32.xlu0 %v4946, 32
    %v4990 = vpop.permute.xlu0 %4989
    %4991 = vrot.lane.b32.xlu0 %v4947, 32
    %v4992 = vpop.permute.xlu0 %4991
    %4993 = vrot.lane.b32.xlu0 %v4948, 32
    %v4994 = vpop.permute.xlu0 %4993
    %4995 = vrot.lane.b32.xlu0 %v4949, 32
    %v4996 = vpop.permute.xlu0 %4995
    %4997 = vrot.lane.b32.xlu0 %v4950, 32
    %v4998 = vpop.permute.xlu0 %4997
    %vm5015 = vcmask 523520
    %5016 = vst.msk [vmem:[#allocation5] sm:$0xff] %vm5015, %v4968
    %5017 = vst.msk [vmem:[#allocation5 + $0x18] sm:$0xff] %vm5015, %v4970
    %5018 = vst.msk [vmem:[#allocation5 + $0x30] sm:$0xff] %vm5015, %v4972
    %5019 = vst.msk [vmem:[#allocation5 + $0x48] sm:$0xff] %vm5015, %v4974
    %5020 = vst.msk [vmem:[#allocation5 + $0x60] sm:$0xff] %vm5015, %v4976
    %5021 = vst.msk [vmem:[#allocation5 + $0x78] sm:$0xff] %vm5015, %v4978
    %5022 = vst.msk [vmem:[#allocation5 + $0x90] sm:$0xff] %vm5015, %v4980
    %5023 = vst.msk [vmem:[#allocation5 + $0xa8] sm:$0xff] %vm5015, %v4982
    %5024 = vst.msk [vmem:[#allocation5 + $0xc0] sm:$0xff] %vm5015, %v4984
    %5025 = vst.msk [vmem:[#allocation5 + $0xd8] sm:$0xff] %vm5015, %v4986
    %5026 = vst.msk [vmem:[#allocation5 + $0xf0] sm:$0xff] %vm5015, %v4988
    %5027 = vst.msk [vmem:[#allocation5 + $0x108] sm:$0xff] %vm5015, %v4990
    %5028 = vst.msk [vmem:[#allocation5 + $0x120] sm:$0xff] %vm5015, %v4992
    %5029 = vst.msk [vmem:[#allocation5 + $0x138] sm:$0xff] %vm5015, %v4994
    %5030 = vst.msk [vmem:[#allocation5 + $0x150] sm:$0xff] %vm5015, %v4996
    %5031 = vst.msk [vmem:[#allocation5 + $0x168] sm:$0xff] %vm5015, %v4998
    %v5032 = vld [vmem:[#allocation4 + $0x2] sm:$0xff]
    %v5033 = vld [vmem:[#allocation4 + $0x12] sm:$0xff]
    %v5034 = vld [vmem:[#allocation4 + $0x22] sm:$0xff]
    %v5035 = vld [vmem:[#allocation4 + $0x32] sm:$0xff]
    %v5036 = vld [vmem:[#allocation4 + $0x42] sm:$0xff]
    %v5037 = vld [vmem:[#allocation4 + $0x52] sm:$0xff]
    %v5038 = vld [vmem:[#allocation4 + $0x62] sm:$0xff]
    %v5039 = vld [vmem:[#allocation4 + $0x72] sm:$0xff]
    %v5040 = vld [vmem:[#allocation4 + $0xa2] sm:$0xff]
    %v5041 = vld [vmem:[#allocation4 + $0xb2] sm:$0xff]
    %v5042 = vld [vmem:[#allocation4 + $0xc2] sm:$0xff]
    %v5043 = vld [vmem:[#allocation4 + $0xd2] sm:$0xff]
    %v5044 = vld [vmem:[#allocation4 + $0xe2] sm:$0xff]
    %v5045 = vld [vmem:[#allocation4 + $0xf2] sm:$0xff]
    %v5046 = vld [vmem:[#allocation4 + $0x102] sm:$0xff]
    %v5047 = vld [vmem:[#allocation4 + $0x112] sm:$0xff]
    %5064 = vrot.lane.b32.xlu0 %v5032, 64
    %v5065 = vpop.permute.xlu0 %5064
    %5066 = vrot.lane.b32.xlu0 %v5033, 64
    %v5067 = vpop.permute.xlu0 %5066
    %5068 = vrot.lane.b32.xlu0 %v5034, 64
    %v5069 = vpop.permute.xlu0 %5068
    %5070 = vrot.lane.b32.xlu0 %v5035, 64
    %v5071 = vpop.permute.xlu0 %5070
    %5072 = vrot.lane.b32.xlu0 %v5036, 64
    %v5073 = vpop.permute.xlu0 %5072
    %5074 = vrot.lane.b32.xlu0 %v5037, 64
    %v5075 = vpop.permute.xlu0 %5074
    %5076 = vrot.lane.b32.xlu0 %v5038, 64
    %v5077 = vpop.permute.xlu0 %5076
    %5078 = vrot.lane.b32.xlu0 %v5039, 64
    %v5079 = vpop.permute.xlu0 %5078
    %5080 = vrot.lane.b32.xlu0 %v5040, 64
    %v5081 = vpop.permute.xlu0 %5080
    %5082 = vrot.lane.b32.xlu0 %v5041, 64
    %v5083 = vpop.permute.xlu0 %5082
    %5084 = vrot.lane.b32.xlu0 %v5042, 64
    %v5085 = vpop.permute.xlu0 %5084
    %5086 = vrot.lane.b32.xlu0 %v5043, 64
    %v5087 = vpop.permute.xlu0 %5086
    %5088 = vrot.lane.b32.xlu0 %v5044, 64
    %v5089 = vpop.permute.xlu0 %5088
    %5090 = vrot.lane.b32.xlu0 %v5045, 64
    %v5091 = vpop.permute.xlu0 %5090
    %5092 = vrot.lane.b32.xlu0 %v5046, 64
    %v5093 = vpop.permute.xlu0 %5092
    %5094 = vrot.lane.b32.xlu0 %v5047, 64
    %v5095 = vpop.permute.xlu0 %5094
    %vm5112 = vcmask 785920
    %5113 = vst.msk [vmem:[#allocation5] sm:$0xff] %vm5112, %v5065
    %5114 = vst.msk [vmem:[#allocation5 + $0x18] sm:$0xff] %vm5112, %v5067
    %5115 = vst.msk [vmem:[#allocation5 + $0x30] sm:$0xff] %vm5112, %v5069
    %5116 = vst.msk [vmem:[#allocation5 + $0x48] sm:$0xff] %vm5112, %v5071
    %5117 = vst.msk [vmem:[#allocation5 + $0x60] sm:$0xff] %vm5112, %v5073
    %5118 = vst.msk [vmem:[#allocation5 + $0x78] sm:$0xff] %vm5112, %v5075
    %5119 = vst.msk [vmem:[#allocation5 + $0x90] sm:$0xff] %vm5112, %v5077
    %5120 = vst.msk [vmem:[#allocation5 + $0xa8] sm:$0xff] %vm5112, %v5079
    %5121 = vst.msk [vmem:[#allocation5 + $0xc0] sm:$0xff] %vm5112, %v5081
    %5122 = vst.msk [vmem:[#allocation5 + $0xd8] sm:$0xff] %vm5112, %v5083
    %5123 = vst.msk [vmem:[#allocation5 + $0xf0] sm:$0xff] %vm5112, %v5085
    %5124 = vst.msk [vmem:[#allocation5 + $0x108] sm:$0xff] %vm5112, %v5087
    %5125 = vst.msk [vmem:[#allocation5 + $0x120] sm:$0xff] %vm5112, %v5089
    %5126 = vst.msk [vmem:[#allocation5 + $0x138] sm:$0xff] %vm5112, %v5091
    %5127 = vst.msk [vmem:[#allocation5 + $0x150] sm:$0xff] %vm5112, %v5093
    %5128 = vst.msk [vmem:[#allocation5 + $0x168] sm:$0xff] %vm5112, %v5095
    %v5129 = vld [vmem:[%s4706] sm:$0xff]
    %v5130 = vld [vmem:[%s4706 + $0x10] sm:$0xff]
    %v5131 = vld [vmem:[%s4706 + $0x20] sm:$0xff]
    %v5132 = vld [vmem:[%s4706 + $0x30] sm:$0xff]
    %v5133 = vld [vmem:[%s4706 + $0x40] sm:$0xff]
    %v5134 = vld [vmem:[%s4706 + $0x50] sm:$0xff]
    %v5135 = vld [vmem:[%s4706 + $0x60] sm:$0xff]
    %v5136 = vld [vmem:[%s4706 + $0x70] sm:$0xff]
    %v5137 = vld [vmem:[%s4706 + $0xa0] sm:$0xff]
    %v5138 = vld [vmem:[%s4706 + $0xb0] sm:$0xff]
    %v5139 = vld [vmem:[%s4706 + $0xc0] sm:$0xff]
    %v5140 = vld [vmem:[%s4706 + $0xd0] sm:$0xff]
    %v5141 = vld [vmem:[%s4706 + $0xe0] sm:$0xff]
    %v5142 = vld [vmem:[%s4706 + $0xf0] sm:$0xff]
    %v5143 = vld [vmem:[%s4706 + $0x100] sm:$0xff]
    %v5144 = vld [vmem:[%s4706 + $0x110] sm:$0xff]
    %5161 = vrot.lane.b32.xlu0 %v5129, 96
    %v5162 = vpop.permute.xlu0 %5161
    %5163 = vrot.lane.b32.xlu0 %v5130, 96
    %v5164 = vpop.permute.xlu0 %5163
    %5165 = vrot.lane.b32.xlu0 %v5131, 96
    %v5166 = vpop.permute.xlu0 %5165
    %5167 = vrot.lane.b32.xlu0 %v5132, 96
    %v5168 = vpop.permute.xlu0 %5167
    %5169 = vrot.lane.b32.xlu0 %v5133, 96
    %v5170 = vpop.permute.xlu0 %5169
    %5171 = vrot.lane.b32.xlu0 %v5134, 96
    %v5172 = vpop.permute.xlu0 %5171
    %5173 = vrot.lane.b32.xlu0 %v5135, 96
    %v5174 = vpop.permute.xlu0 %5173
    %5175 = vrot.lane.b32.xlu0 %v5136, 96
    %v5176 = vpop.permute.xlu0 %5175
    %5177 = vrot.lane.b32.xlu0 %v5137, 96
    %v5178 = vpop.permute.xlu0 %5177
    %5179 = vrot.lane.b32.xlu0 %v5138, 96
    %v5180 = vpop.permute.xlu0 %5179
    %5181 = vrot.lane.b32.xlu0 %v5139, 96
    %v5182 = vpop.permute.xlu0 %5181
    %5183 = vrot.lane.b32.xlu0 %v5140, 96
    %v5184 = vpop.permute.xlu0 %5183
    %5185 = vrot.lane.b32.xlu0 %v5141, 96
    %v5186 = vpop.permute.xlu0 %5185
    %5187 = vrot.lane.b32.xlu0 %v5142, 96
    %v5188 = vpop.permute.xlu0 %5187
    %5189 = vrot.lane.b32.xlu0 %v5143, 96
    %v5190 = vpop.permute.xlu0 %5189
    %5191 = vrot.lane.b32.xlu0 %v5144, 96
    %v5192 = vpop.permute.xlu0 %5191
    %vm5209 = vcmask 1048320
    %5210 = vst.msk [vmem:[#allocation5] sm:$0xff] %vm5209, %v5162
    %5211 = vst.msk [vmem:[#allocation5 + $0x18] sm:$0xff] %vm5209, %v5164
    %5212 = vst.msk [vmem:[#allocation5 + $0x30] sm:$0xff] %vm5209, %v5166
    %5213 = vst.msk [vmem:[#allocation5 + $0x48] sm:$0xff] %vm5209, %v5168
    %5214 = vst.msk [vmem:[#allocation5 + $0x60] sm:$0xff] %vm5209, %v5170
    %5215 = vst.msk [vmem:[#allocation5 + $0x78] sm:$0xff] %vm5209, %v5172
    %5216 = vst.msk [vmem:[#allocation5 + $0x90] sm:$0xff] %vm5209, %v5174
    %5217 = vst.msk [vmem:[#allocation5 + $0xa8] sm:$0xff] %vm5209, %v5176
    %5218 = vst.msk [vmem:[#allocation5 + $0xc0] sm:$0xff] %vm5209, %v5178
    %5219 = vst.msk [vmem:[#allocation5 + $0xd8] sm:$0xff] %vm5209, %v5180
    %5220 = vst.msk [vmem:[#allocation5 + $0xf0] sm:$0xff] %vm5209, %v5182
    %5221 = vst.msk [vmem:[#allocation5 + $0x108] sm:$0xff] %vm5209, %v5184
    %5222 = vst.msk [vmem:[#allocation5 + $0x120] sm:$0xff] %vm5209, %v5186
    %5223 = vst.msk [vmem:[#allocation5 + $0x138] sm:$0xff] %vm5209, %v5188
    %5224 = vst.msk [vmem:[#allocation5 + $0x150] sm:$0xff] %vm5209, %v5190
    %5225 = vst.msk [vmem:[#allocation5 + $0x168] sm:$0xff] %vm5209, %v5192
    %v5226 = vld [vmem:[%s4706 + $0x1] sm:$0xff]
    %v5227 = vld [vmem:[%s4706 + $0x11] sm:$0xff]
    %v5228 = vld [vmem:[%s4706 + $0x21] sm:$0xff]
    %v5229 = vld [vmem:[%s4706 + $0x31] sm:$0xff]
    %v5230 = vld [vmem:[%s4706 + $0x41] sm:$0xff]
    %v5231 = vld [vmem:[%s4706 + $0x51] sm:$0xff]
    %v5232 = vld [vmem:[%s4706 + $0x61] sm:$0xff]
    %v5233 = vld [vmem:[%s4706 + $0x71] sm:$0xff]
    %v5234 = vld [vmem:[%s4706 + $0xa1] sm:$0xff]
    %v5235 = vld [vmem:[%s4706 + $0xb1] sm:$0xff]
    %v5236 = vld [vmem:[%s4706 + $0xc1] sm:$0xff]
    %v5237 = vld [vmem:[%s4706 + $0xd1] sm:$0xff]
    %v5238 = vld [vmem:[%s4706 + $0xe1] sm:$0xff]
    %v5239 = vld [vmem:[%s4706 + $0xf1] sm:$0xff]
    %v5240 = vld [vmem:[%s4706 + $0x101] sm:$0xff]
    %v5241 = vld [vmem:[%s4706 + $0x111] sm:$0xff]
    %5242 = vst.msk [vmem:[#allocation5 + $0x8] sm:$0xff] %vm156, %v5226
    %5243 = vst.msk [vmem:[#allocation5 + $0x20] sm:$0xff] %vm156, %v5227
    %5244 = vst.msk [vmem:[#allocation5 + $0x38] sm:$0xff] %vm156, %v5228
    %5245 = vst.msk [vmem:[#allocation5 + $0x50] sm:$0xff] %vm156, %v5229
    %5246 = vst.msk [vmem:[#allocation5 + $0x68] sm:$0xff] %vm156, %v5230
    %5247 = vst.msk [vmem:[#allocation5 + $0x80] sm:$0xff] %vm156, %v5231
    %5248 = vst.msk [vmem:[#allocation5 + $0x98] sm:$0xff] %vm156, %v5232
    %5249 = vst.msk [vmem:[#allocation5 + $0xb0] sm:$0xff] %vm156, %v5233
    %5250 = vst.msk [vmem:[#allocation5 + $0xc8] sm:$0xff] %vm156, %v5234
    %5251 = vst.msk [vmem:[#allocation5 + $0xe0] sm:$0xff] %vm156, %v5235
    %5252 = vst.msk [vmem:[#allocation5 + $0xf8] sm:$0xff] %vm156, %v5236
    %5253 = vst.msk [vmem:[#allocation5 + $0x110] sm:$0xff] %vm156, %v5237
    %5254 = vst.msk [vmem:[#allocation5 + $0x128] sm:$0xff] %vm156, %v5238
    %5255 = vst.msk [vmem:[#allocation5 + $0x140] sm:$0xff] %vm156, %v5239
    %5256 = vst.msk [vmem:[#allocation5 + $0x158] sm:$0xff] %vm156, %v5240
    %5257 = vst.msk [vmem:[#allocation5 + $0x170] sm:$0xff] %vm156, %v5241
    %v5258 = vld [vmem:[%s4706 + $0x2] sm:$0xff]
    %v5259 = vld [vmem:[%s4706 + $0x12] sm:$0xff]
    %v5260 = vld [vmem:[%s4706 + $0x22] sm:$0xff]
    %v5261 = vld [vmem:[%s4706 + $0x32] sm:$0xff]
    %v5262 = vld [vmem:[%s4706 + $0x42] sm:$0xff]
    %v5263 = vld [vmem:[%s4706 + $0x52] sm:$0xff]
    %v5264 = vld [vmem:[%s4706 + $0x62] sm:$0xff]
    %v5265 = vld [vmem:[%s4706 + $0x72] sm:$0xff]
    %v5266 = vld [vmem:[%s4706 + $0xa2] sm:$0xff]
    %v5267 = vld [vmem:[%s4706 + $0xb2] sm:$0xff]
    %v5268 = vld [vmem:[%s4706 + $0xc2] sm:$0xff]
    %v5269 = vld [vmem:[%s4706 + $0xd2] sm:$0xff]
    %v5270 = vld [vmem:[%s4706 + $0xe2] sm:$0xff]
    %v5271 = vld [vmem:[%s4706 + $0xf2] sm:$0xff]
    %v5272 = vld [vmem:[%s4706 + $0x102] sm:$0xff]
    %v5273 = vld [vmem:[%s4706 + $0x112] sm:$0xff]
    %5290 = vrot.lane.b32.xlu0 %v5258, 32
    %v5291 = vpop.permute.xlu0 %5290
    %5292 = vrot.lane.b32.xlu0 %v5259, 32
    %v5293 = vpop.permute.xlu0 %5292
    %5294 = vrot.lane.b32.xlu0 %v5260, 32
    %v5295 = vpop.permute.xlu0 %5294
    %5296 = vrot.lane.b32.xlu0 %v5261, 32
    %v5297 = vpop.permute.xlu0 %5296
    %5298 = vrot.lane.b32.xlu0 %v5262, 32
    %v5299 = vpop.permute.xlu0 %5298
    %5300 = vrot.lane.b32.xlu0 %v5263, 32
    %v5301 = vpop.permute.xlu0 %5300
    %5302 = vrot.lane.b32.xlu0 %v5264, 32
    %v5303 = vpop.permute.xlu0 %5302
    %5304 = vrot.lane.b32.xlu0 %v5265, 32
    %v5305 = vpop.permute.xlu0 %5304
    %5306 = vrot.lane.b32.xlu0 %v5266, 32
    %v5307 = vpop.permute.xlu0 %5306
    %5308 = vrot.lane.b32.xlu0 %v5267, 32
    %v5309 = vpop.permute.xlu0 %5308
    %5310 = vrot.lane.b32.xlu0 %v5268, 32
    %v5311 = vpop.permute.xlu0 %5310
    %5312 = vrot.lane.b32.xlu0 %v5269, 32
    %v5313 = vpop.permute.xlu0 %5312
    %5314 = vrot.lane.b32.xlu0 %v5270, 32
    %v5315 = vpop.permute.xlu0 %5314
    %5316 = vrot.lane.b32.xlu0 %v5271, 32
    %v5317 = vpop.permute.xlu0 %5316
    %5318 = vrot.lane.b32.xlu0 %v5272, 32
    %v5319 = vpop.permute.xlu0 %5318
    %5320 = vrot.lane.b32.xlu0 %v5273, 32
    %v5321 = vpop.permute.xlu0 %5320
    %5338 = vst.msk [vmem:[#allocation5 + $0x8] sm:$0xff] %vm5015, %v5291
    %5339 = vst.msk [vmem:[#allocation5 + $0x20] sm:$0xff] %vm5015, %v5293
    %5340 = vst.msk [vmem:[#allocation5 + $0x38] sm:$0xff] %vm5015, %v5295
    %5341 = vst.msk [vmem:[#allocation5 + $0x50] sm:$0xff] %vm5015, %v5297
    %5342 = vst.msk [vmem:[#allocation5 + $0x68] sm:$0xff] %vm5015, %v5299
    %5343 = vst.msk [vmem:[#allocation5 + $0x80] sm:$0xff] %vm5015, %v5301
    %5344 = vst.msk [vmem:[#allocation5 + $0x98] sm:$0xff] %vm5015, %v5303
    %5345 = vst.msk [vmem:[#allocation5 + $0xb0] sm:$0xff] %vm5015, %v5305
    %5346 = vst.msk [vmem:[#allocation5 + $0xc8] sm:$0xff] %vm5015, %v5307
    %5347 = vst.msk [vmem:[#allocation5 + $0xe0] sm:$0xff] %vm5015, %v5309
    %5348 = vst.msk [vmem:[#allocation5 + $0xf8] sm:$0xff] %vm5015, %v5311
    %5349 = vst.msk [vmem:[#allocation5 + $0x110] sm:$0xff] %vm5015, %v5313
    %5350 = vst.msk [vmem:[#allocation5 + $0x128] sm:$0xff] %vm5015, %v5315
    %5351 = vst.msk [vmem:[#allocation5 + $0x140] sm:$0xff] %vm5015, %v5317
    %5352 = vst.msk [vmem:[#allocation5 + $0x158] sm:$0xff] %vm5015, %v5319
    %5353 = vst.msk [vmem:[#allocation5 + $0x170] sm:$0xff] %vm5015, %v5321
    %s5354 = scalar_lea.vmem [#allocation4], 32
    %v5355 = vld [vmem:[%s5354] sm:$0xff]
    %v5356 = vld [vmem:[%s5354 + $0x10] sm:$0xff]
    %v5357 = vld [vmem:[%s5354 + $0x20] sm:$0xff]
    %v5358 = vld [vmem:[%s5354 + $0x30] sm:$0xff]
    %v5359 = vld [vmem:[%s5354 + $0x40] sm:$0xff]
    %v5360 = vld [vmem:[%s5354 + $0x50] sm:$0xff]
    %v5361 = vld [vmem:[%s5354 + $0x60] sm:$0xff]
    %v5362 = vld [vmem:[%s5354 + $0x70] sm:$0xff]
    %v5363 = vld [vmem:[%s5354 + $0xa0] sm:$0xff]
    %v5364 = vld [vmem:[%s5354 + $0xb0] sm:$0xff]
    %v5365 = vld [vmem:[%s5354 + $0xc0] sm:$0xff]
    %v5366 = vld [vmem:[%s5354 + $0xd0] sm:$0xff]
    %v5367 = vld [vmem:[%s5354 + $0xe0] sm:$0xff]
    %v5368 = vld [vmem:[%s5354 + $0xf0] sm:$0xff]
    %v5369 = vld [vmem:[%s5354 + $0x100] sm:$0xff]
    %v5370 = vld [vmem:[%s5354 + $0x110] sm:$0xff]
    %5387 = vrot.lane.b32.xlu0 %v5355, 64
    %v5388 = vpop.permute.xlu0 %5387
    %5389 = vrot.lane.b32.xlu0 %v5356, 64
    %v5390 = vpop.permute.xlu0 %5389
    %5391 = vrot.lane.b32.xlu0 %v5357, 64
    %v5392 = vpop.permute.xlu0 %5391
    %5393 = vrot.lane.b32.xlu0 %v5358, 64
    %v5394 = vpop.permute.xlu0 %5393
    %5395 = vrot.lane.b32.xlu0 %v5359, 64
    %v5396 = vpop.permute.xlu0 %5395
    %5397 = vrot.lane.b32.xlu0 %v5360, 64
    %v5398 = vpop.permute.xlu0 %5397
    %5399 = vrot.lane.b32.xlu0 %v5361, 64
    %v5400 = vpop.permute.xlu0 %5399
    %5401 = vrot.lane.b32.xlu0 %v5362, 64
    %v5402 = vpop.permute.xlu0 %5401
    %5403 = vrot.lane.b32.xlu0 %v5363, 64
    %v5404 = vpop.permute.xlu0 %5403
    %5405 = vrot.lane.b32.xlu0 %v5364, 64
    %v5406 = vpop.permute.xlu0 %5405
    %5407 = vrot.lane.b32.xlu0 %v5365, 64
    %v5408 = vpop.permute.xlu0 %5407
    %5409 = vrot.lane.b32.xlu0 %v5366, 64
    %v5410 = vpop.permute.xlu0 %5409
    %5411 = vrot.lane.b32.xlu0 %v5367, 64
    %v5412 = vpop.permute.xlu0 %5411
    %5413 = vrot.lane.b32.xlu0 %v5368, 64
    %v5414 = vpop.permute.xlu0 %5413
    %5415 = vrot.lane.b32.xlu0 %v5369, 64
    %v5416 = vpop.permute.xlu0 %5415
    %5417 = vrot.lane.b32.xlu0 %v5370, 64
    %v5418 = vpop.permute.xlu0 %5417
    %5435 = vst.msk [vmem:[#allocation5 + $0x8] sm:$0xff] %vm5112, %v5388
    %5436 = vst.msk [vmem:[#allocation5 + $0x20] sm:$0xff] %vm5112, %v5390
    %5437 = vst.msk [vmem:[#allocation5 + $0x38] sm:$0xff] %vm5112, %v5392
    %5438 = vst.msk [vmem:[#allocation5 + $0x50] sm:$0xff] %vm5112, %v5394
    %5439 = vst.msk [vmem:[#allocation5 + $0x68] sm:$0xff] %vm5112, %v5396
    %5440 = vst.msk [vmem:[#allocation5 + $0x80] sm:$0xff] %vm5112, %v5398
    %5441 = vst.msk [vmem:[#allocation5 + $0x98] sm:$0xff] %vm5112, %v5400
    %5442 = vst.msk [vmem:[#allocation5 + $0xb0] sm:$0xff] %vm5112, %v5402
    %5443 = vst.msk [vmem:[#allocation5 + $0xc8] sm:$0xff] %vm5112, %v5404
    %5444 = vst.msk [vmem:[#allocation5 + $0xe0] sm:$0xff] %vm5112, %v5406
    %5445 = vst.msk [vmem:[#allocation5 + $0xf8] sm:$0xff] %vm5112, %v5408
    %5446 = vst.msk [vmem:[#allocation5 + $0x110] sm:$0xff] %vm5112, %v5410
    %5447 = vst.msk [vmem:[#allocation5 + $0x128] sm:$0xff] %vm5112, %v5412
    %5448 = vst.msk [vmem:[#allocation5 + $0x140] sm:$0xff] %vm5112, %v5414
    %5449 = vst.msk [vmem:[#allocation5 + $0x158] sm:$0xff] %vm5112, %v5416
    %5450 = vst.msk [vmem:[#allocation5 + $0x170] sm:$0xff] %vm5112, %v5418
    %v5451 = vld [vmem:[%s5354 + $0x1] sm:$0xff]
    %v5452 = vld [vmem:[%s5354 + $0x11] sm:$0xff]
    %v5453 = vld [vmem:[%s5354 + $0x21] sm:$0xff]
    %v5454 = vld [vmem:[%s5354 + $0x31] sm:$0xff]
    %v5455 = vld [vmem:[%s5354 + $0x41] sm:$0xff]
    %v5456 = vld [vmem:[%s5354 + $0x51] sm:$0xff]
    %v5457 = vld [vmem:[%s5354 + $0x61] sm:$0xff]
    %v5458 = vld [vmem:[%s5354 + $0x71] sm:$0xff]
    %v5459 = vld [vmem:[%s5354 + $0xa1] sm:$0xff]
    %v5460 = vld [vmem:[%s5354 + $0xb1] sm:$0xff]
    %v5461 = vld [vmem:[%s5354 + $0xc1] sm:$0xff]
    %v5462 = vld [vmem:[%s5354 + $0xd1] sm:$0xff]
    %v5463 = vld [vmem:[%s5354 + $0xe1] sm:$0xff]
    %v5464 = vld [vmem:[%s5354 + $0xf1] sm:$0xff]
    %v5465 = vld [vmem:[%s5354 + $0x101] sm:$0xff]
    %v5466 = vld [vmem:[%s5354 + $0x111] sm:$0xff]
    %5483 = vrot.lane.b32.xlu0 %v5451, 96
    %v5484 = vpop.permute.xlu0 %5483
    %5485 = vrot.lane.b32.xlu0 %v5452, 96
    %v5486 = vpop.permute.xlu0 %5485
    %5487 = vrot.lane.b32.xlu0 %v5453, 96
    %v5488 = vpop.permute.xlu0 %5487
    %5489 = vrot.lane.b32.xlu0 %v5454, 96
    %v5490 = vpop.permute.xlu0 %5489
    %5491 = vrot.lane.b32.xlu0 %v5455, 96
    %v5492 = vpop.permute.xlu0 %5491
    %5493 = vrot.lane.b32.xlu0 %v5456, 96
    %v5494 = vpop.permute.xlu0 %5493
    %5495 = vrot.lane.b32.xlu0 %v5457, 96
    %v5496 = vpop.permute.xlu0 %5495
    %5497 = vrot.lane.b32.xlu0 %v5458, 96
    %v5498 = vpop.permute.xlu0 %5497
    %5499 = vrot.lane.b32.xlu0 %v5459, 96
    %v5500 = vpop.permute.xlu0 %5499
    %5501 = vrot.lane.b32.xlu0 %v5460, 96
    %v5502 = vpop.permute.xlu0 %5501
    %5503 = vrot.lane.b32.xlu0 %v5461, 96
    %v5504 = vpop.permute.xlu0 %5503
    %5505 = vrot.lane.b32.xlu0 %v5462, 96
    %v5506 = vpop.permute.xlu0 %5505
    %5507 = vrot.lane.b32.xlu0 %v5463, 96
    %v5508 = vpop.permute.xlu0 %5507
    %5509 = vrot.lane.b32.xlu0 %v5464, 96
    %v5510 = vpop.permute.xlu0 %5509
    %5511 = vrot.lane.b32.xlu0 %v5465, 96
    %v5512 = vpop.permute.xlu0 %5511
    %5513 = vrot.lane.b32.xlu0 %v5466, 96
    %v5514 = vpop.permute.xlu0 %5513
    %5531 = vst.msk [vmem:[#allocation5 + $0x8] sm:$0xff] %vm5209, %v5484
    %5532 = vst.msk [vmem:[#allocation5 + $0x20] sm:$0xff] %vm5209, %v5486
    %5533 = vst.msk [vmem:[#allocation5 + $0x38] sm:$0xff] %vm5209, %v5488
    %5534 = vst.msk [vmem:[#allocation5 + $0x50] sm:$0xff] %vm5209, %v5490
    %5535 = vst.msk [vmem:[#allocation5 + $0x68] sm:$0xff] %vm5209, %v5492
    %5536 = vst.msk [vmem:[#allocation5 + $0x80] sm:$0xff] %vm5209, %v5494
    %5537 = vst.msk [vmem:[#allocation5 + $0x98] sm:$0xff] %vm5209, %v5496
    %5538 = vst.msk [vmem:[#allocation5 + $0xb0] sm:$0xff] %vm5209, %v5498
    %5539 = vst.msk [vmem:[#allocation5 + $0xc8] sm:$0xff] %vm5209, %v5500
    %5540 = vst.msk [vmem:[#allocation5 + $0xe0] sm:$0xff] %vm5209, %v5502
    %5541 = vst.msk [vmem:[#allocation5 + $0xf8] sm:$0xff] %vm5209, %v5504
    %5542 = vst.msk [vmem:[#allocation5 + $0x110] sm:$0xff] %vm5209, %v5506
    %5543 = vst.msk [vmem:[#allocation5 + $0x128] sm:$0xff] %vm5209, %v5508
    %5544 = vst.msk [vmem:[#allocation5 + $0x140] sm:$0xff] %vm5209, %v5510
    %5545 = vst.msk [vmem:[#allocation5 + $0x158] sm:$0xff] %vm5209, %v5512
    %5546 = vst.msk [vmem:[#allocation5 + $0x170] sm:$0xff] %vm5209, %v5514
    %v5547 = vld [vmem:[%s5354 + $0x2] sm:$0xff]
    %v5548 = vld [vmem:[%s5354 + $0x12] sm:$0xff]
    %v5549 = vld [vmem:[%s5354 + $0x22] sm:$0xff]
    %v5550 = vld [vmem:[%s5354 + $0x32] sm:$0xff]
    %v5551 = vld [vmem:[%s5354 + $0x42] sm:$0xff]
    %v5552 = vld [vmem:[%s5354 + $0x52] sm:$0xff]
    %v5553 = vld [vmem:[%s5354 + $0x62] sm:$0xff]
    %v5554 = vld [vmem:[%s5354 + $0x72] sm:$0xff]
    %v5555 = vld [vmem:[%s5354 + $0xa2] sm:$0xff]
    %v5556 = vld [vmem:[%s5354 + $0xb2] sm:$0xff]
    %v5557 = vld [vmem:[%s5354 + $0xc2] sm:$0xff]
    %v5558 = vld [vmem:[%s5354 + $0xd2] sm:$0xff]
    %v5559 = vld [vmem:[%s5354 + $0xe2] sm:$0xff]
    %v5560 = vld [vmem:[%s5354 + $0xf2] sm:$0xff]
    %v5561 = vld [vmem:[%s5354 + $0x102] sm:$0xff]
    %v5562 = vld [vmem:[%s5354 + $0x112] sm:$0xff]
    %5563 = vst.msk [vmem:[#allocation5 + $0x10] sm:$0xff] %vm156, %v5547
    %5564 = vst.msk [vmem:[#allocation5 + $0x28] sm:$0xff] %vm156, %v5548
    %5565 = vst.msk [vmem:[#allocation5 + $0x40] sm:$0xff] %vm156, %v5549
    %5566 = vst.msk [vmem:[#allocation5 + $0x58] sm:$0xff] %vm156, %v5550
    %5567 = vst.msk [vmem:[#allocation5 + $0x70] sm:$0xff] %vm156, %v5551
    %5568 = vst.msk [vmem:[#allocation5 + $0x88] sm:$0xff] %vm156, %v5552
    %5569 = vst.msk [vmem:[#allocation5 + $0xa0] sm:$0xff] %vm156, %v5553
    %5570 = vst.msk [vmem:[#allocation5 + $0xb8] sm:$0xff] %vm156, %v5554
    %5571 = vst.msk [vmem:[#allocation5 + $0xd0] sm:$0xff] %vm156, %v5555
    %5572 = vst.msk [vmem:[#allocation5 + $0xe8] sm:$0xff] %vm156, %v5556
    %5573 = vst.msk [vmem:[#allocation5 + $0x100] sm:$0xff] %vm156, %v5557
    %5574 = vst.msk [vmem:[#allocation5 + $0x118] sm:$0xff] %vm156, %v5558
    %5575 = vst.msk [vmem:[#allocation5 + $0x130] sm:$0xff] %vm156, %v5559
    %5576 = vst.msk [vmem:[#allocation5 + $0x148] sm:$0xff] %vm156, %v5560
    %5577 = vst.msk [vmem:[#allocation5 + $0x160] sm:$0xff] %vm156, %v5561
    %5578 = vst.msk [vmem:[#allocation5 + $0x178] sm:$0xff] %vm156, %v5562
    %v5579 = vld [vmem:[#allocation5] sm:$0xff]
    %v5580 = vld [vmem:[#allocation5 + $0x8] sm:$0xff]
    %v5581 = vld [vmem:[#allocation5 + $0x10] sm:$0xff]
    %v5582 = vld [vmem:[#allocation5 + $0x18] sm:$0xff]
    %v5583 = vld [vmem:[#allocation5 + $0x20] sm:$0xff]
    %v5584 = vld [vmem:[#allocation5 + $0x28] sm:$0xff]
    %v5585 = vld [vmem:[#allocation5 + $0x30] sm:$0xff]
    %v5586 = vld [vmem:[#allocation5 + $0x38] sm:$0xff]
    %v5587 = vld [vmem:[#allocation5 + $0x40] sm:$0xff]
    %v5588 = vld [vmem:[#allocation5 + $0x48] sm:$0xff]
    %v5589 = vld [vmem:[#allocation5 + $0x50] sm:$0xff]
    %v5590 = vld [vmem:[#allocation5 + $0x58] sm:$0xff]
    %v5591 = vld [vmem:[#allocation5 + $0x60] sm:$0xff]
    %v5592 = vld [vmem:[#allocation5 + $0x68] sm:$0xff]
    %v5593 = vld [vmem:[#allocation5 + $0x70] sm:$0xff]
    %v5594 = vld [vmem:[#allocation5 + $0x78] sm:$0xff]
    %v5595 = vld [vmem:[#allocation5 + $0x80] sm:$0xff]
    %v5596 = vld [vmem:[#allocation5 + $0x88] sm:$0xff]
    %v5597 = vld [vmem:[#allocation5 + $0x90] sm:$0xff]
    %v5598 = vld [vmem:[#allocation5 + $0x98] sm:$0xff]
    %v5599 = vld [vmem:[#allocation5 + $0xa0] sm:$0xff]
    %v5600 = vld [vmem:[#allocation5 + $0xa8] sm:$0xff]
    %v5601 = vld [vmem:[#allocation5 + $0xb0] sm:$0xff]
    %v5602 = vld [vmem:[#allocation5 + $0xb8] sm:$0xff]
    %v5603 = vld [vmem:[#allocation5 + $0xc0] sm:$0xff]
    %v5604 = vld [vmem:[#allocation5 + $0xc8] sm:$0xff]
    %v5605 = vld [vmem:[#allocation5 + $0xd0] sm:$0xff]
    %v5606 = vld [vmem:[#allocation5 + $0xd8] sm:$0xff]
    %v5607 = vld [vmem:[#allocation5 + $0xe0] sm:$0xff]
    %v5608 = vld [vmem:[#allocation5 + $0xe8] sm:$0xff]
    %v5609 = vld [vmem:[#allocation5 + $0xf0] sm:$0xff]
    %v5610 = vld [vmem:[#allocation5 + $0xf8] sm:$0xff]
    %v5611 = vld [vmem:[#allocation5 + $0x100] sm:$0xff]
    %v5612 = vld [vmem:[#allocation5 + $0x108] sm:$0xff]
    %v5613 = vld [vmem:[#allocation5 + $0x110] sm:$0xff]
    %v5614 = vld [vmem:[#allocation5 + $0x118] sm:$0xff]
    %v5615 = vld [vmem:[#allocation5 + $0x120] sm:$0xff]
    %v5616 = vld [vmem:[#allocation5 + $0x128] sm:$0xff]
    %v5617 = vld [vmem:[#allocation5 + $0x130] sm:$0xff]
    %v5618 = vld [vmem:[#allocation5 + $0x138] sm:$0xff]
    %v5619 = vld [vmem:[#allocation5 + $0x140] sm:$0xff]
    %v5620 = vld [vmem:[#allocation5 + $0x148] sm:$0xff]
    %v5621 = vld [vmem:[#allocation5 + $0x150] sm:$0xff]
    %v5622 = vld [vmem:[#allocation5 + $0x158] sm:$0xff]
    %v5623 = vld [vmem:[#allocation5 + $0x160] sm:$0xff]
    %v5624 = vld [vmem:[#allocation5 + $0x168] sm:$0xff]
    %v5625 = vld [vmem:[#allocation5 + $0x170] sm:$0xff]
    %v5626 = vld [vmem:[#allocation5 + $0x178] sm:$0xff]
    %v5627 = vpack.c.bf16 %v5582, %v5579
    %v5628 = vpack.c.bf16 %v5583, %v5580
    %v5629 = vpack.c.bf16 %v5584, %v5581
    %v5630 = vpack.c.bf16 %v5588, %v5585
    %v5631 = vpack.c.bf16 %v5589, %v5586
    %v5632 = vpack.c.bf16 %v5590, %v5587
    %v5633 = vpack.c.bf16 %v5594, %v5591
    %v5634 = vpack.c.bf16 %v5595, %v5592
    %v5635 = vpack.c.bf16 %v5596, %v5593
    %v5636 = vpack.c.bf16 %v5600, %v5597
    %v5637 = vpack.c.bf16 %v5601, %v5598
    %v5638 = vpack.c.bf16 %v5602, %v5599
    %v5639 = vpack.c.bf16 %v5606, %v5603
    %v5640 = vpack.c.bf16 %v5607, %v5604
    %v5641 = vpack.c.bf16 %v5608, %v5605
    %v5642 = vpack.c.bf16 %v5612, %v5609
    %v5643 = vpack.c.bf16 %v5613, %v5610
    %v5644 = vpack.c.bf16 %v5614, %v5611
    %v5645 = vpack.c.bf16 %v5618, %v5615
    %v5646 = vpack.c.bf16 %v5619, %v5616
    %v5647 = vpack.c.bf16 %v5620, %v5617
    %v5648 = vpack.c.bf16 %v5624, %v5621
    %v5649 = vpack.c.bf16 %v5625, %v5622
    %v5650 = vpack.c.bf16 %v5626, %v5623
    %v5651 = vld [vmem:[%s4] sm:$0xf]
    %v5652 = vld [vmem:[%s4 + $0x4] sm:$0xf]
    %v5653 = vld [vmem:[%s4 + $0x8] sm:$0xf]
    %v5654 = vld [vmem:[%s4 + $0xc] sm:$0xf]
    %v5655 = vld [vmem:[%s4 + $0x10] sm:$0xf]
    %v5656 = vld [vmem:[%s4 + $0x14] sm:$0xf]
    %v5657 = vld [vmem:[%s4 + $0x18] sm:$0xf]
    %v5658 = vld [vmem:[%s4 + $0x1c] sm:$0xf]
    %v5659 = vld [vmem:[%s4 + $0x20] sm:$0xf]
    %v5660 = vld [vmem:[%s4 + $0x24] sm:$0xf]
    %v5661 = vld [vmem:[%s4 + $0x28] sm:$0xf]
    %v5662 = vld [vmem:[%s4 + $0x2c] sm:$0xf]
    %v5663 = vld [vmem:[%s4 + $0x30] sm:$0xf]
    %v5664 = vld [vmem:[%s4 + $0x34] sm:$0xf]
    %v5665 = vld [vmem:[%s4 + $0x38] sm:$0xf]
    %v5666 = vld [vmem:[%s4 + $0x3c] sm:$0xf]
    %v5667 = vld [vmem:[%s4 + $0x40] sm:$0xf]
    %v5668 = vld [vmem:[%s4 + $0x44] sm:$0xf]
    %v5669 = vld [vmem:[%s4 + $0x48] sm:$0xf]
    %v5670 = vld [vmem:[%s4 + $0x4c] sm:$0xf]
    %v5671 = vld [vmem:[%s4 + $0x50] sm:$0xf]
    %v5672 = vld [vmem:[%s4 + $0x54] sm:$0xf]
    %v5673 = vld [vmem:[%s4 + $0x58] sm:$0xf]
    %v5674 = vld [vmem:[%s4 + $0x5c] sm:$0xf]
    %v5675 = vld [vmem:[%s4 + $0x60] sm:$0xf]
    %v5676 = vld [vmem:[%s4 + $0x64] sm:$0xf]
    %v5677 = vld [vmem:[%s4 + $0x68] sm:$0xf]
    %v5678 = vld [vmem:[%s4 + $0x6c] sm:$0xf]
    %v5679 = vld [vmem:[%s4 + $0x70] sm:$0xf]
    %v5680 = vld [vmem:[%s4 + $0x74] sm:$0xf]
    %v5681 = vld [vmem:[%s4 + $0x78] sm:$0xf]
    %v5682 = vld [vmem:[%s4 + $0x7c] sm:$0xf]
    %v5683 = vld [vmem:[%s4 + $0x80] sm:$0xf]
    %v5684 = vld [vmem:[%s4 + $0x84] sm:$0xf]
    %v5685 = vld [vmem:[%s4 + $0x88] sm:$0xf]
    %v5686 = vld [vmem:[%s4 + $0x8c] sm:$0xf]
    %v5723 = vunpack.c.l.b16 %v5651
    %v5724 = vunpack.c.l.b16 %v5652
    %v5725 = vunpack.c.l.b16 %v5653
    %v5726 = vunpack.c.l.b16 %v5654
    %v5727 = vunpack.c.l.b16 %v5655
    %v5728 = vunpack.c.l.b16 %v5656
    %v5729 = vunpack.c.l.b16 %v5657
    %v5730 = vunpack.c.l.b16 %v5658
    %v5731 = vunpack.c.l.b16 %v5659
    %v5732 = vunpack.c.l.b16 %v5660
    %v5733 = vunpack.c.l.b16 %v5661
    %v5734 = vunpack.c.l.b16 %v5662
    %v5735 = vunpack.c.l.b16 %v5663
    %v5736 = vunpack.c.l.b16 %v5664
    %v5737 = vunpack.c.l.b16 %v5665
    %v5738 = vunpack.c.l.b16 %v5666
    %v5739 = vunpack.c.l.b16 %v5667
    %v5740 = vunpack.c.l.b16 %v5668
    %v5741 = vunpack.c.l.b16 %v5669
    %v5742 = vunpack.c.l.b16 %v5670
    %v5743 = vunpack.c.l.b16 %v5671
    %v5744 = vunpack.c.l.b16 %v5672
    %v5745 = vunpack.c.l.b16 %v5673
    %v5746 = vunpack.c.l.b16 %v5674
    %v5747 = vunpack.c.l.b16 %v5675
    %v5748 = vunpack.c.l.b16 %v5676
    %v5749 = vunpack.c.l.b16 %v5677
    %v5750 = vunpack.c.l.b16 %v5678
    %v5751 = vunpack.c.l.b16 %v5679
    %v5752 = vunpack.c.l.b16 %v5680
    %v5753 = vunpack.c.l.b16 %v5681
    %v5754 = vunpack.c.l.b16 %v5682
    %v5755 = vunpack.c.l.b16 %v5683
    %v5756 = vunpack.c.l.b16 %v5684
    %v5757 = vunpack.c.l.b16 %v5685
    %v5758 = vunpack.c.l.b16 %v5686
    %v5759 = vpack.c.b16 %v5724, %v5723
    %v5760 = vpack.c.b16 %v5726, %v5725
    %v5761 = vpack.c.b16 %v5728, %v5727
    %v5762 = vpack.c.b16 %v5730, %v5729
    %v5763 = vpack.c.b16 %v5732, %v5731
    %v5764 = vpack.c.b16 %v5734, %v5733
    %v5765 = vpack.c.b16 %v5736, %v5735
    %v5766 = vpack.c.b16 %v5738, %v5737
    %v5767 = vpack.c.b16 %v5740, %v5739
    %v5768 = vpack.c.b16 %v5742, %v5741
    %v5769 = vpack.c.b16 %v5744, %v5743
    %v5770 = vpack.c.b16 %v5746, %v5745
    %v5771 = vpack.c.b16 %v5748, %v5747
    %v5772 = vpack.c.b16 %v5750, %v5749
    %v5773 = vpack.c.b16 %v5752, %v5751
    %v5774 = vpack.c.b16 %v5754, %v5753
    %v5775 = vpack.c.b16 %v5756, %v5755
    %v5776 = vpack.c.b16 %v5758, %v5757
    %v5796 = vsel %vm156, %v5629, 0
    %v5799 = vsel %vm156, %v5632, 0
    %v5802 = vsel %vm156, %v5635, 0
    %v5805 = vsel %vm156, %v5638, 0
    %v5808 = vsel %vm156, %v5641, 0
    %v5811 = vsel %vm156, %v5644, 0
    %v5814 = vsel %vm156, %v5647, 0
    %v5817 = vsel %vm156, %v5650, 0
    %5819 = vmatprep.subr.bf16.mxu0 0
    %5820 = vmatpush1.bf16.msra.mxu0 %v5759
    %5821 = vmatprep.subr.bf16.mxu0 0
    %5822 = vmatpush1.bf16.msra.mxu0 %v5760
    %5823 = vmatprep.subr.bf16.mxu0 0
    %5824 = vmatpush1.bf16.msra.mxu0 %v5761
    %5825 = vmatprep.subr.bf16.mxu0 0
    %5826 = vmatpush1.bf16.msra.mxu0 %v5762
    %5827 = vmatprep.subr.bf16.mxu0 0
    %5828 = vmatpush1.bf16.msra.mxu0 %v5763
    %5829 = vmatprep.subr.bf16.mxu0 0
    %5830 = vmatpush1.bf16.msra.mxu0 %v5764
    %5831 = vmatprep.subr.bf16.mxu0 0
    %5832 = vmatpush1.bf16.msra.mxu0 %v5765
    %5833 = vmatprep.subr.bf16.mxu0 0
    %5834 = vmatpush1.bf16.msra.mxu0 %v5766
    %5835 = vmatprep.subr.bf16.mxu0 0
    %5836 = vmatpush1.bf16.msra.mxu0 %v5767
    %5837 = vmatprep.subr.bf16.mxu0 0
    %5838 = vmatpush1.bf16.msra.mxu0 %v5768
    %5839 = vmatprep.subr.bf16.mxu0 0
    %5840 = vmatpush1.bf16.msra.mxu0 %v5769
    %5841 = vmatprep.subr.bf16.mxu0 0
    %5842 = vmatpush1.bf16.msra.mxu0 %v5770
    %5843 = vmatprep.subr.bf16.mxu0 0
    %5844 = vmatpush1.bf16.msra.mxu0 %v5771
    %5845 = vmatprep.subr.bf16.mxu0 0
    %5846 = vmatpush1.bf16.msra.mxu0 %v5772
    %5847 = vmatprep.subr.bf16.mxu0 0
    %5848 = vmatpush1.bf16.msra.mxu0 %v5773
    %5849 = vmatprep.subr.bf16.mxu0 0
    %5850 = vmatpush1.bf16.msra.mxu0 %v5774
    %5851 = vmatprep.mubr.bf16.mxu0 %v5628
    %5852 = vmatmul.mubr.bf16.gmra.mrb[0].mxu0 %v5627
    %v5853 = vpop.f32.mrb[0].mxu0
    %v5854 = vadd.f32 0.0, %v5853
    %v5855 = vpop.f32.mrb[0].mxu0
    %v5856 = vpop.f32.mrb[0].mxu0
    %v5857 = vadd.f32 0.0, %v5856
    %v5858 = vpop.f32.mrb[0].mxu0
    %5859 = vmatprep.mubr.bf16.mxu0 %v5631
    %5860 = vmatmul.mubr.bf16.gmra.mrb[0].mxu0 %v5630
    %v5861 = vpop.f32.mrb[0].mxu0
    %v5862 = vadd.f32 0.0, %v5861
    %v5863 = vpop.f32.mrb[0].mxu0
    %v5864 = vpop.f32.mrb[0].mxu0
    %v5865 = vadd.f32 0.0, %v5864
    %v5866 = vpop.f32.mrb[0].mxu0
    %5867 = vmatprep.mubr.bf16.mxu0 %v5634
    %5868 = vmatmul.mubr.bf16.gmra.mrb[0].mxu0 %v5633
    %v5869 = vpop.f32.mrb[0].mxu0
    %v5870 = vadd.f32 0.0, %v5869
    %v5871 = vpop.f32.mrb[0].mxu0
    %v5872 = vpop.f32.mrb[0].mxu0
    %v5873 = vadd.f32 0.0, %v5872
    %v5874 = vpop.f32.mrb[0].mxu0
    %5875 = vmatprep.mubr.bf16.mxu0 %v5637
    %5876 = vmatmul.mubr.bf16.gmra.mrb[0].mxu0 %v5636
    %v5877 = vpop.f32.mrb[0].mxu0
    %v5878 = vadd.f32 0.0, %v5877
    %v5879 = vpop.f32.mrb[0].mxu0
    %v5880 = vpop.f32.mrb[0].mxu0
    %v5881 = vadd.f32 0.0, %v5880
    %v5882 = vpop.f32.mrb[0].mxu0
    %5883 = vmatprep.mubr.bf16.mxu0 %v5640
    %5884 = vmatmul.mubr.bf16.gmra.mrb[0].mxu0 %v5639
    %v5885 = vpop.f32.mrb[0].mxu0
    %v5886 = vadd.f32 0.0, %v5885
    %v5887 = vpop.f32.mrb[0].mxu0
    %v5888 = vpop.f32.mrb[0].mxu0
    %v5889 = vadd.f32 0.0, %v5888
    %v5890 = vpop.f32.mrb[0].mxu0
    %5891 = vmatprep.mubr.bf16.mxu0 %v5643
    %5892 = vmatmul.mubr.bf16.gmra.mrb[0].mxu0 %v5642
    %v5893 = vpop.f32.mrb[0].mxu0
    %v5894 = vadd.f32 0.0, %v5893
    %v5895 = vpop.f32.mrb[0].mxu0
    %v5896 = vpop.f32.mrb[0].mxu0
    %v5897 = vadd.f32 0.0, %v5896
    %v5898 = vpop.f32.mrb[0].mxu0
    %5899 = vmatprep.mubr.bf16.mxu0 %v5646
    %5900 = vmatmul.mubr.bf16.gmra.mrb[0].mxu0 %v5645
    %v5901 = vpop.f32.mrb[0].mxu0
    %v5902 = vadd.f32 0.0, %v5901
    %v5903 = vpop.f32.mrb[0].mxu0
    %v5904 = vpop.f32.mrb[0].mxu0
    %v5905 = vadd.f32 0.0, %v5904
    %v5906 = vpop.f32.mrb[0].mxu0
    %5907 = vmatprep.mubr.bf16.mxu0 %v5649
    %5908 = vmatmul.mubr.bf16.gmra.mrb[0].mxu0 %v5648
    %v5909 = vpop.f32.mrb[0].mxu0
    %v5910 = vadd.f32 0.0, %v5909
    %v5911 = vpop.f32.mrb[0].mxu0
    %v5912 = vpop.f32.mrb[0].mxu0
    %v5913 = vadd.f32 0.0, %v5912
    %v5914 = vpop.f32.mrb[0].mxu0
    %5915 = vdwg.mxu0
    %5916 = vmatprep.subr.bf16.mxu0 0
    %5917 = vmatpush1.bf16.msra.mxu0 %v5775
    %5918 = vmatprep.subr.bf16.mxu0 0
    %5919 = vmatpush1.bf16.msra.mxu0 %v5776
    %5920 = vmatprep.subr.bf16.mxu0 0
    %5921 = vmatpush1.bf16.msra.mxu0 0
    %5922 = vmatprep.subr.bf16.mxu0 0
    %5923 = vmatpush1.bf16.msra.mxu0 0
    %5924 = vmatprep.subr.bf16.mxu0 0
    %5925 = vmatpush1.bf16.msra.mxu0 0
    %5926 = vmatprep.subr.bf16.mxu0 0
    %5927 = vmatpush1.bf16.msra.mxu0 0
    %5928 = vmatprep.subr.bf16.mxu0 0
    %5929 = vmatpush1.bf16.msra.mxu0 0
    %5930 = vmatprep.subr.bf16.mxu0 0
    %5931 = vmatpush1.bf16.msra.mxu0 0
    %5932 = vmatprep.subr.bf16.mxu0 0
    %5933 = vmatpush1.bf16.msra.mxu0 0
    %5934 = vmatprep.subr.bf16.mxu0 0
    %5935 = vmatpush1.bf16.msra.mxu0 0
    %5936 = vmatprep.subr.bf16.mxu0 0
    %5937 = vmatpush1.bf16.msra.mxu0 0
    %5938 = vmatprep.subr.bf16.mxu0 0
    %5939 = vmatpush1.bf16.msra.mxu0 0
    %5940 = vmatprep.subr.bf16.mxu0 0
    %5941 = vmatpush1.bf16.msra.mxu0 0
    %5942 = vmatprep.subr.bf16.mxu0 0
    %5943 = vmatpush1.bf16.msra.mxu0 0
    %5944 = vmatprep.subr.bf16.mxu0 0
    %5945 = vmatpush1.bf16.msra.mxu0 0
    %5946 = vmatprep.subr.bf16.mxu0 0
    %5947 = vmatpush1.bf16.msra.mxu0 0
    %5948 = vmatprep.mubr.bf16.mxu0 0
    %5949 = vmatmul.mubr.bf16.gmra.mrb[0].mxu0 %v5796
    %v5950 = vpop.f32.mrb[0].mxu0
    %v5951 = vadd.f32 %v5854, %v5950
    %v5952 = vpop.f32.mrb[0].mxu0
    %v5953 = vpop.f32.mrb[0].mxu0
    %v5954 = vadd.f32 %v5857, %v5953
    %v5955 = vpop.f32.mrb[0].mxu0
    %5956 = vmatprep.mubr.bf16.mxu0 0
    %5957 = vmatmul.mubr.bf16.gmra.mrb[0].mxu0 %v5799
    %v5958 = vpop.f32.mrb[0].mxu0
    %v5959 = vadd.f32 %v5862, %v5958
    %v5960 = vpop.f32.mrb[0].mxu0
    %v5961 = vpop.f32.mrb[0].mxu0
    %v5962 = vadd.f32 %v5865, %v5961
    %v5963 = vpop.f32.mrb[0].mxu0
    %5964 = vmatprep.mubr.bf16.mxu0 0
    %5965 = vmatmul.mubr.bf16.gmra.mrb[0].mxu0 %v5802
    %v5966 = vpop.f32.mrb[0].mxu0
    %v5967 = vadd.f32 %v5870, %v5966
    %v5968 = vpop.f32.mrb[0].mxu0
    %v5969 = vpop.f32.mrb[0].mxu0
    %v5970 = vadd.f32 %v5873, %v5969
    %v5971 = vpop.f32.mrb[0].mxu0
    %5972 = vmatprep.mubr.bf16.mxu0 0
    %5973 = vmatmul.mubr.bf16.gmra.mrb[0].mxu0 %v5805
    %v5974 = vpop.f32.mrb[0].mxu0
    %v5975 = vadd.f32 %v5878, %v5974
    %v5976 = vpop.f32.mrb[0].mxu0
    %v5977 = vpop.f32.mrb[0].mxu0
    %v5978 = vadd.f32 %v5881, %v5977
    %v5979 = vpop.f32.mrb[0].mxu0
    %5980 = vmatprep.mubr.bf16.mxu0 0
    %5981 = vmatmul.mubr.bf16.gmra.mrb[0].mxu0 %v5808
    %v5982 = vpop.f32.mrb[0].mxu0
    %v5983 = vadd.f32 %v5886, %v5982
    %v5984 = vpop.f32.mrb[0].mxu0
    %v5985 = vpop.f32.mrb[0].mxu0
    %v5986 = vadd.f32 %v5889, %v5985
    %v5987 = vpop.f32.mrb[0].mxu0
    %5988 = vmatprep.mubr.bf16.mxu0 0
    %5989 = vmatmul.mubr.bf16.gmra.mrb[0].mxu0 %v5811
    %v5990 = vpop.f32.mrb[0].mxu0
    %v5991 = vadd.f32 %v5894, %v5990
    %v5992 = vpop.f32.mrb[0].mxu0
    %v5993 = vpop.f32.mrb[0].mxu0
    %v5994 = vadd.f32 %v5897, %v5993
    %v5995 = vpop.f32.mrb[0].mxu0
    %5996 = vmatprep.mubr.bf16.mxu0 0
    %5997 = vmatmul.mubr.bf16.gmra.mrb[0].mxu0 %v5814
    %v5998 = vpop.f32.mrb[0].mxu0
    %v5999 = vadd.f32 %v5902, %v5998
    %v6000 = vpop.f32.mrb[0].mxu0
    %v6001 = vpop.f32.mrb[0].mxu0
    %v6002 = vadd.f32 %v5905, %v6001
    %v6003 = vpop.f32.mrb[0].mxu0
    %6004 = vmatprep.mubr.bf16.mxu0 0
    %6005 = vmatmul.mubr.bf16.gmra.mrb[0].mxu0 %v5817
    %v6006 = vpop.f32.mrb[0].mxu0
    %v6007 = vadd.f32 %v5910, %v6006
    %v6008 = vpop.f32.mrb[0].mxu0
    %v6009 = vpop.f32.mrb[0].mxu0
    %v6010 = vadd.f32 %v5913, %v6009
    %v6011 = vpop.f32.mrb[0].mxu0
    %6012 = vdwg.mxu0
    %v6013 = vsel %vm156, %v5951, 0.0
    %v6014 = vsel %vm156, %v5954, 0.0
    %v6015 = vadd.f32 %v6013, %v6014
    %v6016 = vsel %vm156, %v5959, 0.0
    %v6017 = vadd.f32 %v6015, %v6016
    %v6018 = vsel %vm156, %v5962, 0.0
    %v6019 = vadd.f32 %v6017, %v6018
    %v6020 = vsel %vm156, %v5967, 0.0
    %v6021 = vadd.f32 %v6019, %v6020
    %v6022 = vsel %vm156, %v5970, 0.0
    %v6023 = vadd.f32 %v6021, %v6022
    %v6024 = vsel %vm156, %v5975, 0.0
    %v6025 = vadd.f32 %v6023, %v6024
    %v6026 = vsel %vm156, %v5978, 0.0
    %v6027 = vadd.f32 %v6025, %v6026
    %v6028 = vsel %vm156, %v5983, 0.0
    %v6029 = vadd.f32 %v6027, %v6028
    %v6030 = vsel %vm156, %v5986, 0.0
    %v6031 = vadd.f32 %v6029, %v6030
    %v6032 = vsel %vm156, %v5991, 0.0
    %v6033 = vadd.f32 %v6031, %v6032
    %v6034 = vsel %vm156, %v5994, 0.0
    %v6035 = vadd.f32 %v6033, %v6034
    %v6036 = vsel %vm156, %v5999, 0.0
    %v6037 = vadd.f32 %v6035, %v6036
    %v6038 = vsel %vm156, %v6002, 0.0
    %v6039 = vadd.f32 %v6037, %v6038
    %v6040 = vsel %vm156, %v6007, 0.0
    %v6041 = vadd.f32 %v6039, %v6040
    %v6042 = vsel %vm156, %v6010, 0.0
    %v6043 = vadd.f32 %v6041, %v6042
    %v6044 = vrot.slane %v6043, 4
    %v6045 = vadd.f32 %v6043, %v6044
    %v6046 = vrot.slane %v6045, 2
    %v6047 = vadd.f32 %v6045, %v6046
    %v6048 = vrot.slane %v6047, 1
    %v6049 = vadd.f32 %v6047, %v6048
    %v6050 = vrcp.pop 128.0
    %v6051 = vmul.f32 %v6049, %v6050
    %v6052 = vmul.f32 %v5951, %v5951
    %v6053 = vmul.f32 %v5954, %v5954
    %v6054 = vmul.f32 %v5959, %v5959
    %v6055 = vmul.f32 %v5962, %v5962
    %v6056 = vmul.f32 %v5967, %v5967
    %v6057 = vmul.f32 %v5970, %v5970
    %v6058 = vmul.f32 %v5975, %v5975
    %v6059 = vmul.f32 %v5978, %v5978
    %v6060 = vmul.f32 %v5983, %v5983
    %v6061 = vmul.f32 %v5986, %v5986
    %v6062 = vmul.f32 %v5991, %v5991
    %v6063 = vmul.f32 %v5994, %v5994
    %v6064 = vmul.f32 %v5999, %v5999
    %v6065 = vmul.f32 %v6002, %v6002
    %v6066 = vmul.f32 %v6007, %v6007
    %v6067 = vmul.f32 %v6010, %v6010
    %v6068 = vsel %vm156, %v6052, 0.0
    %v6069 = vsel %vm156, %v6053, 0.0
    %v6070 = vadd.f32 %v6068, %v6069
    %v6071 = vsel %vm156, %v6054, 0.0
    %v6072 = vadd.f32 %v6070, %v6071
    %v6073 = vsel %vm156, %v6055, 0.0
    %v6074 = vadd.f32 %v6072, %v6073
    %v6075 = vsel %vm156, %v6056, 0.0
    %v6076 = vadd.f32 %v6074, %v6075
    %v6077 = vsel %vm156, %v6057, 0.0
    %v6078 = vadd.f32 %v6076, %v6077
    %v6079 = vsel %vm156, %v6058, 0.0
    %v6080 = vadd.f32 %v6078, %v6079
    %v6081 = vsel %vm156, %v6059, 0.0
    %v6082 = vadd.f32 %v6080, %v6081
    %v6083 = vsel %vm156, %v6060, 0.0
    %v6084 = vadd.f32 %v6082, %v6083
    %v6085 = vsel %vm156, %v6061, 0.0
    %v6086 = vadd.f32 %v6084, %v6085
    %v6087 = vsel %vm156, %v6062, 0.0
    %v6088 = vadd.f32 %v6086, %v6087
    %v6089 = vsel %vm156, %v6063, 0.0
    %v6090 = vadd.f32 %v6088, %v6089
    %v6091 = vsel %vm156, %v6064, 0.0
    %v6092 = vadd.f32 %v6090, %v6091
    %v6093 = vsel %vm156, %v6065, 0.0
    %v6094 = vadd.f32 %v6092, %v6093
    %v6095 = vsel %vm156, %v6066, 0.0
    %v6096 = vadd.f32 %v6094, %v6095
    %v6097 = vsel %vm156, %v6067, 0.0
    %v6098 = vadd.f32 %v6096, %v6097
    %v6099 = vrot.slane %v6098, 4
    %v6100 = vadd.f32 %v6098, %v6099
    %v6101 = vrot.slane %v6100, 2
    %v6102 = vadd.f32 %v6100, %v6101
    %v6103 = vrot.slane %v6102, 1
    %v6104 = vadd.f32 %v6102, %v6103
    %v6105 = vmul.f32 %v6104, %v6050
    %v6106 = vmul.f32 %v6051, %v6051
    %v6107 = vsub.f32 %v6105, %v6106
    %v6108 = vld [vmem:[%s5] sm:$0x1]
    %v6109 = vadd.f32 %v6107, 1e-05
    %v6110 = vrsqrt.pop %v6109
    %v6111 = vmul.f32 %v6108, %v6110
    %v6112 = vld [vmem:[%s6] sm:$0x1]
    %v6113 = vmul.f32 %v6051, %v6111
    %v6114 = vsub.f32 %v6112, %v6113
    %v6116 = vlaneseq
    %v6117 = vshrl.u32 %v6116, 7
    %v6118 = vsub.s32 0, %v6117
    %v6119 = vrot.slane %v6111, %v6118
    %v6121 = vmul.f32 %v5951, %v6119
    %v6122 = vmul.f32 %v5954, %v6119
    %v6123 = vmul.f32 %v5959, %v6119
    %v6124 = vmul.f32 %v5962, %v6119
    %v6125 = vmul.f32 %v5967, %v6119
    %v6126 = vmul.f32 %v5970, %v6119
    %v6127 = vmul.f32 %v5975, %v6119
    %v6128 = vmul.f32 %v5978, %v6119
    %v6129 = vmul.f32 %v5983, %v6119
    %v6130 = vmul.f32 %v5986, %v6119
    %v6131 = vmul.f32 %v5991, %v6119
    %v6132 = vmul.f32 %v5994, %v6119
    %v6133 = vmul.f32 %v5999, %v6119
    %v6134 = vmul.f32 %v6002, %v6119
    %v6135 = vmul.f32 %v6007, %v6119
    %v6136 = vmul.f32 %v6010, %v6119
    %v6138 = vlaneseq
    %v6139 = vshrl.u32 %v6138, 7
    %v6140 = vsub.s32 0, %v6139
    %v6141 = vrot.slane %v6114, %v6140
    %v6143 = vadd.f32 %v6121, %v6141
    %v6144 = vadd.f32 %v6122, %v6141
    %v6145 = vadd.f32 %v6123, %v6141
    %v6146 = vadd.f32 %v6124, %v6141
    %v6147 = vadd.f32 %v6125, %v6141
    %v6148 = vadd.f32 %v6126, %v6141
    %v6149 = vadd.f32 %v6127, %v6141
    %v6150 = vadd.f32 %v6128, %v6141
    %v6151 = vadd.f32 %v6129, %v6141
    %v6152 = vadd.f32 %v6130, %v6141
    %v6153 = vadd.f32 %v6131, %v6141
    %v6154 = vadd.f32 %v6132, %v6141
    %v6155 = vadd.f32 %v6133, %v6141
    %v6156 = vadd.f32 %v6134, %v6141
    %v6157 = vadd.f32 %v6135, %v6141
    %v6158 = vadd.f32 %v6136, %v6141
    %v6159 = vmax.f32 %v6143, 0.0
    %v6160 = vmax.f32 %v6144, 0.0
    %v6161 = vmax.f32 %v6145, 0.0
    %v6162 = vmax.f32 %v6146, 0.0
    %v6163 = vmax.f32 %v6147, 0.0
    %v6164 = vmax.f32 %v6148, 0.0
    %v6165 = vmax.f32 %v6149, 0.0
    %v6166 = vmax.f32 %v6150, 0.0
    %v6167 = vmax.f32 %v6151, 0.0
    %v6168 = vmax.f32 %v6152, 0.0
    %v6169 = vmax.f32 %v6153, 0.0
    %v6170 = vmax.f32 %v6154, 0.0
    %v6171 = vmax.f32 %v6155, 0.0
    %v6172 = vmax.f32 %v6156, 0.0
    %v6173 = vmax.f32 %v6157, 0.0
    %v6174 = vmax.f32 %v6158, 0.0
    %v6175 = vmax.f32 %v6159, %v6160
    %v6176 = vmax.f32 %v6161, %v6162
    %v6177 = vmax.f32 %v6163, %v6164
    %v6178 = vmax.f32 %v6165, %v6166
    %v6179 = vmax.f32 %v6167, %v6168
    %v6180 = vmax.f32 %v6169, %v6170
    %v6181 = vmax.f32 %v6171, %v6172
    %v6182 = vmax.f32 %v6173, %v6174
    %v6191 = vrot.slane %v6175, 1
    %v6192 = vrot.slane %v6176, 1
    %v6193 = vrot.slane %v6177, 1
    %v6194 = vrot.slane %v6178, 1
    %v6195 = vrot.slane %v6179, 1
    %v6196 = vrot.slane %v6180, 1
    %v6197 = vrot.slane %v6181, 1
    %v6198 = vrot.slane %v6182, 1
    %v6207 = vmax.f32 %v6175, %v6191
    %v6208 = vmax.f32 %v6176, %v6192
    %v6209 = vmax.f32 %v6177, %v6193
    %v6210 = vmax.f32 %v6178, %v6194
    %v6211 = vmax.f32 %v6179, %v6195
    %v6212 = vmax.f32 %v6180, %v6196
    %v6213 = vmax.f32 %v6181, %v6197
    %v6214 = vmax.f32 %v6182, %v6198
    %s6215 = scalar_lea.vmem [#allocation6], 8
    %6216 = vst.msk [vmem:[%s6215 + $0x1] sm:$0x1] %vm4707, %v6207
    %6217 = vst.msk [vmem:[%s6215 + $0x9] sm:$0x1] %vm4707, %v6208
    %6218 = vst.msk [vmem:[%s6215 + $0x11] sm:$0x1] %vm4707, %v6209
    %6219 = vst.msk [vmem:[%s6215 + $0x19] sm:$0x1] %vm4707, %v6210
    %6220 = vst.msk [vmem:[%s6215 + $0x31] sm:$0x1] %vm4707, %v6211
    %6221 = vst.msk [vmem:[%s6215 + $0x39] sm:$0x1] %vm4707, %v6212
    %6222 = vst.msk [vmem:[%s6215 + $0x41] sm:$0x1] %vm4707, %v6213
    %6223 = vst.msk [vmem:[%s6215 + $0x49] sm:$0x1] %vm4707, %v6214
    %6224 = vst.msk [vmem:[%s6215] sm:$0x4] %vm4724, %v6207
    %6225 = vst.msk [vmem:[%s6215 + $0x8] sm:$0x4] %vm4724, %v6208
    %6226 = vst.msk [vmem:[%s6215 + $0x10] sm:$0x4] %vm4724, %v6209
    %6227 = vst.msk [vmem:[%s6215 + $0x18] sm:$0x4] %vm4724, %v6210
    %6228 = vst.msk [vmem:[%s6215 + $0x30] sm:$0x4] %vm4724, %v6211
    %6229 = vst.msk [vmem:[%s6215 + $0x38] sm:$0x4] %vm4724, %v6212
    %6230 = vst.msk [vmem:[%s6215 + $0x40] sm:$0x4] %vm4724, %v6213
    %6231 = vst.msk [vmem:[%s6215 + $0x48] sm:$0x4] %vm4724, %v6214
    %6232 = vst.msk [vmem:[%s6215 - $0x1] sm:$0x10] %vm4741, %v6207
    %6233 = vst.msk [vmem:[%s6215 + $0x7] sm:$0x10] %vm4741, %v6208
    %6234 = vst.msk [vmem:[%s6215 + $0xf] sm:$0x10] %vm4741, %v6209
    %6235 = vst.msk [vmem:[%s6215 + $0x17] sm:$0x10] %vm4741, %v6210
    %6236 = vst.msk [vmem:[%s6215 + $0x2f] sm:$0x10] %vm4741, %v6211
    %6237 = vst.msk [vmem:[%s6215 + $0x37] sm:$0x10] %vm4741, %v6212
    %6238 = vst.msk [vmem:[%s6215 + $0x3f] sm:$0x10] %vm4741, %v6213
    %6239 = vst.msk [vmem:[%s6215 + $0x47] sm:$0x10] %vm4741, %v6214
    %6240 = vst.msk [vmem:[%s6215 - $0x2] sm:$0x40] %vm4758, %v6207
    %6241 = vst.msk [vmem:[%s6215 + $0x6] sm:$0x40] %vm4758, %v6208
    %6242 = vst.msk [vmem:[%s6215 + $0xe] sm:$0x40] %vm4758, %v6209
    %6243 = vst.msk [vmem:[%s6215 + $0x16] sm:$0x40] %vm4758, %v6210
    %6244 = vst.msk [vmem:[%s6215 + $0x2e] sm:$0x40] %vm4758, %v6211
    %6245 = vst.msk [vmem:[%s6215 + $0x36] sm:$0x40] %vm4758, %v6212
    %6246 = vst.msk [vmem:[%s6215 + $0x3e] sm:$0x40] %vm4758, %v6213
    %6247 = vst.msk [vmem:[%s6215 + $0x46] sm:$0x40] %vm4758, %v6214
    %6248 = vst [vmem:[#allocation7] sm:$0xf0] 0.0
    %6249 = vst [vmem:[#allocation7 + $0x8] sm:$0xf0] 0.0
    %vm6250 = vcmask 261124
    %6251 = vst.msk [vmem:[#allocation7 + $0x10] sm:$0xf0] %vm6250, 0.0
    %6252 = vst [vmem:[#allocation7 + $0x18] sm:$0xf0] 0.0
    %6253 = vst [vmem:[#allocation7 + $0x20] sm:$0xf0] 0.0
    %6254 = vst.msk [vmem:[#allocation7 + $0x28] sm:$0xf0] %vm6250, 0.0
    %6255 = vst [vmem:[#allocation7 + $0x30] sm:$0xf0] 0.0
    %6256 = vst [vmem:[#allocation7 + $0x38] sm:$0xf0] 0.0
    %6257 = vst.msk [vmem:[#allocation7 + $0x40] sm:$0xf0] %vm6250, 0.0
    %6258 = vst [vmem:[#allocation7 + $0x48] sm:$0xf0] 0.0
    %6259 = vst [vmem:[#allocation7 + $0x50] sm:$0xf0] 0.0
    %6260 = vst.msk [vmem:[#allocation7 + $0x58] sm:$0xf0] %vm6250, 0.0
    %6261 = vst [vmem:[#allocation7 + $0x60] sm:$0xf0] 0.0
    %6262 = vst [vmem:[#allocation7 + $0x68] sm:$0xf0] 0.0
    %6263 = vst.msk [vmem:[#allocation7 + $0x70] sm:$0xf0] %vm6250, 0.0
    %6264 = vst [vmem:[#allocation7 + $0x78] sm:$0xf0] 0.0
    %6265 = vst [vmem:[#allocation7 + $0x80] sm:$0xf0] 0.0
    %6266 = vst.msk [vmem:[#allocation7 + $0x88] sm:$0xf0] %vm6250, 0.0
    %6267 = vst [vmem:[#allocation7 + $0x90] sm:$0xf0] 0.0
    %6268 = vst [vmem:[#allocation7 + $0x98] sm:$0xf0] 0.0
    %6269 = vst.msk [vmem:[#allocation7 + $0xa0] sm:$0xf0] %vm6250, 0.0
    %6270 = vst [vmem:[#allocation7 + $0xa8] sm:$0xf0] 0.0
    %6271 = vst [vmem:[#allocation7 + $0xb0] sm:$0xf0] 0.0
    %6272 = vst.msk [vmem:[#allocation7 + $0xb8] sm:$0xf0] %vm6250, 0.0
    %v6273 = vld [vmem:[#allocation6] sm:$0xf]
    %v6274 = vld [vmem:[#allocation6 + $0x8] sm:$0xf]
    %v6275 = vld [vmem:[#allocation6 + $0x10] sm:$0xf]
    %v6276 = vld [vmem:[#allocation6 + $0x18] sm:$0xf]
    %v6277 = vld [vmem:[#allocation6 + $0x30] sm:$0xf]
    %v6278 = vld [vmem:[#allocation6 + $0x38] sm:$0xf]
    %v6279 = vld [vmem:[#allocation6 + $0x40] sm:$0xf]
    %v6280 = vld [vmem:[#allocation6 + $0x48] sm:$0xf]
    %6281 = vst.msk [vmem:[#allocation7] sm:$0xf] %vm211, %v6273
    %6282 = vst.msk [vmem:[#allocation7 + $0x18] sm:$0xf] %vm211, %v6274
    %6283 = vst.msk [vmem:[#allocation7 + $0x30] sm:$0xf] %vm211, %v6275
    %6284 = vst.msk [vmem:[#allocation7 + $0x48] sm:$0xf] %vm211, %v6276
    %6285 = vst.msk [vmem:[#allocation7 + $0x60] sm:$0xf] %vm211, %v6277
    %6286 = vst.msk [vmem:[#allocation7 + $0x78] sm:$0xf] %vm211, %v6278
    %6287 = vst.msk [vmem:[#allocation7 + $0x90] sm:$0xf] %vm211, %v6279
    %6288 = vst.msk [vmem:[#allocation7 + $0xa8] sm:$0xf] %vm211, %v6280
    %v6289 = vld [vmem:[#allocation6 + $0x1] sm:$0xf]
    %v6290 = vld [vmem:[#allocation6 + $0x9] sm:$0xf]
    %v6291 = vld [vmem:[#allocation6 + $0x11] sm:$0xf]
    %v6292 = vld [vmem:[#allocation6 + $0x19] sm:$0xf]
    %v6293 = vld [vmem:[#allocation6 + $0x31] sm:$0xf]
    %v6294 = vld [vmem:[#allocation6 + $0x39] sm:$0xf]
    %v6295 = vld [vmem:[#allocation6 + $0x41] sm:$0xf]
    %v6296 = vld [vmem:[#allocation6 + $0x49] sm:$0xf]
    %6305 = vrot.lane.b32.xlu0 %v6289, 32
    %v6306 = vpop.permute.xlu0 %6305
    %6307 = vrot.lane.b32.xlu0 %v6290, 32
    %v6308 = vpop.permute.xlu0 %6307
    %6309 = vrot.lane.b32.xlu0 %v6291, 32
    %v6310 = vpop.permute.xlu0 %6309
    %6311 = vrot.lane.b32.xlu0 %v6292, 32
    %v6312 = vpop.permute.xlu0 %6311
    %6313 = vrot.lane.b32.xlu0 %v6293, 32
    %v6314 = vpop.permute.xlu0 %6313
    %6315 = vrot.lane.b32.xlu0 %v6294, 32
    %v6316 = vpop.permute.xlu0 %6315
    %6317 = vrot.lane.b32.xlu0 %v6295, 32
    %v6318 = vpop.permute.xlu0 %6317
    %6319 = vrot.lane.b32.xlu0 %v6296, 32
    %v6320 = vpop.permute.xlu0 %6319
    %vm6329 = vcmask 519424
    %6330 = vst.msk [vmem:[#allocation7] sm:$0xf] %vm6329, %v6306
    %6331 = vst.msk [vmem:[#allocation7 + $0x18] sm:$0xf] %vm6329, %v6308
    %6332 = vst.msk [vmem:[#allocation7 + $0x30] sm:$0xf] %vm6329, %v6310
    %6333 = vst.msk [vmem:[#allocation7 + $0x48] sm:$0xf] %vm6329, %v6312
    %6334 = vst.msk [vmem:[#allocation7 + $0x60] sm:$0xf] %vm6329, %v6314
    %6335 = vst.msk [vmem:[#allocation7 + $0x78] sm:$0xf] %vm6329, %v6316
    %6336 = vst.msk [vmem:[#allocation7 + $0x90] sm:$0xf] %vm6329, %v6318
    %6337 = vst.msk [vmem:[#allocation7 + $0xa8] sm:$0xf] %vm6329, %v6320
    %v6338 = vld [vmem:[#allocation6 + $0x2] sm:$0xf]
    %v6339 = vld [vmem:[#allocation6 + $0xa] sm:$0xf]
    %v6340 = vld [vmem:[#allocation6 + $0x12] sm:$0xf]
    %v6341 = vld [vmem:[#allocation6 + $0x1a] sm:$0xf]
    %v6342 = vld [vmem:[#allocation6 + $0x32] sm:$0xf]
    %v6343 = vld [vmem:[#allocation6 + $0x3a] sm:$0xf]
    %v6344 = vld [vmem:[#allocation6 + $0x42] sm:$0xf]
    %v6345 = vld [vmem:[#allocation6 + $0x4a] sm:$0xf]
    %6354 = vrot.lane.b32.xlu0 %v6338, 64
    %v6355 = vpop.permute.xlu0 %6354
    %6356 = vrot.lane.b32.xlu0 %v6339, 64
    %v6357 = vpop.permute.xlu0 %6356
    %6358 = vrot.lane.b32.xlu0 %v6340, 64
    %v6359 = vpop.permute.xlu0 %6358
    %6360 = vrot.lane.b32.xlu0 %v6341, 64
    %v6361 = vpop.permute.xlu0 %6360
    %6362 = vrot.lane.b32.xlu0 %v6342, 64
    %v6363 = vpop.permute.xlu0 %6362
    %6364 = vrot.lane.b32.xlu0 %v6343, 64
    %v6365 = vpop.permute.xlu0 %6364
    %6366 = vrot.lane.b32.xlu0 %v6344, 64
    %v6367 = vpop.permute.xlu0 %6366
    %6368 = vrot.lane.b32.xlu0 %v6345, 64
    %v6369 = vpop.permute.xlu0 %6368
    %vm6378 = vcmask 781824
    %6379 = vst.msk [vmem:[#allocation7] sm:$0xf] %vm6378, %v6355
    %6380 = vst.msk [vmem:[#allocation7 + $0x18] sm:$0xf] %vm6378, %v6357
    %6381 = vst.msk [vmem:[#allocation7 + $0x30] sm:$0xf] %vm6378, %v6359
    %6382 = vst.msk [vmem:[#allocation7 + $0x48] sm:$0xf] %vm6378, %v6361
    %6383 = vst.msk [vmem:[#allocation7 + $0x60] sm:$0xf] %vm6378, %v6363
    %6384 = vst.msk [vmem:[#allocation7 + $0x78] sm:$0xf] %vm6378, %v6365
    %6385 = vst.msk [vmem:[#allocation7 + $0x90] sm:$0xf] %vm6378, %v6367
    %6386 = vst.msk [vmem:[#allocation7 + $0xa8] sm:$0xf] %vm6378, %v6369
    %v6387 = vld [vmem:[%s6215] sm:$0xf]
    %v6388 = vld [vmem:[%s6215 + $0x8] sm:$0xf]
    %v6389 = vld [vmem:[%s6215 + $0x10] sm:$0xf]
    %v6390 = vld [vmem:[%s6215 + $0x18] sm:$0xf]
    %v6391 = vld [vmem:[%s6215 + $0x30] sm:$0xf]
    %v6392 = vld [vmem:[%s6215 + $0x38] sm:$0xf]
    %v6393 = vld [vmem:[%s6215 + $0x40] sm:$0xf]
    %v6394 = vld [vmem:[%s6215 + $0x48] sm:$0xf]
    %6403 = vrot.lane.b32.xlu0 %v6387, 96
    %v6404 = vpop.permute.xlu0 %6403
    %6405 = vrot.lane.b32.xlu0 %v6388, 96
    %v6406 = vpop.permute.xlu0 %6405
    %6407 = vrot.lane.b32.xlu0 %v6389, 96
    %v6408 = vpop.permute.xlu0 %6407
    %6409 = vrot.lane.b32.xlu0 %v6390, 96
    %v6410 = vpop.permute.xlu0 %6409
    %6411 = vrot.lane.b32.xlu0 %v6391, 96
    %v6412 = vpop.permute.xlu0 %6411
    %6413 = vrot.lane.b32.xlu0 %v6392, 96
    %v6414 = vpop.permute.xlu0 %6413
    %6415 = vrot.lane.b32.xlu0 %v6393, 96
    %v6416 = vpop.permute.xlu0 %6415
    %6417 = vrot.lane.b32.xlu0 %v6394, 96
    %v6418 = vpop.permute.xlu0 %6417
    %vm6427 = vcmask 1044224
    %6428 = vst.msk [vmem:[#allocation7] sm:$0xf] %vm6427, %v6404
    %6429 = vst.msk [vmem:[#allocation7 + $0x18] sm:$0xf] %vm6427, %v6406
    %6430 = vst.msk [vmem:[#allocation7 + $0x30] sm:$0xf] %vm6427, %v6408
    %6431 = vst.msk [vmem:[#allocation7 + $0x48] sm:$0xf] %vm6427, %v6410
    %6432 = vst.msk [vmem:[#allocation7 + $0x60] sm:$0xf] %vm6427, %v6412
    %6433 = vst.msk [vmem:[#allocation7 + $0x78] sm:$0xf] %vm6427, %v6414
    %6434 = vst.msk [vmem:[#allocation7 + $0x90] sm:$0xf] %vm6427, %v6416
    %6435 = vst.msk [vmem:[#allocation7 + $0xa8] sm:$0xf] %vm6427, %v6418
    %v6436 = vld [vmem:[%s6215 + $0x1] sm:$0xf]
    %v6437 = vld [vmem:[%s6215 + $0x9] sm:$0xf]
    %v6438 = vld [vmem:[%s6215 + $0x11] sm:$0xf]
    %v6439 = vld [vmem:[%s6215 + $0x19] sm:$0xf]
    %v6440 = vld [vmem:[%s6215 + $0x31] sm:$0xf]
    %v6441 = vld [vmem:[%s6215 + $0x39] sm:$0xf]
    %v6442 = vld [vmem:[%s6215 + $0x41] sm:$0xf]
    %v6443 = vld [vmem:[%s6215 + $0x49] sm:$0xf]
    %6444 = vst.msk [vmem:[#allocation7 + $0x8] sm:$0xf] %vm211, %v6436
    %6445 = vst.msk [vmem:[#allocation7 + $0x20] sm:$0xf] %vm211, %v6437
    %6446 = vst.msk [vmem:[#allocation7 + $0x38] sm:$0xf] %vm211, %v6438
    %6447 = vst.msk [vmem:[#allocation7 + $0x50] sm:$0xf] %vm211, %v6439
    %6448 = vst.msk [vmem:[#allocation7 + $0x68] sm:$0xf] %vm211, %v6440
    %6449 = vst.msk [vmem:[#allocation7 + $0x80] sm:$0xf] %vm211, %v6441
    %6450 = vst.msk [vmem:[#allocation7 + $0x98] sm:$0xf] %vm211, %v6442
    %6451 = vst.msk [vmem:[#allocation7 + $0xb0] sm:$0xf] %vm211, %v6443
    %v6452 = vld [vmem:[%s6215 + $0x2] sm:$0xf]
    %v6453 = vld [vmem:[%s6215 + $0xa] sm:$0xf]
    %v6454 = vld [vmem:[%s6215 + $0x12] sm:$0xf]
    %v6455 = vld [vmem:[%s6215 + $0x1a] sm:$0xf]
    %v6456 = vld [vmem:[%s6215 + $0x32] sm:$0xf]
    %v6457 = vld [vmem:[%s6215 + $0x3a] sm:$0xf]
    %v6458 = vld [vmem:[%s6215 + $0x42] sm:$0xf]
    %v6459 = vld [vmem:[%s6215 + $0x4a] sm:$0xf]
    %6468 = vrot.lane.b32.xlu0 %v6452, 32
    %v6469 = vpop.permute.xlu0 %6468
    %6470 = vrot.lane.b32.xlu0 %v6453, 32
    %v6471 = vpop.permute.xlu0 %6470
    %6472 = vrot.lane.b32.xlu0 %v6454, 32
    %v6473 = vpop.permute.xlu0 %6472
    %6474 = vrot.lane.b32.xlu0 %v6455, 32
    %v6475 = vpop.permute.xlu0 %6474
    %6476 = vrot.lane.b32.xlu0 %v6456, 32
    %v6477 = vpop.permute.xlu0 %6476
    %6478 = vrot.lane.b32.xlu0 %v6457, 32
    %v6479 = vpop.permute.xlu0 %6478
    %6480 = vrot.lane.b32.xlu0 %v6458, 32
    %v6481 = vpop.permute.xlu0 %6480
    %6482 = vrot.lane.b32.xlu0 %v6459, 32
    %v6483 = vpop.permute.xlu0 %6482
    %6492 = vst.msk [vmem:[#allocation7 + $0x8] sm:$0xf] %vm6329, %v6469
    %6493 = vst.msk [vmem:[#allocation7 + $0x20] sm:$0xf] %vm6329, %v6471
    %6494 = vst.msk [vmem:[#allocation7 + $0x38] sm:$0xf] %vm6329, %v6473
    %6495 = vst.msk [vmem:[#allocation7 + $0x50] sm:$0xf] %vm6329, %v6475
    %6496 = vst.msk [vmem:[#allocation7 + $0x68] sm:$0xf] %vm6329, %v6477
    %6497 = vst.msk [vmem:[#allocation7 + $0x80] sm:$0xf] %vm6329, %v6479
    %6498 = vst.msk [vmem:[#allocation7 + $0x98] sm:$0xf] %vm6329, %v6481
    %6499 = vst.msk [vmem:[#allocation7 + $0xb0] sm:$0xf] %vm6329, %v6483
    %s6500 = scalar_lea.vmem [#allocation6], 16
    %v6501 = vld [vmem:[%s6500] sm:$0xf]
    %v6502 = vld [vmem:[%s6500 + $0x8] sm:$0xf]
    %v6503 = vld [vmem:[%s6500 + $0x10] sm:$0xf]
    %v6504 = vld [vmem:[%s6500 + $0x18] sm:$0xf]
    %v6505 = vld [vmem:[%s6500 + $0x30] sm:$0xf]
    %v6506 = vld [vmem:[%s6500 + $0x38] sm:$0xf]
    %v6507 = vld [vmem:[%s6500 + $0x40] sm:$0xf]
    %v6508 = vld [vmem:[%s6500 + $0x48] sm:$0xf]
    %6517 = vrot.lane.b32.xlu0 %v6501, 64
    %v6518 = vpop.permute.xlu0 %6517
    %6519 = vrot.lane.b32.xlu0 %v6502, 64
    %v6520 = vpop.permute.xlu0 %6519
    %6521 = vrot.lane.b32.xlu0 %v6503, 64
    %v6522 = vpop.permute.xlu0 %6521
    %6523 = vrot.lane.b32.xlu0 %v6504, 64
    %v6524 = vpop.permute.xlu0 %6523
    %6525 = vrot.lane.b32.xlu0 %v6505, 64
    %v6526 = vpop.permute.xlu0 %6525
    %6527 = vrot.lane.b32.xlu0 %v6506, 64
    %v6528 = vpop.permute.xlu0 %6527
    %6529 = vrot.lane.b32.xlu0 %v6507, 64
    %v6530 = vpop.permute.xlu0 %6529
    %6531 = vrot.lane.b32.xlu0 %v6508, 64
    %v6532 = vpop.permute.xlu0 %6531
    %6541 = vst.msk [vmem:[#allocation7 + $0x8] sm:$0xf] %vm6378, %v6518
    %6542 = vst.msk [vmem:[#allocation7 + $0x20] sm:$0xf] %vm6378, %v6520
    %6543 = vst.msk [vmem:[#allocation7 + $0x38] sm:$0xf] %vm6378, %v6522
    %6544 = vst.msk [vmem:[#allocation7 + $0x50] sm:$0xf] %vm6378, %v6524
    %6545 = vst.msk [vmem:[#allocation7 + $0x68] sm:$0xf] %vm6378, %v6526
    %6546 = vst.msk [vmem:[#allocation7 + $0x80] sm:$0xf] %vm6378, %v6528
    %6547 = vst.msk [vmem:[#allocation7 + $0x98] sm:$0xf] %vm6378, %v6530
    %6548 = vst.msk [vmem:[#allocation7 + $0xb0] sm:$0xf] %vm6378, %v6532
    %v6549 = vld [vmem:[%s6500 + $0x1] sm:$0xf]
    %v6550 = vld [vmem:[%s6500 + $0x9] sm:$0xf]
    %v6551 = vld [vmem:[%s6500 + $0x11] sm:$0xf]
    %v6552 = vld [vmem:[%s6500 + $0x19] sm:$0xf]
    %v6553 = vld [vmem:[%s6500 + $0x31] sm:$0xf]
    %v6554 = vld [vmem:[%s6500 + $0x39] sm:$0xf]
    %v6555 = vld [vmem:[%s6500 + $0x41] sm:$0xf]
    %v6556 = vld [vmem:[%s6500 + $0x49] sm:$0xf]
    %6565 = vrot.lane.b32.xlu0 %v6549, 96
    %v6566 = vpop.permute.xlu0 %6565
    %6567 = vrot.lane.b32.xlu0 %v6550, 96
    %v6568 = vpop.permute.xlu0 %6567
    %6569 = vrot.lane.b32.xlu0 %v6551, 96
    %v6570 = vpop.permute.xlu0 %6569
    %6571 = vrot.lane.b32.xlu0 %v6552, 96
    %v6572 = vpop.permute.xlu0 %6571
    %6573 = vrot.lane.b32.xlu0 %v6553, 96
    %v6574 = vpop.permute.xlu0 %6573
    %6575 = vrot.lane.b32.xlu0 %v6554, 96
    %v6576 = vpop.permute.xlu0 %6575
    %6577 = vrot.lane.b32.xlu0 %v6555, 96
    %v6578 = vpop.permute.xlu0 %6577
    %6579 = vrot.lane.b32.xlu0 %v6556, 96
    %v6580 = vpop.permute.xlu0 %6579
    %6589 = vst.msk [vmem:[#allocation7 + $0x8] sm:$0xf] %vm6427, %v6566
    %6590 = vst.msk [vmem:[#allocation7 + $0x20] sm:$0xf] %vm6427, %v6568
    %6591 = vst.msk [vmem:[#allocation7 + $0x38] sm:$0xf] %vm6427, %v6570
    %6592 = vst.msk [vmem:[#allocation7 + $0x50] sm:$0xf] %vm6427, %v6572
    %6593 = vst.msk [vmem:[#allocation7 + $0x68] sm:$0xf] %vm6427, %v6574
    %6594 = vst.msk [vmem:[#allocation7 + $0x80] sm:$0xf] %vm6427, %v6576
    %6595 = vst.msk [vmem:[#allocation7 + $0x98] sm:$0xf] %vm6427, %v6578
    %6596 = vst.msk [vmem:[#allocation7 + $0xb0] sm:$0xf] %vm6427, %v6580
    %v6597 = vld [vmem:[%s6500 + $0x2] sm:$0xf]
    %v6598 = vld [vmem:[%s6500 + $0xa] sm:$0xf]
    %v6599 = vld [vmem:[%s6500 + $0x12] sm:$0xf]
    %v6600 = vld [vmem:[%s6500 + $0x1a] sm:$0xf]
    %v6601 = vld [vmem:[%s6500 + $0x32] sm:$0xf]
    %v6602 = vld [vmem:[%s6500 + $0x3a] sm:$0xf]
    %v6603 = vld [vmem:[%s6500 + $0x42] sm:$0xf]
    %v6604 = vld [vmem:[%s6500 + $0x4a] sm:$0xf]
    %6605 = vst.msk [vmem:[#allocation7 + $0x10] sm:$0xf] %vm211, %v6597
    %6606 = vst.msk [vmem:[#allocation7 + $0x28] sm:$0xf] %vm211, %v6598
    %6607 = vst.msk [vmem:[#allocation7 + $0x40] sm:$0xf] %vm211, %v6599
    %6608 = vst.msk [vmem:[#allocation7 + $0x58] sm:$0xf] %vm211, %v6600
    %6609 = vst.msk [vmem:[#allocation7 + $0x70] sm:$0xf] %vm211, %v6601
    %6610 = vst.msk [vmem:[#allocation7 + $0x88] sm:$0xf] %vm211, %v6602
    %6611 = vst.msk [vmem:[#allocation7 + $0xa0] sm:$0xf] %vm211, %v6603
    %6612 = vst.msk [vmem:[#allocation7 + $0xb8] sm:$0xf] %vm211, %v6604
    %v6613 = vld [vmem:[#allocation7] sm:$0xff]
    %v6614 = vld [vmem:[#allocation7 + $0x8] sm:$0xff]
    %v6615 = vld [vmem:[#allocation7 + $0x10] sm:$0xff]
    %v6616 = vld [vmem:[#allocation7 + $0x18] sm:$0xff]
    %v6617 = vld [vmem:[#allocation7 + $0x20] sm:$0xff]
    %v6618 = vld [vmem:[#allocation7 + $0x28] sm:$0xff]
    %v6619 = vld [vmem:[#allocation7 + $0x30] sm:$0xff]
    %v6620 = vld [vmem:[#allocation7 + $0x38] sm:$0xff]
    %v6621 = vld [vmem:[#allocation7 + $0x40] sm:$0xff]
    %v6622 = vld [vmem:[#allocation7 + $0x48] sm:$0xff]
    %v6623 = vld [vmem:[#allocation7 + $0x50] sm:$0xff]
    %v6624 = vld [vmem:[#allocation7 + $0x58] sm:$0xff]
    %v6625 = vld [vmem:[#allocation7 + $0x60] sm:$0xff]
    %v6626 = vld [vmem:[#allocation7 + $0x68] sm:$0xff]
    %v6627 = vld [vmem:[#allocation7 + $0x70] sm:$0xff]
    %v6628 = vld [vmem:[#allocation7 + $0x78] sm:$0xff]
    %v6629 = vld [vmem:[#allocation7 + $0x80] sm:$0xff]
    %v6630 = vld [vmem:[#allocation7 + $0x88] sm:$0xff]
    %v6631 = vld [vmem:[#allocation7 + $0x90] sm:$0xff]
    %v6632 = vld [vmem:[#allocation7 + $0x98] sm:$0xff]
    %v6633 = vld [vmem:[#allocation7 + $0xa0] sm:$0xff]
    %v6634 = vld [vmem:[#allocation7 + $0xa8] sm:$0xff]
    %v6635 = vld [vmem:[#allocation7 + $0xb0] sm:$0xff]
    %v6636 = vld [vmem:[#allocation7 + $0xb8] sm:$0xff]
    %v6637 = vpack.c.bf16 %v6616, %v6613
    %v6638 = vpack.c.bf16 %v6617, %v6614
    %v6639 = vpack.c.bf16 %v6618, %v6615
    %v6640 = vpack.c.bf16 %v6622, %v6619
    %v6641 = vpack.c.bf16 %v6623, %v6620
    %v6642 = vpack.c.bf16 %v6624, %v6621
    %v6643 = vpack.c.bf16 %v6628, %v6625
    %v6644 = vpack.c.bf16 %v6629, %v6626
    %v6645 = vpack.c.bf16 %v6630, %v6627
    %v6646 = vpack.c.bf16 %v6634, %v6631
    %v6647 = vpack.c.bf16 %v6635, %v6632
    %v6648 = vpack.c.bf16 %v6636, %v6633
    %v6649 = vld [vmem:[%s7] sm:$0xf]
    %v6650 = vld [vmem:[%s7 + $0x4] sm:$0xf]
    %v6651 = vld [vmem:[%s7 + $0x8] sm:$0xf]
    %v6652 = vld [vmem:[%s7 + $0xc] sm:$0xf]
    %v6653 = vld [vmem:[%s7 + $0x10] sm:$0xf]
    %v6654 = vld [vmem:[%s7 + $0x14] sm:$0xf]
    %v6655 = vld [vmem:[%s7 + $0x18] sm:$0xf]
    %v6656 = vld [vmem:[%s7 + $0x1c] sm:$0xf]
    %v6657 = vld [vmem:[%s7 + $0x20] sm:$0xf]
    %v6658 = vld [vmem:[%s7 + $0x24] sm:$0xf]
    %v6659 = vld [vmem:[%s7 + $0x28] sm:$0xf]
    %v6660 = vld [vmem:[%s7 + $0x2c] sm:$0xf]
    %v6661 = vld [vmem:[%s7 + $0x30] sm:$0xf]
    %v6662 = vld [vmem:[%s7 + $0x34] sm:$0xf]
    %v6663 = vld [vmem:[%s7 + $0x38] sm:$0xf]
    %v6664 = vld [vmem:[%s7 + $0x3c] sm:$0xf]
    %v6665 = vld [vmem:[%s7 + $0x40] sm:$0xf]
    %v6666 = vld [vmem:[%s7 + $0x44] sm:$0xf]
    %v6667 = vld [vmem:[%s7 + $0x48] sm:$0xf]
    %v6668 = vld [vmem:[%s7 + $0x4c] sm:$0xf]
    %v6669 = vld [vmem:[%s7 + $0x50] sm:$0xf]
    %v6670 = vld [vmem:[%s7 + $0x54] sm:$0xf]
    %v6671 = vld [vmem:[%s7 + $0x58] sm:$0xf]
    %v6672 = vld [vmem:[%s7 + $0x5c] sm:$0xf]
    %v6673 = vld [vmem:[%s7 + $0x60] sm:$0xf]
    %v6674 = vld [vmem:[%s7 + $0x64] sm:$0xf]
    %v6675 = vld [vmem:[%s7 + $0x68] sm:$0xf]
    %v6676 = vld [vmem:[%s7 + $0x6c] sm:$0xf]
    %v6677 = vld [vmem:[%s7 + $0x70] sm:$0xf]
    %v6678 = vld [vmem:[%s7 + $0x74] sm:$0xf]
    %v6679 = vld [vmem:[%s7 + $0x78] sm:$0xf]
    %v6680 = vld [vmem:[%s7 + $0x7c] sm:$0xf]
    %v6681 = vld [vmem:[%s7 + $0x80] sm:$0xf]
    %v6682 = vld [vmem:[%s7 + $0x84] sm:$0xf]
    %v6683 = vld [vmem:[%s7 + $0x88] sm:$0xf]
    %v6684 = vld [vmem:[%s7 + $0x8c] sm:$0xf]
    %v6721 = vunpack.c.l.b16 %v6649
    %v6722 = vunpack.c.l.b16 %v6650
    %v6723 = vunpack.c.l.b16 %v6651
    %v6724 = vunpack.c.l.b16 %v6652
    %v6725 = vunpack.c.l.b16 %v6653
    %v6726 = vunpack.c.l.b16 %v6654
    %v6727 = vunpack.c.l.b16 %v6655
    %v6728 = vunpack.c.l.b16 %v6656
    %v6729 = vunpack.c.l.b16 %v6657
    %v6730 = vunpack.c.l.b16 %v6658
    %v6731 = vunpack.c.l.b16 %v6659
    %v6732 = vunpack.c.l.b16 %v6660
    %v6733 = vunpack.c.l.b16 %v6661
    %v6734 = vunpack.c.l.b16 %v6662
    %v6735 = vunpack.c.l.b16 %v6663
    %v6736 = vunpack.c.l.b16 %v6664
    %v6737 = vunpack.c.l.b16 %v6665
    %v6738 = vunpack.c.l.b16 %v6666
    %v6739 = vunpack.c.l.b16 %v6667
    %v6740 = vunpack.c.l.b16 %v6668
    %v6741 = vunpack.c.l.b16 %v6669
    %v6742 = vunpack.c.l.b16 %v6670
    %v6743 = vunpack.c.l.b16 %v6671
    %v6744 = vunpack.c.l.b16 %v6672
    %v6745 = vunpack.c.l.b16 %v6673
    %v6746 = vunpack.c.l.b16 %v6674
    %v6747 = vunpack.c.l.b16 %v6675
    %v6748 = vunpack.c.l.b16 %v6676
    %v6749 = vunpack.c.l.b16 %v6677
    %v6750 = vunpack.c.l.b16 %v6678
    %v6751 = vunpack.c.l.b16 %v6679
    %v6752 = vunpack.c.l.b16 %v6680
    %v6753 = vunpack.c.l.b16 %v6681
    %v6754 = vunpack.c.l.b16 %v6682
    %v6755 = vunpack.c.l.b16 %v6683
    %v6756 = vunpack.c.l.b16 %v6684
    %v6757 = vpack.c.b16 %v6722, %v6721
    %v6758 = vpack.c.b16 %v6724, %v6723
    %v6759 = vpack.c.b16 %v6726, %v6725
    %v6760 = vpack.c.b16 %v6728, %v6727
    %v6761 = vpack.c.b16 %v6730, %v6729
    %v6762 = vpack.c.b16 %v6732, %v6731
    %v6763 = vpack.c.b16 %v6734, %v6733
    %v6764 = vpack.c.b16 %v6736, %v6735
    %v6765 = vpack.c.b16 %v6738, %v6737
    %v6766 = vpack.c.b16 %v6740, %v6739
    %v6767 = vpack.c.b16 %v6742, %v6741
    %v6768 = vpack.c.b16 %v6744, %v6743
    %v6769 = vpack.c.b16 %v6746, %v6745
    %v6770 = vpack.c.b16 %v6748, %v6747
    %v6771 = vpack.c.b16 %v6750, %v6749
    %v6772 = vpack.c.b16 %v6752, %v6751
    %v6773 = vpack.c.b16 %v6754, %v6753
    %v6774 = vpack.c.b16 %v6756, %v6755
    %v6794 = vsel %vm156, %v6639, 0
    %v6797 = vsel %vm156, %v6642, 0
    %v6800 = vsel %vm156, %v6645, 0
    %v6803 = vsel %vm156, %v6648, 0
    %6805 = vmatprep.subr.bf16.mxu0 0
    %6806 = vmatpush1.bf16.msra.mxu0 %v6757
    %6807 = vmatprep.subr.bf16.mxu0 0
    %6808 = vmatpush1.bf16.msra.mxu0 %v6758
    %6809 = vmatprep.subr.bf16.mxu0 0
    %6810 = vmatpush1.bf16.msra.mxu0 %v6759
    %6811 = vmatprep.subr.bf16.mxu0 0
    %6812 = vmatpush1.bf16.msra.mxu0 %v6760
    %6813 = vmatprep.subr.bf16.mxu0 0
    %6814 = vmatpush1.bf16.msra.mxu0 %v6761
    %6815 = vmatprep.subr.bf16.mxu0 0
    %6816 = vmatpush1.bf16.msra.mxu0 %v6762
    %6817 = vmatprep.subr.bf16.mxu0 0
    %6818 = vmatpush1.bf16.msra.mxu0 %v6763
    %6819 = vmatprep.subr.bf16.mxu0 0
    %6820 = vmatpush1.bf16.msra.mxu0 %v6764
    %6821 = vmatprep.subr.bf16.mxu0 0
    %6822 = vmatpush1.bf16.msra.mxu0 %v6765
    %6823 = vmatprep.subr.bf16.mxu0 0
    %6824 = vmatpush1.bf16.msra.mxu0 %v6766
    %6825 = vmatprep.subr.bf16.mxu0 0
    %6826 = vmatpush1.bf16.msra.mxu0 %v6767
    %6827 = vmatprep.subr.bf16.mxu0 0
    %6828 = vmatpush1.bf16.msra.mxu0 %v6768
    %6829 = vmatprep.subr.bf16.mxu0 0
    %6830 = vmatpush1.bf16.msra.mxu0 %v6769
    %6831 = vmatprep.subr.bf16.mxu0 0
    %6832 = vmatpush1.bf16.msra.mxu0 %v6770
    %6833 = vmatprep.subr.bf16.mxu0 0
    %6834 = vmatpush1.bf16.msra.mxu0 %v6771
    %6835 = vmatprep.subr.bf16.mxu0 0
    %6836 = vmatpush1.bf16.msra.mxu0 %v6772
    %6837 = vmatprep.mubr.bf16.mxu0 %v6638
    %6838 = vmatmul.mubr.bf16.gmra.mrb[0].mxu0 %v6637
    %v6839 = vpop.f32.mrb[0].mxu0
    %v6840 = vadd.f32 0.0, %v6839
    %v6841 = vpop.f32.mrb[0].mxu0
    %v6842 = vpop.f32.mrb[0].mxu0
    %v6843 = vadd.f32 0.0, %v6842
    %v6844 = vpop.f32.mrb[0].mxu0
    %6845 = vmatprep.mubr.bf16.mxu0 %v6641
    %6846 = vmatmul.mubr.bf16.gmra.mrb[0].mxu0 %v6640
    %v6847 = vpop.f32.mrb[0].mxu0
    %v6848 = vadd.f32 0.0, %v6847
    %v6849 = vpop.f32.mrb[0].mxu0
    %v6850 = vpop.f32.mrb[0].mxu0
    %v6851 = vadd.f32 0.0, %v6850
    %v6852 = vpop.f32.mrb[0].mxu0
    %6853 = vmatprep.mubr.bf16.mxu0 %v6644
    %6854 = vmatmul.mubr.bf16.gmra.mrb[0].mxu0 %v6643
    %v6855 = vpop.f32.mrb[0].mxu0
    %v6856 = vadd.f32 0.0, %v6855
    %v6857 = vpop.f32.mrb[0].mxu0
    %v6858 = vpop.f32.mrb[0].mxu0
    %v6859 = vadd.f32 0.0, %v6858
    %v6860 = vpop.f32.mrb[0].mxu0
    %6861 = vmatprep.mubr.bf16.mxu0 %v6647
    %6862 = vmatmul.mubr.bf16.gmra.mrb[0].mxu0 %v6646
    %v6863 = vpop.f32.mrb[0].mxu0
    %v6864 = vadd.f32 0.0, %v6863
    %v6865 = vpop.f32.mrb[0].mxu0
    %v6866 = vpop.f32.mrb[0].mxu0
    %v6867 = vadd.f32 0.0, %v6866
    %v6868 = vpop.f32.mrb[0].mxu0
    %6869 = vdwg.mxu0
    %6870 = vmatprep.subr.bf16.mxu0 0
    %6871 = vmatpush1.bf16.msra.mxu0 %v6773
    %6872 = vmatprep.subr.bf16.mxu0 0
    %6873 = vmatpush1.bf16.msra.mxu0 %v6774
    %6874 = vmatprep.subr.bf16.mxu0 0
    %6875 = vmatpush1.bf16.msra.mxu0 0
    %6876 = vmatprep.subr.bf16.mxu0 0
    %6877 = vmatpush1.bf16.msra.mxu0 0
    %6878 = vmatprep.subr.bf16.mxu0 0
    %6879 = vmatpush1.bf16.msra.mxu0 0
    %6880 = vmatprep.subr.bf16.mxu0 0
    %6881 = vmatpush1.bf16.msra.mxu0 0
    %6882 = vmatprep.subr.bf16.mxu0 0
    %6883 = vmatpush1.bf16.msra.mxu0 0
    %6884 = vmatprep.subr.bf16.mxu0 0
    %6885 = vmatpush1.bf16.msra.mxu0 0
    %6886 = vmatprep.subr.bf16.mxu0 0
    %6887 = vmatpush1.bf16.msra.mxu0 0
    %6888 = vmatprep.subr.bf16.mxu0 0
    %6889 = vmatpush1.bf16.msra.mxu0 0
    %6890 = vmatprep.subr.bf16.mxu0 0
    %6891 = vmatpush1.bf16.msra.mxu0 0
    %6892 = vmatprep.subr.bf16.mxu0 0
    %6893 = vmatpush1.bf16.msra.mxu0 0
    %6894 = vmatprep.subr.bf16.mxu0 0
    %6895 = vmatpush1.bf16.msra.mxu0 0
    %6896 = vmatprep.subr.bf16.mxu0 0
    %6897 = vmatpush1.bf16.msra.mxu0 0
    %6898 = vmatprep.subr.bf16.mxu0 0
    %6899 = vmatpush1.bf16.msra.mxu0 0
    %6900 = vmatprep.subr.bf16.mxu0 0
    %6901 = vmatpush1.bf16.msra.mxu0 0
    %6902 = vmatprep.mubr.bf16.mxu0 0
    %6903 = vmatmul.mubr.bf16.gmra.mrb[0].mxu0 %v6794
    %v6904 = vpop.f32.mrb[0].mxu0
    %v6905 = vadd.f32 %v6840, %v6904
    %v6906 = vpop.f32.mrb[0].mxu0
    %v6907 = vpop.f32.mrb[0].mxu0
    %v6908 = vadd.f32 %v6843, %v6907
    %v6909 = vpop.f32.mrb[0].mxu0
    %6910 = vmatprep.mubr.bf16.mxu0 0
    %6911 = vmatmul.mubr.bf16.gmra.mrb[0].mxu0 %v6797
    %v6912 = vpop.f32.mrb[0].mxu0
    %v6913 = vadd.f32 %v6848, %v6912
    %v6914 = vpop.f32.mrb[0].mxu0
    %v6915 = vpop.f32.mrb[0].mxu0
    %v6916 = vadd.f32 %v6851, %v6915
    %v6917 = vpop.f32.mrb[0].mxu0
    %6918 = vmatprep.mubr.bf16.mxu0 0
    %6919 = vmatmul.mubr.bf16.gmra.mrb[0].mxu0 %v6800
    %v6920 = vpop.f32.mrb[0].mxu0
    %v6921 = vadd.f32 %v6856, %v6920
    %v6922 = vpop.f32.mrb[0].mxu0
    %v6923 = vpop.f32.mrb[0].mxu0
    %v6924 = vadd.f32 %v6859, %v6923
    %v6925 = vpop.f32.mrb[0].mxu0
    %6926 = vmatprep.mubr.bf16.mxu0 0
    %6927 = vmatmul.mubr.bf16.gmra.mrb[0].mxu0 %v6803
    %v6928 = vpop.f32.mrb[0].mxu0
    %v6929 = vadd.f32 %v6864, %v6928
    %v6930 = vpop.f32.mrb[0].mxu0
    %v6931 = vpop.f32.mrb[0].mxu0
    %v6932 = vadd.f32 %v6867, %v6931
    %v6933 = vpop.f32.mrb[0].mxu0
    %6934 = vdwg.mxu0
    %v6935 = vsel %vm156, %v6905, 0.0
    %v6936 = vsel %vm156, %v6908, 0.0
    %v6937 = vadd.f32 %v6935, %v6936
    %v6938 = vsel %vm156, %v6913, 0.0
    %v6939 = vadd.f32 %v6937, %v6938
    %v6940 = vsel %vm156, %v6916, 0.0
    %v6941 = vadd.f32 %v6939, %v6940
    %v6942 = vsel %vm156, %v6921, 0.0
    %v6943 = vadd.f32 %v6941, %v6942
    %v6944 = vsel %vm156, %v6924, 0.0
    %v6945 = vadd.f32 %v6943, %v6944
    %v6946 = vsel %vm156, %v6929, 0.0
    %v6947 = vadd.f32 %v6945, %v6946
    %v6948 = vsel %vm156, %v6932, 0.0
    %v6949 = vadd.f32 %v6947, %v6948
    %v6950 = vrot.slane %v6949, 4
    %v6951 = vadd.f32 %v6949, %v6950
    %v6952 = vrot.slane %v6951, 2
    %v6953 = vadd.f32 %v6951, %v6952
    %v6954 = vrot.slane %v6953, 1
    %v6955 = vadd.f32 %v6953, %v6954
    %v6956 = vrcp.pop 32.0
    %v6957 = vmul.f32 %v6955, %v6956
    %v6958 = vmul.f32 %v6905, %v6905
    %v6959 = vmul.f32 %v6908, %v6908
    %v6960 = vmul.f32 %v6913, %v6913
    %v6961 = vmul.f32 %v6916, %v6916
    %v6962 = vmul.f32 %v6921, %v6921
    %v6963 = vmul.f32 %v6924, %v6924
    %v6964 = vmul.f32 %v6929, %v6929
    %v6965 = vmul.f32 %v6932, %v6932
    %v6966 = vsel %vm156, %v6958, 0.0
    %v6967 = vsel %vm156, %v6959, 0.0
    %v6968 = vadd.f32 %v6966, %v6967
    %v6969 = vsel %vm156, %v6960, 0.0
    %v6970 = vadd.f32 %v6968, %v6969
    %v6971 = vsel %vm156, %v6961, 0.0
    %v6972 = vadd.f32 %v6970, %v6971
    %v6973 = vsel %vm156, %v6962, 0.0
    %v6974 = vadd.f32 %v6972, %v6973
    %v6975 = vsel %vm156, %v6963, 0.0
    %v6976 = vadd.f32 %v6974, %v6975
    %v6977 = vsel %vm156, %v6964, 0.0
    %v6978 = vadd.f32 %v6976, %v6977
    %v6979 = vsel %vm156, %v6965, 0.0
    %v6980 = vadd.f32 %v6978, %v6979
    %v6981 = vrot.slane %v6980, 4
    %v6982 = vadd.f32 %v6980, %v6981
    %v6983 = vrot.slane %v6982, 2
    %v6984 = vadd.f32 %v6982, %v6983
    %v6985 = vrot.slane %v6984, 1
    %v6986 = vadd.f32 %v6984, %v6985
    %v6987 = vmul.f32 %v6986, %v6956
    %v6988 = vmul.f32 %v6957, %v6957
    %v6989 = vsub.f32 %v6987, %v6988
    %v6990 = vld [vmem:[%s8] sm:$0x1]
    %v6991 = vadd.f32 %v6989, 1e-05
    %v6992 = vrsqrt.pop %v6991
    %v6993 = vmul.f32 %v6990, %v6992
    %v6994 = vld [vmem:[%s9] sm:$0x1]
    %v6995 = vmul.f32 %v6957, %v6993
    %v6996 = vsub.f32 %v6994, %v6995
    %v6998 = vlaneseq
    %v6999 = vshrl.u32 %v6998, 7
    %v7000 = vsub.s32 0, %v6999
    %v7001 = vrot.slane %v6993, %v7000
    %v7003 = vmul.f32 %v6905, %v7001
    %v7004 = vmul.f32 %v6908, %v7001
    %v7005 = vmul.f32 %v6913, %v7001
    %v7006 = vmul.f32 %v6916, %v7001
    %v7007 = vmul.f32 %v6921, %v7001
    %v7008 = vmul.f32 %v6924, %v7001
    %v7009 = vmul.f32 %v6929, %v7001
    %v7010 = vmul.f32 %v6932, %v7001
    %v7012 = vlaneseq
    %v7013 = vshrl.u32 %v7012, 7
    %v7014 = vsub.s32 0, %v7013
    %v7015 = vrot.slane %v6996, %v7014
    %v7017 = vadd.f32 %v7003, %v7015
    %v7018 = vadd.f32 %v7004, %v7015
    %v7019 = vadd.f32 %v7005, %v7015
    %v7020 = vadd.f32 %v7006, %v7015
    %v7021 = vadd.f32 %v7007, %v7015
    %v7022 = vadd.f32 %v7008, %v7015
    %v7023 = vadd.f32 %v7009, %v7015
    %v7024 = vadd.f32 %v7010, %v7015
    %v7025 = vmax.f32 %v7017, 0.0
    %v7026 = vmax.f32 %v7018, 0.0
    %v7027 = vmax.f32 %v7019, 0.0
    %v7028 = vmax.f32 %v7020, 0.0
    %v7029 = vmax.f32 %v7021, 0.0
    %v7030 = vmax.f32 %v7022, 0.0
    %v7031 = vmax.f32 %v7023, 0.0
    %v7032 = vmax.f32 %v7024, 0.0
    %v7033 = vmax.f32 %v7025, %v7026
    %v7034 = vmax.f32 %v7027, %v7028
    %v7035 = vmax.f32 %v7029, %v7030
    %v7036 = vmax.f32 %v7031, %v7032
    %v7041 = vrot.slane %v7033, 1
    %v7042 = vrot.slane %v7034, 1
    %v7043 = vrot.slane %v7035, 1
    %v7044 = vrot.slane %v7036, 1
    %v7049 = vmax.f32 %v7033, %v7041
    %v7050 = vmax.f32 %v7034, %v7042
    %v7051 = vmax.f32 %v7035, %v7043
    %v7052 = vmax.f32 %v7036, %v7044
    %s7053 = scalar_lea.vmem [#allocation8], 4
    %7054 = vst.msk [vmem:[%s7053 + $0x1] sm:$0x1] %vm4707, %v7049
    %7055 = vst.msk [vmem:[%s7053 + $0x5] sm:$0x1] %vm4707, %v7050
    %7056 = vst.msk [vmem:[%s7053 + $0x11] sm:$0x1] %vm4707, %v7051
    %7057 = vst.msk [vmem:[%s7053 + $0x15] sm:$0x1] %vm4707, %v7052
    %7058 = vst.msk [vmem:[%s7053] sm:$0x4] %vm4724, %v7049
    %7059 = vst.msk [vmem:[%s7053 + $0x4] sm:$0x4] %vm4724, %v7050
    %7060 = vst.msk [vmem:[%s7053 + $0x10] sm:$0x4] %vm4724, %v7051
    %7061 = vst.msk [vmem:[%s7053 + $0x14] sm:$0x4] %vm4724, %v7052
    %7062 = vst [vmem:[#allocation9] sm:$0xfc] 0.0
    %7063 = vst [vmem:[#allocation9 + $0x8] sm:$0xfc] 0.0
    %vm7064 = vcmask 261122
    %7065 = vst.msk [vmem:[#allocation9 + $0x10] sm:$0xfc] %vm7064, 0.0
    %7066 = vst [vmem:[#allocation9 + $0x18] sm:$0xfc] 0.0
    %7067 = vst [vmem:[#allocation9 + $0x20] sm:$0xfc] 0.0
    %7068 = vst.msk [vmem:[#allocation9 + $0x28] sm:$0xfc] %vm7064, 0.0
    %7069 = vst [vmem:[#allocation9 + $0x30] sm:$0xfc] 0.0
    %7070 = vst [vmem:[#allocation9 + $0x38] sm:$0xfc] 0.0
    %7071 = vst.msk [vmem:[#allocation9 + $0x40] sm:$0xfc] %vm7064, 0.0
    %7072 = vst [vmem:[#allocation9 + $0x48] sm:$0xfc] 0.0
    %7073 = vst [vmem:[#allocation9 + $0x50] sm:$0xfc] 0.0
    %7074 = vst.msk [vmem:[#allocation9 + $0x58] sm:$0xfc] %vm7064, 0.0
    %v7075 = vld [vmem:[#allocation8] sm:$0x3]
    %v7076 = vld [vmem:[#allocation8 + $0x4] sm:$0x3]
    %v7077 = vld [vmem:[#allocation8 + $0x10] sm:$0x3]
    %v7078 = vld [vmem:[#allocation8 + $0x14] sm:$0x3]
    %7079 = vst.msk [vmem:[#allocation9] sm:$0x3] %vm158, %v7075
    %7080 = vst.msk [vmem:[#allocation9 + $0x18] sm:$0x3] %vm158, %v7076
    %7081 = vst.msk [vmem:[#allocation9 + $0x30] sm:$0x3] %vm158, %v7077
    %7082 = vst.msk [vmem:[#allocation9 + $0x48] sm:$0x3] %vm158, %v7078
    %v7083 = vld [vmem:[#allocation8 + $0x1] sm:$0x3]
    %v7084 = vld [vmem:[#allocation8 + $0x5] sm:$0x3]
    %v7085 = vld [vmem:[#allocation8 + $0x11] sm:$0x3]
    %v7086 = vld [vmem:[#allocation8 + $0x15] sm:$0x3]
    %7091 = vrot.lane.b32.xlu0 %v7083, 32
    %v7092 = vpop.permute.xlu0 %7091
    %7093 = vrot.lane.b32.xlu0 %v7084, 32
    %v7094 = vpop.permute.xlu0 %7093
    %7095 = vrot.lane.b32.xlu0 %v7085, 32
    %v7096 = vpop.permute.xlu0 %7095
    %7097 = vrot.lane.b32.xlu0 %v7086, 32
    %v7098 = vpop.permute.xlu0 %7097
    %vm7103 = vcmask 517376
    %7104 = vst.msk [vmem:[#allocation9] sm:$0x3] %vm7103, %v7092
    %7105 = vst.msk [vmem:[#allocation9 + $0x18] sm:$0x3] %vm7103, %v7094
    %7106 = vst.msk [vmem:[#allocation9 + $0x30] sm:$0x3] %vm7103, %v7096
    %7107 = vst.msk [vmem:[#allocation9 + $0x48] sm:$0x3] %vm7103, %v7098
    %v7108 = vld [vmem:[#allocation8 + $0x2] sm:$0x3]
    %v7109 = vld [vmem:[#allocation8 + $0x6] sm:$0x3]
    %v7110 = vld [vmem:[#allocation8 + $0x12] sm:$0x3]
    %v7111 = vld [vmem:[#allocation8 + $0x16] sm:$0x3]
    %7116 = vrot.lane.b32.xlu0 %v7108, 64
    %v7117 = vpop.permute.xlu0 %7116
    %7118 = vrot.lane.b32.xlu0 %v7109, 64
    %v7119 = vpop.permute.xlu0 %7118
    %7120 = vrot.lane.b32.xlu0 %v7110, 64
    %v7121 = vpop.permute.xlu0 %7120
    %7122 = vrot.lane.b32.xlu0 %v7111, 64
    %v7123 = vpop.permute.xlu0 %7122
    %vm7128 = vcmask 779776
    %7129 = vst.msk [vmem:[#allocation9] sm:$0x3] %vm7128, %v7117
    %7130 = vst.msk [vmem:[#allocation9 + $0x18] sm:$0x3] %vm7128, %v7119
    %7131 = vst.msk [vmem:[#allocation9 + $0x30] sm:$0x3] %vm7128, %v7121
    %7132 = vst.msk [vmem:[#allocation9 + $0x48] sm:$0x3] %vm7128, %v7123
    %v7133 = vld [vmem:[%s7053] sm:$0x3]
    %v7134 = vld [vmem:[%s7053 + $0x4] sm:$0x3]
    %v7135 = vld [vmem:[%s7053 + $0x10] sm:$0x3]
    %v7136 = vld [vmem:[%s7053 + $0x14] sm:$0x3]
    %7141 = vrot.lane.b32.xlu0 %v7133, 96
    %v7142 = vpop.permute.xlu0 %7141
    %7143 = vrot.lane.b32.xlu0 %v7134, 96
    %v7144 = vpop.permute.xlu0 %7143
    %7145 = vrot.lane.b32.xlu0 %v7135, 96
    %v7146 = vpop.permute.xlu0 %7145
    %7147 = vrot.lane.b32.xlu0 %v7136, 96
    %v7148 = vpop.permute.xlu0 %7147
    %vm7153 = vcmask 1042176
    %7154 = vst.msk [vmem:[#allocation9] sm:$0x3] %vm7153, %v7142
    %7155 = vst.msk [vmem:[#allocation9 + $0x18] sm:$0x3] %vm7153, %v7144
    %7156 = vst.msk [vmem:[#allocation9 + $0x30] sm:$0x3] %vm7153, %v7146
    %7157 = vst.msk [vmem:[#allocation9 + $0x48] sm:$0x3] %vm7153, %v7148
    %v7158 = vld [vmem:[%s7053 + $0x1] sm:$0x3]
    %v7159 = vld [vmem:[%s7053 + $0x5] sm:$0x3]
    %v7160 = vld [vmem:[%s7053 + $0x11] sm:$0x3]
    %v7161 = vld [vmem:[%s7053 + $0x15] sm:$0x3]
    %7162 = vst.msk [vmem:[#allocation9 + $0x8] sm:$0x3] %vm158, %v7158
    %7163 = vst.msk [vmem:[#allocation9 + $0x20] sm:$0x3] %vm158, %v7159
    %7164 = vst.msk [vmem:[#allocation9 + $0x38] sm:$0x3] %vm158, %v7160
    %7165 = vst.msk [vmem:[#allocation9 + $0x50] sm:$0x3] %vm158, %v7161
    %v7166 = vld [vmem:[%s7053 + $0x2] sm:$0x3]
    %v7167 = vld [vmem:[%s7053 + $0x6] sm:$0x3]
    %v7168 = vld [vmem:[%s7053 + $0x12] sm:$0x3]
    %v7169 = vld [vmem:[%s7053 + $0x16] sm:$0x3]
    %7174 = vrot.lane.b32.xlu0 %v7166, 32
    %v7175 = vpop.permute.xlu0 %7174
    %7176 = vrot.lane.b32.xlu0 %v7167, 32
    %v7177 = vpop.permute.xlu0 %7176
    %7178 = vrot.lane.b32.xlu0 %v7168, 32
    %v7179 = vpop.permute.xlu0 %7178
    %7180 = vrot.lane.b32.xlu0 %v7169, 32
    %v7181 = vpop.permute.xlu0 %7180
    %7186 = vst.msk [vmem:[#allocation9 + $0x8] sm:$0x3] %vm7103, %v7175
    %7187 = vst.msk [vmem:[#allocation9 + $0x20] sm:$0x3] %vm7103, %v7177
    %7188 = vst.msk [vmem:[#allocation9 + $0x38] sm:$0x3] %vm7103, %v7179
    %7189 = vst.msk [vmem:[#allocation9 + $0x50] sm:$0x3] %vm7103, %v7181
    %s7190 = scalar_lea.vmem [#allocation8], 8
    %v7191 = vld [vmem:[%s7190] sm:$0x3]
    %v7192 = vld [vmem:[%s7190 + $0x4] sm:$0x3]
    %v7193 = vld [vmem:[%s7190 + $0x10] sm:$0x3]
    %v7194 = vld [vmem:[%s7190 + $0x14] sm:$0x3]
    %7199 = vrot.lane.b32.xlu0 %v7191, 64
    %v7200 = vpop.permute.xlu0 %7199
    %7201 = vrot.lane.b32.xlu0 %v7192, 64
    %v7202 = vpop.permute.xlu0 %7201
    %7203 = vrot.lane.b32.xlu0 %v7193, 64
    %v7204 = vpop.permute.xlu0 %7203
    %7205 = vrot.lane.b32.xlu0 %v7194, 64
    %v7206 = vpop.permute.xlu0 %7205
    %7211 = vst.msk [vmem:[#allocation9 + $0x8] sm:$0x3] %vm7128, %v7200
    %7212 = vst.msk [vmem:[#allocation9 + $0x20] sm:$0x3] %vm7128, %v7202
    %7213 = vst.msk [vmem:[#allocation9 + $0x38] sm:$0x3] %vm7128, %v7204
    %7214 = vst.msk [vmem:[#allocation9 + $0x50] sm:$0x3] %vm7128, %v7206
    %v7215 = vld [vmem:[%s7190 + $0x1] sm:$0x3]
    %v7216 = vld [vmem:[%s7190 + $0x5] sm:$0x3]
    %v7217 = vld [vmem:[%s7190 + $0x11] sm:$0x3]
    %v7218 = vld [vmem:[%s7190 + $0x15] sm:$0x3]
    %7223 = vrot.lane.b32.xlu0 %v7215, 96
    %v7224 = vpop.permute.xlu0 %7223
    %7225 = vrot.lane.b32.xlu0 %v7216, 96
    %v7226 = vpop.permute.xlu0 %7225
    %7227 = vrot.lane.b32.xlu0 %v7217, 96
    %v7228 = vpop.permute.xlu0 %7227
    %7229 = vrot.lane.b32.xlu0 %v7218, 96
    %v7230 = vpop.permute.xlu0 %7229
    %7235 = vst.msk [vmem:[#allocation9 + $0x8] sm:$0x3] %vm7153, %v7224
    %7236 = vst.msk [vmem:[#allocation9 + $0x20] sm:$0x3] %vm7153, %v7226
    %7237 = vst.msk [vmem:[#allocation9 + $0x38] sm:$0x3] %vm7153, %v7228
    %7238 = vst.msk [vmem:[#allocation9 + $0x50] sm:$0x3] %vm7153, %v7230
    %v7239 = vld [vmem:[%s7190 + $0x2] sm:$0x3]
    %v7240 = vld [vmem:[%s7190 + $0x6] sm:$0x3]
    %v7241 = vld [vmem:[%s7190 + $0x12] sm:$0x3]
    %v7242 = vld [vmem:[%s7190 + $0x16] sm:$0x3]
    %7243 = vst.msk [vmem:[#allocation9 + $0x10] sm:$0x3] %vm158, %v7239
    %7244 = vst.msk [vmem:[#allocation9 + $0x28] sm:$0x3] %vm158, %v7240
    %7245 = vst.msk [vmem:[#allocation9 + $0x40] sm:$0x3] %vm158, %v7241
    %7246 = vst.msk [vmem:[#allocation9 + $0x58] sm:$0x3] %vm158, %v7242
    %v7247 = vld [vmem:[#allocation9] sm:$0xff]
    %v7248 = vld [vmem:[#allocation9 + $0x8] sm:$0xff]
    %v7249 = vld [vmem:[#allocation9 + $0x10] sm:$0xff]
    %v7250 = vld [vmem:[#allocation9 + $0x18] sm:$0xff]
    %v7251 = vld [vmem:[#allocation9 + $0x20] sm:$0xff]
    %v7252 = vld [vmem:[#allocation9 + $0x28] sm:$0xff]
    %v7253 = vld [vmem:[#allocation9 + $0x30] sm:$0xff]
    %v7254 = vld [vmem:[#allocation9 + $0x38] sm:$0xff]
    %v7255 = vld [vmem:[#allocation9 + $0x40] sm:$0xff]
    %v7256 = vld [vmem:[#allocation9 + $0x48] sm:$0xff]
    %v7257 = vld [vmem:[#allocation9 + $0x50] sm:$0xff]
    %v7258 = vld [vmem:[#allocation9 + $0x58] sm:$0xff]
    %v7259 = vpack.c.bf16 %v7250, %v7247
    %v7260 = vpack.c.bf16 %v7251, %v7248
    %v7261 = vpack.c.bf16 %v7252, %v7249
    %v7262 = vpack.c.bf16 %v7256, %v7253
    %v7263 = vpack.c.bf16 %v7257, %v7254
    %v7264 = vpack.c.bf16 %v7258, %v7255
    %v7265 = vld [vmem:[%s10] sm:$0xf]
    %v7266 = vld [vmem:[%s10 + $0x4] sm:$0xf]
    %v7267 = vld [vmem:[%s10 + $0x8] sm:$0xf]
    %v7268 = vld [vmem:[%s10 + $0xc] sm:$0xf]
    %v7269 = vld [vmem:[%s10 + $0x10] sm:$0xf]
    %v7270 = vld [vmem:[%s10 + $0x14] sm:$0xf]
    %v7271 = vld [vmem:[%s10 + $0x18] sm:$0xf]
    %v7272 = vld [vmem:[%s10 + $0x1c] sm:$0xf]
    %v7273 = vld [vmem:[%s10 + $0x20] sm:$0xf]
    %v7274 = vld [vmem:[%s10 + $0x24] sm:$0xf]
    %v7275 = vld [vmem:[%s10 + $0x28] sm:$0xf]
    %v7276 = vld [vmem:[%s10 + $0x2c] sm:$0xf]
    %v7277 = vld [vmem:[%s10 + $0x30] sm:$0xf]
    %v7278 = vld [vmem:[%s10 + $0x34] sm:$0xf]
    %v7279 = vld [vmem:[%s10 + $0x38] sm:$0xf]
    %v7280 = vld [vmem:[%s10 + $0x3c] sm:$0xf]
    %v7281 = vld [vmem:[%s10 + $0x40] sm:$0xf]
    %v7282 = vld [vmem:[%s10 + $0x44] sm:$0xf]
    %v7283 = vld [vmem:[%s10 + $0x48] sm:$0xf]
    %v7284 = vld [vmem:[%s10 + $0x4c] sm:$0xf]
    %v7285 = vld [vmem:[%s10 + $0x50] sm:$0xf]
    %v7286 = vld [vmem:[%s10 + $0x54] sm:$0xf]
    %v7287 = vld [vmem:[%s10 + $0x58] sm:$0xf]
    %v7288 = vld [vmem:[%s10 + $0x5c] sm:$0xf]
    %v7289 = vld [vmem:[%s10 + $0x60] sm:$0xf]
    %v7290 = vld [vmem:[%s10 + $0x64] sm:$0xf]
    %v7291 = vld [vmem:[%s10 + $0x68] sm:$0xf]
    %v7292 = vld [vmem:[%s10 + $0x6c] sm:$0xf]
    %v7293 = vld [vmem:[%s10 + $0x70] sm:$0xf]
    %v7294 = vld [vmem:[%s10 + $0x74] sm:$0xf]
    %v7295 = vld [vmem:[%s10 + $0x78] sm:$0xf]
    %v7296 = vld [vmem:[%s10 + $0x7c] sm:$0xf]
    %v7297 = vld [vmem:[%s10 + $0x80] sm:$0xf]
    %v7298 = vld [vmem:[%s10 + $0x84] sm:$0xf]
    %v7299 = vld [vmem:[%s10 + $0x88] sm:$0xf]
    %v7300 = vld [vmem:[%s10 + $0x8c] sm:$0xf]
    %v7337 = vunpack.c.l.b16 %v7265
    %v7338 = vunpack.c.l.b16 %v7266
    %v7339 = vunpack.c.l.b16 %v7267
    %v7340 = vunpack.c.l.b16 %v7268
    %v7341 = vunpack.c.l.b16 %v7269
    %v7342 = vunpack.c.l.b16 %v7270
    %v7343 = vunpack.c.l.b16 %v7271
    %v7344 = vunpack.c.l.b16 %v7272
    %v7345 = vunpack.c.l.b16 %v7273
    %v7346 = vunpack.c.l.b16 %v7274
    %v7347 = vunpack.c.l.b16 %v7275
    %v7348 = vunpack.c.l.b16 %v7276
    %v7349 = vunpack.c.l.b16 %v7277
    %v7350 = vunpack.c.l.b16 %v7278
    %v7351 = vunpack.c.l.b16 %v7279
    %v7352 = vunpack.c.l.b16 %v7280
    %v7353 = vunpack.c.l.b16 %v7281
    %v7354 = vunpack.c.l.b16 %v7282
    %v7355 = vunpack.c.l.b16 %v7283
    %v7356 = vunpack.c.l.b16 %v7284
    %v7357 = vunpack.c.l.b16 %v7285
    %v7358 = vunpack.c.l.b16 %v7286
    %v7359 = vunpack.c.l.b16 %v7287
    %v7360 = vunpack.c.l.b16 %v7288
    %v7361 = vunpack.c.l.b16 %v7289
    %v7362 = vunpack.c.l.b16 %v7290
    %v7363 = vunpack.c.l.b16 %v7291
    %v7364 = vunpack.c.l.b16 %v7292
    %v7365 = vunpack.c.l.b16 %v7293
    %v7366 = vunpack.c.l.b16 %v7294
    %v7367 = vunpack.c.l.b16 %v7295
    %v7368 = vunpack.c.l.b16 %v7296
    %v7369 = vunpack.c.l.b16 %v7297
    %v7370 = vunpack.c.l.b16 %v7298
    %v7371 = vunpack.c.l.b16 %v7299
    %v7372 = vunpack.c.l.b16 %v7300
    %v7373 = vpack.c.b16 %v7338, %v7337
    %v7374 = vpack.c.b16 %v7340, %v7339
    %v7375 = vpack.c.b16 %v7342, %v7341
    %v7376 = vpack.c.b16 %v7344, %v7343
    %v7377 = vpack.c.b16 %v7346, %v7345
    %v7378 = vpack.c.b16 %v7348, %v7347
    %v7379 = vpack.c.b16 %v7350, %v7349
    %v7380 = vpack.c.b16 %v7352, %v7351
    %v7381 = vpack.c.b16 %v7354, %v7353
    %v7382 = vpack.c.b16 %v7356, %v7355
    %v7383 = vpack.c.b16 %v7358, %v7357
    %v7384 = vpack.c.b16 %v7360, %v7359
    %v7385 = vpack.c.b16 %v7362, %v7361
    %v7386 = vpack.c.b16 %v7364, %v7363
    %v7387 = vpack.c.b16 %v7366, %v7365
    %v7388 = vpack.c.b16 %v7368, %v7367
    %v7389 = vpack.c.b16 %v7370, %v7369
    %v7390 = vpack.c.b16 %v7372, %v7371
    %v7410 = vsel %vm156, %v7261, 0
    %v7413 = vsel %vm156, %v7264, 0
    %7415 = vmatprep.subr.bf16.mxu0 0
    %7416 = vmatpush1.bf16.msra.mxu0 %v7373
    %7417 = vmatprep.subr.bf16.mxu0 0
    %7418 = vmatpush1.bf16.msra.mxu0 %v7374
    %7419 = vmatprep.subr.bf16.mxu0 0
    %7420 = vmatpush1.bf16.msra.mxu0 %v7375
    %7421 = vmatprep.subr.bf16.mxu0 0
    %7422 = vmatpush1.bf16.msra.mxu0 %v7376
    %7423 = vmatprep.subr.bf16.mxu0 0
    %7424 = vmatpush1.bf16.msra.mxu0 %v7377
    %7425 = vmatprep.subr.bf16.mxu0 0
    %7426 = vmatpush1.bf16.msra.mxu0 %v7378
    %7427 = vmatprep.subr.bf16.mxu0 0
    %7428 = vmatpush1.bf16.msra.mxu0 %v7379
    %7429 = vmatprep.subr.bf16.mxu0 0
    %7430 = vmatpush1.bf16.msra.mxu0 %v7380
    %7431 = vmatprep.subr.bf16.mxu0 0
    %7432 = vmatpush1.bf16.msra.mxu0 %v7381
    %7433 = vmatprep.subr.bf16.mxu0 0
    %7434 = vmatpush1.bf16.msra.mxu0 %v7382
    %7435 = vmatprep.subr.bf16.mxu0 0
    %7436 = vmatpush1.bf16.msra.mxu0 %v7383
    %7437 = vmatprep.subr.bf16.mxu0 0
    %7438 = vmatpush1.bf16.msra.mxu0 %v7384
    %7439 = vmatprep.subr.bf16.mxu0 0
    %7440 = vmatpush1.bf16.msra.mxu0 %v7385
    %7441 = vmatprep.subr.bf16.mxu0 0
    %7442 = vmatpush1.bf16.msra.mxu0 %v7386
    %7443 = vmatprep.subr.bf16.mxu0 0
    %7444 = vmatpush1.bf16.msra.mxu0 %v7387
    %7445 = vmatprep.subr.bf16.mxu0 0
    %7446 = vmatpush1.bf16.msra.mxu0 %v7388
    %7447 = vmatprep.mubr.bf16.mxu0 %v7260
    %7448 = vmatmul.mubr.bf16.gmra.mrb[0].mxu0 %v7259
    %v7449 = vpop.f32.mrb[0].mxu0
    %v7450 = vadd.f32 0.0, %v7449
    %v7451 = vpop.f32.mrb[0].mxu0
    %v7452 = vpop.f32.mrb[0].mxu0
    %v7453 = vadd.f32 0.0, %v7452
    %v7454 = vpop.f32.mrb[0].mxu0
    %7455 = vmatprep.mubr.bf16.mxu0 %v7263
    %7456 = vmatmul.mubr.bf16.gmra.mrb[0].mxu0 %v7262
    %v7457 = vpop.f32.mrb[0].mxu0
    %v7458 = vadd.f32 0.0, %v7457
    %v7459 = vpop.f32.mrb[0].mxu0
    %v7460 = vpop.f32.mrb[0].mxu0
    %v7461 = vadd.f32 0.0, %v7460
    %v7462 = vpop.f32.mrb[0].mxu0
    %7463 = vdwg.mxu0
    %7464 = vmatprep.subr.bf16.mxu0 0
    %7465 = vmatpush1.bf16.msra.mxu0 %v7389
    %7466 = vmatprep.subr.bf16.mxu0 0
    %7467 = vmatpush1.bf16.msra.mxu0 %v7390
    %7468 = vmatprep.subr.bf16.mxu0 0
    %7469 = vmatpush1.bf16.msra.mxu0 0
    %7470 = vmatprep.subr.bf16.mxu0 0
    %7471 = vmatpush1.bf16.msra.mxu0 0
    %7472 = vmatprep.subr.bf16.mxu0 0
    %7473 = vmatpush1.bf16.msra.mxu0 0
    %7474 = vmatprep.subr.bf16.mxu0 0
    %7475 = vmatpush1.bf16.msra.mxu0 0
    %7476 = vmatprep.subr.bf16.mxu0 0
    %7477 = vmatpush1.bf16.msra.mxu0 0
    %7478 = vmatprep.subr.bf16.mxu0 0
    %7479 = vmatpush1.bf16.msra.mxu0 0
    %7480 = vmatprep.subr.bf16.mxu0 0
    %7481 = vmatpush1.bf16.msra.mxu0 0
    %7482 = vmatprep.subr.bf16.mxu0 0
    %7483 = vmatpush1.bf16.msra.mxu0 0
    %7484 = vmatprep.subr.bf16.mxu0 0
    %7485 = vmatpush1.bf16.msra.mxu0 0
    %7486 = vmatprep.subr.bf16.mxu0 0
    %7487 = vmatpush1.bf16.msra.mxu0 0
    %7488 = vmatprep.subr.bf16.mxu0 0
    %7489 = vmatpush1.bf16.msra.mxu0 0
    %7490 = vmatprep.subr.bf16.mxu0 0
    %7491 = vmatpush1.bf16.msra.mxu0 0
    %7492 = vmatprep.subr.bf16.mxu0 0
    %7493 = vmatpush1.bf16.msra.mxu0 0
    %7494 = vmatprep.subr.bf16.mxu0 0
    %7495 = vmatpush1.bf16.msra.mxu0 0
    %7496 = vmatprep.mubr.bf16.mxu0 0
    %7497 = vmatmul.mubr.bf16.gmra.mrb[0].mxu0 %v7410
    %v7498 = vpop.f32.mrb[0].mxu0
    %v7499 = vadd.f32 %v7450, %v7498
    %v7500 = vpop.f32.mrb[0].mxu0
    %v7501 = vpop.f32.mrb[0].mxu0
    %v7502 = vadd.f32 %v7453, %v7501
    %v7503 = vpop.f32.mrb[0].mxu0
    %7504 = vmatprep.mubr.bf16.mxu0 0
    %7505 = vmatmul.mubr.bf16.gmra.mrb[0].mxu0 %v7413
    %v7506 = vpop.f32.mrb[0].mxu0
    %v7507 = vadd.f32 %v7458, %v7506
    %v7508 = vpop.f32.mrb[0].mxu0
    %v7509 = vpop.f32.mrb[0].mxu0
    %v7510 = vadd.f32 %v7461, %v7509
    %v7511 = vpop.f32.mrb[0].mxu0
    %7512 = vdwg.mxu0
    %v7513 = vsel %vm156, %v7499, 0.0
    %v7514 = vsel %vm156, %v7502, 0.0
    %v7515 = vadd.f32 %v7513, %v7514
    %v7516 = vsel %vm156, %v7507, 0.0
    %v7517 = vadd.f32 %v7515, %v7516
    %v7518 = vsel %vm156, %v7510, 0.0
    %v7519 = vadd.f32 %v7517, %v7518
    %v7520 = vrot.slane %v7519, 4
    %v7521 = vadd.f32 %v7519, %v7520
    %v7522 = vrot.slane %v7521, 2
    %v7523 = vadd.f32 %v7521, %v7522
    %v7524 = vrot.slane %v7523, 1
    %v7525 = vadd.f32 %v7523, %v7524
    %v7526 = vrcp.pop 8.0
    %v7527 = vmul.f32 %v7525, %v7526
    %v7528 = vmul.f32 %v7499, %v7499
    %v7529 = vmul.f32 %v7502, %v7502
    %v7530 = vmul.f32 %v7507, %v7507
    %v7531 = vmul.f32 %v7510, %v7510
    %v7532 = vsel %vm156, %v7528, 0.0
    %v7533 = vsel %vm156, %v7529, 0.0
    %v7534 = vadd.f32 %v7532, %v7533
    %v7535 = vsel %vm156, %v7530, 0.0
    %v7536 = vadd.f32 %v7534, %v7535
    %v7537 = vsel %vm156, %v7531, 0.0
    %v7538 = vadd.f32 %v7536, %v7537
    %v7539 = vrot.slane %v7538, 4
    %v7540 = vadd.f32 %v7538, %v7539
    %v7541 = vrot.slane %v7540, 2
    %v7542 = vadd.f32 %v7540, %v7541
    %v7543 = vrot.slane %v7542, 1
    %v7544 = vadd.f32 %v7542, %v7543
    %v7545 = vmul.f32 %v7544, %v7526
    %v7546 = vmul.f32 %v7527, %v7527
    %v7547 = vsub.f32 %v7545, %v7546
    %v7548 = vld [vmem:[%s11] sm:$0x1]
    %v7549 = vadd.f32 %v7547, 1e-05
    %v7550 = vrsqrt.pop %v7549
    %v7551 = vmul.f32 %v7548, %v7550
    %v7552 = vld [vmem:[%s12] sm:$0x1]
    %v7553 = vmul.f32 %v7527, %v7551
    %v7554 = vsub.f32 %v7552, %v7553
    %v7556 = vlaneseq
    %v7557 = vshrl.u32 %v7556, 7
    %v7558 = vsub.s32 0, %v7557
    %v7559 = vrot.slane %v7551, %v7558
    %v7561 = vmul.f32 %v7499, %v7559
    %v7562 = vmul.f32 %v7502, %v7559
    %v7563 = vmul.f32 %v7507, %v7559
    %v7564 = vmul.f32 %v7510, %v7559
    %v7566 = vlaneseq
    %v7567 = vshrl.u32 %v7566, 7
    %v7568 = vsub.s32 0, %v7567
    %v7569 = vrot.slane %v7554, %v7568
    %v7571 = vadd.f32 %v7561, %v7569
    %v7572 = vadd.f32 %v7562, %v7569
    %v7573 = vadd.f32 %v7563, %v7569
    %v7574 = vadd.f32 %v7564, %v7569
    %v7575 = vmax.f32 %v7571, 0.0
    %v7576 = vmax.f32 %v7572, 0.0
    %v7577 = vmax.f32 %v7573, 0.0
    %v7578 = vmax.f32 %v7574, 0.0
    %v7579 = vmax.f32 %v7575, %v7576
    %v7580 = vmax.f32 %v7577, %v7578
    %v7583 = vrot.slane %v7579, 1
    %v7584 = vrot.slane %v7580, 1
    %v7587 = vmax.f32 %v7579, %v7583
    %v7588 = vmax.f32 %v7580, %v7584
    %7589 = vst.msk [vmem:[#allocation10] sm:$0x1] %vm4707, %v7587
    %7590 = vst.msk [vmem:[#allocation10 + $0x1] sm:$0x1] %vm4707, %v7588
    // Predicated region
    $region54: #{quicdraw_cnn_forward.1} parent=1 // pred_check
      _
    $region55: #{quicdraw_cnn_forward.1} parent=1 // pred_check_branch
      %7592 = sbr.rel (0) target = $region57
    $region56: #{quicdraw_cnn_forward.1} parent=1 // pred_region
      %s7594 = ssub.s32 32, 32
      %7595 = vsyncadd [#allocation11], %s7594
      %s7596 = sshll.u32 [#allocation10], 4
      %s7597 = int_to_ptr.vmem [resolvable:$true] %s7596
      %7602 = dma.vmem_to_hbm [thread:$0]  %s7597, 32, %s13, [#allocation11], 16, 16, 1
    $region57: #{quicdraw_cnn_forward.1} parent=1 // pred_fallthru
      _
    // Predicated region
    $region58: #{quicdraw_cnn_forward.1} parent=1 // pred_check
      _
    $region59: #{quicdraw_cnn_forward.1} parent=1 // pred_check_branch
      %7604 = sbr.rel (0) target = $region61
    $region60: #{quicdraw_cnn_forward.1} parent=1 // pred_region
      %7605 = dma.done [#allocation11], 32
    $region61: #{quicdraw_cnn_forward.1} parent=1 // pred_fallthru
      _
    %7606 = vsyncpa [#allocation11], 1

</llo_original>
